<compile_context>
chip_gen: v6e
topology: v6e:2x2x1
jax: 0.10.0
libtpu: 0.0.40
codegen_flags: <defaults>
</compile_context>

<pallas_src>
import numpy as np
from functools import partial

import jax
import jax.numpy as jnp
from jax import lax
from jax.experimental import pallas as pl
from jax.experimental.pallas import tpu as pltpu


# ---------------------------------------------------------------------------
# Single fused kernel: BiGRU layer 0 -> BiGRU layer 1 -> attention -> head
# ---------------------------------------------------------------------------
def _fused_gru_attn_kernel(x_ref, mask_ref, pool_ref,
                           wih0_ref, bih0_ref, whh0_ref, bhh0_ref,
                           wih1_ref, bih1_ref, whh1_ref, bhh1_ref,
                           wt_ref, bt_ref, wl_ref, bl_ref, wf_ref, bf_ref,
                           logp_ref, alpha_ref, emo_ref,
                           gx_sc, x1_sc):
    f32 = jnp.float32
    SB, seq = pool_ref.shape
    batch = SB // seq
    twoH = emo_ref.shape[1]
    H = twoH // 2

    # lanes [0, H) carry the forward direction, lanes [H, 2H) the backward one
    lane = lax.broadcasted_iota(jnp.int32, (batch, twoH), 1)
    fwd_lanes = lane < H

    def bigru_layer(x_mat, wih_ref, bih_ref, whh_ref, bhh_ref, out_ref):
        # --- hoisted input projection: one matmul per gate, all timesteps ---
        for g in range(3):
            gx_sc[g] = (jnp.dot(x_mat, wih_ref[g],
                                preferred_element_type=f32) + bih_ref[g])
        whh = [whh_ref[g] for g in range(3)]   # (2H, 2H) block-diag, hoisted
        bhh = [bhh_ref[g] for g in range(3)]   # (1, 2H)

        def gate_x(g, t, rt):
            # forward half reads time t, backward half reads time seq-1-t;
            # all indices are static (loop fully unrolled).
            return jnp.where(fwd_lanes,
                             gx_sc[g, pl.ds(t * batch, batch), :],
                             gx_sc[g, pl.ds(rt * batch, batch), :])

        h = jnp.zeros((batch, twoH), f32)
        hs = []
        for t in range(seq):                   # serial GRU recurrence
            rt = seq - 1 - t
            ghr = jnp.dot(h, whh[0], preferred_element_type=f32) + bhh[0]
            ghz = jnp.dot(h, whh[1], preferred_element_type=f32) + bhh[1]
            ghn = jnp.dot(h, whh[2], preferred_element_type=f32) + bhh[2]
            r = jax.nn.sigmoid(gate_x(0, t, rt) + ghr)
            z = jax.nn.sigmoid(gate_x(1, t, rt) + ghz)
            n = jnp.tanh(gate_x(2, t, rt) + r * ghn)
            h = (1.0 - z) * n + z * h
            hs.append(h)

        # epilogue (off the serial chain): realign the backward half in time
        # and store rows ordered t*batch + b.
        for t in range(seq):
            out_ref[pl.ds(t * batch, batch), :] = jnp.where(
                fwd_lanes, hs[t], hs[seq - 1 - t])

    bigru_layer(x_ref[...], wih0_ref, bih0_ref, whh0_ref, bhh0_ref, x1_sc)
    bigru_layer(x1_sc[...], wih1_ref, bih1_ref, whh1_ref, bhh1_ref, emo_ref)
    em = emo_ref[...]                          # (SB, 2H), stays in VMEM

    # ---- MatchingAttention('general2'), all (t, b) query pairs at once -----
    mfull = mask_ref[...]                      # (SB, SB): same-batch * umask_s
    xt = jnp.dot(em, wt_ref[...], preferred_element_type=f32) + bt_ref[...]
    scores = lax.dot_general(xt, em, (((1,), (1,)), ((), ())),
                             preferred_element_type=f32)          # (SB, SB)
    a = jnp.tanh(scores * mfull)
    # masked softmax + renormalisation (the shared max/denominator cancel, so
    # this is exactly the reference softmax->mask->renorm for a binary mask).
    a = a - jnp.max(a, axis=-1, keepdims=True)
    p = jnp.exp(a) * mfull
    alpha_flat = p / jnp.sum(p, axis=-1, keepdims=True)           # (SB, SB)
    att = jnp.dot(alpha_flat, em, preferred_element_type=f32)     # (SB, 2H)

    # ---- classifier head: ReLU(linear) -> (dropout==id) -> fc -> log_softmax
    hid = jnp.maximum(
        jnp.dot(att, wl_ref[...], preferred_element_type=f32) + bl_ref[...], 0.0)
    logits = jnp.dot(hid, wf_ref[...], preferred_element_type=f32) + bf_ref[...]
    m = jnp.max(logits, axis=-1, keepdims=True)
    lse = m + jnp.log(jnp.sum(jnp.exp(logits - m), axis=-1, keepdims=True))
    logp_ref[...] = (logits - lse).astype(logp_ref.dtype)
    # fold the (zero) cross-batch columns: alpha[t*B+b, s] = sum_b' flat[., s*B+b']
    alpha_ref[...] = jnp.dot(alpha_flat, pool_ref[...],
                             preferred_element_type=f32).astype(alpha_ref.dtype)


# ---------------------------------------------------------------------------
# Wrapper (jitted): input prep + single pallas_call + free output reshapes
# ---------------------------------------------------------------------------
@partial(jax.jit, static_argnames=("att2",))
def gru_model_forward(U, qmask, umask, kp, att2=True):
    """U: (seq, batch, D_m); umask: (batch, seq).  Returns
    (log_prob, alpha, alpha_f, alpha_b, emotions) like the PyTorch module."""
    del qmask                      # unused by the reference forward
    # TODO(synk): only the att2=True branch is implemented (the default path).
    seq, batch, D_m = U.shape
    SB = seq * batch
    twoH = kp['whh0'].shape[1]
    n_classes = kp['wf'].shape[1]

    x2d = U.reshape(SB, D_m)       # row = t*batch + b (free row-major reshape)

    # same-batch mask * umask over memory positions, flattened to (SB, SB)
    bid = jnp.arange(SB, dtype=jnp.int32) % batch
    same = (bid[:, None] == bid[None, :]).astype(jnp.float32)
    umask_cols = jnp.transpose(umask).reshape(1, SB)   # [0, s*B+b] = umask[b, s]
    attn_mask = same * umask_cols
    # constant pooling matrix: pool[s*B+b, s] = 1
    sid = jnp.arange(SB, dtype=jnp.int32) // batch
    pool_mat = (sid[:, None] ==
                jnp.arange(seq, dtype=jnp.int32)[None, :]).astype(jnp.float32)

    logp_flat, alpha_flat, emo_flat = pl.pallas_call(
        _fused_gru_attn_kernel,
        out_shape=(
            jax.ShapeDtypeStruct((SB, n_classes), jnp.float32),
            jax.ShapeDtypeStruct((SB, seq), jnp.float32),
            jax.ShapeDtypeStruct((SB, twoH), jnp.float32),
        ),
        scratch_shapes=[pltpu.VMEM((3, SB, twoH), jnp.float32),   # gate inputs
                        pltpu.VMEM((SB, twoH), jnp.float32)],     # layer-0 out
    )(x2d, attn_mask, pool_mat,
      kp['wih0'], kp['bih0'], kp['whh0'], kp['bhh0'],
      kp['wih1'], kp['bih1'], kp['whh1'], kp['bhh1'],
      kp['wt'], kp['bt'], kp['wl'], kp['bl'], kp['wf'], kp['bf'])

    log_prob = logp_flat.reshape(seq, batch, n_classes)
    alpha = alpha_flat.reshape(seq, batch, seq)
    emotions = emo_flat.reshape(seq, batch, twoH)
    return log_prob, alpha, [], [], emotions


# ---------------------------------------------------------------------------
# Repack natural per-direction GRU weights into the fused-kernel layout.
#   Per gate g in (r, z, n):
#     W_ih -> (3, in, 2H)   lane-concat [fwd | bwd]
#     W_hh -> (3, 2H, 2H)   block-diagonal (fwd block, bwd block)
#     b_*  -> (3, 1, 2H)    lane-concat [fwd | bwd]
# ---------------------------------------------------------------------------
def pack_params(p, D_e):
    H = D_e

    def gate_cat(w):              # (2, in, 3H) -> (3, in, 2H)
        return jnp.stack(
            [jnp.concatenate([w[0][:, g * H:(g + 1) * H],
                              w[1][:, g * H:(g + 1) * H]], axis=1)
             for g in range(3)], axis=0)

    def gate_blockdiag(w):        # (2, H, 3H) -> (3, 2H, 2H)
        z = jnp.zeros((H, H), w.dtype)
        mats = []
        for g in range(3):
            a = w[0][:, g * H:(g + 1) * H]
            b = w[1][:, g * H:(g + 1) * H]
            mats.append(jnp.concatenate(
                [jnp.concatenate([a, z], axis=1),
                 jnp.concatenate([z, b], axis=1)], axis=0))
        return jnp.stack(mats, axis=0)

    kp = {}
    for l in ('0', '1'):
        kp[f'wih{l}'] = gate_cat(p[f'w_ih_{l}'])
        kp[f'bih{l}'] = gate_cat(p[f'b_ih_{l}'])
        kp[f'whh{l}'] = gate_blockdiag(p[f'w_hh_{l}'])
        kp[f'bhh{l}'] = gate_cat(p[f'b_hh_{l}'])
    for k in ('wt', 'bt', 'wl', 'bl', 'wf', 'bf'):
        kp[k] = p[k]
    return kp


# ---------------------------------------------------------------------------
# Pure-JAX reference (for correctness check)
# ---------------------------------------------------------------------------
def forward_ref(U, umask, p):
    def layer(x, w_ih, w_hh, b_ih, b_hh, reverse=False):
        if reverse:
            x = x[::-1]
        H = w_hh.shape[0]
        B = x.shape[1]

        def step(h, x_t):
            gi = x_t @ w_ih + b_ih
            gh = h @ w_hh + b_hh
            r = jax.nn.sigmoid(gi[:, :H] + gh[:, :H])
            z = jax.nn.sigmoid(gi[:, H:2 * H] + gh[:, H:2 * H])
            n = jnp.tanh(gi[:, 2 * H:] + r * gh[:, 2 * H:])
            h = (1.0 - z) * n + z * h
            return h, h

        _, hs = lax.scan(step, jnp.zeros((B, H)), x)
        if reverse:
            hs = hs[::-1]
        return hs

    def bilayer(x, w_ih, w_hh, b_ih, b_hh):
        f = layer(x, w_ih[0], w_hh[0], b_ih[0], b_hh[0], False)
        b = layer(x, w_ih[1], w_hh[1], b_ih[1], b_hh[1], True)
        return jnp.concatenate([f, b], -1)

    h0 = bilayer(U, p['w_ih_0'], p['w_hh_0'], p['b_ih_0'], p['b_hh_0'])
    em = bilayer(h0, p['w_ih_1'], p['w_hh_1'], p['b_ih_1'], p['b_hh_1'])

    # faithful 'general2' attention (double-masked, exactly like PyTorch)
    xt = jnp.einsum('tbd,de->tbe', em, p['wt']) + p['bt']
    Mm = em * jnp.transpose(umask)[:, :, None]
    scores = jnp.tanh(jnp.einsum('tbd,sbd->bts', xt, Mm) * umask[:, None, :])
    a = jax.nn.softmax(scores, axis=-1) * umask[:, None, :]
    a = a / jnp.sum(a, axis=-1, keepdims=True)
    att = jnp.einsum('bts,sbd->tbd', a, em)
    hid = jax.nn.relu(jnp.einsum('tbd,dh->tbh', att, p['wl']) + p['bl'])
    logits = jnp.einsum('tbh,hc->tbc', hid, p['wf']) + p['bf']
    logp = jax.nn.log_softmax(logits, axis=-1)
    alpha = jnp.transpose(a, (1, 0, 2))
    return logp, alpha, em


# ---------------------------------------------------------------------------
# Deterministic parameter init (natural layout: PyTorch weights transposed,
# gate order r, z, n; direction-stacked [fwd, bwd]).
# ---------------------------------------------------------------------------
def init_params(key, D_m, D_e, D_h, n_classes):
    mem = 2 * D_e
    keys = iter(jax.random.split(key, 64))

    def w(shape, scale=0.1):
        return (scale * jax.random.normal(next(keys), shape)).astype(jnp.float32)

    p = {}
    for lname, in_dim in [('0', D_m), ('1', mem)]:
        p[f'w_ih_{lname}'] = w((2, in_dim, 3 * D_e))
        p[f'w_hh_{lname}'] = w((2, D_e, 3 * D_e))
        p[f'b_ih_{lname}'] = w((2, 1, 3 * D_e))
        p[f'b_hh_{lname}'] = w((2, 1, 3 * D_e))
    p['wt'] = w((mem, mem)); p['bt'] = w((1, mem))              # matchatt.transform
    p['wl'] = w((mem, D_h)); p['bl'] = w((1, D_h))              # self.linear
    p['wf'] = w((D_h, n_classes)); p['bf'] = w((1, n_classes))  # self.smax_fc
    return p


if __name__ == "__main__":
    seq_len, batch = 8, 2
    D_m, D_e, D_h, n_classes, n_party = 16, 32, 32, 7, 2

    key = jax.random.PRNGKey(0)
    k_u, k_q, k_p = jax.random.split(key, 3)

    U = jax.random.normal(k_u, (seq_len, batch, D_m), jnp.float32)
    qmask = jax.nn.one_hot(
        jax.random.randint(k_q, (seq_len, batch), 0, n_party), n_party,
        dtype=jnp.float32)
    umask = jnp.ones((batch, seq_len), jnp.float32).at[1, 6:].set(0.0)  # padding
    params = init_params(k_p, D_m, D_e, D_h, n_classes)
    kparams = pack_params(params, D_e)

    log_prob, alpha, alpha_f, alpha_b, emotions = jax.block_until_ready(
        gru_model_forward(U, qmask, umask, kparams))

    # correctness check against a pure-JAX reference
    with jax.default_matmul_precision("float32"):
        logp_ref, alpha_ref, em_ref = jax.block_until_ready(
            forward_ref(U, umask, params))

    np.testing.assert_allclose(np.asarray(emotions), np.asarray(em_ref),
                               rtol=2e-3, atol=2e-3)
    np.testing.assert_allclose(np.asarray(alpha), np.asarray(alpha_ref),
                               rtol=2e-3, atol=2e-3)
    np.testing.assert_allclose(np.asarray(log_prob), np.asarray(logp_ref),
                               rtol=2e-3, atol=2e-3)

    assert log_prob.shape == (seq_len, batch, n_classes)
    assert emotions.shape == (seq_len, batch, 2 * D_e)
    assert alpha.shape == (seq_len, batch, seq_len)

    print("KERNEL_OK")
</pallas_src>

<mosaic_0001>
module attributes {stable_mosaic.version = 11 : i64} {
  func.func @_fused_gru_attn_kernel(%arg0: memref<16x16xf32, #tpu.memory_space<vmem>>, %arg1: memref<16x16xf32, #tpu.memory_space<vmem>>, %arg2: memref<16x8xf32, #tpu.memory_space<vmem>>, %arg3: memref<3x16x64xf32, #tpu.memory_space<vmem>>, %arg4: memref<3x1x64xf32, #tpu.memory_space<vmem>>, %arg5: memref<3x64x64xf32, #tpu.memory_space<vmem>>, %arg6: memref<3x1x64xf32, #tpu.memory_space<vmem>>, %arg7: memref<3x64x64xf32, #tpu.memory_space<vmem>>, %arg8: memref<3x1x64xf32, #tpu.memory_space<vmem>>, %arg9: memref<3x64x64xf32, #tpu.memory_space<vmem>>, %arg10: memref<3x1x64xf32, #tpu.memory_space<vmem>>, %arg11: memref<64x64xf32, #tpu.memory_space<vmem>>, %arg12: memref<1x64xf32, #tpu.memory_space<vmem>>, %arg13: memref<64x32xf32, #tpu.memory_space<vmem>>, %arg14: memref<1x32xf32, #tpu.memory_space<vmem>>, %arg15: memref<32x7xf32, #tpu.memory_space<vmem>>, %arg16: memref<1x7xf32, #tpu.memory_space<vmem>>, %arg17: memref<16x7xf32, #tpu.memory_space<vmem>>, %arg18: memref<16x8xf32, #tpu.memory_space<vmem>>, %arg19: memref<16x64xf32, #tpu.memory_space<vmem>>, %arg20: memref<3x16x64xf32, #tpu.memory_space<vmem>>, %arg21: memref<16x64xf32, #tpu.memory_space<vmem>>) attributes {dimension_semantics = [], scalar_prefetch = 0 : i64, scratch_operands = 2 : i64, tpu.core_type = #tpu.core_type<tc>} {
    %0 = tpu.iota {dimensions = array<i32: 1>} : vector<2x64xi32>
    %c32_i32 = arith.constant 32 : i32
    %1 = vector.broadcast %c32_i32 : i32 to vector<2x64xi32>
    %2 = arith.cmpi slt, %0, %1 : vector<2x64xi32>
    %c0 = arith.constant 0 : index
    %c0_0 = arith.constant 0 : index
    %3 = vector.load %arg0[%c0, %c0_0] : memref<16x16xf32, #tpu.memory_space<vmem>>, vector<16x16xf32>
    %c0_1 = arith.constant 0 : index
    %c0_2 = arith.constant 0 : index
    %c0_3 = arith.constant 0 : index
    %4 = vector.load %arg3[%c0_1, %c0_2, %c0_3] : memref<3x16x64xf32, #tpu.memory_space<vmem>>, vector<1x16x64xf32>
    %5 = vector.shape_cast %4 : vector<1x16x64xf32> to vector<16x64xf32>
    %cst = arith.constant dense<0.000000e+00> : vector<16x64xf32>
    %6 = tpu.matmul %3, %5, %cst {dimension_numbers = #tpu.dot_dimension_numbers<[1], [0], [0], [1], [0, 0, 1, 1], [], []>} : vector<16x16xf32>, vector<16x64xf32>, vector<16x64xf32> -> vector<16x64xf32>
    %c0_4 = arith.constant 0 : index
    %c0_5 = arith.constant 0 : index
    %c0_6 = arith.constant 0 : index
    %7 = vector.load %arg4[%c0_4, %c0_5, %c0_6] : memref<3x1x64xf32, #tpu.memory_space<vmem>>, vector<1x1x64xf32>
    %8 = vector.shape_cast %7 : vector<1x1x64xf32> to vector<1x64xf32>
    %9 = vector.broadcast %8 : vector<1x64xf32> to vector<16x64xf32>
    %10 = arith.addf %6, %9 : vector<16x64xf32>
    %c0_7 = arith.constant 0 : index
    %c0_8 = arith.constant 0 : index
    %c0_9 = arith.constant 0 : index
    %11 = vector.load %arg20[%c0_7, %c0_8, %c0_9] : memref<3x16x64xf32, #tpu.memory_space<vmem>>, vector<1x16x64xf32>
    %12 = vector.shape_cast %11 : vector<1x16x64xf32> to vector<16x64xf32>
    %13 = vector.shape_cast %10 : vector<16x64xf32> to vector<1x16x64xf32>
    tpu.vector_store %arg20[%c0_7, %c0_8, %c0_9], %13 {strides = array<i32>} : memref<3x16x64xf32, #tpu.memory_space<vmem>>, vector<1x16x64xf32>,
    %c1 = arith.constant 1 : index
    %c0_10 = arith.constant 0 : index
    %c0_11 = arith.constant 0 : index
    %14 = vector.load %arg3[%c1, %c0_10, %c0_11] : memref<3x16x64xf32, #tpu.memory_space<vmem>>, vector<1x16x64xf32>
    %15 = vector.shape_cast %14 : vector<1x16x64xf32> to vector<16x64xf32>
    %cst_12 = arith.constant dense<0.000000e+00> : vector<16x64xf32>
    %16 = tpu.matmul %3, %15, %cst_12 {dimension_numbers = #tpu.dot_dimension_numbers<[1], [0], [0], [1], [0, 0, 1, 1], [], []>} : vector<16x16xf32>, vector<16x64xf32>, vector<16x64xf32> -> vector<16x64xf32>
    %c1_13 = arith.constant 1 : index
    %c0_14 = arith.constant 0 : index
    %c0_15 = arith.constant 0 : index
    %17 = vector.load %arg4[%c1_13, %c0_14, %c0_15] : memref<3x1x64xf32, #tpu.memory_space<vmem>>, vector<1x1x64xf32>
    %18 = vector.shape_cast %17 : vector<1x1x64xf32> to vector<1x64xf32>
    %19 = vector.broadcast %18 : vector<1x64xf32> to vector<16x64xf32>
    %20 = arith.addf %16, %19 : vector<16x64xf32>
    %c1_16 = arith.constant 1 : index
    %c0_17 = arith.constant 0 : index
    %c0_18 = arith.constant 0 : index
    %21 = vector.load %arg20[%c1_16, %c0_17, %c0_18] : memref<3x16x64xf32, #tpu.memory_space<vmem>>, vector<1x16x64xf32>
    %22 = vector.shape_cast %21 : vector<1x16x64xf32> to vector<16x64xf32>
    %23 = vector.shape_cast %20 : vector<16x64xf32> to vector<1x16x64xf32>
    tpu.vector_store %arg20[%c1_16, %c0_17, %c0_18], %23 {strides = array<i32>} : memref<3x16x64xf32, #tpu.memory_space<vmem>>, vector<1x16x64xf32>,
    %c2 = arith.constant 2 : index
    %c0_19 = arith.constant 0 : index
    %c0_20 = arith.constant 0 : index
    %24 = vector.load %arg3[%c2, %c0_19, %c0_20] : memref<3x16x64xf32, #tpu.memory_space<vmem>>, vector<1x16x64xf32>
    %25 = vector.shape_cast %24 : vector<1x16x64xf32> to vector<16x64xf32>
    %cst_21 = arith.constant dense<0.000000e+00> : vector<16x64xf32>
    %26 = tpu.matmul %3, %25, %cst_21 {dimension_numbers = #tpu.dot_dimension_numbers<[1], [0], [0], [1], [0, 0, 1, 1], [], []>} : vector<16x16xf32>, vector<16x64xf32>, vector<16x64xf32> -> vector<16x64xf32>
    %c2_22 = arith.constant 2 : index
    %c0_23 = arith.constant 0 : index
    %c0_24 = arith.constant 0 : index
    %27 = vector.load %arg4[%c2_22, %c0_23, %c0_24] : memref<3x1x64xf32, #tpu.memory_space<vmem>>, vector<1x1x64xf32>
    %28 = vector.shape_cast %27 : vector<1x1x64xf32> to vector<1x64xf32>
    %29 = vector.broadcast %28 : vector<1x64xf32> to vector<16x64xf32>
    %30 = arith.addf %26, %29 : vector<16x64xf32>
    %c2_25 = arith.constant 2 : index
    %c0_26 = arith.constant 0 : index
    %c0_27 = arith.constant 0 : index
    %31 = vector.load %arg20[%c2_25, %c0_26, %c0_27] : memref<3x16x64xf32, #tpu.memory_space<vmem>>, vector<1x16x64xf32>
    %32 = vector.shape_cast %31 : vector<1x16x64xf32> to vector<16x64xf32>
    %33 = vector.shape_cast %30 : vector<16x64xf32> to vector<1x16x64xf32>
    tpu.vector_store %arg20[%c2_25, %c0_26, %c0_27], %33 {strides = array<i32>} : memref<3x16x64xf32, #tpu.memory_space<vmem>>, vector<1x16x64xf32>,
    %c0_28 = arith.constant 0 : index
    %c0_29 = arith.constant 0 : index
    %c0_30 = arith.constant 0 : index
    %34 = vector.load %arg5[%c0_28, %c0_29, %c0_30] : memref<3x64x64xf32, #tpu.memory_space<vmem>>, vector<1x64x64xf32>
    %35 = vector.shape_cast %34 : vector<1x64x64xf32> to vector<64x64xf32>
    %c1_31 = arith.constant 1 : index
    %c0_32 = arith.constant 0 : index
    %c0_33 = arith.constant 0 : index
    %36 = vector.load %arg5[%c1_31, %c0_32, %c0_33] : memref<3x64x64xf32, #tpu.memory_space<vmem>>, vector<1x64x64xf32>
    %37 = vector.shape_cast %36 : vector<1x64x64xf32> to vector<64x64xf32>
    %c2_34 = arith.constant 2 : index
    %c0_35 = arith.constant 0 : index
    %c0_36 = arith.constant 0 : index
    %38 = vector.load %arg5[%c2_34, %c0_35, %c0_36] : memref<3x64x64xf32, #tpu.memory_space<vmem>>, vector<1x64x64xf32>
    %39 = vector.shape_cast %38 : vector<1x64x64xf32> to vector<64x64xf32>
    %c0_37 = arith.constant 0 : index
    %c0_38 = arith.constant 0 : index
    %c0_39 = arith.constant 0 : index
    %40 = vector.load %arg6[%c0_37, %c0_38, %c0_39] : memref<3x1x64xf32, #tpu.memory_space<vmem>>, vector<1x1x64xf32>
    %41 = vector.shape_cast %40 : vector<1x1x64xf32> to vector<1x64xf32>
    %c1_40 = arith.constant 1 : index
    %c0_41 = arith.constant 0 : index
    %c0_42 = arith.constant 0 : index
    %42 = vector.load %arg6[%c1_40, %c0_41, %c0_42] : memref<3x1x64xf32, #tpu.memory_space<vmem>>, vector<1x1x64xf32>
    %43 = vector.shape_cast %42 : vector<1x1x64xf32> to vector<1x64xf32>
    %c2_43 = arith.constant 2 : index
    %c0_44 = arith.constant 0 : index
    %c0_45 = arith.constant 0 : index
    %44 = vector.load %arg6[%c2_43, %c0_44, %c0_45] : memref<3x1x64xf32, #tpu.memory_space<vmem>>, vector<1x1x64xf32>
    %45 = vector.shape_cast %44 : vector<1x1x64xf32> to vector<1x64xf32>
    %cst_46 = arith.constant 0.000000e+00 : f32
    %46 = vector.broadcast %cst_46 : f32 to vector<2x64xf32>
    %cst_47 = arith.constant dense<0.000000e+00> : vector<2x64xf32>
    %47 = tpu.matmul %46, %35, %cst_47 {dimension_numbers = #tpu.dot_dimension_numbers<[1], [0], [0], [1], [0, 0, 1, 1], [], []>} : vector<2x64xf32>, vector<64x64xf32>, vector<2x64xf32> -> vector<2x64xf32>
    %48 = vector.broadcast %41 : vector<1x64xf32> to vector<2x64xf32>
    %49 = arith.addf %47, %48 : vector<2x64xf32>
    %cst_48 = arith.constant dense<0.000000e+00> : vector<2x64xf32>
    %50 = tpu.matmul %46, %37, %cst_48 {dimension_numbers = #tpu.dot_dimension_numbers<[1], [0], [0], [1], [0, 0, 1, 1], [], []>} : vector<2x64xf32>, vector<64x64xf32>, vector<2x64xf32> -> vector<2x64xf32>
    %51 = vector.broadcast %43 : vector<1x64xf32> to vector<2x64xf32>
    %52 = arith.addf %50, %51 : vector<2x64xf32>
    %cst_49 = arith.constant dense<0.000000e+00> : vector<2x64xf32>
    %53 = tpu.matmul %46, %39, %cst_49 {dimension_numbers = #tpu.dot_dimension_numbers<[1], [0], [0], [1], [0, 0, 1, 1], [], []>} : vector<2x64xf32>, vector<64x64xf32>, vector<2x64xf32> -> vector<2x64xf32>
    %54 = vector.broadcast %45 : vector<1x64xf32> to vector<2x64xf32>
    %55 = arith.addf %53, %54 : vector<2x64xf32>
    %c0_50 = arith.constant 0 : index
    %c0_51 = arith.constant 0 : index
    %c0_52 = arith.constant 0 : index
    %56 = vector.load %arg20[%c0_50, %c0_51, %c0_52] : memref<3x16x64xf32, #tpu.memory_space<vmem>>, vector<1x2x64xf32>
    %57 = vector.shape_cast %56 : vector<1x2x64xf32> to vector<2x64xf32>
    %c0_53 = arith.constant 0 : index
    %c14 = arith.constant 14 : index
    %c0_54 = arith.constant 0 : index
    %58 = vector.load %arg20[%c0_53, %c14, %c0_54] : memref<3x16x64xf32, #tpu.memory_space<vmem>>, vector<1x2x64xf32>
    %59 = vector.shape_cast %58 : vector<1x2x64xf32> to vector<2x64xf32>
    %60 = arith.select %2, %57, %59 : vector<2x64xi1>, vector<2x64xf32>
    %61 = arith.addf %60, %49 : vector<2x64xf32>
    %62 = arith.negf %61 : vector<2x64xf32>
    %63 = math.exp %62 : vector<2x64xf32>
    %cst_55 = arith.constant 1.000000e+00 : f32
    %64 = vector.broadcast %cst_55 : f32 to vector<2x64xf32>
    %65 = arith.addf %64, %63 : vector<2x64xf32>
    %66 = arith.divf %64, %65 : vector<2x64xf32>
    %c1_56 = arith.constant 1 : index
    %c0_57 = arith.constant 0 : index
    %c0_58 = arith.constant 0 : index
    %67 = vector.load %arg20[%c1_56, %c0_57, %c0_58] : memref<3x16x64xf32, #tpu.memory_space<vmem>>, vector<1x2x64xf32>
    %68 = vector.shape_cast %67 : vector<1x2x64xf32> to vector<2x64xf32>
    %c1_59 = arith.constant 1 : index
    %c14_60 = arith.constant 14 : index
    %c0_61 = arith.constant 0 : index
    %69 = vector.load %arg20[%c1_59, %c14_60, %c0_61] : memref<3x16x64xf32, #tpu.memory_space<vmem>>, vector<1x2x64xf32>
    %70 = vector.shape_cast %69 : vector<1x2x64xf32> to vector<2x64xf32>
    %71 = arith.select %2, %68, %70 : vector<2x64xi1>, vector<2x64xf32>
    %72 = arith.addf %71, %52 : vector<2x64xf32>
    %73 = arith.negf %72 : vector<2x64xf32>
    %74 = math.exp %73 : vector<2x64xf32>
    %cst_62 = arith.constant 1.000000e+00 : f32
    %75 = vector.broadcast %cst_62 : f32 to vector<2x64xf32>
    %76 = arith.addf %75, %74 : vector<2x64xf32>
    %77 = arith.divf %75, %76 : vector<2x64xf32>
    %c2_63 = arith.constant 2 : index
    %c0_64 = arith.constant 0 : index
    %c0_65 = arith.constant 0 : index
    %78 = vector.load %arg20[%c2_63, %c0_64, %c0_65] : memref<3x16x64xf32, #tpu.memory_space<vmem>>, vector<1x2x64xf32>
    %79 = vector.shape_cast %78 : vector<1x2x64xf32> to vector<2x64xf32>
    %c2_66 = arith.constant 2 : index
    %c14_67 = arith.constant 14 : index
    %c0_68 = arith.constant 0 : index
    %80 = vector.load %arg20[%c2_66, %c14_67, %c0_68] : memref<3x16x64xf32, #tpu.memory_space<vmem>>, vector<1x2x64xf32>
    %81 = vector.shape_cast %80 : vector<1x2x64xf32> to vector<2x64xf32>
    %82 = arith.select %2, %79, %81 : vector<2x64xi1>, vector<2x64xf32>
    %83 = arith.mulf %66, %55 : vector<2x64xf32>
    %84 = arith.addf %82, %83 : vector<2x64xf32>
    %85 = math.tanh %84 : vector<2x64xf32>
    %cst_69 = arith.constant 1.000000e+00 : f32
    %86 = vector.broadcast %cst_69 : f32 to vector<2x64xf32>
    %87 = arith.subf %86, %77 : vector<2x64xf32>
    %88 = arith.mulf %87, %85 : vector<2x64xf32>
    %89 = arith.mulf %77, %46 : vector<2x64xf32>
    %90 = arith.addf %88, %89 : vector<2x64xf32>
    %cst_70 = arith.constant dense<0.000000e+00> : vector<2x64xf32>
    %91 = tpu.matmul %90, %35, %cst_70 {dimension_numbers = #tpu.dot_dimension_numbers<[1], [0], [0], [1], [0, 0, 1, 1], [], []>} : vector<2x64xf32>, vector<64x64xf32>, vector<2x64xf32> -> vector<2x64xf32>
    %92 = vector.broadcast %41 : vector<1x64xf32> to vector<2x64xf32>
    %93 = arith.addf %91, %92 : vector<2x64xf32>
    %cst_71 = arith.constant dense<0.000000e+00> : vector<2x64xf32>
    %94 = tpu.matmul %90, %37, %cst_71 {dimension_numbers = #tpu.dot_dimension_numbers<[1], [0], [0], [1], [0, 0, 1, 1], [], []>} : vector<2x64xf32>, vector<64x64xf32>, vector<2x64xf32> -> vector<2x64xf32>
    %95 = vector.broadcast %43 : vector<1x64xf32> to vector<2x64xf32>
    %96 = arith.addf %94, %95 : vector<2x64xf32>
    %cst_72 = arith.constant dense<0.000000e+00> : vector<2x64xf32>
    %97 = tpu.matmul %90, %39, %cst_72 {dimension_numbers = #tpu.dot_dimension_numbers<[1], [0], [0], [1], [0, 0, 1, 1], [], []>} : vector<2x64xf32>, vector<64x64xf32>, vector<2x64xf32> -> vector<2x64xf32>
    %98 = vector.broadcast %45 : vector<1x64xf32> to vector<2x64xf32>
    %99 = arith.addf %97, %98 : vector<2x64xf32>
    %c0_73 = arith.constant 0 : index
    %c2_74 = arith.constant 2 : index
    %c0_75 = arith.constant 0 : index
    %100 = vector.load %arg20[%c0_73, %c2_74, %c0_75] : memref<3x16x64xf32, #tpu.memory_space<vmem>>, vector<1x2x64xf32>
    %101 = vector.shape_cast %100 : vector<1x2x64xf32> to vector<2x64xf32>
    %c0_76 = arith.constant 0 : index
    %c12 = arith.constant 12 : index
    %c0_77 = arith.constant 0 : index
    %102 = vector.load %arg20[%c0_76, %c12, %c0_77] : memref<3x16x64xf32, #tpu.memory_space<vmem>>, vector<1x2x64xf32>
    %103 = vector.shape_cast %102 : vector<1x2x64xf32> to vector<2x64xf32>
    %104 = arith.select %2, %101, %103 : vector<2x64xi1>, vector<2x64xf32>
    %105 = arith.addf %104, %93 : vector<2x64xf32>
    %106 = arith.negf %105 : vector<2x64xf32>
    %107 = math.exp %106 : vector<2x64xf32>
    %cst_78 = arith.constant 1.000000e+00 : f32
    %108 = vector.broadcast %cst_78 : f32 to vector<2x64xf32>
    %109 = arith.addf %108, %107 : vector<2x64xf32>
    %110 = arith.divf %108, %109 : vector<2x64xf32>
    %c1_79 = arith.constant 1 : index
    %c2_80 = arith.constant 2 : index
    %c0_81 = arith.constant 0 : index
    %111 = vector.load %arg20[%c1_79, %c2_80, %c0_81] : memref<3x16x64xf32, #tpu.memory_space<vmem>>, vector<1x2x64xf32>
    %112 = vector.shape_cast %111 : vector<1x2x64xf32> to vector<2x64xf32>
    %c1_82 = arith.constant 1 : index
    %c12_83 = arith.constant 12 : index
    %c0_84 = arith.constant 0 : index
    %113 = vector.load %arg20[%c1_82, %c12_83, %c0_84] : memref<3x16x64xf32, #tpu.memory_space<vmem>>, vector<1x2x64xf32>
    %114 = vector.shape_cast %113 : vector<1x2x64xf32> to vector<2x64xf32>
    %115 = arith.select %2, %112, %114 : vector<2x64xi1>, vector<2x64xf32>
    %116 = arith.addf %115, %96 : vector<2x64xf32>
    %117 = arith.negf %116 : vector<2x64xf32>
    %118 = math.exp %117 : vector<2x64xf32>
    %cst_85 = arith.constant 1.000000e+00 : f32
    %119 = vector.broadcast %cst_85 : f32 to vector<2x64xf32>
    %120 = arith.addf %119, %118 : vector<2x64xf32>
    %121 = arith.divf %119, %120 : vector<2x64xf32>
    %c2_86 = arith.constant 2 : index
    %c2_87 = arith.constant 2 : index
    %c0_88 = arith.constant 0 : index
    %122 = vector.load %arg20[%c2_86, %c2_87, %c0_88] : memref<3x16x64xf32, #tpu.memory_space<vmem>>, vector<1x2x64xf32>
    %123 = vector.shape_cast %122 : vector<1x2x64xf32> to vector<2x64xf32>
    %c2_89 = arith.constant 2 : index
    %c12_90 = arith.constant 12 : index
    %c0_91 = arith.constant 0 : index
    %124 = vector.load %arg20[%c2_89, %c12_90, %c0_91] : memref<3x16x64xf32, #tpu.memory_space<vmem>>, vector<1x2x64xf32>
    %125 = vector.shape_cast %124 : vector<1x2x64xf32> to vector<2x64xf32>
    %126 = arith.select %2, %123, %125 : vector<2x64xi1>, vector<2x64xf32>
    %127 = arith.mulf %110, %99 : vector<2x64xf32>
    %128 = arith.addf %126, %127 : vector<2x64xf32>
    %129 = math.tanh %128 : vector<2x64xf32>
    %cst_92 = arith.constant 1.000000e+00 : f32
    %130 = vector.broadcast %cst_92 : f32 to vector<2x64xf32>
    %131 = arith.subf %130, %121 : vector<2x64xf32>
    %132 = arith.mulf %131, %129 : vector<2x64xf32>
    %133 = arith.mulf %121, %90 : vector<2x64xf32>
    %134 = arith.addf %132, %133 : vector<2x64xf32>
    %cst_93 = arith.constant dense<0.000000e+00> : vector<2x64xf32>
    %135 = tpu.matmul %134, %35, %cst_93 {dimension_numbers = #tpu.dot_dimension_numbers<[1], [0], [0], [1], [0, 0, 1, 1], [], []>} : vector<2x64xf32>, vector<64x64xf32>, vector<2x64xf32> -> vector<2x64xf32>
    %136 = vector.broadcast %41 : vector<1x64xf32> to vector<2x64xf32>
    %137 = arith.addf %135, %136 : vector<2x64xf32>
    %cst_94 = arith.constant dense<0.000000e+00> : vector<2x64xf32>
    %138 = tpu.matmul %134, %37, %cst_94 {dimension_numbers = #tpu.dot_dimension_numbers<[1], [0], [0], [1], [0, 0, 1, 1], [], []>} : vector<2x64xf32>, vector<64x64xf32>, vector<2x64xf32> -> vector<2x64xf32>
    %139 = vector.broadcast %43 : vector<1x64xf32> to vector<2x64xf32>
    %140 = arith.addf %138, %139 : vector<2x64xf32>
    %cst_95 = arith.constant dense<0.000000e+00> : vector<2x64xf32>
    %141 = tpu.matmul %134, %39, %cst_95 {dimension_numbers = #tpu.dot_dimension_numbers<[1], [0], [0], [1], [0, 0, 1, 1], [], []>} : vector<2x64xf32>, vector<64x64xf32>, vector<2x64xf32> -> vector<2x64xf32>
    %142 = vector.broadcast %45 : vector<1x64xf32> to vector<2x64xf32>
    %143 = arith.addf %141, %142 : vector<2x64xf32>
    %c0_96 = arith.constant 0 : index
    %c4 = arith.constant 4 : index
    %c0_97 = arith.constant 0 : index
    %144 = vector.load %arg20[%c0_96, %c4, %c0_97] : memref<3x16x64xf32, #tpu.memory_space<vmem>>, vector<1x2x64xf32>
    %145 = vector.shape_cast %144 : vector<1x2x64xf32> to vector<2x64xf32>
    %c0_98 = arith.constant 0 : index
    %c10 = arith.constant 10 : index
    %c0_99 = arith.constant 0 : index
    %146 = vector.load %arg20[%c0_98, %c10, %c0_99] : memref<3x16x64xf32, #tpu.memory_space<vmem>>, vector<1x2x64xf32>
    %147 = vector.shape_cast %146 : vector<1x2x64xf32> to vector<2x64xf32>
    %148 = arith.select %2, %145, %147 : vector<2x64xi1>, vector<2x64xf32>
    %149 = arith.addf %148, %137 : vector<2x64xf32>
    %150 = arith.negf %149 : vector<2x64xf32>
    %151 = math.exp %150 : vector<2x64xf32>
    %cst_100 = arith.constant 1.000000e+00 : f32
    %152 = vector.broadcast %cst_100 : f32 to vector<2x64xf32>
    %153 = arith.addf %152, %151 : vector<2x64xf32>
    %154 = arith.divf %152, %153 : vector<2x64xf32>
    %c1_101 = arith.constant 1 : index
    %c4_102 = arith.constant 4 : index
    %c0_103 = arith.constant 0 : index
    %155 = vector.load %arg20[%c1_101, %c4_102, %c0_103] : memref<3x16x64xf32, #tpu.memory_space<vmem>>, vector<1x2x64xf32>
    %156 = vector.shape_cast %155 : vector<1x2x64xf32> to vector<2x64xf32>
    %c1_104 = arith.constant 1 : index
    %c10_105 = arith.constant 10 : index
    %c0_106 = arith.constant 0 : index
    %157 = vector.load %arg20[%c1_104, %c10_105, %c0_106] : memref<3x16x64xf32, #tpu.memory_space<vmem>>, vector<1x2x64xf32>
    %158 = vector.shape_cast %157 : vector<1x2x64xf32> to vector<2x64xf32>
    %159 = arith.select %2, %156, %158 : vector<2x64xi1>, vector<2x64xf32>
    %160 = arith.addf %159, %140 : vector<2x64xf32>
    %161 = arith.negf %160 : vector<2x64xf32>
    %162 = math.exp %161 : vector<2x64xf32>
    %cst_107 = arith.constant 1.000000e+00 : f32
    %163 = vector.broadcast %cst_107 : f32 to vector<2x64xf32>
    %164 = arith.addf %163, %162 : vector<2x64xf32>
    %165 = arith.divf %163, %164 : vector<2x64xf32>
    %c2_108 = arith.constant 2 : index
    %c4_109 = arith.constant 4 : index
    %c0_110 = arith.constant 0 : index
    %166 = vector.load %arg20[%c2_108, %c4_109, %c0_110] : memref<3x16x64xf32, #tpu.memory_space<vmem>>, vector<1x2x64xf32>
    %167 = vector.shape_cast %166 : vector<1x2x64xf32> to vector<2x64xf32>
    %c2_111 = arith.constant 2 : index
    %c10_112 = arith.constant 10 : index
    %c0_113 = arith.constant 0 : index
    %168 = vector.load %arg20[%c2_111, %c10_112, %c0_113] : memref<3x16x64xf32, #tpu.memory_space<vmem>>, vector<1x2x64xf32>
    %169 = vector.shape_cast %168 : vector<1x2x64xf32> to vector<2x64xf32>
    %170 = arith.select %2, %167, %169 : vector<2x64xi1>, vector<2x64xf32>
    %171 = arith.mulf %154, %143 : vector<2x64xf32>
    %172 = arith.addf %170, %171 : vector<2x64xf32>
    %173 = math.tanh %172 : vector<2x64xf32>
    %cst_114 = arith.constant 1.000000e+00 : f32
    %174 = vector.broadcast %cst_114 : f32 to vector<2x64xf32>
    %175 = arith.subf %174, %165 : vector<2x64xf32>
    %176 = arith.mulf %175, %173 : vector<2x64xf32>
    %177 = arith.mulf %165, %134 : vector<2x64xf32>
    %178 = arith.addf %176, %177 : vector<2x64xf32>
    %cst_115 = arith.constant dense<0.000000e+00> : vector<2x64xf32>
    %179 = tpu.matmul %178, %35, %cst_115 {dimension_numbers = #tpu.dot_dimension_numbers<[1], [0], [0], [1], [0, 0, 1, 1], [], []>} : vector<2x64xf32>, vector<64x64xf32>, vector<2x64xf32> -> vector<2x64xf32>
    %180 = vector.broadcast %41 : vector<1x64xf32> to vector<2x64xf32>
    %181 = arith.addf %179, %180 : vector<2x64xf32>
    %cst_116 = arith.constant dense<0.000000e+00> : vector<2x64xf32>
    %182 = tpu.matmul %178, %37, %cst_116 {dimension_numbers = #tpu.dot_dimension_numbers<[1], [0], [0], [1], [0, 0, 1, 1], [], []>} : vector<2x64xf32>, vector<64x64xf32>, vector<2x64xf32> -> vector<2x64xf32>
    %183 = vector.broadcast %43 : vector<1x64xf32> to vector<2x64xf32>
    %184 = arith.addf %182, %183 : vector<2x64xf32>
    %cst_117 = arith.constant dense<0.000000e+00> : vector<2x64xf32>
    %185 = tpu.matmul %178, %39, %cst_117 {dimension_numbers = #tpu.dot_dimension_numbers<[1], [0], [0], [1], [0, 0, 1, 1], [], []>} : vector<2x64xf32>, vector<64x64xf32>, vector<2x64xf32> -> vector<2x64xf32>
    %186 = vector.broadcast %45 : vector<1x64xf32> to vector<2x64xf32>
    %187 = arith.addf %185, %186 : vector<2x64xf32>
    %c0_118 = arith.constant 0 : index
    %c6 = arith.constant 6 : index
    %c0_119 = arith.constant 0 : index
    %188 = vector.load %arg20[%c0_118, %c6, %c0_119] : memref<3x16x64xf32, #tpu.memory_space<vmem>>, vector<1x2x64xf32>
    %189 = vector.shape_cast %188 : vector<1x2x64xf32> to vector<2x64xf32>
    %c0_120 = arith.constant 0 : index
    %c8 = arith.constant 8 : index
    %c0_121 = arith.constant 0 : index
    %190 = vector.load %arg20[%c0_120, %c8, %c0_121] : memref<3x16x64xf32, #tpu.memory_space<vmem>>, vector<1x2x64xf32>
    %191 = vector.shape_cast %190 : vector<1x2x64xf32> to vector<2x64xf32>
    %192 = arith.select %2, %189, %191 : vector<2x64xi1>, vector<2x64xf32>
    %193 = arith.addf %192, %181 : vector<2x64xf32>
    %194 = arith.negf %193 : vector<2x64xf32>
    %195 = math.exp %194 : vector<2x64xf32>
    %cst_122 = arith.constant 1.000000e+00 : f32
    %196 = vector.broadcast %cst_122 : f32 to vector<2x64xf32>
    %197 = arith.addf %196, %195 : vector<2x64xf32>
    %198 = arith.divf %196, %197 : vector<2x64xf32>
    %c1_123 = arith.constant 1 : index
    %c6_124 = arith.constant 6 : index
    %c0_125 = arith.constant 0 : index
    %199 = vector.load %arg20[%c1_123, %c6_124, %c0_125] : memref<3x16x64xf32, #tpu.memory_space<vmem>>, vector<1x2x64xf32>
    %200 = vector.shape_cast %199 : vector<1x2x64xf32> to vector<2x64xf32>
    %c1_126 = arith.constant 1 : index
    %c8_127 = arith.constant 8 : index
    %c0_128 = arith.constant 0 : index
    %201 = vector.load %arg20[%c1_126, %c8_127, %c0_128] : memref<3x16x64xf32, #tpu.memory_space<vmem>>, vector<1x2x64xf32>
    %202 = vector.shape_cast %201 : vector<1x2x64xf32> to vector<2x64xf32>
    %203 = arith.select %2, %200, %202 : vector<2x64xi1>, vector<2x64xf32>
    %204 = arith.addf %203, %184 : vector<2x64xf32>
    %205 = arith.negf %204 : vector<2x64xf32>
    %206 = math.exp %205 : vector<2x64xf32>
    %cst_129 = arith.constant 1.000000e+00 : f32
    %207 = vector.broadcast %cst_129 : f32 to vector<2x64xf32>
    %208 = arith.addf %207, %206 : vector<2x64xf32>
    %209 = arith.divf %207, %208 : vector<2x64xf32>
    %c2_130 = arith.constant 2 : index
    %c6_131 = arith.constant 6 : index
    %c0_132 = arith.constant 0 : index
    %210 = vector.load %arg20[%c2_130, %c6_131, %c0_132] : memref<3x16x64xf32, #tpu.memory_space<vmem>>, vector<1x2x64xf32>
    %211 = vector.shape_cast %210 : vector<1x2x64xf32> to vector<2x64xf32>
    %c2_133 = arith.constant 2 : index
    %c8_134 = arith.constant 8 : index
    %c0_135 = arith.constant 0 : index
    %212 = vector.load %arg20[%c2_133, %c8_134, %c0_135] : memref<3x16x64xf32, #tpu.memory_space<vmem>>, vector<1x2x64xf32>
    %213 = vector.shape_cast %212 : vector<1x2x64xf32> to vector<2x64xf32>
    %214 = arith.select %2, %211, %213 : vector<2x64xi1>, vector<2x64xf32>
    %215 = arith.mulf %198, %187 : vector<2x64xf32>
    %216 = arith.addf %214, %215 : vector<2x64xf32>
    %217 = math.tanh %216 : vector<2x64xf32>
    %cst_136 = arith.constant 1.000000e+00 : f32
    %218 = vector.broadcast %cst_136 : f32 to vector<2x64xf32>
    %219 = arith.subf %218, %209 : vector<2x64xf32>
    %220 = arith.mulf %219, %217 : vector<2x64xf32>
    %221 = arith.mulf %209, %178 : vector<2x64xf32>
    %222 = arith.addf %220, %221 : vector<2x64xf32>
    %cst_137 = arith.constant dense<0.000000e+00> : vector<2x64xf32>
    %223 = tpu.matmul %222, %35, %cst_137 {dimension_numbers = #tpu.dot_dimension_numbers<[1], [0], [0], [1], [0, 0, 1, 1], [], []>} : vector<2x64xf32>, vector<64x64xf32>, vector<2x64xf32> -> vector<2x64xf32>
    %224 = vector.broadcast %41 : vector<1x64xf32> to vector<2x64xf32>
    %225 = arith.addf %223, %224 : vector<2x64xf32>
    %cst_138 = arith.constant dense<0.000000e+00> : vector<2x64xf32>
    %226 = tpu.matmul %222, %37, %cst_138 {dimension_numbers = #tpu.dot_dimension_numbers<[1], [0], [0], [1], [0, 0, 1, 1], [], []>} : vector<2x64xf32>, vector<64x64xf32>, vector<2x64xf32> -> vector<2x64xf32>
    %227 = vector.broadcast %43 : vector<1x64xf32> to vector<2x64xf32>
    %228 = arith.addf %226, %227 : vector<2x64xf32>
    %cst_139 = arith.constant dense<0.000000e+00> : vector<2x64xf32>
    %229 = tpu.matmul %222, %39, %cst_139 {dimension_numbers = #tpu.dot_dimension_numbers<[1], [0], [0], [1], [0, 0, 1, 1], [], []>} : vector<2x64xf32>, vector<64x64xf32>, vector<2x64xf32> -> vector<2x64xf32>
    %230 = vector.broadcast %45 : vector<1x64xf32> to vector<2x64xf32>
    %231 = arith.addf %229, %230 : vector<2x64xf32>
    %c0_140 = arith.constant 0 : index
    %c8_141 = arith.constant 8 : index
    %c0_142 = arith.constant 0 : index
    %232 = vector.load %arg20[%c0_140, %c8_141, %c0_142] : memref<3x16x64xf32, #tpu.memory_space<vmem>>, vector<1x2x64xf32>
    %233 = vector.shape_cast %232 : vector<1x2x64xf32> to vector<2x64xf32>
    %c0_143 = arith.constant 0 : index
    %c6_144 = arith.constant 6 : index
    %c0_145 = arith.constant 0 : index
    %234 = vector.load %arg20[%c0_143, %c6_144, %c0_145] : memref<3x16x64xf32, #tpu.memory_space<vmem>>, vector<1x2x64xf32>
    %235 = vector.shape_cast %234 : vector<1x2x64xf32> to vector<2x64xf32>
    %236 = arith.select %2, %233, %235 : vector<2x64xi1>, vector<2x64xf32>
    %237 = arith.addf %236, %225 : vector<2x64xf32>
    %238 = arith.negf %237 : vector<2x64xf32>
    %239 = math.exp %238 : vector<2x64xf32>
    %cst_146 = arith.constant 1.000000e+00 : f32
    %240 = vector.broadcast %cst_146 : f32 to vector<2x64xf32>
    %241 = arith.addf %240, %239 : vector<2x64xf32>
    %242 = arith.divf %240, %241 : vector<2x64xf32>
    %c1_147 = arith.constant 1 : index
    %c8_148 = arith.constant 8 : index
    %c0_149 = arith.constant 0 : index
    %243 = vector.load %arg20[%c1_147, %c8_148, %c0_149] : memref<3x16x64xf32, #tpu.memory_space<vmem>>, vector<1x2x64xf32>
    %244 = vector.shape_cast %243 : vector<1x2x64xf32> to vector<2x64xf32>
    %c1_150 = arith.constant 1 : index
    %c6_151 = arith.constant 6 : index
    %c0_152 = arith.constant 0 : index
    %245 = vector.load %arg20[%c1_150, %c6_151, %c0_152] : memref<3x16x64xf32, #tpu.memory_space<vmem>>, vector<1x2x64xf32>
    %246 = vector.shape_cast %245 : vector<1x2x64xf32> to vector<2x64xf32>
    %247 = arith.select %2, %244, %246 : vector<2x64xi1>, vector<2x64xf32>
    %248 = arith.addf %247, %228 : vector<2x64xf32>
    %249 = arith.negf %248 : vector<2x64xf32>
    %250 = math.exp %249 : vector<2x64xf32>
    %cst_153 = arith.constant 1.000000e+00 : f32
    %251 = vector.broadcast %cst_153 : f32 to vector<2x64xf32>
    %252 = arith.addf %251, %250 : vector<2x64xf32>
    %253 = arith.divf %251, %252 : vector<2x64xf32>
    %c2_154 = arith.constant 2 : index
    %c8_155 = arith.constant 8 : index
    %c0_156 = arith.constant 0 : index
    %254 = vector.load %arg20[%c2_154, %c8_155, %c0_156] : memref<3x16x64xf32, #tpu.memory_space<vmem>>, vector<1x2x64xf32>
    %255 = vector.shape_cast %254 : vector<1x2x64xf32> to vector<2x64xf32>
    %c2_157 = arith.constant 2 : index
    %c6_158 = arith.constant 6 : index
    %c0_159 = arith.constant 0 : index
    %256 = vector.load %arg20[%c2_157, %c6_158, %c0_159] : memref<3x16x64xf32, #tpu.memory_space<vmem>>, vector<1x2x64xf32>
    %257 = vector.shape_cast %256 : vector<1x2x64xf32> to vector<2x64xf32>
    %258 = arith.select %2, %255, %257 : vector<2x64xi1>, vector<2x64xf32>
    %259 = arith.mulf %242, %231 : vector<2x64xf32>
    %260 = arith.addf %258, %259 : vector<2x64xf32>
    %261 = math.tanh %260 : vector<2x64xf32>
    %cst_160 = arith.constant 1.000000e+00 : f32
    %262 = vector.broadcast %cst_160 : f32 to vector<2x64xf32>
    %263 = arith.subf %262, %253 : vector<2x64xf32>
    %264 = arith.mulf %263, %261 : vector<2x64xf32>
    %265 = arith.mulf %253, %222 : vector<2x64xf32>
    %266 = arith.addf %264, %265 : vector<2x64xf32>
    %cst_161 = arith.constant dense<0.000000e+00> : vector<2x64xf32>
    %267 = tpu.matmul %266, %35, %cst_161 {dimension_numbers = #tpu.dot_dimension_numbers<[1], [0], [0], [1], [0, 0, 1, 1], [], []>} : vector<2x64xf32>, vector<64x64xf32>, vector<2x64xf32> -> vector<2x64xf32>
    %268 = vector.broadcast %41 : vector<1x64xf32> to vector<2x64xf32>
    %269 = arith.addf %267, %268 : vector<2x64xf32>
    %cst_162 = arith.constant dense<0.000000e+00> : vector<2x64xf32>
    %270 = tpu.matmul %266, %37, %cst_162 {dimension_numbers = #tpu.dot_dimension_numbers<[1], [0], [0], [1], [0, 0, 1, 1], [], []>} : vector<2x64xf32>, vector<64x64xf32>, vector<2x64xf32> -> vector<2x64xf32>
    %271 = vector.broadcast %43 : vector<1x64xf32> to vector<2x64xf32>
    %272 = arith.addf %270, %271 : vector<2x64xf32>
    %cst_163 = arith.constant dense<0.000000e+00> : vector<2x64xf32>
    %273 = tpu.matmul %266, %39, %cst_163 {dimension_numbers = #tpu.dot_dimension_numbers<[1], [0], [0], [1], [0, 0, 1, 1], [], []>} : vector<2x64xf32>, vector<64x64xf32>, vector<2x64xf32> -> vector<2x64xf32>
    %274 = vector.broadcast %45 : vector<1x64xf32> to vector<2x64xf32>
    %275 = arith.addf %273, %274 : vector<2x64xf32>
    %c0_164 = arith.constant 0 : index
    %c10_165 = arith.constant 10 : index
    %c0_166 = arith.constant 0 : index
    %276 = vector.load %arg20[%c0_164, %c10_165, %c0_166] : memref<3x16x64xf32, #tpu.memory_space<vmem>>, vector<1x2x64xf32>
    %277 = vector.shape_cast %276 : vector<1x2x64xf32> to vector<2x64xf32>
    %c0_167 = arith.constant 0 : index
    %c4_168 = arith.constant 4 : index
    %c0_169 = arith.constant 0 : index
    %278 = vector.load %arg20[%c0_167, %c4_168, %c0_169] : memref<3x16x64xf32, #tpu.memory_space<vmem>>, vector<1x2x64xf32>
    %279 = vector.shape_cast %278 : vector<1x2x64xf32> to vector<2x64xf32>
    %280 = arith.select %2, %277, %279 : vector<2x64xi1>, vector<2x64xf32>
    %281 = arith.addf %280, %269 : vector<2x64xf32>
    %282 = arith.negf %281 : vector<2x64xf32>
    %283 = math.exp %282 : vector<2x64xf32>
    %cst_170 = arith.constant 1.000000e+00 : f32
    %284 = vector.broadcast %cst_170 : f32 to vector<2x64xf32>
    %285 = arith.addf %284, %283 : vector<2x64xf32>
    %286 = arith.divf %284, %285 : vector<2x64xf32>
    %c1_171 = arith.constant 1 : index
    %c10_172 = arith.constant 10 : index
    %c0_173 = arith.constant 0 : index
    %287 = vector.load %arg20[%c1_171, %c10_172, %c0_173] : memref<3x16x64xf32, #tpu.memory_space<vmem>>, vector<1x2x64xf32>
    %288 = vector.shape_cast %287 : vector<1x2x64xf32> to vector<2x64xf32>
    %c1_174 = arith.constant 1 : index
    %c4_175 = arith.constant 4 : index
    %c0_176 = arith.constant 0 : index
    %289 = vector.load %arg20[%c1_174, %c4_175, %c0_176] : memref<3x16x64xf32, #tpu.memory_space<vmem>>, vector<1x2x64xf32>
    %290 = vector.shape_cast %289 : vector<1x2x64xf32> to vector<2x64xf32>
    %291 = arith.select %2, %288, %290 : vector<2x64xi1>, vector<2x64xf32>
    %292 = arith.addf %291, %272 : vector<2x64xf32>
    %293 = arith.negf %292 : vector<2x64xf32>
    %294 = math.exp %293 : vector<2x64xf32>
    %cst_177 = arith.constant 1.000000e+00 : f32
    %295 = vector.broadcast %cst_177 : f32 to vector<2x64xf32>
    %296 = arith.addf %295, %294 : vector<2x64xf32>
    %297 = arith.divf %295, %296 : vector<2x64xf32>
    %c2_178 = arith.constant 2 : index
    %c10_179 = arith.constant 10 : index
    %c0_180 = arith.constant 0 : index
    %298 = vector.load %arg20[%c2_178, %c10_179, %c0_180] : memref<3x16x64xf32, #tpu.memory_space<vmem>>, vector<1x2x64xf32>
    %299 = vector.shape_cast %298 : vector<1x2x64xf32> to vector<2x64xf32>
    %c2_181 = arith.constant 2 : index
    %c4_182 = arith.constant 4 : index
    %c0_183 = arith.constant 0 : index
    %300 = vector.load %arg20[%c2_181, %c4_182, %c0_183] : memref<3x16x64xf32, #tpu.memory_space<vmem>>, vector<1x2x64xf32>
    %301 = vector.shape_cast %300 : vector<1x2x64xf32> to vector<2x64xf32>
    %302 = arith.select %2, %299, %301 : vector<2x64xi1>, vector<2x64xf32>
    %303 = arith.mulf %286, %275 : vector<2x64xf32>
    %304 = arith.addf %302, %303 : vector<2x64xf32>
    %305 = math.tanh %304 : vector<2x64xf32>
    %cst_184 = arith.constant 1.000000e+00 : f32
    %306 = vector.broadcast %cst_184 : f32 to vector<2x64xf32>
    %307 = arith.subf %306, %297 : vector<2x64xf32>
    %308 = arith.mulf %307, %305 : vector<2x64xf32>
    %309 = arith.mulf %297, %266 : vector<2x64xf32>
    %310 = arith.addf %308, %309 : vector<2x64xf32>
    %cst_185 = arith.constant dense<0.000000e+00> : vector<2x64xf32>
    %311 = tpu.matmul %310, %35, %cst_185 {dimension_numbers = #tpu.dot_dimension_numbers<[1], [0], [0], [1], [0, 0, 1, 1], [], []>} : vector<2x64xf32>, vector<64x64xf32>, vector<2x64xf32> -> vector<2x64xf32>
    %312 = vector.broadcast %41 : vector<1x64xf32> to vector<2x64xf32>
    %313 = arith.addf %311, %312 : vector<2x64xf32>
    %cst_186 = arith.constant dense<0.000000e+00> : vector<2x64xf32>
    %314 = tpu.matmul %310, %37, %cst_186 {dimension_numbers = #tpu.dot_dimension_numbers<[1], [0], [0], [1], [0, 0, 1, 1], [], []>} : vector<2x64xf32>, vector<64x64xf32>, vector<2x64xf32> -> vector<2x64xf32>
    %315 = vector.broadcast %43 : vector<1x64xf32> to vector<2x64xf32>
    %316 = arith.addf %314, %315 : vector<2x64xf32>
    %cst_187 = arith.constant dense<0.000000e+00> : vector<2x64xf32>
    %317 = tpu.matmul %310, %39, %cst_187 {dimension_numbers = #tpu.dot_dimension_numbers<[1], [0], [0], [1], [0, 0, 1, 1], [], []>} : vector<2x64xf32>, vector<64x64xf32>, vector<2x64xf32> -> vector<2x64xf32>
    %318 = vector.broadcast %45 : vector<1x64xf32> to vector<2x64xf32>
    %319 = arith.addf %317, %318 : vector<2x64xf32>
    %c0_188 = arith.constant 0 : index
    %c12_189 = arith.constant 12 : index
    %c0_190 = arith.constant 0 : index
    %320 = vector.load %arg20[%c0_188, %c12_189, %c0_190] : memref<3x16x64xf32, #tpu.memory_space<vmem>>, vector<1x2x64xf32>
    %321 = vector.shape_cast %320 : vector<1x2x64xf32> to vector<2x64xf32>
    %c0_191 = arith.constant 0 : index
    %c2_192 = arith.constant 2 : index
    %c0_193 = arith.constant 0 : index
    %322 = vector.load %arg20[%c0_191, %c2_192, %c0_193] : memref<3x16x64xf32, #tpu.memory_space<vmem>>, vector<1x2x64xf32>
    %323 = vector.shape_cast %322 : vector<1x2x64xf32> to vector<2x64xf32>
    %324 = arith.select %2, %321, %323 : vector<2x64xi1>, vector<2x64xf32>
    %325 = arith.addf %324, %313 : vector<2x64xf32>
    %326 = arith.negf %325 : vector<2x64xf32>
    %327 = math.exp %326 : vector<2x64xf32>
    %cst_194 = arith.constant 1.000000e+00 : f32
    %328 = vector.broadcast %cst_194 : f32 to vector<2x64xf32>
    %329 = arith.addf %328, %327 : vector<2x64xf32>
    %330 = arith.divf %328, %329 : vector<2x64xf32>
    %c1_195 = arith.constant 1 : index
    %c12_196 = arith.constant 12 : index
    %c0_197 = arith.constant 0 : index
    %331 = vector.load %arg20[%c1_195, %c12_196, %c0_197] : memref<3x16x64xf32, #tpu.memory_space<vmem>>, vector<1x2x64xf32>
    %332 = vector.shape_cast %331 : vector<1x2x64xf32> to vector<2x64xf32>
    %c1_198 = arith.constant 1 : index
    %c2_199 = arith.constant 2 : index
    %c0_200 = arith.constant 0 : index
    %333 = vector.load %arg20[%c1_198, %c2_199, %c0_200] : memref<3x16x64xf32, #tpu.memory_space<vmem>>, vector<1x2x64xf32>
    %334 = vector.shape_cast %333 : vector<1x2x64xf32> to vector<2x64xf32>
    %335 = arith.select %2, %332, %334 : vector<2x64xi1>, vector<2x64xf32>
    %336 = arith.addf %335, %316 : vector<2x64xf32>
    %337 = arith.negf %336 : vector<2x64xf32>
    %338 = math.exp %337 : vector<2x64xf32>
    %cst_201 = arith.constant 1.000000e+00 : f32
    %339 = vector.broadcast %cst_201 : f32 to vector<2x64xf32>
    %340 = arith.addf %339, %338 : vector<2x64xf32>
    %341 = arith.divf %339, %340 : vector<2x64xf32>
    %c2_202 = arith.constant 2 : index
    %c12_203 = arith.constant 12 : index
    %c0_204 = arith.constant 0 : index
    %342 = vector.load %arg20[%c2_202, %c12_203, %c0_204] : memref<3x16x64xf32, #tpu.memory_space<vmem>>, vector<1x2x64xf32>
    %343 = vector.shape_cast %342 : vector<1x2x64xf32> to vector<2x64xf32>
    %c2_205 = arith.constant 2 : index
    %c2_206 = arith.constant 2 : index
    %c0_207 = arith.constant 0 : index
    %344 = vector.load %arg20[%c2_205, %c2_206, %c0_207] : memref<3x16x64xf32, #tpu.memory_space<vmem>>, vector<1x2x64xf32>
    %345 = vector.shape_cast %344 : vector<1x2x64xf32> to vector<2x64xf32>
    %346 = arith.select %2, %343, %345 : vector<2x64xi1>, vector<2x64xf32>
    %347 = arith.mulf %330, %319 : vector<2x64xf32>
    %348 = arith.addf %346, %347 : vector<2x64xf32>
    %349 = math.tanh %348 : vector<2x64xf32>
    %cst_208 = arith.constant 1.000000e+00 : f32
    %350 = vector.broadcast %cst_208 : f32 to vector<2x64xf32>
    %351 = arith.subf %350, %341 : vector<2x64xf32>
    %352 = arith.mulf %351, %349 : vector<2x64xf32>
    %353 = arith.mulf %341, %310 : vector<2x64xf32>
    %354 = arith.addf %352, %353 : vector<2x64xf32>
    %cst_209 = arith.constant dense<0.000000e+00> : vector<2x64xf32>
    %355 = tpu.matmul %354, %35, %cst_209 {dimension_numbers = #tpu.dot_dimension_numbers<[1], [0], [0], [1], [0, 0, 1, 1], [], []>} : vector<2x64xf32>, vector<64x64xf32>, vector<2x64xf32> -> vector<2x64xf32>
    %356 = vector.broadcast %41 : vector<1x64xf32> to vector<2x64xf32>
    %357 = arith.addf %355, %356 : vector<2x64xf32>
    %cst_210 = arith.constant dense<0.000000e+00> : vector<2x64xf32>
    %358 = tpu.matmul %354, %37, %cst_210 {dimension_numbers = #tpu.dot_dimension_numbers<[1], [0], [0], [1], [0, 0, 1, 1], [], []>} : vector<2x64xf32>, vector<64x64xf32>, vector<2x64xf32> -> vector<2x64xf32>
    %359 = vector.broadcast %43 : vector<1x64xf32> to vector<2x64xf32>
    %360 = arith.addf %358, %359 : vector<2x64xf32>
    %cst_211 = arith.constant dense<0.000000e+00> : vector<2x64xf32>
    %361 = tpu.matmul %354, %39, %cst_211 {dimension_numbers = #tpu.dot_dimension_numbers<[1], [0], [0], [1], [0, 0, 1, 1], [], []>} : vector<2x64xf32>, vector<64x64xf32>, vector<2x64xf32> -> vector<2x64xf32>
    %362 = vector.broadcast %45 : vector<1x64xf32> to vector<2x64xf32>
    %363 = arith.addf %361, %362 : vector<2x64xf32>
    %c0_212 = arith.constant 0 : index
    %c14_213 = arith.constant 14 : index
    %c0_214 = arith.constant 0 : index
    %364 = vector.load %arg20[%c0_212, %c14_213, %c0_214] : memref<3x16x64xf32, #tpu.memory_space<vmem>>, vector<1x2x64xf32>
    %365 = vector.shape_cast %364 : vector<1x2x64xf32> to vector<2x64xf32>
    %c0_215 = arith.constant 0 : index
    %c0_216 = arith.constant 0 : index
    %c0_217 = arith.constant 0 : index
    %366 = vector.load %arg20[%c0_215, %c0_216, %c0_217] : memref<3x16x64xf32, #tpu.memory_space<vmem>>, vector<1x2x64xf32>
    %367 = vector.shape_cast %366 : vector<1x2x64xf32> to vector<2x64xf32>
    %368 = arith.select %2, %365, %367 : vector<2x64xi1>, vector<2x64xf32>
    %369 = arith.addf %368, %357 : vector<2x64xf32>
    %370 = arith.negf %369 : vector<2x64xf32>
    %371 = math.exp %370 : vector<2x64xf32>
    %cst_218 = arith.constant 1.000000e+00 : f32
    %372 = vector.broadcast %cst_218 : f32 to vector<2x64xf32>
    %373 = arith.addf %372, %371 : vector<2x64xf32>
    %374 = arith.divf %372, %373 : vector<2x64xf32>
    %c1_219 = arith.constant 1 : index
    %c14_220 = arith.constant 14 : index
    %c0_221 = arith.constant 0 : index
    %375 = vector.load %arg20[%c1_219, %c14_220, %c0_221] : memref<3x16x64xf32, #tpu.memory_space<vmem>>, vector<1x2x64xf32>
    %376 = vector.shape_cast %375 : vector<1x2x64xf32> to vector<2x64xf32>
    %c1_222 = arith.constant 1 : index
    %c0_223 = arith.constant 0 : index
    %c0_224 = arith.constant 0 : index
    %377 = vector.load %arg20[%c1_222, %c0_223, %c0_224] : memref<3x16x64xf32, #tpu.memory_space<vmem>>, vector<1x2x64xf32>
    %378 = vector.shape_cast %377 : vector<1x2x64xf32> to vector<2x64xf32>
    %379 = arith.select %2, %376, %378 : vector<2x64xi1>, vector<2x64xf32>
    %380 = arith.addf %379, %360 : vector<2x64xf32>
    %381 = arith.negf %380 : vector<2x64xf32>
    %382 = math.exp %381 : vector<2x64xf32>
    %cst_225 = arith.constant 1.000000e+00 : f32
    %383 = vector.broadcast %cst_225 : f32 to vector<2x64xf32>
    %384 = arith.addf %383, %382 : vector<2x64xf32>
    %385 = arith.divf %383, %384 : vector<2x64xf32>
    %c2_226 = arith.constant 2 : index
    %c14_227 = arith.constant 14 : index
    %c0_228 = arith.constant 0 : index
    %386 = vector.load %arg20[%c2_226, %c14_227, %c0_228] : memref<3x16x64xf32, #tpu.memory_space<vmem>>, vector<1x2x64xf32>
    %387 = vector.shape_cast %386 : vector<1x2x64xf32> to vector<2x64xf32>
    %c2_229 = arith.constant 2 : index
    %c0_230 = arith.constant 0 : index
    %c0_231 = arith.constant 0 : index
    %388 = vector.load %arg20[%c2_229, %c0_230, %c0_231] : memref<3x16x64xf32, #tpu.memory_space<vmem>>, vector<1x2x64xf32>
    %389 = vector.shape_cast %388 : vector<1x2x64xf32> to vector<2x64xf32>
    %390 = arith.select %2, %387, %389 : vector<2x64xi1>, vector<2x64xf32>
    %391 = arith.mulf %374, %363 : vector<2x64xf32>
    %392 = arith.addf %390, %391 : vector<2x64xf32>
    %393 = math.tanh %392 : vector<2x64xf32>
    %cst_232 = arith.constant 1.000000e+00 : f32
    %394 = vector.broadcast %cst_232 : f32 to vector<2x64xf32>
    %395 = arith.subf %394, %385 : vector<2x64xf32>
    %396 = arith.mulf %395, %393 : vector<2x64xf32>
    %397 = arith.mulf %385, %354 : vector<2x64xf32>
    %398 = arith.addf %396, %397 : vector<2x64xf32>
    %399 = arith.select %2, %90, %398 : vector<2x64xi1>, vector<2x64xf32>
    %c0_233 = arith.constant 0 : index
    %c0_234 = arith.constant 0 : index
    %400 = vector.load %arg21[%c0_233, %c0_234] : memref<16x64xf32, #tpu.memory_space<vmem>>, vector<2x64xf32>
    tpu.vector_store %arg21[%c0_233, %c0_234], %399 {strides = array<i32>} : memref<16x64xf32, #tpu.memory_space<vmem>>, vector<2x64xf32>,
    %401 = arith.select %2, %134, %354 : vector<2x64xi1>, vector<2x64xf32>
    %c2_235 = arith.constant 2 : index
    %c0_236 = arith.constant 0 : index
    %402 = vector.load %arg21[%c2_235, %c0_236] : memref<16x64xf32, #tpu.memory_space<vmem>>, vector<2x64xf32>
    tpu.vector_store %arg21[%c2_235, %c0_236], %401 {strides = array<i32>} : memref<16x64xf32, #tpu.memory_space<vmem>>, vector<2x64xf32>,
    %403 = arith.select %2, %178, %310 : vector<2x64xi1>, vector<2x64xf32>
    %c4_237 = arith.constant 4 : index
    %c0_238 = arith.constant 0 : index
    %404 = vector.load %arg21[%c4_237, %c0_238] : memref<16x64xf32, #tpu.memory_space<vmem>>, vector<2x64xf32>
    tpu.vector_store %arg21[%c4_237, %c0_238], %403 {strides = array<i32>} : memref<16x64xf32, #tpu.memory_space<vmem>>, vector<2x64xf32>,
    %405 = arith.select %2, %222, %266 : vector<2x64xi1>, vector<2x64xf32>
    %c6_239 = arith.constant 6 : index
    %c0_240 = arith.constant 0 : index
    %406 = vector.load %arg21[%c6_239, %c0_240] : memref<16x64xf32, #tpu.memory_space<vmem>>, vector<2x64xf32>
    tpu.vector_store %arg21[%c6_239, %c0_240], %405 {strides = array<i32>} : memref<16x64xf32, #tpu.memory_space<vmem>>, vector<2x64xf32>,
    %407 = arith.select %2, %266, %222 : vector<2x64xi1>, vector<2x64xf32>
    %c8_241 = arith.constant 8 : index
    %c0_242 = arith.constant 0 : index
    %408 = vector.load %arg21[%c8_241, %c0_242] : memref<16x64xf32, #tpu.memory_space<vmem>>, vector<2x64xf32>
    tpu.vector_store %arg21[%c8_241, %c0_242], %407 {strides = array<i32>} : memref<16x64xf32, #tpu.memory_space<vmem>>, vector<2x64xf32>,
    %409 = arith.select %2, %310, %178 : vector<2x64xi1>, vector<2x64xf32>
    %c10_243 = arith.constant 10 : index
    %c0_244 = arith.constant 0 : index
    %410 = vector.load %arg21[%c10_243, %c0_244] : memref<16x64xf32, #tpu.memory_space<vmem>>, vector<2x64xf32>
    tpu.vector_store %arg21[%c10_243, %c0_244], %409 {strides = array<i32>} : memref<16x64xf32, #tpu.memory_space<vmem>>, vector<2x64xf32>,
    %411 = arith.select %2, %354, %134 : vector<2x64xi1>, vector<2x64xf32>
    %c12_245 = arith.constant 12 : index
    %c0_246 = arith.constant 0 : index
    %412 = vector.load %arg21[%c12_245, %c0_246] : memref<16x64xf32, #tpu.memory_space<vmem>>, vector<2x64xf32>
    tpu.vector_store %arg21[%c12_245, %c0_246], %411 {strides = array<i32>} : memref<16x64xf32, #tpu.memory_space<vmem>>, vector<2x64xf32>,
    %413 = arith.select %2, %398, %90 : vector<2x64xi1>, vector<2x64xf32>
    %c14_247 = arith.constant 14 : index
    %c0_248 = arith.constant 0 : index
    %414 = vector.load %arg21[%c14_247, %c0_248] : memref<16x64xf32, #tpu.memory_space<vmem>>, vector<2x64xf32>
    tpu.vector_store %arg21[%c14_247, %c0_248], %413 {strides = array<i32>} : memref<16x64xf32, #tpu.memory_space<vmem>>, vector<2x64xf32>,
    %c0_249 = arith.constant 0 : index
    %c0_250 = arith.constant 0 : index
    %415 = vector.load %arg21[%c0_249, %c0_250] : memref<16x64xf32, #tpu.memory_space<vmem>>, vector<16x64xf32>
    %c0_251 = arith.constant 0 : index
    %c0_252 = arith.constant 0 : index
    %c0_253 = arith.constant 0 : index
    %416 = vector.load %arg7[%c0_251, %c0_252, %c0_253] : memref<3x64x64xf32, #tpu.memory_space<vmem>>, vector<1x64x64xf32>
    %417 = vector.shape_cast %416 : vector<1x64x64xf32> to vector<64x64xf32>
    %cst_254 = arith.constant dense<0.000000e+00> : vector<16x64xf32>
    %418 = tpu.matmul %415, %417, %cst_254 {dimension_numbers = #tpu.dot_dimension_numbers<[1], [0], [0], [1], [0, 0, 1, 1], [], []>} : vector<16x64xf32>, vector<64x64xf32>, vector<16x64xf32> -> vector<16x64xf32>
    %c0_255 = arith.constant 0 : index
    %c0_256 = arith.constant 0 : index
    %c0_257 = arith.constant 0 : index
    %419 = vector.load %arg8[%c0_255, %c0_256, %c0_257] : memref<3x1x64xf32, #tpu.memory_space<vmem>>, vector<1x1x64xf32>
    %420 = vector.shape_cast %419 : vector<1x1x64xf32> to vector<1x64xf32>
    %421 = vector.broadcast %420 : vector<1x64xf32> to vector<16x64xf32>
    %422 = arith.addf %418, %421 : vector<16x64xf32>
    %c0_258 = arith.constant 0 : index
    %c0_259 = arith.constant 0 : index
    %c0_260 = arith.constant 0 : index
    %423 = vector.load %arg20[%c0_258, %c0_259, %c0_260] : memref<3x16x64xf32, #tpu.memory_space<vmem>>, vector<1x16x64xf32>
    %424 = vector.shape_cast %423 : vector<1x16x64xf32> to vector<16x64xf32>
    %425 = vector.shape_cast %422 : vector<16x64xf32> to vector<1x16x64xf32>
    tpu.vector_store %arg20[%c0_258, %c0_259, %c0_260], %425 {strides = array<i32>} : memref<3x16x64xf32, #tpu.memory_space<vmem>>, vector<1x16x64xf32>,
    %c1_261 = arith.constant 1 : index
    %c0_262 = arith.constant 0 : index
    %c0_263 = arith.constant 0 : index
    %426 = vector.load %arg7[%c1_261, %c0_262, %c0_263] : memref<3x64x64xf32, #tpu.memory_space<vmem>>, vector<1x64x64xf32>
    %427 = vector.shape_cast %426 : vector<1x64x64xf32> to vector<64x64xf32>
    %cst_264 = arith.constant dense<0.000000e+00> : vector<16x64xf32>
    %428 = tpu.matmul %415, %427, %cst_264 {dimension_numbers = #tpu.dot_dimension_numbers<[1], [0], [0], [1], [0, 0, 1, 1], [], []>} : vector<16x64xf32>, vector<64x64xf32>, vector<16x64xf32> -> vector<16x64xf32>
    %c1_265 = arith.constant 1 : index
    %c0_266 = arith.constant 0 : index
    %c0_267 = arith.constant 0 : index
    %429 = vector.load %arg8[%c1_265, %c0_266, %c0_267] : memref<3x1x64xf32, #tpu.memory_space<vmem>>, vector<1x1x64xf32>
    %430 = vector.shape_cast %429 : vector<1x1x64xf32> to vector<1x64xf32>
    %431 = vector.broadcast %430 : vector<1x64xf32> to vector<16x64xf32>
    %432 = arith.addf %428, %431 : vector<16x64xf32>
    %c1_268 = arith.constant 1 : index
    %c0_269 = arith.constant 0 : index
    %c0_270 = arith.constant 0 : index
    %433 = vector.load %arg20[%c1_268, %c0_269, %c0_270] : memref<3x16x64xf32, #tpu.memory_space<vmem>>, vector<1x16x64xf32>
    %434 = vector.shape_cast %433 : vector<1x16x64xf32> to vector<16x64xf32>
    %435 = vector.shape_cast %432 : vector<16x64xf32> to vector<1x16x64xf32>
    tpu.vector_store %arg20[%c1_268, %c0_269, %c0_270], %435 {strides = array<i32>} : memref<3x16x64xf32, #tpu.memory_space<vmem>>, vector<1x16x64xf32>,
    %c2_271 = arith.constant 2 : index
    %c0_272 = arith.constant 0 : index
    %c0_273 = arith.constant 0 : index
    %436 = vector.load %arg7[%c2_271, %c0_272, %c0_273] : memref<3x64x64xf32, #tpu.memory_space<vmem>>, vector<1x64x64xf32>
    %437 = vector.shape_cast %436 : vector<1x64x64xf32> to vector<64x64xf32>
    %cst_274 = arith.constant dense<0.000000e+00> : vector<16x64xf32>
    %438 = tpu.matmul %415, %437, %cst_274 {dimension_numbers = #tpu.dot_dimension_numbers<[1], [0], [0], [1], [0, 0, 1, 1], [], []>} : vector<16x64xf32>, vector<64x64xf32>, vector<16x64xf32> -> vector<16x64xf32>
    %c2_275 = arith.constant 2 : index
    %c0_276 = arith.constant 0 : index
    %c0_277 = arith.constant 0 : index
    %439 = vector.load %arg8[%c2_275, %c0_276, %c0_277] : memref<3x1x64xf32, #tpu.memory_space<vmem>>, vector<1x1x64xf32>
    %440 = vector.shape_cast %439 : vector<1x1x64xf32> to vector<1x64xf32>
    %441 = vector.broadcast %440 : vector<1x64xf32> to vector<16x64xf32>
    %442 = arith.addf %438, %441 : vector<16x64xf32>
    %c2_278 = arith.constant 2 : index
    %c0_279 = arith.constant 0 : index
    %c0_280 = arith.constant 0 : index
    %443 = vector.load %arg20[%c2_278, %c0_279, %c0_280] : memref<3x16x64xf32, #tpu.memory_space<vmem>>, vector<1x16x64xf32>
    %444 = vector.shape_cast %443 : vector<1x16x64xf32> to vector<16x64xf32>
    %445 = vector.shape_cast %442 : vector<16x64xf32> to vector<1x16x64xf32>
    tpu.vector_store %arg20[%c2_278, %c0_279, %c0_280], %445 {strides = array<i32>} : memref<3x16x64xf32, #tpu.memory_space<vmem>>, vector<1x16x64xf32>,
    %c0_281 = arith.constant 0 : index
    %c0_282 = arith.constant 0 : index
    %c0_283 = arith.constant 0 : index
    %446 = vector.load %arg9[%c0_281, %c0_282, %c0_283] : memref<3x64x64xf32, #tpu.memory_space<vmem>>, vector<1x64x64xf32>
    %447 = vector.shape_cast %446 : vector<1x64x64xf32> to vector<64x64xf32>
    %c1_284 = arith.constant 1 : index
    %c0_285 = arith.constant 0 : index
    %c0_286 = arith.constant 0 : index
    %448 = vector.load %arg9[%c1_284, %c0_285, %c0_286] : memref<3x64x64xf32, #tpu.memory_space<vmem>>, vector<1x64x64xf32>
    %449 = vector.shape_cast %448 : vector<1x64x64xf32> to vector<64x64xf32>
    %c2_287 = arith.constant 2 : index
    %c0_288 = arith.constant 0 : index
    %c0_289 = arith.constant 0 : index
    %450 = vector.load %arg9[%c2_287, %c0_288, %c0_289] : memref<3x64x64xf32, #tpu.memory_space<vmem>>, vector<1x64x64xf32>
    %451 = vector.shape_cast %450 : vector<1x64x64xf32> to vector<64x64xf32>
    %c0_290 = arith.constant 0 : index
    %c0_291 = arith.constant 0 : index
    %c0_292 = arith.constant 0 : index
    %452 = vector.load %arg10[%c0_290, %c0_291, %c0_292] : memref<3x1x64xf32, #tpu.memory_space<vmem>>, vector<1x1x64xf32>
    %453 = vector.shape_cast %452 : vector<1x1x64xf32> to vector<1x64xf32>
    %c1_293 = arith.constant 1 : index
    %c0_294 = arith.constant 0 : index
    %c0_295 = arith.constant 0 : index
    %454 = vector.load %arg10[%c1_293, %c0_294, %c0_295] : memref<3x1x64xf32, #tpu.memory_space<vmem>>, vector<1x1x64xf32>
    %455 = vector.shape_cast %454 : vector<1x1x64xf32> to vector<1x64xf32>
    %c2_296 = arith.constant 2 : index
    %c0_297 = arith.constant 0 : index
    %c0_298 = arith.constant 0 : index
    %456 = vector.load %arg10[%c2_296, %c0_297, %c0_298] : memref<3x1x64xf32, #tpu.memory_space<vmem>>, vector<1x1x64xf32>
    %457 = vector.shape_cast %456 : vector<1x1x64xf32> to vector<1x64xf32>
    %cst_299 = arith.constant 0.000000e+00 : f32
    %458 = vector.broadcast %cst_299 : f32 to vector<2x64xf32>
    %cst_300 = arith.constant dense<0.000000e+00> : vector<2x64xf32>
    %459 = tpu.matmul %458, %447, %cst_300 {dimension_numbers = #tpu.dot_dimension_numbers<[1], [0], [0], [1], [0, 0, 1, 1], [], []>} : vector<2x64xf32>, vector<64x64xf32>, vector<2x64xf32> -> vector<2x64xf32>
    %460 = vector.broadcast %453 : vector<1x64xf32> to vector<2x64xf32>
    %461 = arith.addf %459, %460 : vector<2x64xf32>
    %cst_301 = arith.constant dense<0.000000e+00> : vector<2x64xf32>
    %462 = tpu.matmul %458, %449, %cst_301 {dimension_numbers = #tpu.dot_dimension_numbers<[1], [0], [0], [1], [0, 0, 1, 1], [], []>} : vector<2x64xf32>, vector<64x64xf32>, vector<2x64xf32> -> vector<2x64xf32>
    %463 = vector.broadcast %455 : vector<1x64xf32> to vector<2x64xf32>
    %464 = arith.addf %462, %463 : vector<2x64xf32>
    %cst_302 = arith.constant dense<0.000000e+00> : vector<2x64xf32>
    %465 = tpu.matmul %458, %451, %cst_302 {dimension_numbers = #tpu.dot_dimension_numbers<[1], [0], [0], [1], [0, 0, 1, 1], [], []>} : vector<2x64xf32>, vector<64x64xf32>, vector<2x64xf32> -> vector<2x64xf32>
    %466 = vector.broadcast %457 : vector<1x64xf32> to vector<2x64xf32>
    %467 = arith.addf %465, %466 : vector<2x64xf32>
    %c0_303 = arith.constant 0 : index
    %c0_304 = arith.constant 0 : index
    %c0_305 = arith.constant 0 : index
    %468 = vector.load %arg20[%c0_303, %c0_304, %c0_305] : memref<3x16x64xf32, #tpu.memory_space<vmem>>, vector<1x2x64xf32>
    %469 = vector.shape_cast %468 : vector<1x2x64xf32> to vector<2x64xf32>
    %c0_306 = arith.constant 0 : index
    %c14_307 = arith.constant 14 : index
    %c0_308 = arith.constant 0 : index
    %470 = vector.load %arg20[%c0_306, %c14_307, %c0_308] : memref<3x16x64xf32, #tpu.memory_space<vmem>>, vector<1x2x64xf32>
    %471 = vector.shape_cast %470 : vector<1x2x64xf32> to vector<2x64xf32>
    %472 = arith.select %2, %469, %471 : vector<2x64xi1>, vector<2x64xf32>
    %473 = arith.addf %472, %461 : vector<2x64xf32>
    %474 = arith.negf %473 : vector<2x64xf32>
    %475 = math.exp %474 : vector<2x64xf32>
    %cst_309 = arith.constant 1.000000e+00 : f32
    %476 = vector.broadcast %cst_309 : f32 to vector<2x64xf32>
    %477 = arith.addf %476, %475 : vector<2x64xf32>
    %478 = arith.divf %476, %477 : vector<2x64xf32>
    %c1_310 = arith.constant 1 : index
    %c0_311 = arith.constant 0 : index
    %c0_312 = arith.constant 0 : index
    %479 = vector.load %arg20[%c1_310, %c0_311, %c0_312] : memref<3x16x64xf32, #tpu.memory_space<vmem>>, vector<1x2x64xf32>
    %480 = vector.shape_cast %479 : vector<1x2x64xf32> to vector<2x64xf32>
    %c1_313 = arith.constant 1 : index
    %c14_314 = arith.constant 14 : index
    %c0_315 = arith.constant 0 : index
    %481 = vector.load %arg20[%c1_313, %c14_314, %c0_315] : memref<3x16x64xf32, #tpu.memory_space<vmem>>, vector<1x2x64xf32>
    %482 = vector.shape_cast %481 : vector<1x2x64xf32> to vector<2x64xf32>
    %483 = arith.select %2, %480, %482 : vector<2x64xi1>, vector<2x64xf32>
    %484 = arith.addf %483, %464 : vector<2x64xf32>
    %485 = arith.negf %484 : vector<2x64xf32>
    %486 = math.exp %485 : vector<2x64xf32>
    %cst_316 = arith.constant 1.000000e+00 : f32
    %487 = vector.broadcast %cst_316 : f32 to vector<2x64xf32>
    %488 = arith.addf %487, %486 : vector<2x64xf32>
    %489 = arith.divf %487, %488 : vector<2x64xf32>
    %c2_317 = arith.constant 2 : index
    %c0_318 = arith.constant 0 : index
    %c0_319 = arith.constant 0 : index
    %490 = vector.load %arg20[%c2_317, %c0_318, %c0_319] : memref<3x16x64xf32, #tpu.memory_space<vmem>>, vector<1x2x64xf32>
    %491 = vector.shape_cast %490 : vector<1x2x64xf32> to vector<2x64xf32>
    %c2_320 = arith.constant 2 : index
    %c14_321 = arith.constant 14 : index
    %c0_322 = arith.constant 0 : index
    %492 = vector.load %arg20[%c2_320, %c14_321, %c0_322] : memref<3x16x64xf32, #tpu.memory_space<vmem>>, vector<1x2x64xf32>
    %493 = vector.shape_cast %492 : vector<1x2x64xf32> to vector<2x64xf32>
    %494 = arith.select %2, %491, %493 : vector<2x64xi1>, vector<2x64xf32>
    %495 = arith.mulf %478, %467 : vector<2x64xf32>
    %496 = arith.addf %494, %495 : vector<2x64xf32>
    %497 = math.tanh %496 : vector<2x64xf32>
    %cst_323 = arith.constant 1.000000e+00 : f32
    %498 = vector.broadcast %cst_323 : f32 to vector<2x64xf32>
    %499 = arith.subf %498, %489 : vector<2x64xf32>
    %500 = arith.mulf %499, %497 : vector<2x64xf32>
    %501 = arith.mulf %489, %458 : vector<2x64xf32>
    %502 = arith.addf %500, %501 : vector<2x64xf32>
    %cst_324 = arith.constant dense<0.000000e+00> : vector<2x64xf32>
    %503 = tpu.matmul %502, %447, %cst_324 {dimension_numbers = #tpu.dot_dimension_numbers<[1], [0], [0], [1], [0, 0, 1, 1], [], []>} : vector<2x64xf32>, vector<64x64xf32>, vector<2x64xf32> -> vector<2x64xf32>
    %504 = vector.broadcast %453 : vector<1x64xf32> to vector<2x64xf32>
    %505 = arith.addf %503, %504 : vector<2x64xf32>
    %cst_325 = arith.constant dense<0.000000e+00> : vector<2x64xf32>
    %506 = tpu.matmul %502, %449, %cst_325 {dimension_numbers = #tpu.dot_dimension_numbers<[1], [0], [0], [1], [0, 0, 1, 1], [], []>} : vector<2x64xf32>, vector<64x64xf32>, vector<2x64xf32> -> vector<2x64xf32>
    %507 = vector.broadcast %455 : vector<1x64xf32> to vector<2x64xf32>
    %508 = arith.addf %506, %507 : vector<2x64xf32>
    %cst_326 = arith.constant dense<0.000000e+00> : vector<2x64xf32>
    %509 = tpu.matmul %502, %451, %cst_326 {dimension_numbers = #tpu.dot_dimension_numbers<[1], [0], [0], [1], [0, 0, 1, 1], [], []>} : vector<2x64xf32>, vector<64x64xf32>, vector<2x64xf32> -> vector<2x64xf32>
    %510 = vector.broadcast %457 : vector<1x64xf32> to vector<2x64xf32>
    %511 = arith.addf %509, %510 : vector<2x64xf32>
    %c0_327 = arith.constant 0 : index
    %c2_328 = arith.constant 2 : index
    %c0_329 = arith.constant 0 : index
    %512 = vector.load %arg20[%c0_327, %c2_328, %c0_329] : memref<3x16x64xf32, #tpu.memory_space<vmem>>, vector<1x2x64xf32>
    %513 = vector.shape_cast %512 : vector<1x2x64xf32> to vector<2x64xf32>
    %c0_330 = arith.constant 0 : index
    %c12_331 = arith.constant 12 : index
    %c0_332 = arith.constant 0 : index
    %514 = vector.load %arg20[%c0_330, %c12_331, %c0_332] : memref<3x16x64xf32, #tpu.memory_space<vmem>>, vector<1x2x64xf32>
    %515 = vector.shape_cast %514 : vector<1x2x64xf32> to vector<2x64xf32>
    %516 = arith.select %2, %513, %515 : vector<2x64xi1>, vector<2x64xf32>
    %517 = arith.addf %516, %505 : vector<2x64xf32>
    %518 = arith.negf %517 : vector<2x64xf32>
    %519 = math.exp %518 : vector<2x64xf32>
    %cst_333 = arith.constant 1.000000e+00 : f32
    %520 = vector.broadcast %cst_333 : f32 to vector<2x64xf32>
    %521 = arith.addf %520, %519 : vector<2x64xf32>
    %522 = arith.divf %520, %521 : vector<2x64xf32>
    %c1_334 = arith.constant 1 : index
    %c2_335 = arith.constant 2 : index
    %c0_336 = arith.constant 0 : index
    %523 = vector.load %arg20[%c1_334, %c2_335, %c0_336] : memref<3x16x64xf32, #tpu.memory_space<vmem>>, vector<1x2x64xf32>
    %524 = vector.shape_cast %523 : vector<1x2x64xf32> to vector<2x64xf32>
    %c1_337 = arith.constant 1 : index
    %c12_338 = arith.constant 12 : index
    %c0_339 = arith.constant 0 : index
    %525 = vector.load %arg20[%c1_337, %c12_338, %c0_339] : memref<3x16x64xf32, #tpu.memory_space<vmem>>, vector<1x2x64xf32>
    %526 = vector.shape_cast %525 : vector<1x2x64xf32> to vector<2x64xf32>
    %527 = arith.select %2, %524, %526 : vector<2x64xi1>, vector<2x64xf32>
    %528 = arith.addf %527, %508 : vector<2x64xf32>
    %529 = arith.negf %528 : vector<2x64xf32>
    %530 = math.exp %529 : vector<2x64xf32>
    %cst_340 = arith.constant 1.000000e+00 : f32
    %531 = vector.broadcast %cst_340 : f32 to vector<2x64xf32>
    %532 = arith.addf %531, %530 : vector<2x64xf32>
    %533 = arith.divf %531, %532 : vector<2x64xf32>
    %c2_341 = arith.constant 2 : index
    %c2_342 = arith.constant 2 : index
    %c0_343 = arith.constant 0 : index
    %534 = vector.load %arg20[%c2_341, %c2_342, %c0_343] : memref<3x16x64xf32, #tpu.memory_space<vmem>>, vector<1x2x64xf32>
    %535 = vector.shape_cast %534 : vector<1x2x64xf32> to vector<2x64xf32>
    %c2_344 = arith.constant 2 : index
    %c12_345 = arith.constant 12 : index
    %c0_346 = arith.constant 0 : index
    %536 = vector.load %arg20[%c2_344, %c12_345, %c0_346] : memref<3x16x64xf32, #tpu.memory_space<vmem>>, vector<1x2x64xf32>
    %537 = vector.shape_cast %536 : vector<1x2x64xf32> to vector<2x64xf32>
    %538 = arith.select %2, %535, %537 : vector<2x64xi1>, vector<2x64xf32>
    %539 = arith.mulf %522, %511 : vector<2x64xf32>
    %540 = arith.addf %538, %539 : vector<2x64xf32>
    %541 = math.tanh %540 : vector<2x64xf32>
    %cst_347 = arith.constant 1.000000e+00 : f32
    %542 = vector.broadcast %cst_347 : f32 to vector<2x64xf32>
    %543 = arith.subf %542, %533 : vector<2x64xf32>
    %544 = arith.mulf %543, %541 : vector<2x64xf32>
    %545 = arith.mulf %533, %502 : vector<2x64xf32>
    %546 = arith.addf %544, %545 : vector<2x64xf32>
    %cst_348 = arith.constant dense<0.000000e+00> : vector<2x64xf32>
    %547 = tpu.matmul %546, %447, %cst_348 {dimension_numbers = #tpu.dot_dimension_numbers<[1], [0], [0], [1], [0, 0, 1, 1], [], []>} : vector<2x64xf32>, vector<64x64xf32>, vector<2x64xf32> -> vector<2x64xf32>
    %548 = vector.broadcast %453 : vector<1x64xf32> to vector<2x64xf32>
    %549 = arith.addf %547, %548 : vector<2x64xf32>
    %cst_349 = arith.constant dense<0.000000e+00> : vector<2x64xf32>
    %550 = tpu.matmul %546, %449, %cst_349 {dimension_numbers = #tpu.dot_dimension_numbers<[1], [0], [0], [1], [0, 0, 1, 1], [], []>} : vector<2x64xf32>, vector<64x64xf32>, vector<2x64xf32> -> vector<2x64xf32>
    %551 = vector.broadcast %455 : vector<1x64xf32> to vector<2x64xf32>
    %552 = arith.addf %550, %551 : vector<2x64xf32>
    %cst_350 = arith.constant dense<0.000000e+00> : vector<2x64xf32>
    %553 = tpu.matmul %546, %451, %cst_350 {dimension_numbers = #tpu.dot_dimension_numbers<[1], [0], [0], [1], [0, 0, 1, 1], [], []>} : vector<2x64xf32>, vector<64x64xf32>, vector<2x64xf32> -> vector<2x64xf32>
    %554 = vector.broadcast %457 : vector<1x64xf32> to vector<2x64xf32>
    %555 = arith.addf %553, %554 : vector<2x64xf32>
    %c0_351 = arith.constant 0 : index
    %c4_352 = arith.constant 4 : index
    %c0_353 = arith.constant 0 : index
    %556 = vector.load %arg20[%c0_351, %c4_352, %c0_353] : memref<3x16x64xf32, #tpu.memory_space<vmem>>, vector<1x2x64xf32>
    %557 = vector.shape_cast %556 : vector<1x2x64xf32> to vector<2x64xf32>
    %c0_354 = arith.constant 0 : index
    %c10_355 = arith.constant 10 : index
    %c0_356 = arith.constant 0 : index
    %558 = vector.load %arg20[%c0_354, %c10_355, %c0_356] : memref<3x16x64xf32, #tpu.memory_space<vmem>>, vector<1x2x64xf32>
    %559 = vector.shape_cast %558 : vector<1x2x64xf32> to vector<2x64xf32>
    %560 = arith.select %2, %557, %559 : vector<2x64xi1>, vector<2x64xf32>
    %561 = arith.addf %560, %549 : vector<2x64xf32>
    %562 = arith.negf %561 : vector<2x64xf32>
    %563 = math.exp %562 : vector<2x64xf32>
    %cst_357 = arith.constant 1.000000e+00 : f32
    %564 = vector.broadcast %cst_357 : f32 to vector<2x64xf32>
    %565 = arith.addf %564, %563 : vector<2x64xf32>
    %566 = arith.divf %564, %565 : vector<2x64xf32>
    %c1_358 = arith.constant 1 : index
    %c4_359 = arith.constant 4 : index
    %c0_360 = arith.constant 0 : index
    %567 = vector.load %arg20[%c1_358, %c4_359, %c0_360] : memref<3x16x64xf32, #tpu.memory_space<vmem>>, vector<1x2x64xf32>
    %568 = vector.shape_cast %567 : vector<1x2x64xf32> to vector<2x64xf32>
    %c1_361 = arith.constant 1 : index
    %c10_362 = arith.constant 10 : index
    %c0_363 = arith.constant 0 : index
    %569 = vector.load %arg20[%c1_361, %c10_362, %c0_363] : memref<3x16x64xf32, #tpu.memory_space<vmem>>, vector<1x2x64xf32>
    %570 = vector.shape_cast %569 : vector<1x2x64xf32> to vector<2x64xf32>
    %571 = arith.select %2, %568, %570 : vector<2x64xi1>, vector<2x64xf32>
    %572 = arith.addf %571, %552 : vector<2x64xf32>
    %573 = arith.negf %572 : vector<2x64xf32>
    %574 = math.exp %573 : vector<2x64xf32>
    %cst_364 = arith.constant 1.000000e+00 : f32
    %575 = vector.broadcast %cst_364 : f32 to vector<2x64xf32>
    %576 = arith.addf %575, %574 : vector<2x64xf32>
    %577 = arith.divf %575, %576 : vector<2x64xf32>
    %c2_365 = arith.constant 2 : index
    %c4_366 = arith.constant 4 : index
    %c0_367 = arith.constant 0 : index
    %578 = vector.load %arg20[%c2_365, %c4_366, %c0_367] : memref<3x16x64xf32, #tpu.memory_space<vmem>>, vector<1x2x64xf32>
    %579 = vector.shape_cast %578 : vector<1x2x64xf32> to vector<2x64xf32>
    %c2_368 = arith.constant 2 : index
    %c10_369 = arith.constant 10 : index
    %c0_370 = arith.constant 0 : index
    %580 = vector.load %arg20[%c2_368, %c10_369, %c0_370] : memref<3x16x64xf32, #tpu.memory_space<vmem>>, vector<1x2x64xf32>
    %581 = vector.shape_cast %580 : vector<1x2x64xf32> to vector<2x64xf32>
    %582 = arith.select %2, %579, %581 : vector<2x64xi1>, vector<2x64xf32>
    %583 = arith.mulf %566, %555 : vector<2x64xf32>
    %584 = arith.addf %582, %583 : vector<2x64xf32>
    %585 = math.tanh %584 : vector<2x64xf32>
    %cst_371 = arith.constant 1.000000e+00 : f32
    %586 = vector.broadcast %cst_371 : f32 to vector<2x64xf32>
    %587 = arith.subf %586, %577 : vector<2x64xf32>
    %588 = arith.mulf %587, %585 : vector<2x64xf32>
    %589 = arith.mulf %577, %546 : vector<2x64xf32>
    %590 = arith.addf %588, %589 : vector<2x64xf32>
    %cst_372 = arith.constant dense<0.000000e+00> : vector<2x64xf32>
    %591 = tpu.matmul %590, %447, %cst_372 {dimension_numbers = #tpu.dot_dimension_numbers<[1], [0], [0], [1], [0, 0, 1, 1], [], []>} : vector<2x64xf32>, vector<64x64xf32>, vector<2x64xf32> -> vector<2x64xf32>
    %592 = vector.broadcast %453 : vector<1x64xf32> to vector<2x64xf32>
    %593 = arith.addf %591, %592 : vector<2x64xf32>
    %cst_373 = arith.constant dense<0.000000e+00> : vector<2x64xf32>
    %594 = tpu.matmul %590, %449, %cst_373 {dimension_numbers = #tpu.dot_dimension_numbers<[1], [0], [0], [1], [0, 0, 1, 1], [], []>} : vector<2x64xf32>, vector<64x64xf32>, vector<2x64xf32> -> vector<2x64xf32>
    %595 = vector.broadcast %455 : vector<1x64xf32> to vector<2x64xf32>
    %596 = arith.addf %594, %595 : vector<2x64xf32>
    %cst_374 = arith.constant dense<0.000000e+00> : vector<2x64xf32>
    %597 = tpu.matmul %590, %451, %cst_374 {dimension_numbers = #tpu.dot_dimension_numbers<[1], [0], [0], [1], [0, 0, 1, 1], [], []>} : vector<2x64xf32>, vector<64x64xf32>, vector<2x64xf32> -> vector<2x64xf32>
    %598 = vector.broadcast %457 : vector<1x64xf32> to vector<2x64xf32>
    %599 = arith.addf %597, %598 : vector<2x64xf32>
    %c0_375 = arith.constant 0 : index
    %c6_376 = arith.constant 6 : index
    %c0_377 = arith.constant 0 : index
    %600 = vector.load %arg20[%c0_375, %c6_376, %c0_377] : memref<3x16x64xf32, #tpu.memory_space<vmem>>, vector<1x2x64xf32>
    %601 = vector.shape_cast %600 : vector<1x2x64xf32> to vector<2x64xf32>
    %c0_378 = arith.constant 0 : index
    %c8_379 = arith.constant 8 : index
    %c0_380 = arith.constant 0 : index
    %602 = vector.load %arg20[%c0_378, %c8_379, %c0_380] : memref<3x16x64xf32, #tpu.memory_space<vmem>>, vector<1x2x64xf32>
    %603 = vector.shape_cast %602 : vector<1x2x64xf32> to vector<2x64xf32>
    %604 = arith.select %2, %601, %603 : vector<2x64xi1>, vector<2x64xf32>
    %605 = arith.addf %604, %593 : vector<2x64xf32>
    %606 = arith.negf %605 : vector<2x64xf32>
    %607 = math.exp %606 : vector<2x64xf32>
    %cst_381 = arith.constant 1.000000e+00 : f32
    %608 = vector.broadcast %cst_381 : f32 to vector<2x64xf32>
    %609 = arith.addf %608, %607 : vector<2x64xf32>
    %610 = arith.divf %608, %609 : vector<2x64xf32>
    %c1_382 = arith.constant 1 : index
    %c6_383 = arith.constant 6 : index
    %c0_384 = arith.constant 0 : index
    %611 = vector.load %arg20[%c1_382, %c6_383, %c0_384] : memref<3x16x64xf32, #tpu.memory_space<vmem>>, vector<1x2x64xf32>
    %612 = vector.shape_cast %611 : vector<1x2x64xf32> to vector<2x64xf32>
    %c1_385 = arith.constant 1 : index
    %c8_386 = arith.constant 8 : index
    %c0_387 = arith.constant 0 : index
    %613 = vector.load %arg20[%c1_385, %c8_386, %c0_387] : memref<3x16x64xf32, #tpu.memory_space<vmem>>, vector<1x2x64xf32>
    %614 = vector.shape_cast %613 : vector<1x2x64xf32> to vector<2x64xf32>
    %615 = arith.select %2, %612, %614 : vector<2x64xi1>, vector<2x64xf32>
    %616 = arith.addf %615, %596 : vector<2x64xf32>
    %617 = arith.negf %616 : vector<2x64xf32>
    %618 = math.exp %617 : vector<2x64xf32>
    %cst_388 = arith.constant 1.000000e+00 : f32
    %619 = vector.broadcast %cst_388 : f32 to vector<2x64xf32>
    %620 = arith.addf %619, %618 : vector<2x64xf32>
    %621 = arith.divf %619, %620 : vector<2x64xf32>
    %c2_389 = arith.constant 2 : index
    %c6_390 = arith.constant 6 : index
    %c0_391 = arith.constant 0 : index
    %622 = vector.load %arg20[%c2_389, %c6_390, %c0_391] : memref<3x16x64xf32, #tpu.memory_space<vmem>>, vector<1x2x64xf32>
    %623 = vector.shape_cast %622 : vector<1x2x64xf32> to vector<2x64xf32>
    %c2_392 = arith.constant 2 : index
    %c8_393 = arith.constant 8 : index
    %c0_394 = arith.constant 0 : index
    %624 = vector.load %arg20[%c2_392, %c8_393, %c0_394] : memref<3x16x64xf32, #tpu.memory_space<vmem>>, vector<1x2x64xf32>
    %625 = vector.shape_cast %624 : vector<1x2x64xf32> to vector<2x64xf32>
    %626 = arith.select %2, %623, %625 : vector<2x64xi1>, vector<2x64xf32>
    %627 = arith.mulf %610, %599 : vector<2x64xf32>
    %628 = arith.addf %626, %627 : vector<2x64xf32>
    %629 = math.tanh %628 : vector<2x64xf32>
    %cst_395 = arith.constant 1.000000e+00 : f32
    %630 = vector.broadcast %cst_395 : f32 to vector<2x64xf32>
    %631 = arith.subf %630, %621 : vector<2x64xf32>
    %632 = arith.mulf %631, %629 : vector<2x64xf32>
    %633 = arith.mulf %621, %590 : vector<2x64xf32>
    %634 = arith.addf %632, %633 : vector<2x64xf32>
    %cst_396 = arith.constant dense<0.000000e+00> : vector<2x64xf32>
    %635 = tpu.matmul %634, %447, %cst_396 {dimension_numbers = #tpu.dot_dimension_numbers<[1], [0], [0], [1], [0, 0, 1, 1], [], []>} : vector<2x64xf32>, vector<64x64xf32>, vector<2x64xf32> -> vector<2x64xf32>
    %636 = vector.broadcast %453 : vector<1x64xf32> to vector<2x64xf32>
    %637 = arith.addf %635, %636 : vector<2x64xf32>
    %cst_397 = arith.constant dense<0.000000e+00> : vector<2x64xf32>
    %638 = tpu.matmul %634, %449, %cst_397 {dimension_numbers = #tpu.dot_dimension_numbers<[1], [0], [0], [1], [0, 0, 1, 1], [], []>} : vector<2x64xf32>, vector<64x64xf32>, vector<2x64xf32> -> vector<2x64xf32>
    %639 = vector.broadcast %455 : vector<1x64xf32> to vector<2x64xf32>
    %640 = arith.addf %638, %639 : vector<2x64xf32>
    %cst_398 = arith.constant dense<0.000000e+00> : vector<2x64xf32>
    %641 = tpu.matmul %634, %451, %cst_398 {dimension_numbers = #tpu.dot_dimension_numbers<[1], [0], [0], [1], [0, 0, 1, 1], [], []>} : vector<2x64xf32>, vector<64x64xf32>, vector<2x64xf32> -> vector<2x64xf32>
    %642 = vector.broadcast %457 : vector<1x64xf32> to vector<2x64xf32>
    %643 = arith.addf %641, %642 : vector<2x64xf32>
    %c0_399 = arith.constant 0 : index
    %c8_400 = arith.constant 8 : index
    %c0_401 = arith.constant 0 : index
    %644 = vector.load %arg20[%c0_399, %c8_400, %c0_401] : memref<3x16x64xf32, #tpu.memory_space<vmem>>, vector<1x2x64xf32>
    %645 = vector.shape_cast %644 : vector<1x2x64xf32> to vector<2x64xf32>
    %c0_402 = arith.constant 0 : index
    %c6_403 = arith.constant 6 : index
    %c0_404 = arith.constant 0 : index
    %646 = vector.load %arg20[%c0_402, %c6_403, %c0_404] : memref<3x16x64xf32, #tpu.memory_space<vmem>>, vector<1x2x64xf32>
    %647 = vector.shape_cast %646 : vector<1x2x64xf32> to vector<2x64xf32>
    %648 = arith.select %2, %645, %647 : vector<2x64xi1>, vector<2x64xf32>
    %649 = arith.addf %648, %637 : vector<2x64xf32>
    %650 = arith.negf %649 : vector<2x64xf32>
    %651 = math.exp %650 : vector<2x64xf32>
    %cst_405 = arith.constant 1.000000e+00 : f32
    %652 = vector.broadcast %cst_405 : f32 to vector<2x64xf32>
    %653 = arith.addf %652, %651 : vector<2x64xf32>
    %654 = arith.divf %652, %653 : vector<2x64xf32>
    %c1_406 = arith.constant 1 : index
    %c8_407 = arith.constant 8 : index
    %c0_408 = arith.constant 0 : index
    %655 = vector.load %arg20[%c1_406, %c8_407, %c0_408] : memref<3x16x64xf32, #tpu.memory_space<vmem>>, vector<1x2x64xf32>
    %656 = vector.shape_cast %655 : vector<1x2x64xf32> to vector<2x64xf32>
    %c1_409 = arith.constant 1 : index
    %c6_410 = arith.constant 6 : index
    %c0_411 = arith.constant 0 : index
    %657 = vector.load %arg20[%c1_409, %c6_410, %c0_411] : memref<3x16x64xf32, #tpu.memory_space<vmem>>, vector<1x2x64xf32>
    %658 = vector.shape_cast %657 : vector<1x2x64xf32> to vector<2x64xf32>
    %659 = arith.select %2, %656, %658 : vector<2x64xi1>, vector<2x64xf32>
    %660 = arith.addf %659, %640 : vector<2x64xf32>
    %661 = arith.negf %660 : vector<2x64xf32>
    %662 = math.exp %661 : vector<2x64xf32>
    %cst_412 = arith.constant 1.000000e+00 : f32
    %663 = vector.broadcast %cst_412 : f32 to vector<2x64xf32>
    %664 = arith.addf %663, %662 : vector<2x64xf32>
    %665 = arith.divf %663, %664 : vector<2x64xf32>
    %c2_413 = arith.constant 2 : index
    %c8_414 = arith.constant 8 : index
    %c0_415 = arith.constant 0 : index
    %666 = vector.load %arg20[%c2_413, %c8_414, %c0_415] : memref<3x16x64xf32, #tpu.memory_space<vmem>>, vector<1x2x64xf32>
    %667 = vector.shape_cast %666 : vector<1x2x64xf32> to vector<2x64xf32>
    %c2_416 = arith.constant 2 : index
    %c6_417 = arith.constant 6 : index
    %c0_418 = arith.constant 0 : index
    %668 = vector.load %arg20[%c2_416, %c6_417, %c0_418] : memref<3x16x64xf32, #tpu.memory_space<vmem>>, vector<1x2x64xf32>
    %669 = vector.shape_cast %668 : vector<1x2x64xf32> to vector<2x64xf32>
    %670 = arith.select %2, %667, %669 : vector<2x64xi1>, vector<2x64xf32>
    %671 = arith.mulf %654, %643 : vector<2x64xf32>
    %672 = arith.addf %670, %671 : vector<2x64xf32>
    %673 = math.tanh %672 : vector<2x64xf32>
    %cst_419 = arith.constant 1.000000e+00 : f32
    %674 = vector.broadcast %cst_419 : f32 to vector<2x64xf32>
    %675 = arith.subf %674, %665 : vector<2x64xf32>
    %676 = arith.mulf %675, %673 : vector<2x64xf32>
    %677 = arith.mulf %665, %634 : vector<2x64xf32>
    %678 = arith.addf %676, %677 : vector<2x64xf32>
    %cst_420 = arith.constant dense<0.000000e+00> : vector<2x64xf32>
    %679 = tpu.matmul %678, %447, %cst_420 {dimension_numbers = #tpu.dot_dimension_numbers<[1], [0], [0], [1], [0, 0, 1, 1], [], []>} : vector<2x64xf32>, vector<64x64xf32>, vector<2x64xf32> -> vector<2x64xf32>
    %680 = vector.broadcast %453 : vector<1x64xf32> to vector<2x64xf32>
    %681 = arith.addf %679, %680 : vector<2x64xf32>
    %cst_421 = arith.constant dense<0.000000e+00> : vector<2x64xf32>
    %682 = tpu.matmul %678, %449, %cst_421 {dimension_numbers = #tpu.dot_dimension_numbers<[1], [0], [0], [1], [0, 0, 1, 1], [], []>} : vector<2x64xf32>, vector<64x64xf32>, vector<2x64xf32> -> vector<2x64xf32>
    %683 = vector.broadcast %455 : vector<1x64xf32> to vector<2x64xf32>
    %684 = arith.addf %682, %683 : vector<2x64xf32>
    %cst_422 = arith.constant dense<0.000000e+00> : vector<2x64xf32>
    %685 = tpu.matmul %678, %451, %cst_422 {dimension_numbers = #tpu.dot_dimension_numbers<[1], [0], [0], [1], [0, 0, 1, 1], [], []>} : vector<2x64xf32>, vector<64x64xf32>, vector<2x64xf32> -> vector<2x64xf32>
    %686 = vector.broadcast %457 : vector<1x64xf32> to vector<2x64xf32>
    %687 = arith.addf %685, %686 : vector<2x64xf32>
    %c0_423 = arith.constant 0 : index
    %c10_424 = arith.constant 10 : index
    %c0_425 = arith.constant 0 : index
    %688 = vector.load %arg20[%c0_423, %c10_424, %c0_425] : memref<3x16x64xf32, #tpu.memory_space<vmem>>, vector<1x2x64xf32>
    %689 = vector.shape_cast %688 : vector<1x2x64xf32> to vector<2x64xf32>
    %c0_426 = arith.constant 0 : index
    %c4_427 = arith.constant 4 : index
    %c0_428 = arith.constant 0 : index
    %690 = vector.load %arg20[%c0_426, %c4_427, %c0_428] : memref<3x16x64xf32, #tpu.memory_space<vmem>>, vector<1x2x64xf32>
    %691 = vector.shape_cast %690 : vector<1x2x64xf32> to vector<2x64xf32>
    %692 = arith.select %2, %689, %691 : vector<2x64xi1>, vector<2x64xf32>
    %693 = arith.addf %692, %681 : vector<2x64xf32>
    %694 = arith.negf %693 : vector<2x64xf32>
    %695 = math.exp %694 : vector<2x64xf32>
    %cst_429 = arith.constant 1.000000e+00 : f32
    %696 = vector.broadcast %cst_429 : f32 to vector<2x64xf32>
    %697 = arith.addf %696, %695 : vector<2x64xf32>
    %698 = arith.divf %696, %697 : vector<2x64xf32>
    %c1_430 = arith.constant 1 : index
    %c10_431 = arith.constant 10 : index
    %c0_432 = arith.constant 0 : index
    %699 = vector.load %arg20[%c1_430, %c10_431, %c0_432] : memref<3x16x64xf32, #tpu.memory_space<vmem>>, vector<1x2x64xf32>
    %700 = vector.shape_cast %699 : vector<1x2x64xf32> to vector<2x64xf32>
    %c1_433 = arith.constant 1 : index
    %c4_434 = arith.constant 4 : index
    %c0_435 = arith.constant 0 : index
    %701 = vector.load %arg20[%c1_433, %c4_434, %c0_435] : memref<3x16x64xf32, #tpu.memory_space<vmem>>, vector<1x2x64xf32>
    %702 = vector.shape_cast %701 : vector<1x2x64xf32> to vector<2x64xf32>
    %703 = arith.select %2, %700, %702 : vector<2x64xi1>, vector<2x64xf32>
    %704 = arith.addf %703, %684 : vector<2x64xf32>
    %705 = arith.negf %704 : vector<2x64xf32>
    %706 = math.exp %705 : vector<2x64xf32>
    %cst_436 = arith.constant 1.000000e+00 : f32
    %707 = vector.broadcast %cst_436 : f32 to vector<2x64xf32>
    %708 = arith.addf %707, %706 : vector<2x64xf32>
    %709 = arith.divf %707, %708 : vector<2x64xf32>
    %c2_437 = arith.constant 2 : index
    %c10_438 = arith.constant 10 : index
    %c0_439 = arith.constant 0 : index
    %710 = vector.load %arg20[%c2_437, %c10_438, %c0_439] : memref<3x16x64xf32, #tpu.memory_space<vmem>>, vector<1x2x64xf32>
    %711 = vector.shape_cast %710 : vector<1x2x64xf32> to vector<2x64xf32>
    %c2_440 = arith.constant 2 : index
    %c4_441 = arith.constant 4 : index
    %c0_442 = arith.constant 0 : index
    %712 = vector.load %arg20[%c2_440, %c4_441, %c0_442] : memref<3x16x64xf32, #tpu.memory_space<vmem>>, vector<1x2x64xf32>
    %713 = vector.shape_cast %712 : vector<1x2x64xf32> to vector<2x64xf32>
    %714 = arith.select %2, %711, %713 : vector<2x64xi1>, vector<2x64xf32>
    %715 = arith.mulf %698, %687 : vector<2x64xf32>
    %716 = arith.addf %714, %715 : vector<2x64xf32>
    %717 = math.tanh %716 : vector<2x64xf32>
    %cst_443 = arith.constant 1.000000e+00 : f32
    %718 = vector.broadcast %cst_443 : f32 to vector<2x64xf32>
    %719 = arith.subf %718, %709 : vector<2x64xf32>
    %720 = arith.mulf %719, %717 : vector<2x64xf32>
    %721 = arith.mulf %709, %678 : vector<2x64xf32>
    %722 = arith.addf %720, %721 : vector<2x64xf32>
    %cst_444 = arith.constant dense<0.000000e+00> : vector<2x64xf32>
    %723 = tpu.matmul %722, %447, %cst_444 {dimension_numbers = #tpu.dot_dimension_numbers<[1], [0], [0], [1], [0, 0, 1, 1], [], []>} : vector<2x64xf32>, vector<64x64xf32>, vector<2x64xf32> -> vector<2x64xf32>
    %724 = vector.broadcast %453 : vector<1x64xf32> to vector<2x64xf32>
    %725 = arith.addf %723, %724 : vector<2x64xf32>
    %cst_445 = arith.constant dense<0.000000e+00> : vector<2x64xf32>
    %726 = tpu.matmul %722, %449, %cst_445 {dimension_numbers = #tpu.dot_dimension_numbers<[1], [0], [0], [1], [0, 0, 1, 1], [], []>} : vector<2x64xf32>, vector<64x64xf32>, vector<2x64xf32> -> vector<2x64xf32>
    %727 = vector.broadcast %455 : vector<1x64xf32> to vector<2x64xf32>
    %728 = arith.addf %726, %727 : vector<2x64xf32>
    %cst_446 = arith.constant dense<0.000000e+00> : vector<2x64xf32>
    %729 = tpu.matmul %722, %451, %cst_446 {dimension_numbers = #tpu.dot_dimension_numbers<[1], [0], [0], [1], [0, 0, 1, 1], [], []>} : vector<2x64xf32>, vector<64x64xf32>, vector<2x64xf32> -> vector<2x64xf32>
    %730 = vector.broadcast %457 : vector<1x64xf32> to vector<2x64xf32>
    %731 = arith.addf %729, %730 : vector<2x64xf32>
    %c0_447 = arith.constant 0 : index
    %c12_448 = arith.constant 12 : index
    %c0_449 = arith.constant 0 : index
    %732 = vector.load %arg20[%c0_447, %c12_448, %c0_449] : memref<3x16x64xf32, #tpu.memory_space<vmem>>, vector<1x2x64xf32>
    %733 = vector.shape_cast %732 : vector<1x2x64xf32> to vector<2x64xf32>
    %c0_450 = arith.constant 0 : index
    %c2_451 = arith.constant 2 : index
    %c0_452 = arith.constant 0 : index
    %734 = vector.load %arg20[%c0_450, %c2_451, %c0_452] : memref<3x16x64xf32, #tpu.memory_space<vmem>>, vector<1x2x64xf32>
    %735 = vector.shape_cast %734 : vector<1x2x64xf32> to vector<2x64xf32>
    %736 = arith.select %2, %733, %735 : vector<2x64xi1>, vector<2x64xf32>
    %737 = arith.addf %736, %725 : vector<2x64xf32>
    %738 = arith.negf %737 : vector<2x64xf32>
    %739 = math.exp %738 : vector<2x64xf32>
    %cst_453 = arith.constant 1.000000e+00 : f32
    %740 = vector.broadcast %cst_453 : f32 to vector<2x64xf32>
    %741 = arith.addf %740, %739 : vector<2x64xf32>
    %742 = arith.divf %740, %741 : vector<2x64xf32>
    %c1_454 = arith.constant 1 : index
    %c12_455 = arith.constant 12 : index
    %c0_456 = arith.constant 0 : index
    %743 = vector.load %arg20[%c1_454, %c12_455, %c0_456] : memref<3x16x64xf32, #tpu.memory_space<vmem>>, vector<1x2x64xf32>
    %744 = vector.shape_cast %743 : vector<1x2x64xf32> to vector<2x64xf32>
    %c1_457 = arith.constant 1 : index
    %c2_458 = arith.constant 2 : index
    %c0_459 = arith.constant 0 : index
    %745 = vector.load %arg20[%c1_457, %c2_458, %c0_459] : memref<3x16x64xf32, #tpu.memory_space<vmem>>, vector<1x2x64xf32>
    %746 = vector.shape_cast %745 : vector<1x2x64xf32> to vector<2x64xf32>
    %747 = arith.select %2, %744, %746 : vector<2x64xi1>, vector<2x64xf32>
    %748 = arith.addf %747, %728 : vector<2x64xf32>
    %749 = arith.negf %748 : vector<2x64xf32>
    %750 = math.exp %749 : vector<2x64xf32>
    %cst_460 = arith.constant 1.000000e+00 : f32
    %751 = vector.broadcast %cst_460 : f32 to vector<2x64xf32>
    %752 = arith.addf %751, %750 : vector<2x64xf32>
    %753 = arith.divf %751, %752 : vector<2x64xf32>
    %c2_461 = arith.constant 2 : index
    %c12_462 = arith.constant 12 : index
    %c0_463 = arith.constant 0 : index
    %754 = vector.load %arg20[%c2_461, %c12_462, %c0_463] : memref<3x16x64xf32, #tpu.memory_space<vmem>>, vector<1x2x64xf32>
    %755 = vector.shape_cast %754 : vector<1x2x64xf32> to vector<2x64xf32>
    %c2_464 = arith.constant 2 : index
    %c2_465 = arith.constant 2 : index
    %c0_466 = arith.constant 0 : index
    %756 = vector.load %arg20[%c2_464, %c2_465, %c0_466] : memref<3x16x64xf32, #tpu.memory_space<vmem>>, vector<1x2x64xf32>
    %757 = vector.shape_cast %756 : vector<1x2x64xf32> to vector<2x64xf32>
    %758 = arith.select %2, %755, %757 : vector<2x64xi1>, vector<2x64xf32>
    %759 = arith.mulf %742, %731 : vector<2x64xf32>
    %760 = arith.addf %758, %759 : vector<2x64xf32>
    %761 = math.tanh %760 : vector<2x64xf32>
    %cst_467 = arith.constant 1.000000e+00 : f32
    %762 = vector.broadcast %cst_467 : f32 to vector<2x64xf32>
    %763 = arith.subf %762, %753 : vector<2x64xf32>
    %764 = arith.mulf %763, %761 : vector<2x64xf32>
    %765 = arith.mulf %753, %722 : vector<2x64xf32>
    %766 = arith.addf %764, %765 : vector<2x64xf32>
    %cst_468 = arith.constant dense<0.000000e+00> : vector<2x64xf32>
    %767 = tpu.matmul %766, %447, %cst_468 {dimension_numbers = #tpu.dot_dimension_numbers<[1], [0], [0], [1], [0, 0, 1, 1], [], []>} : vector<2x64xf32>, vector<64x64xf32>, vector<2x64xf32> -> vector<2x64xf32>
    %768 = vector.broadcast %453 : vector<1x64xf32> to vector<2x64xf32>
    %769 = arith.addf %767, %768 : vector<2x64xf32>
    %cst_469 = arith.constant dense<0.000000e+00> : vector<2x64xf32>
    %770 = tpu.matmul %766, %449, %cst_469 {dimension_numbers = #tpu.dot_dimension_numbers<[1], [0], [0], [1], [0, 0, 1, 1], [], []>} : vector<2x64xf32>, vector<64x64xf32>, vector<2x64xf32> -> vector<2x64xf32>
    %771 = vector.broadcast %455 : vector<1x64xf32> to vector<2x64xf32>
    %772 = arith.addf %770, %771 : vector<2x64xf32>
    %cst_470 = arith.constant dense<0.000000e+00> : vector<2x64xf32>
    %773 = tpu.matmul %766, %451, %cst_470 {dimension_numbers = #tpu.dot_dimension_numbers<[1], [0], [0], [1], [0, 0, 1, 1], [], []>} : vector<2x64xf32>, vector<64x64xf32>, vector<2x64xf32> -> vector<2x64xf32>
    %774 = vector.broadcast %457 : vector<1x64xf32> to vector<2x64xf32>
    %775 = arith.addf %773, %774 : vector<2x64xf32>
    %c0_471 = arith.constant 0 : index
    %c14_472 = arith.constant 14 : index
    %c0_473 = arith.constant 0 : index
    %776 = vector.load %arg20[%c0_471, %c14_472, %c0_473] : memref<3x16x64xf32, #tpu.memory_space<vmem>>, vector<1x2x64xf32>
    %777 = vector.shape_cast %776 : vector<1x2x64xf32> to vector<2x64xf32>
    %c0_474 = arith.constant 0 : index
    %c0_475 = arith.constant 0 : index
    %c0_476 = arith.constant 0 : index
    %778 = vector.load %arg20[%c0_474, %c0_475, %c0_476] : memref<3x16x64xf32, #tpu.memory_space<vmem>>, vector<1x2x64xf32>
    %779 = vector.shape_cast %778 : vector<1x2x64xf32> to vector<2x64xf32>
    %780 = arith.select %2, %777, %779 : vector<2x64xi1>, vector<2x64xf32>
    %781 = arith.addf %780, %769 : vector<2x64xf32>
    %782 = arith.negf %781 : vector<2x64xf32>
    %783 = math.exp %782 : vector<2x64xf32>
    %cst_477 = arith.constant 1.000000e+00 : f32
    %784 = vector.broadcast %cst_477 : f32 to vector<2x64xf32>
    %785 = arith.addf %784, %783 : vector<2x64xf32>
    %786 = arith.divf %784, %785 : vector<2x64xf32>
    %c1_478 = arith.constant 1 : index
    %c14_479 = arith.constant 14 : index
    %c0_480 = arith.constant 0 : index
    %787 = vector.load %arg20[%c1_478, %c14_479, %c0_480] : memref<3x16x64xf32, #tpu.memory_space<vmem>>, vector<1x2x64xf32>
    %788 = vector.shape_cast %787 : vector<1x2x64xf32> to vector<2x64xf32>
    %c1_481 = arith.constant 1 : index
    %c0_482 = arith.constant 0 : index
    %c0_483 = arith.constant 0 : index
    %789 = vector.load %arg20[%c1_481, %c0_482, %c0_483] : memref<3x16x64xf32, #tpu.memory_space<vmem>>, vector<1x2x64xf32>
    %790 = vector.shape_cast %789 : vector<1x2x64xf32> to vector<2x64xf32>
    %791 = arith.select %2, %788, %790 : vector<2x64xi1>, vector<2x64xf32>
    %792 = arith.addf %791, %772 : vector<2x64xf32>
    %793 = arith.negf %792 : vector<2x64xf32>
    %794 = math.exp %793 : vector<2x64xf32>
    %cst_484 = arith.constant 1.000000e+00 : f32
    %795 = vector.broadcast %cst_484 : f32 to vector<2x64xf32>
    %796 = arith.addf %795, %794 : vector<2x64xf32>
    %797 = arith.divf %795, %796 : vector<2x64xf32>
    %c2_485 = arith.constant 2 : index
    %c14_486 = arith.constant 14 : index
    %c0_487 = arith.constant 0 : index
    %798 = vector.load %arg20[%c2_485, %c14_486, %c0_487] : memref<3x16x64xf32, #tpu.memory_space<vmem>>, vector<1x2x64xf32>
    %799 = vector.shape_cast %798 : vector<1x2x64xf32> to vector<2x64xf32>
    %c2_488 = arith.constant 2 : index
    %c0_489 = arith.constant 0 : index
    %c0_490 = arith.constant 0 : index
    %800 = vector.load %arg20[%c2_488, %c0_489, %c0_490] : memref<3x16x64xf32, #tpu.memory_space<vmem>>, vector<1x2x64xf32>
    %801 = vector.shape_cast %800 : vector<1x2x64xf32> to vector<2x64xf32>
    %802 = arith.select %2, %799, %801 : vector<2x64xi1>, vector<2x64xf32>
    %803 = arith.mulf %786, %775 : vector<2x64xf32>
    %804 = arith.addf %802, %803 : vector<2x64xf32>
    %805 = math.tanh %804 : vector<2x64xf32>
    %cst_491 = arith.constant 1.000000e+00 : f32
    %806 = vector.broadcast %cst_491 : f32 to vector<2x64xf32>
    %807 = arith.subf %806, %797 : vector<2x64xf32>
    %808 = arith.mulf %807, %805 : vector<2x64xf32>
    %809 = arith.mulf %797, %766 : vector<2x64xf32>
    %810 = arith.addf %808, %809 : vector<2x64xf32>
    %811 = arith.select %2, %502, %810 : vector<2x64xi1>, vector<2x64xf32>
    %c0_492 = arith.constant 0 : index
    %c0_493 = arith.constant 0 : index
    %812 = vector.load %arg19[%c0_492, %c0_493] : memref<16x64xf32, #tpu.memory_space<vmem>>, vector<2x64xf32>
    tpu.vector_store %arg19[%c0_492, %c0_493], %811 {strides = array<i32>} : memref<16x64xf32, #tpu.memory_space<vmem>>, vector<2x64xf32>,
    %813 = arith.select %2, %546, %766 : vector<2x64xi1>, vector<2x64xf32>
    %c2_494 = arith.constant 2 : index
    %c0_495 = arith.constant 0 : index
    %814 = vector.load %arg19[%c2_494, %c0_495] : memref<16x64xf32, #tpu.memory_space<vmem>>, vector<2x64xf32>
    tpu.vector_store %arg19[%c2_494, %c0_495], %813 {strides = array<i32>} : memref<16x64xf32, #tpu.memory_space<vmem>>, vector<2x64xf32>,
    %815 = arith.select %2, %590, %722 : vector<2x64xi1>, vector<2x64xf32>
    %c4_496 = arith.constant 4 : index
    %c0_497 = arith.constant 0 : index
    %816 = vector.load %arg19[%c4_496, %c0_497] : memref<16x64xf32, #tpu.memory_space<vmem>>, vector<2x64xf32>
    tpu.vector_store %arg19[%c4_496, %c0_497], %815 {strides = array<i32>} : memref<16x64xf32, #tpu.memory_space<vmem>>, vector<2x64xf32>,
    %817 = arith.select %2, %634, %678 : vector<2x64xi1>, vector<2x64xf32>
    %c6_498 = arith.constant 6 : index
    %c0_499 = arith.constant 0 : index
    %818 = vector.load %arg19[%c6_498, %c0_499] : memref<16x64xf32, #tpu.memory_space<vmem>>, vector<2x64xf32>
    tpu.vector_store %arg19[%c6_498, %c0_499], %817 {strides = array<i32>} : memref<16x64xf32, #tpu.memory_space<vmem>>, vector<2x64xf32>,
    %819 = arith.select %2, %678, %634 : vector<2x64xi1>, vector<2x64xf32>
    %c8_500 = arith.constant 8 : index
    %c0_501 = arith.constant 0 : index
    %820 = vector.load %arg19[%c8_500, %c0_501] : memref<16x64xf32, #tpu.memory_space<vmem>>, vector<2x64xf32>
    tpu.vector_store %arg19[%c8_500, %c0_501], %819 {strides = array<i32>} : memref<16x64xf32, #tpu.memory_space<vmem>>, vector<2x64xf32>,
    %821 = arith.select %2, %722, %590 : vector<2x64xi1>, vector<2x64xf32>
    %c10_502 = arith.constant 10 : index
    %c0_503 = arith.constant 0 : index
    %822 = vector.load %arg19[%c10_502, %c0_503] : memref<16x64xf32, #tpu.memory_space<vmem>>, vector<2x64xf32>
    tpu.vector_store %arg19[%c10_502, %c0_503], %821 {strides = array<i32>} : memref<16x64xf32, #tpu.memory_space<vmem>>, vector<2x64xf32>,
    %823 = arith.select %2, %766, %546 : vector<2x64xi1>, vector<2x64xf32>
    %c12_504 = arith.constant 12 : index
    %c0_505 = arith.constant 0 : index
    %824 = vector.load %arg19[%c12_504, %c0_505] : memref<16x64xf32, #tpu.memory_space<vmem>>, vector<2x64xf32>
    tpu.vector_store %arg19[%c12_504, %c0_505], %823 {strides = array<i32>} : memref<16x64xf32, #tpu.memory_space<vmem>>, vector<2x64xf32>,
    %825 = arith.select %2, %810, %502 : vector<2x64xi1>, vector<2x64xf32>
    %c14_506 = arith.constant 14 : index
    %c0_507 = arith.constant 0 : index
    %826 = vector.load %arg19[%c14_506, %c0_507] : memref<16x64xf32, #tpu.memory_space<vmem>>, vector<2x64xf32>
    tpu.vector_store %arg19[%c14_506, %c0_507], %825 {strides = array<i32>} : memref<16x64xf32, #tpu.memory_space<vmem>>, vector<2x64xf32>,
    %c0_508 = arith.constant 0 : index
    %c0_509 = arith.constant 0 : index
    %827 = vector.load %arg19[%c0_508, %c0_509] : memref<16x64xf32, #tpu.memory_space<vmem>>, vector<16x64xf32>
    %c0_510 = arith.constant 0 : index
    %c0_511 = arith.constant 0 : index
    %828 = vector.load %arg1[%c0_510, %c0_511] : memref<16x16xf32, #tpu.memory_space<vmem>>, vector<16x16xf32>
    %c0_512 = arith.constant 0 : index
    %c0_513 = arith.constant 0 : index
    %829 = vector.load %arg11[%c0_512, %c0_513] : memref<64x64xf32, #tpu.memory_space<vmem>>, vector<64x64xf32>
    %cst_514 = arith.constant dense<0.000000e+00> : vector<16x64xf32>
    %830 = tpu.matmul %827, %829, %cst_514 {dimension_numbers = #tpu.dot_dimension_numbers<[1], [0], [0], [1], [0, 0, 1, 1], [], []>} : vector<16x64xf32>, vector<64x64xf32>, vector<16x64xf32> -> vector<16x64xf32>
    %c0_515 = arith.constant 0 : index
    %c0_516 = arith.constant 0 : index
    %831 = vector.load %arg12[%c0_515, %c0_516] : memref<1x64xf32, #tpu.memory_space<vmem>>, vector<1x64xf32>
    %832 = vector.broadcast %831 : vector<1x64xf32> to vector<16x64xf32>
    %833 = arith.addf %830, %832 : vector<16x64xf32>
    %cst_517 = arith.constant dense<0.000000e+00> : vector<16x16xf32>
    %834 = tpu.matmul %833, %827, %cst_517 {dimension_numbers = #tpu.dot_dimension_numbers<[1], [1], [0], [0], [0, 0, 1, 0], [], []>} : vector<16x64xf32>, vector<16x64xf32>, vector<16x16xf32> -> vector<16x16xf32>
    %835 = arith.mulf %834, %828 : vector<16x16xf32>
    %836 = math.tanh %835 : vector<16x16xf32>
    %cst_518 = arith.constant dense<0xFF800000> : vector<16xf32>
    %837 = vector.multi_reduction <maximumf>, %836, %cst_518 [1] : vector<16x16xf32> to vector<16xf32>
    %838 = vector.shape_cast %837 : vector<16xf32> to vector<16x1xf32>
    %839 = vector.broadcast %838 : vector<16x1xf32> to vector<16x16xf32>
    %840 = arith.subf %836, %839 : vector<16x16xf32>
    %841 = math.exp %840 : vector<16x16xf32>
    %842 = arith.mulf %841, %828 : vector<16x16xf32>
    %cst_519 = arith.constant dense<0.000000e+00> : vector<16xf32>
    %843 = vector.multi_reduction <add>, %842, %cst_519 [1] : vector<16x16xf32> to vector<16xf32>
    %844 = vector.shape_cast %843 : vector<16xf32> to vector<16x1xf32>
    %845 = vector.broadcast %844 : vector<16x1xf32> to vector<16x16xf32>
    %846 = arith.divf %842, %845 : vector<16x16xf32>
    %cst_520 = arith.constant dense<0.000000e+00> : vector<16x64xf32>
    %847 = tpu.matmul %846, %827, %cst_520 {dimension_numbers = #tpu.dot_dimension_numbers<[1], [0], [0], [1], [0, 0, 1, 1], [], []>} : vector<16x16xf32>, vector<16x64xf32>, vector<16x64xf32> -> vector<16x64xf32>
    %c0_521 = arith.constant 0 : index
    %c0_522 = arith.constant 0 : index
    %848 = vector.load %arg13[%c0_521, %c0_522] : memref<64x32xf32, #tpu.memory_space<vmem>>, vector<64x32xf32>
    %cst_523 = arith.constant dense<0.000000e+00> : vector<16x32xf32>
    %849 = tpu.matmul %847, %848, %cst_523 {dimension_numbers = #tpu.dot_dimension_numbers<[1], [0], [0], [1], [0, 0, 1, 1], [], []>} : vector<16x64xf32>, vector<64x32xf32>, vector<16x32xf32> -> vector<16x32xf32>
    %c0_524 = arith.constant 0 : index
    %c0_525 = arith.constant 0 : index
    %850 = vector.load %arg14[%c0_524, %c0_525] : memref<1x32xf32, #tpu.memory_space<vmem>>, vector<1x32xf32>
    %851 = vector.broadcast %850 : vector<1x32xf32> to vector<16x32xf32>
    %852 = arith.addf %849, %851 : vector<16x32xf32>
    %cst_526 = arith.constant 0.000000e+00 : f32
    %853 = vector.broadcast %cst_526 : f32 to vector<16x32xf32>
    %854 = arith.maximumf %852, %853 : vector<16x32xf32>
    %c0_527 = arith.constant 0 : index
    %c0_528 = arith.constant 0 : index
    %855 = vector.load %arg15[%c0_527, %c0_528] : memref<32x7xf32, #tpu.memory_space<vmem>>, vector<32x7xf32>
    %cst_529 = arith.constant dense<0.000000e+00> : vector<16x7xf32>
    %856 = tpu.matmul %854, %855, %cst_529 {dimension_numbers = #tpu.dot_dimension_numbers<[1], [0], [0], [1], [0, 0, 1, 1], [], []>} : vector<16x32xf32>, vector<32x7xf32>, vector<16x7xf32> -> vector<16x7xf32>
    %c0_530 = arith.constant 0 : index
    %c0_531 = arith.constant 0 : index
    %857 = vector.load %arg16[%c0_530, %c0_531] : memref<1x7xf32, #tpu.memory_space<vmem>>, vector<1x7xf32>
    %858 = vector.broadcast %857 : vector<1x7xf32> to vector<16x7xf32>
    %859 = arith.addf %856, %858 : vector<16x7xf32>
    %cst_532 = arith.constant dense<0xFF800000> : vector<16xf32>
    %860 = vector.multi_reduction <maximumf>, %859, %cst_532 [1] : vector<16x7xf32> to vector<16xf32>
    %861 = vector.shape_cast %860 : vector<16xf32> to vector<16x1xf32>
    %862 = vector.broadcast %861 : vector<16x1xf32> to vector<16x7xf32>
    %863 = arith.subf %859, %862 : vector<16x7xf32>
    %864 = math.exp %863 : vector<16x7xf32>
    %cst_533 = arith.constant dense<0.000000e+00> : vector<16xf32>
    %865 = vector.multi_reduction <add>, %864, %cst_533 [1] : vector<16x7xf32> to vector<16xf32>
    %866 = vector.shape_cast %865 : vector<16xf32> to vector<16x1xf32>
    %867 = math.log %866 : vector<16x1xf32>
    %868 = arith.addf %861, %867 : vector<16x1xf32>
    %869 = vector.broadcast %868 : vector<16x1xf32> to vector<16x7xf32>
    %870 = arith.subf %859, %869 : vector<16x7xf32>
    %c0_534 = arith.constant 0 : index
    %c0_535 = arith.constant 0 : index
    %871 = vector.load %arg17[%c0_534, %c0_535] : memref<16x7xf32, #tpu.memory_space<vmem>>, vector<16x7xf32>
    tpu.vector_store %arg17[%c0_534, %c0_535], %870 {strides = array<i32>} : memref<16x7xf32, #tpu.memory_space<vmem>>, vector<16x7xf32>,
    %c0_536 = arith.constant 0 : index
    %c0_537 = arith.constant 0 : index
    %872 = vector.load %arg2[%c0_536, %c0_537] : memref<16x8xf32, #tpu.memory_space<vmem>>, vector<16x8xf32>
    %cst_538 = arith.constant dense<0.000000e+00> : vector<16x8xf32>
    %873 = tpu.matmul %846, %872, %cst_538 {dimension_numbers = #tpu.dot_dimension_numbers<[1], [0], [0], [1], [0, 0, 1, 1], [], []>} : vector<16x16xf32>, vector<16x8xf32>, vector<16x8xf32> -> vector<16x8xf32>
    %c0_539 = arith.constant 0 : index
    %c0_540 = arith.constant 0 : index
    %874 = vector.load %arg18[%c0_539, %c0_540] : memref<16x8xf32, #tpu.memory_space<vmem>>, vector<16x8xf32>
    tpu.vector_store %arg18[%c0_539, %c0_540], %873 {strides = array<i32>} : memref<16x8xf32, #tpu.memory_space<vmem>>, vector<16x8xf32>,
    return
  }
}

</mosaic_0001>

<llo_original>
// kernel: mul.5
$region0: #{mul.5}
  %s0 = inlined_call_operand.vmem [shape: f32[8,2], index: 0, kind: input, shape index: {}]
  %s1 = inlined_call_operand.vmem [shape: f32[16], index: 1, kind: output, shape index: {}]
  $region1: #{mul.5} parent=0
    #allocation0 [shape = 'u8[4096]{0}', space=vmem, size = 0x1000, scoped, tag = 'scoped mem for output reshape']
    %v2 = vld [vmem:[%s0] sm:$0x1]
    %vm3 = vcmask 15360
    %4 = vst.msk [vmem:[#allocation0] sm:$0x1] %vm3, %v2
    %s5 = scalar_lea.vmem %s0, 7
    %v6 = vld [vmem:[%s5] sm:$0x1]
    %7 = vrot.lane.b32.xlu0 %v6, 14
    %v8 = vpop.permute.xlu0 %7
    %vm9 = vcmask 130160
    %10 = vst.msk [vmem:[#allocation0] sm:$0x1] %vm9, %v8
    %s11 = scalar_lea.vmem %s0, 6
    %v12 = vld [vmem:[%s11] sm:$0x1]
    %13 = vrot.lane.b32.xlu0 %v12, 12
    %v14 = vpop.permute.xlu0 %13
    %vm15 = vcmask 113760
    %16 = vst.msk [vmem:[#allocation0] sm:$0x1] %vm15, %v14
    %s17 = scalar_lea.vmem %s0, 5
    %v18 = vld [vmem:[%s17] sm:$0x1]
    %19 = vrot.lane.b32.xlu0 %v18, 10
    %v20 = vpop.permute.xlu0 %19
    %vm21 = vcmask 97360
    %22 = vst.msk [vmem:[#allocation0] sm:$0x1] %vm21, %v20
    %s23 = scalar_lea.vmem %s0, 4
    %v24 = vld [vmem:[%s23] sm:$0x1]
    %25 = vrot.lane.b32.xlu0 %v24, 8
    %v26 = vpop.permute.xlu0 %25
    %vm27 = vcmask 80960
    %28 = vst.msk [vmem:[#allocation0] sm:$0x1] %vm27, %v26
    %s29 = scalar_lea.vmem %s0, 3
    %v30 = vld [vmem:[%s29] sm:$0x1]
    %31 = vrot.lane.b32.xlu0 %v30, 6
    %v32 = vpop.permute.xlu0 %31
    %vm33 = vcmask 64560
    %34 = vst.msk [vmem:[#allocation0] sm:$0x1] %vm33, %v32
    %s35 = scalar_lea.vmem %s0, 2
    %v36 = vld [vmem:[%s35] sm:$0x1]
    %37 = vrot.lane.b32.xlu0 %v36, 4
    %v38 = vpop.permute.xlu0 %37
    %vm39 = vcmask 48160
    %40 = vst.msk [vmem:[#allocation0] sm:$0x1] %vm39, %v38
    %s41 = scalar_lea.vmem %s0, 1
    %v42 = vld [vmem:[%s41] sm:$0x1]
    %43 = vrot.lane.b32.xlu0 %v42, 2
    %v44 = vpop.permute.xlu0 %43
    %vm45 = vcmask 31760
    %46 = vst.msk [vmem:[#allocation0] sm:$0x1] %vm45, %v44
    %s48 = sshll.u32 1, 1
    %s49 = ssub.s32 %s48, 1
    %v51 = vld [vmem:[#allocation0] sm:%s49]
    %s52 = sshll.u32 1, 1
    %s53 = ssub.s32 %s52, 1
    %54 = vst [vmem:[%s1] sm:%s53] %v51

// kernel: gru_model_forward.1
$region0: #{gru_model_forward.1}
  #allocation0 [shape = 'u32[]', space=smem, size = 0x4, offset = 0x4, fixed_abs, tag = 'smem constant byte address 0x4 - core index']
  #allocation1 [shape = 'u32[144,128]{1,0:T(1,128)}', space=vmem, size = 0x12000, scoped, tag = 'internal scratch']
  #allocation2 [shape = 'f32[3,16,64]{2,1,0:T(8,128)}', space=vmem, size = 0x6000, scoped, tag = 'scratch operand']
  #allocation3 [shape = 'f32[16,64]{1,0:T(8,128)}', space=vmem, size = 0x2000, scoped, tag = 'scratch operand']
  %s0 = inlined_call_operand.vmem [shape: f32[16,16], index: 0, kind: input, shape index: {}]
  %s1 = inlined_call_operand.vmem [shape: f32[16,16], index: 1, kind: input, shape index: {}]
  %s2 = inlined_call_operand.vmem [shape: f32[16,8], index: 2, kind: input, shape index: {}]
  %s3 = inlined_call_operand.hbm [shape: f32[3,16,64], index: 3, kind: input, shape index: {}]
  %s4 = inlined_call_operand.vmem [shape: f32[3,1,64], index: 4, kind: input, shape index: {}]
  %s5 = inlined_call_operand.vmem [shape: f32[3,64,64], index: 5, kind: input, shape index: {}]
  %s6 = inlined_call_operand.vmem [shape: f32[3,1,64], index: 6, kind: input, shape index: {}]
  %s7 = inlined_call_operand.hbm [shape: f32[3,64,64], index: 7, kind: input, shape index: {}]
  %s8 = inlined_call_operand.hbm [shape: f32[3,1,64], index: 8, kind: input, shape index: {}]
  %s9 = inlined_call_operand.hbm [shape: f32[3,64,64], index: 9, kind: input, shape index: {}]
  %s10 = inlined_call_operand.hbm [shape: f32[3,1,64], index: 10, kind: input, shape index: {}]
  %s11 = inlined_call_operand.hbm [shape: f32[64,64], index: 11, kind: input, shape index: {}]
  %s12 = inlined_call_operand.vmem [shape: f32[1,64], index: 12, kind: input, shape index: {}]
  %s13 = inlined_call_operand.vmem [shape: f32[64,32], index: 13, kind: input, shape index: {}]
  %s14 = inlined_call_operand.vmem [shape: f32[1,32], index: 14, kind: input, shape index: {}]
  %s15 = inlined_call_operand.vmem [shape: f32[32,7], index: 15, kind: input, shape index: {}]
  %s16 = inlined_call_operand.hbm [shape: f32[1,7], index: 16, kind: input, shape index: {}]
  %s17 = inlined_call_operand.vmem [shape: f32[16,7], index: 17, kind: output, shape index: {0}]
  %s18 = inlined_call_operand.hbm [shape: f32[16,8], index: 18, kind: output, shape index: {1}]
  %s19 = inlined_call_operand.hbm [shape: f32[16,64], index: 19, kind: output, shape index: {2}]
  %20 = xla_tuple %s17, %s18, %s19
  %s21 = sld [smem:[#allocation0]]
  $region122: #{gru_model_forward.1} parent=0
    _
  %s23 = ssub.s32 1, %s21
  %s24 = scalar_select 0, %s23, %s21
  $region1: #{gru_model_forward.1} parent=0
    #allocation4 [shape = 'u8[24576]{0}', space=vmem, size = 0x6000, scoped, tag = 'input window, operand 3, single buffered']
    #allocation5 [shape = 's32[1]{0}', space=sflag, size = 0x4, scoped, tag = 'scoped memory for gru_model_forward.1']
    #allocation6 [shape = 's32[1]{0}', space=sflag, size = 0x4, scoped, tag = 'scoped memory for gru_model_forward.1']
    #allocation7 [shape = 'u8[98304]{0}', space=vmem, size = 0x18000, scoped, tag = 'input window, operand 7, single buffered']
    #allocation8 [shape = 's32[1]{0}', space=sflag, size = 0x4, scoped, tag = 'scoped memory for gru_model_forward.1']
    #allocation9 [shape = 'u8[1536]{0}', space=vmem, size = 0x800, scoped, tag = 'input window, operand 8, single buffered']
    #allocation10 [shape = 'u8[98304]{0}', space=vmem, size = 0x18000, scoped, tag = 'input window, operand 9, single buffered']
    #allocation11 [shape = 's32[1]{0}', space=sflag, size = 0x4, scoped, tag = 'scoped memory for gru_model_forward.1']
    #allocation12 [shape = 'u8[1536]{0}', space=vmem, size = 0x800, scoped, tag = 'input window, operand 10, single buffered']
    #allocation13 [shape = 'u8[32768]{0}', space=vmem, size = 0x8000, scoped, tag = 'input window, operand 11, single buffered']
    #allocation14 [shape = 's32[1]{0}', space=sflag, size = 0x4, scoped, tag = 'scoped memory for gru_model_forward.1']
    #allocation15 [shape = 'u8[512]{0}', space=vmem, size = 0x400, scoped, tag = 'input window, operand 16, single buffered']
    #allocation16 [shape = 'u8[8192]{0}', space=vmem, size = 0x2000, scoped, tag = 'output window, operand 1, single buffered']
    #allocation17 [shape = 'u8[8192]{0}', space=vmem, size = 0x2000, scoped, tag = 'output window, operand 2, single buffered']
    #allocation18 [shape = 's32[1]{0}', space=sflag, size = 0x4, scoped, tag = 'scoped memory for gru_model_forward.1']
    %25 = vsyncpa [#allocation5], 0
    %26 = vsyncpa [#allocation8], 0
    %27 = vsyncpa [#allocation11], 0
    %28 = vsyncpa [#allocation14], 0
    %29 = vsyncpa [#allocation6], 0
    %30 = vsyncpa [#allocation18], 0
    // Predicated region
    $region2: #{gru_model_forward.1} parent=1 // pred_check
      _
    $region3: #{gru_model_forward.1} parent=1 // pred_check_branch
      %32 = sbr.rel (0) target = $region5
    $region4: #{gru_model_forward.1} parent=1 // pred_region
      _
    $region5: #{gru_model_forward.1} parent=1 // pred_fallthru
      _
    // Predicated region
    $region6: #{gru_model_forward.1} parent=1 // pred_check
      _
    $region7: #{gru_model_forward.1} parent=1 // pred_check_branch
      %34 = sbr.rel (0) target = $region9
    $region8: #{gru_model_forward.1} parent=1 // pred_region
      _
    $region9: #{gru_model_forward.1} parent=1 // pred_fallthru
      _
    // Predicated region
    $region10: #{gru_model_forward.1} parent=1 // pred_check
      _
    $region11: #{gru_model_forward.1} parent=1 // pred_check_branch
      %36 = sbr.rel (0) target = $region13
    $region12: #{gru_model_forward.1} parent=1 // pred_region
      _
    $region13: #{gru_model_forward.1} parent=1 // pred_fallthru
      _
    // Predicated region
    $region14: #{gru_model_forward.1} parent=1 // pred_check
      _
    $region15: #{gru_model_forward.1} parent=1 // pred_check_branch
      %38 = sbr.rel (0) target = $region17
    $region16: #{gru_model_forward.1} parent=1 // pred_region
      %s40 = ssub.s32 768, 768
      %41 = vsyncadd [#allocation5], %s40
      %s42 = sshll.u32 [#allocation4], 4
      %s43 = int_to_ptr.vmem [resolvable:$true] %s42
      %48 = dma.hbm_to_vmem [thread:$0]  %s3, 768, %s43, [#allocation5], 128, 128, 8
    $region17: #{gru_model_forward.1} parent=1 // pred_fallthru
      _
    // Predicated region
    $region18: #{gru_model_forward.1} parent=1 // pred_check
      _
    $region19: #{gru_model_forward.1} parent=1 // pred_check_branch
      %50 = sbr.rel (0) target = $region21
    $region20: #{gru_model_forward.1} parent=1 // pred_region
      _
    $region21: #{gru_model_forward.1} parent=1 // pred_fallthru
      _
    // Predicated region
    $region22: #{gru_model_forward.1} parent=1 // pred_check
      _
    $region23: #{gru_model_forward.1} parent=1 // pred_check_branch
      %52 = sbr.rel (0) target = $region25
    $region24: #{gru_model_forward.1} parent=1 // pred_region
      _
    $region25: #{gru_model_forward.1} parent=1 // pred_fallthru
      _
    // Predicated region
    $region26: #{gru_model_forward.1} parent=1 // pred_check
      _
    $region27: #{gru_model_forward.1} parent=1 // pred_check_branch
      %54 = sbr.rel (0) target = $region29
    $region28: #{gru_model_forward.1} parent=1 // pred_region
      _
    $region29: #{gru_model_forward.1} parent=1 // pred_fallthru
      _
    // Predicated region
    $region30: #{gru_model_forward.1} parent=1 // pred_check
      _
    $region31: #{gru_model_forward.1} parent=1 // pred_check_branch
      %56 = sbr.rel (0) target = $region33
    $region32: #{gru_model_forward.1} parent=1 // pred_region
      %s58 = ssub.s32 3072, 3072
      %59 = vsyncadd [#allocation8], %s58
      %s60 = sshll.u32 [#allocation7], 4
      %s61 = int_to_ptr.vmem [resolvable:$true] %s60
      %66 = dma.hbm_to_vmem [thread:$0]  %s7, 3072, %s61, [#allocation8], 128, 128, 8
    $region33: #{gru_model_forward.1} parent=1 // pred_fallthru
      _
    // Predicated region
    $region34: #{gru_model_forward.1} parent=1 // pred_check
      _
    $region35: #{gru_model_forward.1} parent=1 // pred_check_branch
      %68 = sbr.rel (0) target = $region37
    $region36: #{gru_model_forward.1} parent=1 // pred_region
      %s70 = ssub.s32 48, 48
      %71 = vsyncadd [#allocation8], %s70
      %s72 = sshll.u32 [#allocation9], 4
      %s73 = int_to_ptr.vmem [resolvable:$true] %s72
      %78 = dma.hbm_to_vmem [thread:$0]  %s8, 48, %s73, [#allocation8], 16, 16, 1
    $region37: #{gru_model_forward.1} parent=1 // pred_fallthru
      _
    // Predicated region
    $region38: #{gru_model_forward.1} parent=1 // pred_check
      _
    $region39: #{gru_model_forward.1} parent=1 // pred_check_branch
      %80 = sbr.rel (0) target = $region41
    $region40: #{gru_model_forward.1} parent=1 // pred_region
      %s82 = ssub.s32 3072, 3072
      %83 = vsyncadd [#allocation11], %s82
      %s84 = sshll.u32 [#allocation10], 4
      %s85 = int_to_ptr.vmem [resolvable:$true] %s84
      %90 = dma.hbm_to_vmem [thread:$0]  %s9, 3072, %s85, [#allocation11], 128, 128, 8
    $region41: #{gru_model_forward.1} parent=1 // pred_fallthru
      _
    // Predicated region
    $region42: #{gru_model_forward.1} parent=1 // pred_check
      _
    $region43: #{gru_model_forward.1} parent=1 // pred_check_branch
      %92 = sbr.rel (0) target = $region45
    $region44: #{gru_model_forward.1} parent=1 // pred_region
      %s94 = ssub.s32 48, 48
      %95 = vsyncadd [#allocation11], %s94
      %s96 = sshll.u32 [#allocation12], 4
      %s97 = int_to_ptr.vmem [resolvable:$true] %s96
      %102 = dma.hbm_to_vmem [thread:$0]  %s10, 48, %s97, [#allocation11], 16, 16, 1
    $region45: #{gru_model_forward.1} parent=1 // pred_fallthru
      _
    // Predicated region
    $region46: #{gru_model_forward.1} parent=1 // pred_check
      _
    $region47: #{gru_model_forward.1} parent=1 // pred_check_branch
      %104 = sbr.rel (0) target = $region49
    $region48: #{gru_model_forward.1} parent=1 // pred_region
      %s106 = ssub.s32 1024, 1024
      %107 = vsyncadd [#allocation14], %s106
      %s108 = sshll.u32 [#allocation13], 4
      %s109 = int_to_ptr.vmem [resolvable:$true] %s108
      %114 = dma.hbm_to_vmem [thread:$0]  %s11, 1024, %s109, [#allocation14], 128, 128, 8
    $region49: #{gru_model_forward.1} parent=1 // pred_fallthru
      _
    // Predicated region
    $region50: #{gru_model_forward.1} parent=1 // pred_check
      _
    $region51: #{gru_model_forward.1} parent=1 // pred_check_branch
      %116 = sbr.rel (0) target = $region53
    $region52: #{gru_model_forward.1} parent=1 // pred_region
      _
    $region53: #{gru_model_forward.1} parent=1 // pred_fallthru
      _
    // Predicated region
    $region54: #{gru_model_forward.1} parent=1 // pred_check
      _
    $region55: #{gru_model_forward.1} parent=1 // pred_check_branch
      %118 = sbr.rel (0) target = $region57
    $region56: #{gru_model_forward.1} parent=1 // pred_region
      _
    $region57: #{gru_model_forward.1} parent=1 // pred_fallthru
      _
    // Predicated region
    $region58: #{gru_model_forward.1} parent=1 // pred_check
      _
    $region59: #{gru_model_forward.1} parent=1 // pred_check_branch
      %120 = sbr.rel (0) target = $region61
    $region60: #{gru_model_forward.1} parent=1 // pred_region
      _
    $region61: #{gru_model_forward.1} parent=1 // pred_fallthru
      _
    // Predicated region
    $region62: #{gru_model_forward.1} parent=1 // pred_check
      _
    $region63: #{gru_model_forward.1} parent=1 // pred_check_branch
      %122 = sbr.rel (0) target = $region65
    $region64: #{gru_model_forward.1} parent=1 // pred_region
      _
    $region65: #{gru_model_forward.1} parent=1 // pred_fallthru
      _
    // Predicated region
    $region66: #{gru_model_forward.1} parent=1 // pred_check
      _
    $region67: #{gru_model_forward.1} parent=1 // pred_check_branch
      %124 = sbr.rel (0) target = $region69
    $region68: #{gru_model_forward.1} parent=1 // pred_region
      %s126 = ssub.s32 16, 16
      %127 = vsyncadd [#allocation14], %s126
      %s129 = sshll.u32 [#allocation15], 4
      %s130 = int_to_ptr.vmem [resolvable:$true] %s129
      %132 = dma.hbm_to_vmem [thread:$0]  %s16, 16, %s130, [#allocation14]
    $region69: #{gru_model_forward.1} parent=1 // pred_fallthru
      _
    // Predicated region
    $region70: #{gru_model_forward.1} parent=1 // pred_check
      _
    $region71: #{gru_model_forward.1} parent=1 // pred_check_branch
      %134 = sbr.rel (0) target = $region73
    $region72: #{gru_model_forward.1} parent=1 // pred_region
      %135 = dma.done [#allocation5], 768
    $region73: #{gru_model_forward.1} parent=1 // pred_fallthru
      _
    // Predicated region
    $region74: #{gru_model_forward.1} parent=1 // pred_check
      _
    $region75: #{gru_model_forward.1} parent=1 // pred_check_branch
      %137 = sbr.rel (0) target = $region77
    $region76: #{gru_model_forward.1} parent=1 // pred_region
      %138 = dma.done [#allocation8], 3072
    $region77: #{gru_model_forward.1} parent=1 // pred_fallthru
      _
    // Predicated region
    $region78: #{gru_model_forward.1} parent=1 // pred_check
      _
    $region79: #{gru_model_forward.1} parent=1 // pred_check_branch
      %140 = sbr.rel (0) target = $region81
    $region80: #{gru_model_forward.1} parent=1 // pred_region
      %141 = dma.done [#allocation8], 48
    $region81: #{gru_model_forward.1} parent=1 // pred_fallthru
      _
    // Predicated region
    $region82: #{gru_model_forward.1} parent=1 // pred_check
      _
    $region83: #{gru_model_forward.1} parent=1 // pred_check_branch
      %143 = sbr.rel (0) target = $region85
    $region84: #{gru_model_forward.1} parent=1 // pred_region
      %144 = dma.done [#allocation11], 3072
    $region85: #{gru_model_forward.1} parent=1 // pred_fallthru
      _
    // Predicated region
    $region86: #{gru_model_forward.1} parent=1 // pred_check
      _
    $region87: #{gru_model_forward.1} parent=1 // pred_check_branch
      %146 = sbr.rel (0) target = $region89
    $region88: #{gru_model_forward.1} parent=1 // pred_region
      %147 = dma.done [#allocation11], 48
    $region89: #{gru_model_forward.1} parent=1 // pred_fallthru
      _
    // Predicated region
    $region90: #{gru_model_forward.1} parent=1 // pred_check
      _
    $region91: #{gru_model_forward.1} parent=1 // pred_check_branch
      %149 = sbr.rel (0) target = $region93
    $region92: #{gru_model_forward.1} parent=1 // pred_region
      %150 = dma.done [#allocation14], 1024
    $region93: #{gru_model_forward.1} parent=1 // pred_fallthru
      _
    // Predicated region
    $region94: #{gru_model_forward.1} parent=1 // pred_check
      _
    $region95: #{gru_model_forward.1} parent=1 // pred_check_branch
      %152 = sbr.rel (0) target = $region97
    $region96: #{gru_model_forward.1} parent=1 // pred_region
      %153 = dma.done [#allocation14], 16
    $region97: #{gru_model_forward.1} parent=1 // pred_fallthru
      _
    %v154 = vlaneseq
    %v155 = vand.u32 %v154, 127
    %vm156 = vcmp.lt.s32.totalorder %v155, 32
    %v157 = vld [vmem:[%s0] sm:$0xff]
    %v158 = vld [vmem:[%s0 + $0x8] sm:$0xff]
    %v159 = vld [vmem:[#allocation4] sm:$0xff]
    %v160 = vld [vmem:[#allocation4 + $0x8] sm:$0xff]
    %v161 = vld [vmem:[%s4] sm:$0x1]
    %v163 = vlaneseq
    %v164 = vshrl.u32 %v163, 7
    %v165 = vsub.s32 0, %v164
    %v166 = vrot.slane %v161, %v165
    %vm168 = vcmask 130048
    %v170 = vsel %vm168, %v157, 0
    %v173 = vsel %vm168, %v158, 0
    %175 = vmatprep.subr.mxu0 0.0
    %176 = vmatpush1.msra.mxu0 0.0
    %177 = vmatprep.subr.mxu0 0.0
    %178 = vmatpush1.msra.mxu0 0.0
    %179 = vmatprep.subr.mxu0 0.0
    %180 = vmatpush1.msra.mxu0 0.0
    %181 = vmatprep.subr.mxu0 0.0
    %182 = vmatpush1.msra.mxu0 0.0
    %183 = vmatprep.subr.mxu0 0.0
    %184 = vmatpush1.msra.mxu0 0.0
    %185 = vmatprep.subr.mxu0 0.0
    %186 = vmatpush1.msra.mxu0 0.0
    %187 = vmatprep.subr.mxu0 0.0
    %188 = vmatpush1.msra.mxu0 0.0
    %189 = vmatprep.subr.mxu0 0.0
    %190 = vmatpush1.msra.mxu0 0.0
    %191 = vmatprep.subr.mxu0 0.0
    %192 = vmatpush1.msra.mxu0 0.0
    %193 = vmatprep.subr.mxu0 0.0
    %194 = vmatpush1.msra.mxu0 0.0
    %195 = vmatprep.subr.mxu0 0.0
    %196 = vmatpush1.msra.mxu0 0.0
    %197 = vmatprep.subr.mxu0 0.0
    %198 = vmatpush1.msra.mxu0 0.0
    %199 = vmatprep.subr.mxu0 0.0
    %200 = vmatpush1.msra.mxu0 0.0
    %201 = vmatprep.subr.mxu0 0.0
    %202 = vmatpush1.msra.mxu0 0.0
    %203 = vmatprep.subr.mxu0 0.0
    %204 = vmatpush1.msra.mxu0 %v160
    %205 = vmatprep.subr.mxu0 0.0
    %206 = vmatpush1.msra.mxu0 %v159
    %207 = vmatprep.subr.mxu0 0.0
    %208 = vmatpush2.msra.mxu0 0.0
    %209 = vmatprep.subr.mxu0 0.0
    %210 = vmatpush2.msra.mxu0 0.0
    %211 = vmatprep.subr.mxu0 0.0
    %212 = vmatpush2.msra.mxu0 0.0
    %213 = vmatprep.subr.mxu0 0.0
    %214 = vmatpush2.msra.mxu0 0.0
    %215 = vmatprep.subr.mxu0 0.0
    %216 = vmatpush2.msra.mxu0 0.0
    %217 = vmatprep.subr.mxu0 0.0
    %218 = vmatpush2.msra.mxu0 0.0
    %219 = vmatprep.subr.mxu0 0.0
    %220 = vmatpush2.msra.mxu0 0.0
    %221 = vmatprep.subr.mxu0 0.0
    %222 = vmatpush2.msra.mxu0 0.0
    %223 = vmatprep.subr.mxu0 0.0
    %224 = vmatpush2.msra.mxu0 0.0
    %225 = vmatprep.subr.mxu0 0.0
    %226 = vmatpush2.msra.mxu0 0.0
    %227 = vmatprep.subr.mxu0 0.0
    %228 = vmatpush2.msra.mxu0 0.0
    %229 = vmatprep.subr.mxu0 0.0
    %230 = vmatpush2.msra.mxu0 0.0
    %231 = vmatprep.subr.mxu0 0.0
    %232 = vmatpush2.msra.mxu0 0.0
    %233 = vmatprep.subr.mxu0 0.0
    %234 = vmatpush2.msra.mxu0 0.0
    %235 = vmatprep.subr.mxu0 0.0
    %236 = vmatpush2.msra.mxu0 0.0
    %237 = vmatprep.subr.mxu0 0.0
    %238 = vmatpush2.msra.mxu0 0.0
    %239 = vmatprep.mubr.f32.mxu0 0.0
    %240 = vmatmul.mubr.f32.gmra.mxu0 %v170
    %v241 = vpop.f32.mrf.mxu0
    %v242 = vadd.f32 %v166, %v241
    %v243 = vpop.f32.mrf.mxu0
    %244 = vmatprep.mubr.f32.mxu0 0.0
    %245 = vmatmul.mubr.f32.gmra.mxu0 %v173
    %v246 = vpop.f32.mrf.mxu0
    %v247 = vadd.f32 %v166, %v246
    %v248 = vpop.f32.mrf.mxu0
    %249 = vdwg.mxu0
    %vm250 = vcmask 523264
    %251 = vst.msk [vmem:[#allocation2] sm:$0xff] %vm250, %v242
    %252 = vst.msk [vmem:[#allocation2 + $0x8] sm:$0xff] %vm250, %v247
    %s253 = scalar_lea.vmem [#allocation4], 16
    %v254 = vld [vmem:[%s253] sm:$0xff]
    %v255 = vld [vmem:[%s253 + $0x8] sm:$0xff]
    %s256 = scalar_lea.vmem %s4, 1
    %v257 = vld [vmem:[%s256] sm:$0x1]
    %v259 = vlaneseq
    %v260 = vshrl.u32 %v259, 7
    %v261 = vsub.s32 0, %v260
    %v262 = vrot.slane %v257, %v261
    %264 = vmatprep.subr.mxu0 0.0
    %265 = vmatpush1.msra.mxu0 0.0
    %266 = vmatprep.subr.mxu0 0.0
    %267 = vmatpush1.msra.mxu0 0.0
    %268 = vmatprep.subr.mxu0 0.0
    %269 = vmatpush1.msra.mxu0 0.0
    %270 = vmatprep.subr.mxu0 0.0
    %271 = vmatpush1.msra.mxu0 0.0
    %272 = vmatprep.subr.mxu0 0.0
    %273 = vmatpush1.msra.mxu0 0.0
    %274 = vmatprep.subr.mxu0 0.0
    %275 = vmatpush1.msra.mxu0 0.0
    %276 = vmatprep.subr.mxu0 0.0
    %277 = vmatpush1.msra.mxu0 0.0
    %278 = vmatprep.subr.mxu0 0.0
    %279 = vmatpush1.msra.mxu0 0.0
    %280 = vmatprep.subr.mxu0 0.0
    %281 = vmatpush1.msra.mxu0 0.0
    %282 = vmatprep.subr.mxu0 0.0
    %283 = vmatpush1.msra.mxu0 0.0
    %284 = vmatprep.subr.mxu0 0.0
    %285 = vmatpush1.msra.mxu0 0.0
    %286 = vmatprep.subr.mxu0 0.0
    %287 = vmatpush1.msra.mxu0 0.0
    %288 = vmatprep.subr.mxu0 0.0
    %289 = vmatpush1.msra.mxu0 0.0
    %290 = vmatprep.subr.mxu0 0.0
    %291 = vmatpush1.msra.mxu0 0.0
    %292 = vmatprep.subr.mxu0 0.0
    %293 = vmatpush1.msra.mxu0 %v255
    %294 = vmatprep.subr.mxu0 0.0
    %295 = vmatpush1.msra.mxu0 %v254
    %296 = vmatprep.subr.mxu0 0.0
    %297 = vmatpush2.msra.mxu0 0.0
    %298 = vmatprep.subr.mxu0 0.0
    %299 = vmatpush2.msra.mxu0 0.0
    %300 = vmatprep.subr.mxu0 0.0
    %301 = vmatpush2.msra.mxu0 0.0
    %302 = vmatprep.subr.mxu0 0.0
    %303 = vmatpush2.msra.mxu0 0.0
    %304 = vmatprep.subr.mxu0 0.0
    %305 = vmatpush2.msra.mxu0 0.0
    %306 = vmatprep.subr.mxu0 0.0
    %307 = vmatpush2.msra.mxu0 0.0
    %308 = vmatprep.subr.mxu0 0.0
    %309 = vmatpush2.msra.mxu0 0.0
    %310 = vmatprep.subr.mxu0 0.0
    %311 = vmatpush2.msra.mxu0 0.0
    %312 = vmatprep.subr.mxu0 0.0
    %313 = vmatpush2.msra.mxu0 0.0
    %314 = vmatprep.subr.mxu0 0.0
    %315 = vmatpush2.msra.mxu0 0.0
    %316 = vmatprep.subr.mxu0 0.0
    %317 = vmatpush2.msra.mxu0 0.0
    %318 = vmatprep.subr.mxu0 0.0
    %319 = vmatpush2.msra.mxu0 0.0
    %320 = vmatprep.subr.mxu0 0.0
    %321 = vmatpush2.msra.mxu0 0.0
    %322 = vmatprep.subr.mxu0 0.0
    %323 = vmatpush2.msra.mxu0 0.0
    %324 = vmatprep.subr.mxu0 0.0
    %325 = vmatpush2.msra.mxu0 0.0
    %326 = vmatprep.subr.mxu0 0.0
    %327 = vmatpush2.msra.mxu0 0.0
    %328 = vmatprep.mubr.f32.mxu0 0.0
    %329 = vmatmul.mubr.f32.gmra.mxu0 %v170
    %v330 = vpop.f32.mrf.mxu0
    %v331 = vadd.f32 %v262, %v330
    %v332 = vpop.f32.mrf.mxu0
    %333 = vmatprep.mubr.f32.mxu0 0.0
    %334 = vmatmul.mubr.f32.gmra.mxu0 %v173
    %v335 = vpop.f32.mrf.mxu0
    %v336 = vadd.f32 %v262, %v335
    %v337 = vpop.f32.mrf.mxu0
    %338 = vdwg.mxu0
    %s339 = scalar_lea.vmem [#allocation2], 16
    %340 = vst.msk [vmem:[%s339] sm:$0xff] %vm250, %v331
    %341 = vst.msk [vmem:[%s339 + $0x8] sm:$0xff] %vm250, %v336
    %s342 = scalar_lea.vmem [#allocation4], 32
    %v343 = vld [vmem:[%s342] sm:$0xff]
    %v344 = vld [vmem:[%s342 + $0x8] sm:$0xff]
    %s345 = scalar_lea.vmem %s4, 2
    %v346 = vld [vmem:[%s345] sm:$0x1]
    %v348 = vlaneseq
    %v349 = vshrl.u32 %v348, 7
    %v350 = vsub.s32 0, %v349
    %v351 = vrot.slane %v346, %v350
    %353 = vmatprep.subr.mxu0 0.0
    %354 = vmatpush1.msra.mxu0 0.0
    %355 = vmatprep.subr.mxu0 0.0
    %356 = vmatpush1.msra.mxu0 0.0
    %357 = vmatprep.subr.mxu0 0.0
    %358 = vmatpush1.msra.mxu0 0.0
    %359 = vmatprep.subr.mxu0 0.0
    %360 = vmatpush1.msra.mxu0 0.0
    %361 = vmatprep.subr.mxu0 0.0
    %362 = vmatpush1.msra.mxu0 0.0
    %363 = vmatprep.subr.mxu0 0.0
    %364 = vmatpush1.msra.mxu0 0.0
    %365 = vmatprep.subr.mxu0 0.0
    %366 = vmatpush1.msra.mxu0 0.0
    %367 = vmatprep.subr.mxu0 0.0
    %368 = vmatpush1.msra.mxu0 0.0
    %369 = vmatprep.subr.mxu0 0.0
    %370 = vmatpush1.msra.mxu0 0.0
    %371 = vmatprep.subr.mxu0 0.0
    %372 = vmatpush1.msra.mxu0 0.0
    %373 = vmatprep.subr.mxu0 0.0
    %374 = vmatpush1.msra.mxu0 0.0
    %375 = vmatprep.subr.mxu0 0.0
    %376 = vmatpush1.msra.mxu0 0.0
    %377 = vmatprep.subr.mxu0 0.0
    %378 = vmatpush1.msra.mxu0 0.0
    %379 = vmatprep.subr.mxu0 0.0
    %380 = vmatpush1.msra.mxu0 0.0
    %381 = vmatprep.subr.mxu0 0.0
    %382 = vmatpush1.msra.mxu0 %v344
    %383 = vmatprep.subr.mxu0 0.0
    %384 = vmatpush1.msra.mxu0 %v343
    %385 = vmatprep.subr.mxu0 0.0
    %386 = vmatpush2.msra.mxu0 0.0
    %387 = vmatprep.subr.mxu0 0.0
    %388 = vmatpush2.msra.mxu0 0.0
    %389 = vmatprep.subr.mxu0 0.0
    %390 = vmatpush2.msra.mxu0 0.0
    %391 = vmatprep.subr.mxu0 0.0
    %392 = vmatpush2.msra.mxu0 0.0
    %393 = vmatprep.subr.mxu0 0.0
    %394 = vmatpush2.msra.mxu0 0.0
    %395 = vmatprep.subr.mxu0 0.0
    %396 = vmatpush2.msra.mxu0 0.0
    %397 = vmatprep.subr.mxu0 0.0
    %398 = vmatpush2.msra.mxu0 0.0
    %399 = vmatprep.subr.mxu0 0.0
    %400 = vmatpush2.msra.mxu0 0.0
    %401 = vmatprep.subr.mxu0 0.0
    %402 = vmatpush2.msra.mxu0 0.0
    %403 = vmatprep.subr.mxu0 0.0
    %404 = vmatpush2.msra.mxu0 0.0
    %405 = vmatprep.subr.mxu0 0.0
    %406 = vmatpush2.msra.mxu0 0.0
    %407 = vmatprep.subr.mxu0 0.0
    %408 = vmatpush2.msra.mxu0 0.0
    %409 = vmatprep.subr.mxu0 0.0
    %410 = vmatpush2.msra.mxu0 0.0
    %411 = vmatprep.subr.mxu0 0.0
    %412 = vmatpush2.msra.mxu0 0.0
    %413 = vmatprep.subr.mxu0 0.0
    %414 = vmatpush2.msra.mxu0 0.0
    %415 = vmatprep.subr.mxu0 0.0
    %416 = vmatpush2.msra.mxu0 0.0
    %417 = vmatprep.mubr.f32.mxu0 0.0
    %418 = vmatmul.mubr.f32.gmra.mxu0 %v170
    %v419 = vpop.f32.mrf.mxu0
    %v420 = vadd.f32 %v351, %v419
    %v421 = vpop.f32.mrf.mxu0
    %422 = vmatprep.mubr.f32.mxu0 0.0
    %423 = vmatmul.mubr.f32.gmra.mxu0 %v173
    %v424 = vpop.f32.mrf.mxu0
    %v425 = vadd.f32 %v351, %v424
    %v426 = vpop.f32.mrf.mxu0
    %427 = vdwg.mxu0
    %s428 = scalar_lea.vmem [#allocation2], 32
    %429 = vst.msk [vmem:[%s428] sm:$0xff] %vm250, %v420
    %430 = vst.msk [vmem:[%s428 + $0x8] sm:$0xff] %vm250, %v425
    %v431 = vld [vmem:[%s5] sm:$0xff]
    %v432 = vld [vmem:[%s5 + $0x8] sm:$0xff]
    %v433 = vld [vmem:[%s5 + $0x10] sm:$0xff]
    %v434 = vld [vmem:[%s5 + $0x18] sm:$0xff]
    %v435 = vld [vmem:[%s5 + $0x20] sm:$0xff]
    %v436 = vld [vmem:[%s5 + $0x28] sm:$0xff]
    %v437 = vld [vmem:[%s5 + $0x30] sm:$0xff]
    %v438 = vld [vmem:[%s5 + $0x38] sm:$0xff]
    %s439 = scalar_lea.vmem %s5, 64
    %v440 = vld [vmem:[%s439] sm:$0xff]
    %v441 = vld [vmem:[%s439 + $0x8] sm:$0xff]
    %v442 = vld [vmem:[%s439 + $0x10] sm:$0xff]
    %v443 = vld [vmem:[%s439 + $0x18] sm:$0xff]
    %v444 = vld [vmem:[%s439 + $0x20] sm:$0xff]
    %v445 = vld [vmem:[%s439 + $0x28] sm:$0xff]
    %v446 = vld [vmem:[%s439 + $0x30] sm:$0xff]
    %v447 = vld [vmem:[%s439 + $0x38] sm:$0xff]
    %s448 = scalar_lea.vmem %s5, 128
    %v449 = vld [vmem:[%s448] sm:$0xff]
    %v450 = vld [vmem:[%s448 + $0x8] sm:$0xff]
    %v451 = vld [vmem:[%s448 + $0x10] sm:$0xff]
    %v452 = vld [vmem:[%s448 + $0x18] sm:$0xff]
    %v453 = vld [vmem:[%s448 + $0x20] sm:$0xff]
    %v454 = vld [vmem:[%s448 + $0x28] sm:$0xff]
    %v455 = vld [vmem:[%s448 + $0x30] sm:$0xff]
    %v456 = vld [vmem:[%s448 + $0x38] sm:$0xff]
    %v457 = vld [vmem:[%s6] sm:$0x1]
    %s458 = scalar_lea.vmem %s6, 1
    %v459 = vld [vmem:[%s458] sm:$0x1]
    %s460 = scalar_lea.vmem %s6, 2
    %v461 = vld [vmem:[%s460] sm:$0x1]
    %v463 = vlaneseq
    %v464 = vshrl.u32 %v463, 7
    %v465 = vsub.s32 0, %v464
    %v466 = vrot.slane %v457, %v465
    %v469 = vsel %vm250, 0.0, 0
    %471 = vmatprep.subr.mxu0 0.0
    %472 = vmatpush1.msra.mxu0 0.0
    %473 = vmatprep.subr.mxu0 0.0
    %474 = vmatpush1.msra.mxu0 0.0
    %475 = vmatprep.subr.mxu0 0.0
    %476 = vmatpush1.msra.mxu0 0.0
    %477 = vmatprep.subr.mxu0 0.0
    %478 = vmatpush1.msra.mxu0 0.0
    %479 = vmatprep.subr.mxu0 0.0
    %480 = vmatpush1.msra.mxu0 0.0
    %481 = vmatprep.subr.mxu0 0.0
    %482 = vmatpush1.msra.mxu0 0.0
    %483 = vmatprep.subr.mxu0 0.0
    %484 = vmatpush1.msra.mxu0 0.0
    %485 = vmatprep.subr.mxu0 0.0
    %486 = vmatpush1.msra.mxu0 0.0
    %487 = vmatprep.subr.mxu0 0.0
    %488 = vmatpush1.msra.mxu0 %v438
    %489 = vmatprep.subr.mxu0 0.0
    %490 = vmatpush1.msra.mxu0 %v437
    %491 = vmatprep.subr.mxu0 0.0
    %492 = vmatpush1.msra.mxu0 %v436
    %493 = vmatprep.subr.mxu0 0.0
    %494 = vmatpush1.msra.mxu0 %v435
    %495 = vmatprep.subr.mxu0 0.0
    %496 = vmatpush1.msra.mxu0 %v434
    %497 = vmatprep.subr.mxu0 0.0
    %498 = vmatpush1.msra.mxu0 %v433
    %499 = vmatprep.subr.mxu0 0.0
    %500 = vmatpush1.msra.mxu0 %v432
    %501 = vmatprep.subr.mxu0 0.0
    %502 = vmatpush1.msra.mxu0 %v431
    %503 = vmatprep.subr.mxu0 0.0
    %504 = vmatpush2.msra.mxu0 0.0
    %505 = vmatprep.subr.mxu0 0.0
    %506 = vmatpush2.msra.mxu0 0.0
    %507 = vmatprep.subr.mxu0 0.0
    %508 = vmatpush2.msra.mxu0 0.0
    %509 = vmatprep.subr.mxu0 0.0
    %510 = vmatpush2.msra.mxu0 0.0
    %511 = vmatprep.subr.mxu0 0.0
    %512 = vmatpush2.msra.mxu0 0.0
    %513 = vmatprep.subr.mxu0 0.0
    %514 = vmatpush2.msra.mxu0 0.0
    %515 = vmatprep.subr.mxu0 0.0
    %516 = vmatpush2.msra.mxu0 0.0
    %517 = vmatprep.subr.mxu0 0.0
    %518 = vmatpush2.msra.mxu0 0.0
    %519 = vmatprep.subr.mxu0 0.0
    %520 = vmatpush2.msra.mxu0 0.0
    %521 = vmatprep.subr.mxu0 0.0
    %522 = vmatpush2.msra.mxu0 0.0
    %523 = vmatprep.subr.mxu0 0.0
    %524 = vmatpush2.msra.mxu0 0.0
    %525 = vmatprep.subr.mxu0 0.0
    %526 = vmatpush2.msra.mxu0 0.0
    %527 = vmatprep.subr.mxu0 0.0
    %528 = vmatpush2.msra.mxu0 0.0
    %529 = vmatprep.subr.mxu0 0.0
    %530 = vmatpush2.msra.mxu0 0.0
    %531 = vmatprep.subr.mxu0 0.0
    %532 = vmatpush2.msra.mxu0 0.0
    %533 = vmatprep.subr.mxu0 0.0
    %534 = vmatpush2.msra.mxu0 0.0
    %535 = vmatprep.mubr.f32.mxu0 0.0
    %536 = vmatmul.mubr.f32.gmra.mxu0 %v469
    %v537 = vpop.f32.mrf.mxu0
    %v538 = vadd.f32 %v466, %v537
    %v539 = vpop.f32.mrf.mxu0
    %540 = vdwg.mxu0
    %v542 = vlaneseq
    %v543 = vshrl.u32 %v542, 7
    %v544 = vsub.s32 0, %v543
    %v545 = vrot.slane %v459, %v544
    %547 = vmatprep.subr.mxu0 0.0
    %548 = vmatpush1.msra.mxu0 0.0
    %549 = vmatprep.subr.mxu0 0.0
    %550 = vmatpush1.msra.mxu0 0.0
    %551 = vmatprep.subr.mxu0 0.0
    %552 = vmatpush1.msra.mxu0 0.0
    %553 = vmatprep.subr.mxu0 0.0
    %554 = vmatpush1.msra.mxu0 0.0
    %555 = vmatprep.subr.mxu0 0.0
    %556 = vmatpush1.msra.mxu0 0.0
    %557 = vmatprep.subr.mxu0 0.0
    %558 = vmatpush1.msra.mxu0 0.0
    %559 = vmatprep.subr.mxu0 0.0
    %560 = vmatpush1.msra.mxu0 0.0
    %561 = vmatprep.subr.mxu0 0.0
    %562 = vmatpush1.msra.mxu0 0.0
    %563 = vmatprep.subr.mxu0 0.0
    %564 = vmatpush1.msra.mxu0 %v447
    %565 = vmatprep.subr.mxu0 0.0
    %566 = vmatpush1.msra.mxu0 %v446
    %567 = vmatprep.subr.mxu0 0.0
    %568 = vmatpush1.msra.mxu0 %v445
    %569 = vmatprep.subr.mxu0 0.0
    %570 = vmatpush1.msra.mxu0 %v444
    %571 = vmatprep.subr.mxu0 0.0
    %572 = vmatpush1.msra.mxu0 %v443
    %573 = vmatprep.subr.mxu0 0.0
    %574 = vmatpush1.msra.mxu0 %v442
    %575 = vmatprep.subr.mxu0 0.0
    %576 = vmatpush1.msra.mxu0 %v441
    %577 = vmatprep.subr.mxu0 0.0
    %578 = vmatpush1.msra.mxu0 %v440
    %579 = vmatprep.subr.mxu0 0.0
    %580 = vmatpush2.msra.mxu0 0.0
    %581 = vmatprep.subr.mxu0 0.0
    %582 = vmatpush2.msra.mxu0 0.0
    %583 = vmatprep.subr.mxu0 0.0
    %584 = vmatpush2.msra.mxu0 0.0
    %585 = vmatprep.subr.mxu0 0.0
    %586 = vmatpush2.msra.mxu0 0.0
    %587 = vmatprep.subr.mxu0 0.0
    %588 = vmatpush2.msra.mxu0 0.0
    %589 = vmatprep.subr.mxu0 0.0
    %590 = vmatpush2.msra.mxu0 0.0
    %591 = vmatprep.subr.mxu0 0.0
    %592 = vmatpush2.msra.mxu0 0.0
    %593 = vmatprep.subr.mxu0 0.0
    %594 = vmatpush2.msra.mxu0 0.0
    %595 = vmatprep.subr.mxu0 0.0
    %596 = vmatpush2.msra.mxu0 0.0
    %597 = vmatprep.subr.mxu0 0.0
    %598 = vmatpush2.msra.mxu0 0.0
    %599 = vmatprep.subr.mxu0 0.0
    %600 = vmatpush2.msra.mxu0 0.0
    %601 = vmatprep.subr.mxu0 0.0
    %602 = vmatpush2.msra.mxu0 0.0
    %603 = vmatprep.subr.mxu0 0.0
    %604 = vmatpush2.msra.mxu0 0.0
    %605 = vmatprep.subr.mxu0 0.0
    %606 = vmatpush2.msra.mxu0 0.0
    %607 = vmatprep.subr.mxu0 0.0
    %608 = vmatpush2.msra.mxu0 0.0
    %609 = vmatprep.subr.mxu0 0.0
    %610 = vmatpush2.msra.mxu0 0.0
    %611 = vmatprep.mubr.f32.mxu0 0.0
    %612 = vmatmul.mubr.f32.gmra.mxu0 %v469
    %v613 = vpop.f32.mrf.mxu0
    %v614 = vadd.f32 %v545, %v613
    %v615 = vpop.f32.mrf.mxu0
    %616 = vdwg.mxu0
    %v618 = vlaneseq
    %v619 = vshrl.u32 %v618, 7
    %v620 = vsub.s32 0, %v619
    %v621 = vrot.slane %v461, %v620
    %623 = vmatprep.subr.mxu0 0.0
    %624 = vmatpush1.msra.mxu0 0.0
    %625 = vmatprep.subr.mxu0 0.0
    %626 = vmatpush1.msra.mxu0 0.0
    %627 = vmatprep.subr.mxu0 0.0
    %628 = vmatpush1.msra.mxu0 0.0
    %629 = vmatprep.subr.mxu0 0.0
    %630 = vmatpush1.msra.mxu0 0.0
    %631 = vmatprep.subr.mxu0 0.0
    %632 = vmatpush1.msra.mxu0 0.0
    %633 = vmatprep.subr.mxu0 0.0
    %634 = vmatpush1.msra.mxu0 0.0
    %635 = vmatprep.subr.mxu0 0.0
    %636 = vmatpush1.msra.mxu0 0.0
    %637 = vmatprep.subr.mxu0 0.0
    %638 = vmatpush1.msra.mxu0 0.0
    %639 = vmatprep.subr.mxu0 0.0
    %640 = vmatpush1.msra.mxu0 %v456
    %641 = vmatprep.subr.mxu0 0.0
    %642 = vmatpush1.msra.mxu0 %v455
    %643 = vmatprep.subr.mxu0 0.0
    %644 = vmatpush1.msra.mxu0 %v454
    %645 = vmatprep.subr.mxu0 0.0
    %646 = vmatpush1.msra.mxu0 %v453
    %647 = vmatprep.subr.mxu0 0.0
    %648 = vmatpush1.msra.mxu0 %v452
    %649 = vmatprep.subr.mxu0 0.0
    %650 = vmatpush1.msra.mxu0 %v451
    %651 = vmatprep.subr.mxu0 0.0
    %652 = vmatpush1.msra.mxu0 %v450
    %653 = vmatprep.subr.mxu0 0.0
    %654 = vmatpush1.msra.mxu0 %v449
    %655 = vmatprep.subr.mxu0 0.0
    %656 = vmatpush2.msra.mxu0 0.0
    %657 = vmatprep.subr.mxu0 0.0
    %658 = vmatpush2.msra.mxu0 0.0
    %659 = vmatprep.subr.mxu0 0.0
    %660 = vmatpush2.msra.mxu0 0.0
    %661 = vmatprep.subr.mxu0 0.0
    %662 = vmatpush2.msra.mxu0 0.0
    %663 = vmatprep.subr.mxu0 0.0
    %664 = vmatpush2.msra.mxu0 0.0
    %665 = vmatprep.subr.mxu0 0.0
    %666 = vmatpush2.msra.mxu0 0.0
    %667 = vmatprep.subr.mxu0 0.0
    %668 = vmatpush2.msra.mxu0 0.0
    %669 = vmatprep.subr.mxu0 0.0
    %670 = vmatpush2.msra.mxu0 0.0
    %671 = vmatprep.subr.mxu0 0.0
    %672 = vmatpush2.msra.mxu0 0.0
    %673 = vmatprep.subr.mxu0 0.0
    %674 = vmatpush2.msra.mxu0 0.0
    %675 = vmatprep.subr.mxu0 0.0
    %676 = vmatpush2.msra.mxu0 0.0
    %677 = vmatprep.subr.mxu0 0.0
    %678 = vmatpush2.msra.mxu0 0.0
    %679 = vmatprep.subr.mxu0 0.0
    %680 = vmatpush2.msra.mxu0 0.0
    %681 = vmatprep.subr.mxu0 0.0
    %682 = vmatpush2.msra.mxu0 0.0
    %683 = vmatprep.subr.mxu0 0.0
    %684 = vmatpush2.msra.mxu0 0.0
    %685 = vmatprep.subr.mxu0 0.0
    %686 = vmatpush2.msra.mxu0 0.0
    %687 = vmatprep.mubr.f32.mxu0 0.0
    %688 = vmatmul.mubr.f32.gmra.mxu0 %v469
    %v689 = vpop.f32.mrf.mxu0
    %v690 = vadd.f32 %v621, %v689
    %v691 = vpop.f32.mrf.mxu0
    %692 = vdwg.mxu0
    %v693 = vld [vmem:[#allocation2] sm:$0x3]
    %v694 = vld [vmem:[#allocation2 + $0xe] sm:$0x3]
    %v695 = vsel %vm156, %v693, %v694
    %v696 = vadd.f32 %v695, %v538
    %v697 = vxor.u32 %v696, 2147483648
    %v698 = vmul.f32 %v697, 1.442695
    %v699 = vpow.pop %v698
    %v700 = vadd.f32 %v699, 1.0
    %v701 = vrcp.pop %v700
    %v702 = vmul.f32 1.0, %v701
    %v703 = vld [vmem:[%s339] sm:$0x3]
    %v704 = vld [vmem:[%s339 + $0xe] sm:$0x3]
    %v705 = vsel %vm156, %v703, %v704
    %v706 = vadd.f32 %v705, %v614
    %v707 = vxor.u32 %v706, 2147483648
    %v708 = vmul.f32 %v707, 1.442695
    %v709 = vpow.pop %v708
    %v710 = vadd.f32 %v709, 1.0
    %v711 = vrcp.pop %v710
    %v712 = vmul.f32 1.0, %v711
    %v713 = vld [vmem:[%s428] sm:$0x3]
    %v714 = vld [vmem:[%s428 + $0xe] sm:$0x3]
    %v715 = vsel %vm156, %v713, %v714
    %v716 = vmul.f32 %v702, %v690
    %v717 = vadd.f32 %v715, %v716
    %v718 = vtanh.pop %v717
    %v719 = vsub.f32 1.0, %v712
    %v720 = vmul.f32 %v719, %v718
    %v721 = vmul.f32 %v712, 0.0
    %v722 = vadd.f32 %v720, %v721
    %v724 = vsel %vm250, %v722, 0
    %726 = vmatprep.subr.mxu0 0.0
    %727 = vmatpush1.msra.mxu0 0.0
    %728 = vmatprep.subr.mxu0 0.0
    %729 = vmatpush1.msra.mxu0 0.0
    %730 = vmatprep.subr.mxu0 0.0
    %731 = vmatpush1.msra.mxu0 0.0
    %732 = vmatprep.subr.mxu0 0.0
    %733 = vmatpush1.msra.mxu0 0.0
    %734 = vmatprep.subr.mxu0 0.0
    %735 = vmatpush1.msra.mxu0 0.0
    %736 = vmatprep.subr.mxu0 0.0
    %737 = vmatpush1.msra.mxu0 0.0
    %738 = vmatprep.subr.mxu0 0.0
    %739 = vmatpush1.msra.mxu0 0.0
    %740 = vmatprep.subr.mxu0 0.0
    %741 = vmatpush1.msra.mxu0 0.0
    %742 = vmatprep.subr.mxu0 0.0
    %743 = vmatpush1.msra.mxu0 %v438
    %744 = vmatprep.subr.mxu0 0.0
    %745 = vmatpush1.msra.mxu0 %v437
    %746 = vmatprep.subr.mxu0 0.0
    %747 = vmatpush1.msra.mxu0 %v436
    %748 = vmatprep.subr.mxu0 0.0
    %749 = vmatpush1.msra.mxu0 %v435
    %750 = vmatprep.subr.mxu0 0.0
    %751 = vmatpush1.msra.mxu0 %v434
    %752 = vmatprep.subr.mxu0 0.0
    %753 = vmatpush1.msra.mxu0 %v433
    %754 = vmatprep.subr.mxu0 0.0
    %755 = vmatpush1.msra.mxu0 %v432
    %756 = vmatprep.subr.mxu0 0.0
    %757 = vmatpush1.msra.mxu0 %v431
    %758 = vmatprep.subr.mxu0 0.0
    %759 = vmatpush2.msra.mxu0 0.0
    %760 = vmatprep.subr.mxu0 0.0
    %761 = vmatpush2.msra.mxu0 0.0
    %762 = vmatprep.subr.mxu0 0.0
    %763 = vmatpush2.msra.mxu0 0.0
    %764 = vmatprep.subr.mxu0 0.0
    %765 = vmatpush2.msra.mxu0 0.0
    %766 = vmatprep.subr.mxu0 0.0
    %767 = vmatpush2.msra.mxu0 0.0
    %768 = vmatprep.subr.mxu0 0.0
    %769 = vmatpush2.msra.mxu0 0.0
    %770 = vmatprep.subr.mxu0 0.0
    %771 = vmatpush2.msra.mxu0 0.0
    %772 = vmatprep.subr.mxu0 0.0
    %773 = vmatpush2.msra.mxu0 0.0
    %774 = vmatprep.subr.mxu0 0.0
    %775 = vmatpush2.msra.mxu0 0.0
    %776 = vmatprep.subr.mxu0 0.0
    %777 = vmatpush2.msra.mxu0 0.0
    %778 = vmatprep.subr.mxu0 0.0
    %779 = vmatpush2.msra.mxu0 0.0
    %780 = vmatprep.subr.mxu0 0.0
    %781 = vmatpush2.msra.mxu0 0.0
    %782 = vmatprep.subr.mxu0 0.0
    %783 = vmatpush2.msra.mxu0 0.0
    %784 = vmatprep.subr.mxu0 0.0
    %785 = vmatpush2.msra.mxu0 0.0
    %786 = vmatprep.subr.mxu0 0.0
    %787 = vmatpush2.msra.mxu0 0.0
    %788 = vmatprep.subr.mxu0 0.0
    %789 = vmatpush2.msra.mxu0 0.0
    %790 = vmatprep.mubr.f32.mxu0 0.0
    %791 = vmatmul.mubr.f32.gmra.mxu0 %v724
    %v792 = vpop.f32.mrf.mxu0
    %v793 = vadd.f32 %v466, %v792
    %v794 = vpop.f32.mrf.mxu0
    %795 = vdwg.mxu0
    %796 = vmatprep.subr.mxu0 0.0
    %797 = vmatpush1.msra.mxu0 0.0
    %798 = vmatprep.subr.mxu0 0.0
    %799 = vmatpush1.msra.mxu0 0.0
    %800 = vmatprep.subr.mxu0 0.0
    %801 = vmatpush1.msra.mxu0 0.0
    %802 = vmatprep.subr.mxu0 0.0
    %803 = vmatpush1.msra.mxu0 0.0
    %804 = vmatprep.subr.mxu0 0.0
    %805 = vmatpush1.msra.mxu0 0.0
    %806 = vmatprep.subr.mxu0 0.0
    %807 = vmatpush1.msra.mxu0 0.0
    %808 = vmatprep.subr.mxu0 0.0
    %809 = vmatpush1.msra.mxu0 0.0
    %810 = vmatprep.subr.mxu0 0.0
    %811 = vmatpush1.msra.mxu0 0.0
    %812 = vmatprep.subr.mxu0 0.0
    %813 = vmatpush1.msra.mxu0 %v447
    %814 = vmatprep.subr.mxu0 0.0
    %815 = vmatpush1.msra.mxu0 %v446
    %816 = vmatprep.subr.mxu0 0.0
    %817 = vmatpush1.msra.mxu0 %v445
    %818 = vmatprep.subr.mxu0 0.0
    %819 = vmatpush1.msra.mxu0 %v444
    %820 = vmatprep.subr.mxu0 0.0
    %821 = vmatpush1.msra.mxu0 %v443
    %822 = vmatprep.subr.mxu0 0.0
    %823 = vmatpush1.msra.mxu0 %v442
    %824 = vmatprep.subr.mxu0 0.0
    %825 = vmatpush1.msra.mxu0 %v441
    %826 = vmatprep.subr.mxu0 0.0
    %827 = vmatpush1.msra.mxu0 %v440
    %828 = vmatprep.subr.mxu0 0.0
    %829 = vmatpush2.msra.mxu0 0.0
    %830 = vmatprep.subr.mxu0 0.0
    %831 = vmatpush2.msra.mxu0 0.0
    %832 = vmatprep.subr.mxu0 0.0
    %833 = vmatpush2.msra.mxu0 0.0
    %834 = vmatprep.subr.mxu0 0.0
    %835 = vmatpush2.msra.mxu0 0.0
    %836 = vmatprep.subr.mxu0 0.0
    %837 = vmatpush2.msra.mxu0 0.0
    %838 = vmatprep.subr.mxu0 0.0
    %839 = vmatpush2.msra.mxu0 0.0
    %840 = vmatprep.subr.mxu0 0.0
    %841 = vmatpush2.msra.mxu0 0.0
    %842 = vmatprep.subr.mxu0 0.0
    %843 = vmatpush2.msra.mxu0 0.0
    %844 = vmatprep.subr.mxu0 0.0
    %845 = vmatpush2.msra.mxu0 0.0
    %846 = vmatprep.subr.mxu0 0.0
    %847 = vmatpush2.msra.mxu0 0.0
    %848 = vmatprep.subr.mxu0 0.0
    %849 = vmatpush2.msra.mxu0 0.0
    %850 = vmatprep.subr.mxu0 0.0
    %851 = vmatpush2.msra.mxu0 0.0
    %852 = vmatprep.subr.mxu0 0.0
    %853 = vmatpush2.msra.mxu0 0.0
    %854 = vmatprep.subr.mxu0 0.0
    %855 = vmatpush2.msra.mxu0 0.0
    %856 = vmatprep.subr.mxu0 0.0
    %857 = vmatpush2.msra.mxu0 0.0
    %858 = vmatprep.subr.mxu0 0.0
    %859 = vmatpush2.msra.mxu0 0.0
    %860 = vmatprep.mubr.f32.mxu0 0.0
    %861 = vmatmul.mubr.f32.gmra.mxu0 %v724
    %v862 = vpop.f32.mrf.mxu0
    %v863 = vadd.f32 %v545, %v862
    %v864 = vpop.f32.mrf.mxu0
    %865 = vdwg.mxu0
    %866 = vmatprep.subr.mxu0 0.0
    %867 = vmatpush1.msra.mxu0 0.0
    %868 = vmatprep.subr.mxu0 0.0
    %869 = vmatpush1.msra.mxu0 0.0
    %870 = vmatprep.subr.mxu0 0.0
    %871 = vmatpush1.msra.mxu0 0.0
    %872 = vmatprep.subr.mxu0 0.0
    %873 = vmatpush1.msra.mxu0 0.0
    %874 = vmatprep.subr.mxu0 0.0
    %875 = vmatpush1.msra.mxu0 0.0
    %876 = vmatprep.subr.mxu0 0.0
    %877 = vmatpush1.msra.mxu0 0.0
    %878 = vmatprep.subr.mxu0 0.0
    %879 = vmatpush1.msra.mxu0 0.0
    %880 = vmatprep.subr.mxu0 0.0
    %881 = vmatpush1.msra.mxu0 0.0
    %882 = vmatprep.subr.mxu0 0.0
    %883 = vmatpush1.msra.mxu0 %v456
    %884 = vmatprep.subr.mxu0 0.0
    %885 = vmatpush1.msra.mxu0 %v455
    %886 = vmatprep.subr.mxu0 0.0
    %887 = vmatpush1.msra.mxu0 %v454
    %888 = vmatprep.subr.mxu0 0.0
    %889 = vmatpush1.msra.mxu0 %v453
    %890 = vmatprep.subr.mxu0 0.0
    %891 = vmatpush1.msra.mxu0 %v452
    %892 = vmatprep.subr.mxu0 0.0
    %893 = vmatpush1.msra.mxu0 %v451
    %894 = vmatprep.subr.mxu0 0.0
    %895 = vmatpush1.msra.mxu0 %v450
    %896 = vmatprep.subr.mxu0 0.0
    %897 = vmatpush1.msra.mxu0 %v449
    %898 = vmatprep.subr.mxu0 0.0
    %899 = vmatpush2.msra.mxu0 0.0
    %900 = vmatprep.subr.mxu0 0.0
    %901 = vmatpush2.msra.mxu0 0.0
    %902 = vmatprep.subr.mxu0 0.0
    %903 = vmatpush2.msra.mxu0 0.0
    %904 = vmatprep.subr.mxu0 0.0
    %905 = vmatpush2.msra.mxu0 0.0
    %906 = vmatprep.subr.mxu0 0.0
    %907 = vmatpush2.msra.mxu0 0.0
    %908 = vmatprep.subr.mxu0 0.0
    %909 = vmatpush2.msra.mxu0 0.0
    %910 = vmatprep.subr.mxu0 0.0
    %911 = vmatpush2.msra.mxu0 0.0
    %912 = vmatprep.subr.mxu0 0.0
    %913 = vmatpush2.msra.mxu0 0.0
    %914 = vmatprep.subr.mxu0 0.0
    %915 = vmatpush2.msra.mxu0 0.0
    %916 = vmatprep.subr.mxu0 0.0
    %917 = vmatpush2.msra.mxu0 0.0
    %918 = vmatprep.subr.mxu0 0.0
    %919 = vmatpush2.msra.mxu0 0.0
    %920 = vmatprep.subr.mxu0 0.0
    %921 = vmatpush2.msra.mxu0 0.0
    %922 = vmatprep.subr.mxu0 0.0
    %923 = vmatpush2.msra.mxu0 0.0
    %924 = vmatprep.subr.mxu0 0.0
    %925 = vmatpush2.msra.mxu0 0.0
    %926 = vmatprep.subr.mxu0 0.0
    %927 = vmatpush2.msra.mxu0 0.0
    %928 = vmatprep.subr.mxu0 0.0
    %929 = vmatpush2.msra.mxu0 0.0
    %930 = vmatprep.mubr.f32.mxu0 0.0
    %931 = vmatmul.mubr.f32.gmra.mxu0 %v724
    %v932 = vpop.f32.mrf.mxu0
    %v933 = vadd.f32 %v621, %v932
    %v934 = vpop.f32.mrf.mxu0
    %935 = vdwg.mxu0
    %v936 = vld [vmem:[#allocation2 + $0x2] sm:$0x3]
    %v937 = vld [vmem:[#allocation2 + $0xc] sm:$0x3]
    %v938 = vsel %vm156, %v936, %v937
    %v939 = vadd.f32 %v938, %v793
    %v940 = vxor.u32 %v939, 2147483648
    %v941 = vmul.f32 %v940, 1.442695
    %v942 = vpow.pop %v941
    %v943 = vadd.f32 %v942, 1.0
    %v944 = vrcp.pop %v943
    %v945 = vmul.f32 1.0, %v944
    %v946 = vld [vmem:[%s339 + $0x2] sm:$0x3]
    %v947 = vld [vmem:[%s339 + $0xc] sm:$0x3]
    %v948 = vsel %vm156, %v946, %v947
    %v949 = vadd.f32 %v948, %v863
    %v950 = vxor.u32 %v949, 2147483648
    %v951 = vmul.f32 %v950, 1.442695
    %v952 = vpow.pop %v951
    %v953 = vadd.f32 %v952, 1.0
    %v954 = vrcp.pop %v953
    %v955 = vmul.f32 1.0, %v954
    %v956 = vld [vmem:[%s428 + $0x2] sm:$0x3]
    %v957 = vld [vmem:[%s428 + $0xc] sm:$0x3]
    %v958 = vsel %vm156, %v956, %v957
    %v959 = vmul.f32 %v945, %v933
    %v960 = vadd.f32 %v958, %v959
    %v961 = vtanh.pop %v960
    %v962 = vsub.f32 1.0, %v955
    %v963 = vmul.f32 %v962, %v961
    %v964 = vmul.f32 %v955, %v722
    %v965 = vadd.f32 %v963, %v964
    %v967 = vsel %vm250, %v965, 0
    %969 = vmatprep.subr.mxu0 0.0
    %970 = vmatpush1.msra.mxu0 0.0
    %971 = vmatprep.subr.mxu0 0.0
    %972 = vmatpush1.msra.mxu0 0.0
    %973 = vmatprep.subr.mxu0 0.0
    %974 = vmatpush1.msra.mxu0 0.0
    %975 = vmatprep.subr.mxu0 0.0
    %976 = vmatpush1.msra.mxu0 0.0
    %977 = vmatprep.subr.mxu0 0.0
    %978 = vmatpush1.msra.mxu0 0.0
    %979 = vmatprep.subr.mxu0 0.0
    %980 = vmatpush1.msra.mxu0 0.0
    %981 = vmatprep.subr.mxu0 0.0
    %982 = vmatpush1.msra.mxu0 0.0
    %983 = vmatprep.subr.mxu0 0.0
    %984 = vmatpush1.msra.mxu0 0.0
    %985 = vmatprep.subr.mxu0 0.0
    %986 = vmatpush1.msra.mxu0 %v438
    %987 = vmatprep.subr.mxu0 0.0
    %988 = vmatpush1.msra.mxu0 %v437
    %989 = vmatprep.subr.mxu0 0.0
    %990 = vmatpush1.msra.mxu0 %v436
    %991 = vmatprep.subr.mxu0 0.0
    %992 = vmatpush1.msra.mxu0 %v435
    %993 = vmatprep.subr.mxu0 0.0
    %994 = vmatpush1.msra.mxu0 %v434
    %995 = vmatprep.subr.mxu0 0.0
    %996 = vmatpush1.msra.mxu0 %v433
    %997 = vmatprep.subr.mxu0 0.0
    %998 = vmatpush1.msra.mxu0 %v432
    %999 = vmatprep.subr.mxu0 0.0
    %1000 = vmatpush1.msra.mxu0 %v431
    %1001 = vmatprep.subr.mxu0 0.0
    %1002 = vmatpush2.msra.mxu0 0.0
    %1003 = vmatprep.subr.mxu0 0.0
    %1004 = vmatpush2.msra.mxu0 0.0
    %1005 = vmatprep.subr.mxu0 0.0
    %1006 = vmatpush2.msra.mxu0 0.0
    %1007 = vmatprep.subr.mxu0 0.0
    %1008 = vmatpush2.msra.mxu0 0.0
    %1009 = vmatprep.subr.mxu0 0.0
    %1010 = vmatpush2.msra.mxu0 0.0
    %1011 = vmatprep.subr.mxu0 0.0
    %1012 = vmatpush2.msra.mxu0 0.0
    %1013 = vmatprep.subr.mxu0 0.0
    %1014 = vmatpush2.msra.mxu0 0.0
    %1015 = vmatprep.subr.mxu0 0.0
    %1016 = vmatpush2.msra.mxu0 0.0
    %1017 = vmatprep.subr.mxu0 0.0
    %1018 = vmatpush2.msra.mxu0 0.0
    %1019 = vmatprep.subr.mxu0 0.0
    %1020 = vmatpush2.msra.mxu0 0.0
    %1021 = vmatprep.subr.mxu0 0.0
    %1022 = vmatpush2.msra.mxu0 0.0
    %1023 = vmatprep.subr.mxu0 0.0
    %1024 = vmatpush2.msra.mxu0 0.0
    %1025 = vmatprep.subr.mxu0 0.0
    %1026 = vmatpush2.msra.mxu0 0.0
    %1027 = vmatprep.subr.mxu0 0.0
    %1028 = vmatpush2.msra.mxu0 0.0
    %1029 = vmatprep.subr.mxu0 0.0
    %1030 = vmatpush2.msra.mxu0 0.0
    %1031 = vmatprep.subr.mxu0 0.0
    %1032 = vmatpush2.msra.mxu0 0.0
    %1033 = vmatprep.mubr.f32.mxu0 0.0
    %1034 = vmatmul.mubr.f32.gmra.mxu0 %v967
    %v1035 = vpop.f32.mrf.mxu0
    %v1036 = vadd.f32 %v466, %v1035
    %v1037 = vpop.f32.mrf.mxu0
    %1038 = vdwg.mxu0
    %1039 = vmatprep.subr.mxu0 0.0
    %1040 = vmatpush1.msra.mxu0 0.0
    %1041 = vmatprep.subr.mxu0 0.0
    %1042 = vmatpush1.msra.mxu0 0.0
    %1043 = vmatprep.subr.mxu0 0.0
    %1044 = vmatpush1.msra.mxu0 0.0
    %1045 = vmatprep.subr.mxu0 0.0
    %1046 = vmatpush1.msra.mxu0 0.0
    %1047 = vmatprep.subr.mxu0 0.0
    %1048 = vmatpush1.msra.mxu0 0.0
    %1049 = vmatprep.subr.mxu0 0.0
    %1050 = vmatpush1.msra.mxu0 0.0
    %1051 = vmatprep.subr.mxu0 0.0
    %1052 = vmatpush1.msra.mxu0 0.0
    %1053 = vmatprep.subr.mxu0 0.0
    %1054 = vmatpush1.msra.mxu0 0.0
    %1055 = vmatprep.subr.mxu0 0.0
    %1056 = vmatpush1.msra.mxu0 %v447
    %1057 = vmatprep.subr.mxu0 0.0
    %1058 = vmatpush1.msra.mxu0 %v446
    %1059 = vmatprep.subr.mxu0 0.0
    %1060 = vmatpush1.msra.mxu0 %v445
    %1061 = vmatprep.subr.mxu0 0.0
    %1062 = vmatpush1.msra.mxu0 %v444
    %1063 = vmatprep.subr.mxu0 0.0
    %1064 = vmatpush1.msra.mxu0 %v443
    %1065 = vmatprep.subr.mxu0 0.0
    %1066 = vmatpush1.msra.mxu0 %v442
    %1067 = vmatprep.subr.mxu0 0.0
    %1068 = vmatpush1.msra.mxu0 %v441
    %1069 = vmatprep.subr.mxu0 0.0
    %1070 = vmatpush1.msra.mxu0 %v440
    %1071 = vmatprep.subr.mxu0 0.0
    %1072 = vmatpush2.msra.mxu0 0.0
    %1073 = vmatprep.subr.mxu0 0.0
    %1074 = vmatpush2.msra.mxu0 0.0
    %1075 = vmatprep.subr.mxu0 0.0
    %1076 = vmatpush2.msra.mxu0 0.0
    %1077 = vmatprep.subr.mxu0 0.0
    %1078 = vmatpush2.msra.mxu0 0.0
    %1079 = vmatprep.subr.mxu0 0.0
    %1080 = vmatpush2.msra.mxu0 0.0
    %1081 = vmatprep.subr.mxu0 0.0
    %1082 = vmatpush2.msra.mxu0 0.0
    %1083 = vmatprep.subr.mxu0 0.0
    %1084 = vmatpush2.msra.mxu0 0.0
    %1085 = vmatprep.subr.mxu0 0.0
    %1086 = vmatpush2.msra.mxu0 0.0
    %1087 = vmatprep.subr.mxu0 0.0
    %1088 = vmatpush2.msra.mxu0 0.0
    %1089 = vmatprep.subr.mxu0 0.0
    %1090 = vmatpush2.msra.mxu0 0.0
    %1091 = vmatprep.subr.mxu0 0.0
    %1092 = vmatpush2.msra.mxu0 0.0
    %1093 = vmatprep.subr.mxu0 0.0
    %1094 = vmatpush2.msra.mxu0 0.0
    %1095 = vmatprep.subr.mxu0 0.0
    %1096 = vmatpush2.msra.mxu0 0.0
    %1097 = vmatprep.subr.mxu0 0.0
    %1098 = vmatpush2.msra.mxu0 0.0
    %1099 = vmatprep.subr.mxu0 0.0
    %1100 = vmatpush2.msra.mxu0 0.0
    %1101 = vmatprep.subr.mxu0 0.0
    %1102 = vmatpush2.msra.mxu0 0.0
    %1103 = vmatprep.mubr.f32.mxu0 0.0
    %1104 = vmatmul.mubr.f32.gmra.mxu0 %v967
    %v1105 = vpop.f32.mrf.mxu0
    %v1106 = vadd.f32 %v545, %v1105
    %v1107 = vpop.f32.mrf.mxu0
    %1108 = vdwg.mxu0
    %1109 = vmatprep.subr.mxu0 0.0
    %1110 = vmatpush1.msra.mxu0 0.0
    %1111 = vmatprep.subr.mxu0 0.0
    %1112 = vmatpush1.msra.mxu0 0.0
    %1113 = vmatprep.subr.mxu0 0.0
    %1114 = vmatpush1.msra.mxu0 0.0
    %1115 = vmatprep.subr.mxu0 0.0
    %1116 = vmatpush1.msra.mxu0 0.0
    %1117 = vmatprep.subr.mxu0 0.0
    %1118 = vmatpush1.msra.mxu0 0.0
    %1119 = vmatprep.subr.mxu0 0.0
    %1120 = vmatpush1.msra.mxu0 0.0
    %1121 = vmatprep.subr.mxu0 0.0
    %1122 = vmatpush1.msra.mxu0 0.0
    %1123 = vmatprep.subr.mxu0 0.0
    %1124 = vmatpush1.msra.mxu0 0.0
    %1125 = vmatprep.subr.mxu0 0.0
    %1126 = vmatpush1.msra.mxu0 %v456
    %1127 = vmatprep.subr.mxu0 0.0
    %1128 = vmatpush1.msra.mxu0 %v455
    %1129 = vmatprep.subr.mxu0 0.0
    %1130 = vmatpush1.msra.mxu0 %v454
    %1131 = vmatprep.subr.mxu0 0.0
    %1132 = vmatpush1.msra.mxu0 %v453
    %1133 = vmatprep.subr.mxu0 0.0
    %1134 = vmatpush1.msra.mxu0 %v452
    %1135 = vmatprep.subr.mxu0 0.0
    %1136 = vmatpush1.msra.mxu0 %v451
    %1137 = vmatprep.subr.mxu0 0.0
    %1138 = vmatpush1.msra.mxu0 %v450
    %1139 = vmatprep.subr.mxu0 0.0
    %1140 = vmatpush1.msra.mxu0 %v449
    %1141 = vmatprep.subr.mxu0 0.0
    %1142 = vmatpush2.msra.mxu0 0.0
    %1143 = vmatprep.subr.mxu0 0.0
    %1144 = vmatpush2.msra.mxu0 0.0
    %1145 = vmatprep.subr.mxu0 0.0
    %1146 = vmatpush2.msra.mxu0 0.0
    %1147 = vmatprep.subr.mxu0 0.0
    %1148 = vmatpush2.msra.mxu0 0.0
    %1149 = vmatprep.subr.mxu0 0.0
    %1150 = vmatpush2.msra.mxu0 0.0
    %1151 = vmatprep.subr.mxu0 0.0
    %1152 = vmatpush2.msra.mxu0 0.0
    %1153 = vmatprep.subr.mxu0 0.0
    %1154 = vmatpush2.msra.mxu0 0.0
    %1155 = vmatprep.subr.mxu0 0.0
    %1156 = vmatpush2.msra.mxu0 0.0
    %1157 = vmatprep.subr.mxu0 0.0
    %1158 = vmatpush2.msra.mxu0 0.0
    %1159 = vmatprep.subr.mxu0 0.0
    %1160 = vmatpush2.msra.mxu0 0.0
    %1161 = vmatprep.subr.mxu0 0.0
    %1162 = vmatpush2.msra.mxu0 0.0
    %1163 = vmatprep.subr.mxu0 0.0
    %1164 = vmatpush2.msra.mxu0 0.0
    %1165 = vmatprep.subr.mxu0 0.0
    %1166 = vmatpush2.msra.mxu0 0.0
    %1167 = vmatprep.subr.mxu0 0.0
    %1168 = vmatpush2.msra.mxu0 0.0
    %1169 = vmatprep.subr.mxu0 0.0
    %1170 = vmatpush2.msra.mxu0 0.0
    %1171 = vmatprep.subr.mxu0 0.0
    %1172 = vmatpush2.msra.mxu0 0.0
    %1173 = vmatprep.mubr.f32.mxu0 0.0
    %1174 = vmatmul.mubr.f32.gmra.mxu0 %v967
    %v1175 = vpop.f32.mrf.mxu0
    %v1176 = vadd.f32 %v621, %v1175
    %v1177 = vpop.f32.mrf.mxu0
    %1178 = vdwg.mxu0
    %v1179 = vld [vmem:[#allocation2 + $0x4] sm:$0x3]
    %v1180 = vld [vmem:[#allocation2 + $0xa] sm:$0x3]
    %v1181 = vsel %vm156, %v1179, %v1180
    %v1182 = vadd.f32 %v1181, %v1036
    %v1183 = vxor.u32 %v1182, 2147483648
    %v1184 = vmul.f32 %v1183, 1.442695
    %v1185 = vpow.pop %v1184
    %v1186 = vadd.f32 %v1185, 1.0
    %v1187 = vrcp.pop %v1186
    %v1188 = vmul.f32 1.0, %v1187
    %v1189 = vld [vmem:[%s339 + $0x4] sm:$0x3]
    %v1190 = vld [vmem:[%s339 + $0xa] sm:$0x3]
    %v1191 = vsel %vm156, %v1189, %v1190
    %v1192 = vadd.f32 %v1191, %v1106
    %v1193 = vxor.u32 %v1192, 2147483648
    %v1194 = vmul.f32 %v1193, 1.442695
    %v1195 = vpow.pop %v1194
    %v1196 = vadd.f32 %v1195, 1.0
    %v1197 = vrcp.pop %v1196
    %v1198 = vmul.f32 1.0, %v1197
    %v1199 = vld [vmem:[%s428 + $0x4] sm:$0x3]
    %v1200 = vld [vmem:[%s428 + $0xa] sm:$0x3]
    %v1201 = vsel %vm156, %v1199, %v1200
    %v1202 = vmul.f32 %v1188, %v1176
    %v1203 = vadd.f32 %v1201, %v1202
    %v1204 = vtanh.pop %v1203
    %v1205 = vsub.f32 1.0, %v1198
    %v1206 = vmul.f32 %v1205, %v1204
    %v1207 = vmul.f32 %v1198, %v965
    %v1208 = vadd.f32 %v1206, %v1207
    %v1210 = vsel %vm250, %v1208, 0
    %1212 = vmatprep.subr.mxu0 0.0
    %1213 = vmatpush1.msra.mxu0 0.0
    %1214 = vmatprep.subr.mxu0 0.0
    %1215 = vmatpush1.msra.mxu0 0.0
    %1216 = vmatprep.subr.mxu0 0.0
    %1217 = vmatpush1.msra.mxu0 0.0
    %1218 = vmatprep.subr.mxu0 0.0
    %1219 = vmatpush1.msra.mxu0 0.0
    %1220 = vmatprep.subr.mxu0 0.0
    %1221 = vmatpush1.msra.mxu0 0.0
    %1222 = vmatprep.subr.mxu0 0.0
    %1223 = vmatpush1.msra.mxu0 0.0
    %1224 = vmatprep.subr.mxu0 0.0
    %1225 = vmatpush1.msra.mxu0 0.0
    %1226 = vmatprep.subr.mxu0 0.0
    %1227 = vmatpush1.msra.mxu0 0.0
    %1228 = vmatprep.subr.mxu0 0.0
    %1229 = vmatpush1.msra.mxu0 %v438
    %1230 = vmatprep.subr.mxu0 0.0
    %1231 = vmatpush1.msra.mxu0 %v437
    %1232 = vmatprep.subr.mxu0 0.0
    %1233 = vmatpush1.msra.mxu0 %v436
    %1234 = vmatprep.subr.mxu0 0.0
    %1235 = vmatpush1.msra.mxu0 %v435
    %1236 = vmatprep.subr.mxu0 0.0
    %1237 = vmatpush1.msra.mxu0 %v434
    %1238 = vmatprep.subr.mxu0 0.0
    %1239 = vmatpush1.msra.mxu0 %v433
    %1240 = vmatprep.subr.mxu0 0.0
    %1241 = vmatpush1.msra.mxu0 %v432
    %1242 = vmatprep.subr.mxu0 0.0
    %1243 = vmatpush1.msra.mxu0 %v431
    %1244 = vmatprep.subr.mxu0 0.0
    %1245 = vmatpush2.msra.mxu0 0.0
    %1246 = vmatprep.subr.mxu0 0.0
    %1247 = vmatpush2.msra.mxu0 0.0
    %1248 = vmatprep.subr.mxu0 0.0
    %1249 = vmatpush2.msra.mxu0 0.0
    %1250 = vmatprep.subr.mxu0 0.0
    %1251 = vmatpush2.msra.mxu0 0.0
    %1252 = vmatprep.subr.mxu0 0.0
    %1253 = vmatpush2.msra.mxu0 0.0
    %1254 = vmatprep.subr.mxu0 0.0
    %1255 = vmatpush2.msra.mxu0 0.0
    %1256 = vmatprep.subr.mxu0 0.0
    %1257 = vmatpush2.msra.mxu0 0.0
    %1258 = vmatprep.subr.mxu0 0.0
    %1259 = vmatpush2.msra.mxu0 0.0
    %1260 = vmatprep.subr.mxu0 0.0
    %1261 = vmatpush2.msra.mxu0 0.0
    %1262 = vmatprep.subr.mxu0 0.0
    %1263 = vmatpush2.msra.mxu0 0.0
    %1264 = vmatprep.subr.mxu0 0.0
    %1265 = vmatpush2.msra.mxu0 0.0
    %1266 = vmatprep.subr.mxu0 0.0
    %1267 = vmatpush2.msra.mxu0 0.0
    %1268 = vmatprep.subr.mxu0 0.0
    %1269 = vmatpush2.msra.mxu0 0.0
    %1270 = vmatprep.subr.mxu0 0.0
    %1271 = vmatpush2.msra.mxu0 0.0
    %1272 = vmatprep.subr.mxu0 0.0
    %1273 = vmatpush2.msra.mxu0 0.0
    %1274 = vmatprep.subr.mxu0 0.0
    %1275 = vmatpush2.msra.mxu0 0.0
    %1276 = vmatprep.mubr.f32.mxu0 0.0
    %1277 = vmatmul.mubr.f32.gmra.mxu0 %v1210
    %v1278 = vpop.f32.mrf.mxu0
    %v1279 = vadd.f32 %v466, %v1278
    %v1280 = vpop.f32.mrf.mxu0
    %1281 = vdwg.mxu0
    %1282 = vmatprep.subr.mxu0 0.0
    %1283 = vmatpush1.msra.mxu0 0.0
    %1284 = vmatprep.subr.mxu0 0.0
    %1285 = vmatpush1.msra.mxu0 0.0
    %1286 = vmatprep.subr.mxu0 0.0
    %1287 = vmatpush1.msra.mxu0 0.0
    %1288 = vmatprep.subr.mxu0 0.0
    %1289 = vmatpush1.msra.mxu0 0.0
    %1290 = vmatprep.subr.mxu0 0.0
    %1291 = vmatpush1.msra.mxu0 0.0
    %1292 = vmatprep.subr.mxu0 0.0
    %1293 = vmatpush1.msra.mxu0 0.0
    %1294 = vmatprep.subr.mxu0 0.0
    %1295 = vmatpush1.msra.mxu0 0.0
    %1296 = vmatprep.subr.mxu0 0.0
    %1297 = vmatpush1.msra.mxu0 0.0
    %1298 = vmatprep.subr.mxu0 0.0
    %1299 = vmatpush1.msra.mxu0 %v447
    %1300 = vmatprep.subr.mxu0 0.0
    %1301 = vmatpush1.msra.mxu0 %v446
    %1302 = vmatprep.subr.mxu0 0.0
    %1303 = vmatpush1.msra.mxu0 %v445
    %1304 = vmatprep.subr.mxu0 0.0
    %1305 = vmatpush1.msra.mxu0 %v444
    %1306 = vmatprep.subr.mxu0 0.0
    %1307 = vmatpush1.msra.mxu0 %v443
    %1308 = vmatprep.subr.mxu0 0.0
    %1309 = vmatpush1.msra.mxu0 %v442
    %1310 = vmatprep.subr.mxu0 0.0
    %1311 = vmatpush1.msra.mxu0 %v441
    %1312 = vmatprep.subr.mxu0 0.0
    %1313 = vmatpush1.msra.mxu0 %v440
    %1314 = vmatprep.subr.mxu0 0.0
    %1315 = vmatpush2.msra.mxu0 0.0
    %1316 = vmatprep.subr.mxu0 0.0
    %1317 = vmatpush2.msra.mxu0 0.0
    %1318 = vmatprep.subr.mxu0 0.0
    %1319 = vmatpush2.msra.mxu0 0.0
    %1320 = vmatprep.subr.mxu0 0.0
    %1321 = vmatpush2.msra.mxu0 0.0
    %1322 = vmatprep.subr.mxu0 0.0
    %1323 = vmatpush2.msra.mxu0 0.0
    %1324 = vmatprep.subr.mxu0 0.0
    %1325 = vmatpush2.msra.mxu0 0.0
    %1326 = vmatprep.subr.mxu0 0.0
    %1327 = vmatpush2.msra.mxu0 0.0
    %1328 = vmatprep.subr.mxu0 0.0
    %1329 = vmatpush2.msra.mxu0 0.0
    %1330 = vmatprep.subr.mxu0 0.0
    %1331 = vmatpush2.msra.mxu0 0.0
    %1332 = vmatprep.subr.mxu0 0.0
    %1333 = vmatpush2.msra.mxu0 0.0
    %1334 = vmatprep.subr.mxu0 0.0
    %1335 = vmatpush2.msra.mxu0 0.0
    %1336 = vmatprep.subr.mxu0 0.0
    %1337 = vmatpush2.msra.mxu0 0.0
    %1338 = vmatprep.subr.mxu0 0.0
    %1339 = vmatpush2.msra.mxu0 0.0
    %1340 = vmatprep.subr.mxu0 0.0
    %1341 = vmatpush2.msra.mxu0 0.0
    %1342 = vmatprep.subr.mxu0 0.0
    %1343 = vmatpush2.msra.mxu0 0.0
    %1344 = vmatprep.subr.mxu0 0.0
    %1345 = vmatpush2.msra.mxu0 0.0
    %1346 = vmatprep.mubr.f32.mxu0 0.0
    %1347 = vmatmul.mubr.f32.gmra.mxu0 %v1210
    %v1348 = vpop.f32.mrf.mxu0
    %v1349 = vadd.f32 %v545, %v1348
    %v1350 = vpop.f32.mrf.mxu0
    %1351 = vdwg.mxu0
    %1352 = vmatprep.subr.mxu0 0.0
    %1353 = vmatpush1.msra.mxu0 0.0
    %1354 = vmatprep.subr.mxu0 0.0
    %1355 = vmatpush1.msra.mxu0 0.0
    %1356 = vmatprep.subr.mxu0 0.0
    %1357 = vmatpush1.msra.mxu0 0.0
    %1358 = vmatprep.subr.mxu0 0.0
    %1359 = vmatpush1.msra.mxu0 0.0
    %1360 = vmatprep.subr.mxu0 0.0
    %1361 = vmatpush1.msra.mxu0 0.0
    %1362 = vmatprep.subr.mxu0 0.0
    %1363 = vmatpush1.msra.mxu0 0.0
    %1364 = vmatprep.subr.mxu0 0.0
    %1365 = vmatpush1.msra.mxu0 0.0
    %1366 = vmatprep.subr.mxu0 0.0
    %1367 = vmatpush1.msra.mxu0 0.0
    %1368 = vmatprep.subr.mxu0 0.0
    %1369 = vmatpush1.msra.mxu0 %v456
    %1370 = vmatprep.subr.mxu0 0.0
    %1371 = vmatpush1.msra.mxu0 %v455
    %1372 = vmatprep.subr.mxu0 0.0
    %1373 = vmatpush1.msra.mxu0 %v454
    %1374 = vmatprep.subr.mxu0 0.0
    %1375 = vmatpush1.msra.mxu0 %v453
    %1376 = vmatprep.subr.mxu0 0.0
    %1377 = vmatpush1.msra.mxu0 %v452
    %1378 = vmatprep.subr.mxu0 0.0
    %1379 = vmatpush1.msra.mxu0 %v451
    %1380 = vmatprep.subr.mxu0 0.0
    %1381 = vmatpush1.msra.mxu0 %v450
    %1382 = vmatprep.subr.mxu0 0.0
    %1383 = vmatpush1.msra.mxu0 %v449
    %1384 = vmatprep.subr.mxu0 0.0
    %1385 = vmatpush2.msra.mxu0 0.0
    %1386 = vmatprep.subr.mxu0 0.0
    %1387 = vmatpush2.msra.mxu0 0.0
    %1388 = vmatprep.subr.mxu0 0.0
    %1389 = vmatpush2.msra.mxu0 0.0
    %1390 = vmatprep.subr.mxu0 0.0
    %1391 = vmatpush2.msra.mxu0 0.0
    %1392 = vmatprep.subr.mxu0 0.0
    %1393 = vmatpush2.msra.mxu0 0.0
    %1394 = vmatprep.subr.mxu0 0.0
    %1395 = vmatpush2.msra.mxu0 0.0
    %1396 = vmatprep.subr.mxu0 0.0
    %1397 = vmatpush2.msra.mxu0 0.0
    %1398 = vmatprep.subr.mxu0 0.0
    %1399 = vmatpush2.msra.mxu0 0.0
    %1400 = vmatprep.subr.mxu0 0.0
    %1401 = vmatpush2.msra.mxu0 0.0
    %1402 = vmatprep.subr.mxu0 0.0
    %1403 = vmatpush2.msra.mxu0 0.0
    %1404 = vmatprep.subr.mxu0 0.0
    %1405 = vmatpush2.msra.mxu0 0.0
    %1406 = vmatprep.subr.mxu0 0.0
    %1407 = vmatpush2.msra.mxu0 0.0
    %1408 = vmatprep.subr.mxu0 0.0
    %1409 = vmatpush2.msra.mxu0 0.0
    %1410 = vmatprep.subr.mxu0 0.0
    %1411 = vmatpush2.msra.mxu0 0.0
    %1412 = vmatprep.subr.mxu0 0.0
    %1413 = vmatpush2.msra.mxu0 0.0
    %1414 = vmatprep.subr.mxu0 0.0
    %1415 = vmatpush2.msra.mxu0 0.0
    %1416 = vmatprep.mubr.f32.mxu0 0.0
    %1417 = vmatmul.mubr.f32.gmra.mxu0 %v1210
    %v1418 = vpop.f32.mrf.mxu0
    %v1419 = vadd.f32 %v621, %v1418
    %v1420 = vpop.f32.mrf.mxu0
    %1421 = vdwg.mxu0
    %v1422 = vld [vmem:[#allocation2 + $0x6] sm:$0x3]
    %v1423 = vld [vmem:[#allocation2 + $0x8] sm:$0x3]
    %v1424 = vsel %vm156, %v1422, %v1423
    %v1425 = vadd.f32 %v1424, %v1279
    %v1426 = vxor.u32 %v1425, 2147483648
    %v1427 = vmul.f32 %v1426, 1.442695
    %v1428 = vpow.pop %v1427
    %v1429 = vadd.f32 %v1428, 1.0
    %v1430 = vrcp.pop %v1429
    %v1431 = vmul.f32 1.0, %v1430
    %v1432 = vld [vmem:[%s339 + $0x6] sm:$0x3]
    %v1433 = vld [vmem:[%s339 + $0x8] sm:$0x3]
    %v1434 = vsel %vm156, %v1432, %v1433
    %v1435 = vadd.f32 %v1434, %v1349
    %v1436 = vxor.u32 %v1435, 2147483648
    %v1437 = vmul.f32 %v1436, 1.442695
    %v1438 = vpow.pop %v1437
    %v1439 = vadd.f32 %v1438, 1.0
    %v1440 = vrcp.pop %v1439
    %v1441 = vmul.f32 1.0, %v1440
    %v1442 = vld [vmem:[%s428 + $0x6] sm:$0x3]
    %v1443 = vld [vmem:[%s428 + $0x8] sm:$0x3]
    %v1444 = vsel %vm156, %v1442, %v1443
    %v1445 = vmul.f32 %v1431, %v1419
    %v1446 = vadd.f32 %v1444, %v1445
    %v1447 = vtanh.pop %v1446
    %v1448 = vsub.f32 1.0, %v1441
    %v1449 = vmul.f32 %v1448, %v1447
    %v1450 = vmul.f32 %v1441, %v1208
    %v1451 = vadd.f32 %v1449, %v1450
    %v1453 = vsel %vm250, %v1451, 0
    %1455 = vmatprep.subr.mxu0 0.0
    %1456 = vmatpush1.msra.mxu0 0.0
    %1457 = vmatprep.subr.mxu0 0.0
    %1458 = vmatpush1.msra.mxu0 0.0
    %1459 = vmatprep.subr.mxu0 0.0
    %1460 = vmatpush1.msra.mxu0 0.0
    %1461 = vmatprep.subr.mxu0 0.0
    %1462 = vmatpush1.msra.mxu0 0.0
    %1463 = vmatprep.subr.mxu0 0.0
    %1464 = vmatpush1.msra.mxu0 0.0
    %1465 = vmatprep.subr.mxu0 0.0
    %1466 = vmatpush1.msra.mxu0 0.0
    %1467 = vmatprep.subr.mxu0 0.0
    %1468 = vmatpush1.msra.mxu0 0.0
    %1469 = vmatprep.subr.mxu0 0.0
    %1470 = vmatpush1.msra.mxu0 0.0
    %1471 = vmatprep.subr.mxu0 0.0
    %1472 = vmatpush1.msra.mxu0 %v438
    %1473 = vmatprep.subr.mxu0 0.0
    %1474 = vmatpush1.msra.mxu0 %v437
    %1475 = vmatprep.subr.mxu0 0.0
    %1476 = vmatpush1.msra.mxu0 %v436
    %1477 = vmatprep.subr.mxu0 0.0
    %1478 = vmatpush1.msra.mxu0 %v435
    %1479 = vmatprep.subr.mxu0 0.0
    %1480 = vmatpush1.msra.mxu0 %v434
    %1481 = vmatprep.subr.mxu0 0.0
    %1482 = vmatpush1.msra.mxu0 %v433
    %1483 = vmatprep.subr.mxu0 0.0
    %1484 = vmatpush1.msra.mxu0 %v432
    %1485 = vmatprep.subr.mxu0 0.0
    %1486 = vmatpush1.msra.mxu0 %v431
    %1487 = vmatprep.subr.mxu0 0.0
    %1488 = vmatpush2.msra.mxu0 0.0
    %1489 = vmatprep.subr.mxu0 0.0
    %1490 = vmatpush2.msra.mxu0 0.0
    %1491 = vmatprep.subr.mxu0 0.0
    %1492 = vmatpush2.msra.mxu0 0.0
    %1493 = vmatprep.subr.mxu0 0.0
    %1494 = vmatpush2.msra.mxu0 0.0
    %1495 = vmatprep.subr.mxu0 0.0
    %1496 = vmatpush2.msra.mxu0 0.0
    %1497 = vmatprep.subr.mxu0 0.0
    %1498 = vmatpush2.msra.mxu0 0.0
    %1499 = vmatprep.subr.mxu0 0.0
    %1500 = vmatpush2.msra.mxu0 0.0
    %1501 = vmatprep.subr.mxu0 0.0
    %1502 = vmatpush2.msra.mxu0 0.0
    %1503 = vmatprep.subr.mxu0 0.0
    %1504 = vmatpush2.msra.mxu0 0.0
    %1505 = vmatprep.subr.mxu0 0.0
    %1506 = vmatpush2.msra.mxu0 0.0
    %1507 = vmatprep.subr.mxu0 0.0
    %1508 = vmatpush2.msra.mxu0 0.0
    %1509 = vmatprep.subr.mxu0 0.0
    %1510 = vmatpush2.msra.mxu0 0.0
    %1511 = vmatprep.subr.mxu0 0.0
    %1512 = vmatpush2.msra.mxu0 0.0
    %1513 = vmatprep.subr.mxu0 0.0
    %1514 = vmatpush2.msra.mxu0 0.0
    %1515 = vmatprep.subr.mxu0 0.0
    %1516 = vmatpush2.msra.mxu0 0.0
    %1517 = vmatprep.subr.mxu0 0.0
    %1518 = vmatpush2.msra.mxu0 0.0
    %1519 = vmatprep.mubr.f32.mxu0 0.0
    %1520 = vmatmul.mubr.f32.gmra.mxu0 %v1453
    %v1521 = vpop.f32.mrf.mxu0
    %v1522 = vadd.f32 %v466, %v1521
    %v1523 = vpop.f32.mrf.mxu0
    %1524 = vdwg.mxu0
    %1525 = vmatprep.subr.mxu0 0.0
    %1526 = vmatpush1.msra.mxu0 0.0
    %1527 = vmatprep.subr.mxu0 0.0
    %1528 = vmatpush1.msra.mxu0 0.0
    %1529 = vmatprep.subr.mxu0 0.0
    %1530 = vmatpush1.msra.mxu0 0.0
    %1531 = vmatprep.subr.mxu0 0.0
    %1532 = vmatpush1.msra.mxu0 0.0
    %1533 = vmatprep.subr.mxu0 0.0
    %1534 = vmatpush1.msra.mxu0 0.0
    %1535 = vmatprep.subr.mxu0 0.0
    %1536 = vmatpush1.msra.mxu0 0.0
    %1537 = vmatprep.subr.mxu0 0.0
    %1538 = vmatpush1.msra.mxu0 0.0
    %1539 = vmatprep.subr.mxu0 0.0
    %1540 = vmatpush1.msra.mxu0 0.0
    %1541 = vmatprep.subr.mxu0 0.0
    %1542 = vmatpush1.msra.mxu0 %v447
    %1543 = vmatprep.subr.mxu0 0.0
    %1544 = vmatpush1.msra.mxu0 %v446
    %1545 = vmatprep.subr.mxu0 0.0
    %1546 = vmatpush1.msra.mxu0 %v445
    %1547 = vmatprep.subr.mxu0 0.0
    %1548 = vmatpush1.msra.mxu0 %v444
    %1549 = vmatprep.subr.mxu0 0.0
    %1550 = vmatpush1.msra.mxu0 %v443
    %1551 = vmatprep.subr.mxu0 0.0
    %1552 = vmatpush1.msra.mxu0 %v442
    %1553 = vmatprep.subr.mxu0 0.0
    %1554 = vmatpush1.msra.mxu0 %v441
    %1555 = vmatprep.subr.mxu0 0.0
    %1556 = vmatpush1.msra.mxu0 %v440
    %1557 = vmatprep.subr.mxu0 0.0
    %1558 = vmatpush2.msra.mxu0 0.0
    %1559 = vmatprep.subr.mxu0 0.0
    %1560 = vmatpush2.msra.mxu0 0.0
    %1561 = vmatprep.subr.mxu0 0.0
    %1562 = vmatpush2.msra.mxu0 0.0
    %1563 = vmatprep.subr.mxu0 0.0
    %1564 = vmatpush2.msra.mxu0 0.0
    %1565 = vmatprep.subr.mxu0 0.0
    %1566 = vmatpush2.msra.mxu0 0.0
    %1567 = vmatprep.subr.mxu0 0.0
    %1568 = vmatpush2.msra.mxu0 0.0
    %1569 = vmatprep.subr.mxu0 0.0
    %1570 = vmatpush2.msra.mxu0 0.0
    %1571 = vmatprep.subr.mxu0 0.0
    %1572 = vmatpush2.msra.mxu0 0.0
    %1573 = vmatprep.subr.mxu0 0.0
    %1574 = vmatpush2.msra.mxu0 0.0
    %1575 = vmatprep.subr.mxu0 0.0
    %1576 = vmatpush2.msra.mxu0 0.0
    %1577 = vmatprep.subr.mxu0 0.0
    %1578 = vmatpush2.msra.mxu0 0.0
    %1579 = vmatprep.subr.mxu0 0.0
    %1580 = vmatpush2.msra.mxu0 0.0
    %1581 = vmatprep.subr.mxu0 0.0
    %1582 = vmatpush2.msra.mxu0 0.0
    %1583 = vmatprep.subr.mxu0 0.0
    %1584 = vmatpush2.msra.mxu0 0.0
    %1585 = vmatprep.subr.mxu0 0.0
    %1586 = vmatpush2.msra.mxu0 0.0
    %1587 = vmatprep.subr.mxu0 0.0
    %1588 = vmatpush2.msra.mxu0 0.0
    %1589 = vmatprep.mubr.f32.mxu0 0.0
    %1590 = vmatmul.mubr.f32.gmra.mxu0 %v1453
    %v1591 = vpop.f32.mrf.mxu0
    %v1592 = vadd.f32 %v545, %v1591
    %v1593 = vpop.f32.mrf.mxu0
    %1594 = vdwg.mxu0
    %1595 = vmatprep.subr.mxu0 0.0
    %1596 = vmatpush1.msra.mxu0 0.0
    %1597 = vmatprep.subr.mxu0 0.0
    %1598 = vmatpush1.msra.mxu0 0.0
    %1599 = vmatprep.subr.mxu0 0.0
    %1600 = vmatpush1.msra.mxu0 0.0
    %1601 = vmatprep.subr.mxu0 0.0
    %1602 = vmatpush1.msra.mxu0 0.0
    %1603 = vmatprep.subr.mxu0 0.0
    %1604 = vmatpush1.msra.mxu0 0.0
    %1605 = vmatprep.subr.mxu0 0.0
    %1606 = vmatpush1.msra.mxu0 0.0
    %1607 = vmatprep.subr.mxu0 0.0
    %1608 = vmatpush1.msra.mxu0 0.0
    %1609 = vmatprep.subr.mxu0 0.0
    %1610 = vmatpush1.msra.mxu0 0.0
    %1611 = vmatprep.subr.mxu0 0.0
    %1612 = vmatpush1.msra.mxu0 %v456
    %1613 = vmatprep.subr.mxu0 0.0
    %1614 = vmatpush1.msra.mxu0 %v455
    %1615 = vmatprep.subr.mxu0 0.0
    %1616 = vmatpush1.msra.mxu0 %v454
    %1617 = vmatprep.subr.mxu0 0.0
    %1618 = vmatpush1.msra.mxu0 %v453
    %1619 = vmatprep.subr.mxu0 0.0
    %1620 = vmatpush1.msra.mxu0 %v452
    %1621 = vmatprep.subr.mxu0 0.0
    %1622 = vmatpush1.msra.mxu0 %v451
    %1623 = vmatprep.subr.mxu0 0.0
    %1624 = vmatpush1.msra.mxu0 %v450
    %1625 = vmatprep.subr.mxu0 0.0
    %1626 = vmatpush1.msra.mxu0 %v449
    %1627 = vmatprep.subr.mxu0 0.0
    %1628 = vmatpush2.msra.mxu0 0.0
    %1629 = vmatprep.subr.mxu0 0.0
    %1630 = vmatpush2.msra.mxu0 0.0
    %1631 = vmatprep.subr.mxu0 0.0
    %1632 = vmatpush2.msra.mxu0 0.0
    %1633 = vmatprep.subr.mxu0 0.0
    %1634 = vmatpush2.msra.mxu0 0.0
    %1635 = vmatprep.subr.mxu0 0.0
    %1636 = vmatpush2.msra.mxu0 0.0
    %1637 = vmatprep.subr.mxu0 0.0
    %1638 = vmatpush2.msra.mxu0 0.0
    %1639 = vmatprep.subr.mxu0 0.0
    %1640 = vmatpush2.msra.mxu0 0.0
    %1641 = vmatprep.subr.mxu0 0.0
    %1642 = vmatpush2.msra.mxu0 0.0
    %1643 = vmatprep.subr.mxu0 0.0
    %1644 = vmatpush2.msra.mxu0 0.0
    %1645 = vmatprep.subr.mxu0 0.0
    %1646 = vmatpush2.msra.mxu0 0.0
    %1647 = vmatprep.subr.mxu0 0.0
    %1648 = vmatpush2.msra.mxu0 0.0
    %1649 = vmatprep.subr.mxu0 0.0
    %1650 = vmatpush2.msra.mxu0 0.0
    %1651 = vmatprep.subr.mxu0 0.0
    %1652 = vmatpush2.msra.mxu0 0.0
    %1653 = vmatprep.subr.mxu0 0.0
    %1654 = vmatpush2.msra.mxu0 0.0
    %1655 = vmatprep.subr.mxu0 0.0
    %1656 = vmatpush2.msra.mxu0 0.0
    %1657 = vmatprep.subr.mxu0 0.0
    %1658 = vmatpush2.msra.mxu0 0.0
    %1659 = vmatprep.mubr.f32.mxu0 0.0
    %1660 = vmatmul.mubr.f32.gmra.mxu0 %v1453
    %v1661 = vpop.f32.mrf.mxu0
    %v1662 = vadd.f32 %v621, %v1661
    %v1663 = vpop.f32.mrf.mxu0
    %1664 = vdwg.mxu0
    %v1665 = vsel %vm156, %v1423, %v1422
    %v1666 = vadd.f32 %v1665, %v1522
    %v1667 = vxor.u32 %v1666, 2147483648
    %v1668 = vmul.f32 %v1667, 1.442695
    %v1669 = vpow.pop %v1668
    %v1670 = vadd.f32 %v1669, 1.0
    %v1671 = vrcp.pop %v1670
    %v1672 = vmul.f32 1.0, %v1671
    %v1673 = vsel %vm156, %v1433, %v1432
    %v1674 = vadd.f32 %v1673, %v1592
    %v1675 = vxor.u32 %v1674, 2147483648
    %v1676 = vmul.f32 %v1675, 1.442695
    %v1677 = vpow.pop %v1676
    %v1678 = vadd.f32 %v1677, 1.0
    %v1679 = vrcp.pop %v1678
    %v1680 = vmul.f32 1.0, %v1679
    %v1681 = vsel %vm156, %v1443, %v1442
    %v1682 = vmul.f32 %v1672, %v1662
    %v1683 = vadd.f32 %v1681, %v1682
    %v1684 = vtanh.pop %v1683
    %v1685 = vsub.f32 1.0, %v1680
    %v1686 = vmul.f32 %v1685, %v1684
    %v1687 = vmul.f32 %v1680, %v1451
    %v1688 = vadd.f32 %v1686, %v1687
    %v1690 = vsel %vm250, %v1688, 0
    %1692 = vmatprep.subr.mxu0 0.0
    %1693 = vmatpush1.msra.mxu0 0.0
    %1694 = vmatprep.subr.mxu0 0.0
    %1695 = vmatpush1.msra.mxu0 0.0
    %1696 = vmatprep.subr.mxu0 0.0
    %1697 = vmatpush1.msra.mxu0 0.0
    %1698 = vmatprep.subr.mxu0 0.0
    %1699 = vmatpush1.msra.mxu0 0.0
    %1700 = vmatprep.subr.mxu0 0.0
    %1701 = vmatpush1.msra.mxu0 0.0
    %1702 = vmatprep.subr.mxu0 0.0
    %1703 = vmatpush1.msra.mxu0 0.0
    %1704 = vmatprep.subr.mxu0 0.0
    %1705 = vmatpush1.msra.mxu0 0.0
    %1706 = vmatprep.subr.mxu0 0.0
    %1707 = vmatpush1.msra.mxu0 0.0
    %1708 = vmatprep.subr.mxu0 0.0
    %1709 = vmatpush1.msra.mxu0 %v438
    %1710 = vmatprep.subr.mxu0 0.0
    %1711 = vmatpush1.msra.mxu0 %v437
    %1712 = vmatprep.subr.mxu0 0.0
    %1713 = vmatpush1.msra.mxu0 %v436
    %1714 = vmatprep.subr.mxu0 0.0
    %1715 = vmatpush1.msra.mxu0 %v435
    %1716 = vmatprep.subr.mxu0 0.0
    %1717 = vmatpush1.msra.mxu0 %v434
    %1718 = vmatprep.subr.mxu0 0.0
    %1719 = vmatpush1.msra.mxu0 %v433
    %1720 = vmatprep.subr.mxu0 0.0
    %1721 = vmatpush1.msra.mxu0 %v432
    %1722 = vmatprep.subr.mxu0 0.0
    %1723 = vmatpush1.msra.mxu0 %v431
    %1724 = vmatprep.subr.mxu0 0.0
    %1725 = vmatpush2.msra.mxu0 0.0
    %1726 = vmatprep.subr.mxu0 0.0
    %1727 = vmatpush2.msra.mxu0 0.0
    %1728 = vmatprep.subr.mxu0 0.0
    %1729 = vmatpush2.msra.mxu0 0.0
    %1730 = vmatprep.subr.mxu0 0.0
    %1731 = vmatpush2.msra.mxu0 0.0
    %1732 = vmatprep.subr.mxu0 0.0
    %1733 = vmatpush2.msra.mxu0 0.0
    %1734 = vmatprep.subr.mxu0 0.0
    %1735 = vmatpush2.msra.mxu0 0.0
    %1736 = vmatprep.subr.mxu0 0.0
    %1737 = vmatpush2.msra.mxu0 0.0
    %1738 = vmatprep.subr.mxu0 0.0
    %1739 = vmatpush2.msra.mxu0 0.0
    %1740 = vmatprep.subr.mxu0 0.0
    %1741 = vmatpush2.msra.mxu0 0.0
    %1742 = vmatprep.subr.mxu0 0.0
    %1743 = vmatpush2.msra.mxu0 0.0
    %1744 = vmatprep.subr.mxu0 0.0
    %1745 = vmatpush2.msra.mxu0 0.0
    %1746 = vmatprep.subr.mxu0 0.0
    %1747 = vmatpush2.msra.mxu0 0.0
    %1748 = vmatprep.subr.mxu0 0.0
    %1749 = vmatpush2.msra.mxu0 0.0
    %1750 = vmatprep.subr.mxu0 0.0
    %1751 = vmatpush2.msra.mxu0 0.0
    %1752 = vmatprep.subr.mxu0 0.0
    %1753 = vmatpush2.msra.mxu0 0.0
    %1754 = vmatprep.subr.mxu0 0.0
    %1755 = vmatpush2.msra.mxu0 0.0
    %1756 = vmatprep.mubr.f32.mxu0 0.0
    %1757 = vmatmul.mubr.f32.gmra.mxu0 %v1690
    %v1758 = vpop.f32.mrf.mxu0
    %v1759 = vadd.f32 %v466, %v1758
    %v1760 = vpop.f32.mrf.mxu0
    %1761 = vdwg.mxu0
    %1762 = vmatprep.subr.mxu0 0.0
    %1763 = vmatpush1.msra.mxu0 0.0
    %1764 = vmatprep.subr.mxu0 0.0
    %1765 = vmatpush1.msra.mxu0 0.0
    %1766 = vmatprep.subr.mxu0 0.0
    %1767 = vmatpush1.msra.mxu0 0.0
    %1768 = vmatprep.subr.mxu0 0.0
    %1769 = vmatpush1.msra.mxu0 0.0
    %1770 = vmatprep.subr.mxu0 0.0
    %1771 = vmatpush1.msra.mxu0 0.0
    %1772 = vmatprep.subr.mxu0 0.0
    %1773 = vmatpush1.msra.mxu0 0.0
    %1774 = vmatprep.subr.mxu0 0.0
    %1775 = vmatpush1.msra.mxu0 0.0
    %1776 = vmatprep.subr.mxu0 0.0
    %1777 = vmatpush1.msra.mxu0 0.0
    %1778 = vmatprep.subr.mxu0 0.0
    %1779 = vmatpush1.msra.mxu0 %v447
    %1780 = vmatprep.subr.mxu0 0.0
    %1781 = vmatpush1.msra.mxu0 %v446
    %1782 = vmatprep.subr.mxu0 0.0
    %1783 = vmatpush1.msra.mxu0 %v445
    %1784 = vmatprep.subr.mxu0 0.0
    %1785 = vmatpush1.msra.mxu0 %v444
    %1786 = vmatprep.subr.mxu0 0.0
    %1787 = vmatpush1.msra.mxu0 %v443
    %1788 = vmatprep.subr.mxu0 0.0
    %1789 = vmatpush1.msra.mxu0 %v442
    %1790 = vmatprep.subr.mxu0 0.0
    %1791 = vmatpush1.msra.mxu0 %v441
    %1792 = vmatprep.subr.mxu0 0.0
    %1793 = vmatpush1.msra.mxu0 %v440
    %1794 = vmatprep.subr.mxu0 0.0
    %1795 = vmatpush2.msra.mxu0 0.0
    %1796 = vmatprep.subr.mxu0 0.0
    %1797 = vmatpush2.msra.mxu0 0.0
    %1798 = vmatprep.subr.mxu0 0.0
    %1799 = vmatpush2.msra.mxu0 0.0
    %1800 = vmatprep.subr.mxu0 0.0
    %1801 = vmatpush2.msra.mxu0 0.0
    %1802 = vmatprep.subr.mxu0 0.0
    %1803 = vmatpush2.msra.mxu0 0.0
    %1804 = vmatprep.subr.mxu0 0.0
    %1805 = vmatpush2.msra.mxu0 0.0
    %1806 = vmatprep.subr.mxu0 0.0
    %1807 = vmatpush2.msra.mxu0 0.0
    %1808 = vmatprep.subr.mxu0 0.0
    %1809 = vmatpush2.msra.mxu0 0.0
    %1810 = vmatprep.subr.mxu0 0.0
    %1811 = vmatpush2.msra.mxu0 0.0
    %1812 = vmatprep.subr.mxu0 0.0
    %1813 = vmatpush2.msra.mxu0 0.0
    %1814 = vmatprep.subr.mxu0 0.0
    %1815 = vmatpush2.msra.mxu0 0.0
    %1816 = vmatprep.subr.mxu0 0.0
    %1817 = vmatpush2.msra.mxu0 0.0
    %1818 = vmatprep.subr.mxu0 0.0
    %1819 = vmatpush2.msra.mxu0 0.0
    %1820 = vmatprep.subr.mxu0 0.0
    %1821 = vmatpush2.msra.mxu0 0.0
    %1822 = vmatprep.subr.mxu0 0.0
    %1823 = vmatpush2.msra.mxu0 0.0
    %1824 = vmatprep.subr.mxu0 0.0
    %1825 = vmatpush2.msra.mxu0 0.0
    %1826 = vmatprep.mubr.f32.mxu0 0.0
    %1827 = vmatmul.mubr.f32.gmra.mxu0 %v1690
    %v1828 = vpop.f32.mrf.mxu0
    %v1829 = vadd.f32 %v545, %v1828
    %v1830 = vpop.f32.mrf.mxu0
    %1831 = vdwg.mxu0
    %1832 = vmatprep.subr.mxu0 0.0
    %1833 = vmatpush1.msra.mxu0 0.0
    %1834 = vmatprep.subr.mxu0 0.0
    %1835 = vmatpush1.msra.mxu0 0.0
    %1836 = vmatprep.subr.mxu0 0.0
    %1837 = vmatpush1.msra.mxu0 0.0
    %1838 = vmatprep.subr.mxu0 0.0
    %1839 = vmatpush1.msra.mxu0 0.0
    %1840 = vmatprep.subr.mxu0 0.0
    %1841 = vmatpush1.msra.mxu0 0.0
    %1842 = vmatprep.subr.mxu0 0.0
    %1843 = vmatpush1.msra.mxu0 0.0
    %1844 = vmatprep.subr.mxu0 0.0
    %1845 = vmatpush1.msra.mxu0 0.0
    %1846 = vmatprep.subr.mxu0 0.0
    %1847 = vmatpush1.msra.mxu0 0.0
    %1848 = vmatprep.subr.mxu0 0.0
    %1849 = vmatpush1.msra.mxu0 %v456
    %1850 = vmatprep.subr.mxu0 0.0
    %1851 = vmatpush1.msra.mxu0 %v455
    %1852 = vmatprep.subr.mxu0 0.0
    %1853 = vmatpush1.msra.mxu0 %v454
    %1854 = vmatprep.subr.mxu0 0.0
    %1855 = vmatpush1.msra.mxu0 %v453
    %1856 = vmatprep.subr.mxu0 0.0
    %1857 = vmatpush1.msra.mxu0 %v452
    %1858 = vmatprep.subr.mxu0 0.0
    %1859 = vmatpush1.msra.mxu0 %v451
    %1860 = vmatprep.subr.mxu0 0.0
    %1861 = vmatpush1.msra.mxu0 %v450
    %1862 = vmatprep.subr.mxu0 0.0
    %1863 = vmatpush1.msra.mxu0 %v449
    %1864 = vmatprep.subr.mxu0 0.0
    %1865 = vmatpush2.msra.mxu0 0.0
    %1866 = vmatprep.subr.mxu0 0.0
    %1867 = vmatpush2.msra.mxu0 0.0
    %1868 = vmatprep.subr.mxu0 0.0
    %1869 = vmatpush2.msra.mxu0 0.0
    %1870 = vmatprep.subr.mxu0 0.0
    %1871 = vmatpush2.msra.mxu0 0.0
    %1872 = vmatprep.subr.mxu0 0.0
    %1873 = vmatpush2.msra.mxu0 0.0
    %1874 = vmatprep.subr.mxu0 0.0
    %1875 = vmatpush2.msra.mxu0 0.0
    %1876 = vmatprep.subr.mxu0 0.0
    %1877 = vmatpush2.msra.mxu0 0.0
    %1878 = vmatprep.subr.mxu0 0.0
    %1879 = vmatpush2.msra.mxu0 0.0
    %1880 = vmatprep.subr.mxu0 0.0
    %1881 = vmatpush2.msra.mxu0 0.0
    %1882 = vmatprep.subr.mxu0 0.0
    %1883 = vmatpush2.msra.mxu0 0.0
    %1884 = vmatprep.subr.mxu0 0.0
    %1885 = vmatpush2.msra.mxu0 0.0
    %1886 = vmatprep.subr.mxu0 0.0
    %1887 = vmatpush2.msra.mxu0 0.0
    %1888 = vmatprep.subr.mxu0 0.0
    %1889 = vmatpush2.msra.mxu0 0.0
    %1890 = vmatprep.subr.mxu0 0.0
    %1891 = vmatpush2.msra.mxu0 0.0
    %1892 = vmatprep.subr.mxu0 0.0
    %1893 = vmatpush2.msra.mxu0 0.0
    %1894 = vmatprep.subr.mxu0 0.0
    %1895 = vmatpush2.msra.mxu0 0.0
    %1896 = vmatprep.mubr.f32.mxu0 0.0
    %1897 = vmatmul.mubr.f32.gmra.mxu0 %v1690
    %v1898 = vpop.f32.mrf.mxu0
    %v1899 = vadd.f32 %v621, %v1898
    %v1900 = vpop.f32.mrf.mxu0
    %1901 = vdwg.mxu0
    %v1902 = vsel %vm156, %v1180, %v1179
    %v1903 = vadd.f32 %v1902, %v1759
    %v1904 = vxor.u32 %v1903, 2147483648
    %v1905 = vmul.f32 %v1904, 1.442695
    %v1906 = vpow.pop %v1905
    %v1907 = vadd.f32 %v1906, 1.0
    %v1908 = vrcp.pop %v1907
    %v1909 = vmul.f32 1.0, %v1908
    %v1910 = vsel %vm156, %v1190, %v1189
    %v1911 = vadd.f32 %v1910, %v1829
    %v1912 = vxor.u32 %v1911, 2147483648
    %v1913 = vmul.f32 %v1912, 1.442695
    %v1914 = vpow.pop %v1913
    %v1915 = vadd.f32 %v1914, 1.0
    %v1916 = vrcp.pop %v1915
    %v1917 = vmul.f32 1.0, %v1916
    %v1918 = vsel %vm156, %v1200, %v1199
    %v1919 = vmul.f32 %v1909, %v1899
    %v1920 = vadd.f32 %v1918, %v1919
    %v1921 = vtanh.pop %v1920
    %v1922 = vsub.f32 1.0, %v1917
    %v1923 = vmul.f32 %v1922, %v1921
    %v1924 = vmul.f32 %v1917, %v1688
    %v1925 = vadd.f32 %v1923, %v1924
    %v1927 = vsel %vm250, %v1925, 0
    %1929 = vmatprep.subr.mxu0 0.0
    %1930 = vmatpush1.msra.mxu0 0.0
    %1931 = vmatprep.subr.mxu0 0.0
    %1932 = vmatpush1.msra.mxu0 0.0
    %1933 = vmatprep.subr.mxu0 0.0
    %1934 = vmatpush1.msra.mxu0 0.0
    %1935 = vmatprep.subr.mxu0 0.0
    %1936 = vmatpush1.msra.mxu0 0.0
    %1937 = vmatprep.subr.mxu0 0.0
    %1938 = vmatpush1.msra.mxu0 0.0
    %1939 = vmatprep.subr.mxu0 0.0
    %1940 = vmatpush1.msra.mxu0 0.0
    %1941 = vmatprep.subr.mxu0 0.0
    %1942 = vmatpush1.msra.mxu0 0.0
    %1943 = vmatprep.subr.mxu0 0.0
    %1944 = vmatpush1.msra.mxu0 0.0
    %1945 = vmatprep.subr.mxu0 0.0
    %1946 = vmatpush1.msra.mxu0 %v438
    %1947 = vmatprep.subr.mxu0 0.0
    %1948 = vmatpush1.msra.mxu0 %v437
    %1949 = vmatprep.subr.mxu0 0.0
    %1950 = vmatpush1.msra.mxu0 %v436
    %1951 = vmatprep.subr.mxu0 0.0
    %1952 = vmatpush1.msra.mxu0 %v435
    %1953 = vmatprep.subr.mxu0 0.0
    %1954 = vmatpush1.msra.mxu0 %v434
    %1955 = vmatprep.subr.mxu0 0.0
    %1956 = vmatpush1.msra.mxu0 %v433
    %1957 = vmatprep.subr.mxu0 0.0
    %1958 = vmatpush1.msra.mxu0 %v432
    %1959 = vmatprep.subr.mxu0 0.0
    %1960 = vmatpush1.msra.mxu0 %v431
    %1961 = vmatprep.subr.mxu0 0.0
    %1962 = vmatpush2.msra.mxu0 0.0
    %1963 = vmatprep.subr.mxu0 0.0
    %1964 = vmatpush2.msra.mxu0 0.0
    %1965 = vmatprep.subr.mxu0 0.0
    %1966 = vmatpush2.msra.mxu0 0.0
    %1967 = vmatprep.subr.mxu0 0.0
    %1968 = vmatpush2.msra.mxu0 0.0
    %1969 = vmatprep.subr.mxu0 0.0
    %1970 = vmatpush2.msra.mxu0 0.0
    %1971 = vmatprep.subr.mxu0 0.0
    %1972 = vmatpush2.msra.mxu0 0.0
    %1973 = vmatprep.subr.mxu0 0.0
    %1974 = vmatpush2.msra.mxu0 0.0
    %1975 = vmatprep.subr.mxu0 0.0
    %1976 = vmatpush2.msra.mxu0 0.0
    %1977 = vmatprep.subr.mxu0 0.0
    %1978 = vmatpush2.msra.mxu0 0.0
    %1979 = vmatprep.subr.mxu0 0.0
    %1980 = vmatpush2.msra.mxu0 0.0
    %1981 = vmatprep.subr.mxu0 0.0
    %1982 = vmatpush2.msra.mxu0 0.0
    %1983 = vmatprep.subr.mxu0 0.0
    %1984 = vmatpush2.msra.mxu0 0.0
    %1985 = vmatprep.subr.mxu0 0.0
    %1986 = vmatpush2.msra.mxu0 0.0
    %1987 = vmatprep.subr.mxu0 0.0
    %1988 = vmatpush2.msra.mxu0 0.0
    %1989 = vmatprep.subr.mxu0 0.0
    %1990 = vmatpush2.msra.mxu0 0.0
    %1991 = vmatprep.subr.mxu0 0.0
    %1992 = vmatpush2.msra.mxu0 0.0
    %1993 = vmatprep.mubr.f32.mxu0 0.0
    %1994 = vmatmul.mubr.f32.gmra.mxu0 %v1927
    %v1995 = vpop.f32.mrf.mxu0
    %v1996 = vadd.f32 %v466, %v1995
    %v1997 = vpop.f32.mrf.mxu0
    %1998 = vdwg.mxu0
    %1999 = vmatprep.subr.mxu0 0.0
    %2000 = vmatpush1.msra.mxu0 0.0
    %2001 = vmatprep.subr.mxu0 0.0
    %2002 = vmatpush1.msra.mxu0 0.0
    %2003 = vmatprep.subr.mxu0 0.0
    %2004 = vmatpush1.msra.mxu0 0.0
    %2005 = vmatprep.subr.mxu0 0.0
    %2006 = vmatpush1.msra.mxu0 0.0
    %2007 = vmatprep.subr.mxu0 0.0
    %2008 = vmatpush1.msra.mxu0 0.0
    %2009 = vmatprep.subr.mxu0 0.0
    %2010 = vmatpush1.msra.mxu0 0.0
    %2011 = vmatprep.subr.mxu0 0.0
    %2012 = vmatpush1.msra.mxu0 0.0
    %2013 = vmatprep.subr.mxu0 0.0
    %2014 = vmatpush1.msra.mxu0 0.0
    %2015 = vmatprep.subr.mxu0 0.0
    %2016 = vmatpush1.msra.mxu0 %v447
    %2017 = vmatprep.subr.mxu0 0.0
    %2018 = vmatpush1.msra.mxu0 %v446
    %2019 = vmatprep.subr.mxu0 0.0
    %2020 = vmatpush1.msra.mxu0 %v445
    %2021 = vmatprep.subr.mxu0 0.0
    %2022 = vmatpush1.msra.mxu0 %v444
    %2023 = vmatprep.subr.mxu0 0.0
    %2024 = vmatpush1.msra.mxu0 %v443
    %2025 = vmatprep.subr.mxu0 0.0
    %2026 = vmatpush1.msra.mxu0 %v442
    %2027 = vmatprep.subr.mxu0 0.0
    %2028 = vmatpush1.msra.mxu0 %v441
    %2029 = vmatprep.subr.mxu0 0.0
    %2030 = vmatpush1.msra.mxu0 %v440
    %2031 = vmatprep.subr.mxu0 0.0
    %2032 = vmatpush2.msra.mxu0 0.0
    %2033 = vmatprep.subr.mxu0 0.0
    %2034 = vmatpush2.msra.mxu0 0.0
    %2035 = vmatprep.subr.mxu0 0.0
    %2036 = vmatpush2.msra.mxu0 0.0
    %2037 = vmatprep.subr.mxu0 0.0
    %2038 = vmatpush2.msra.mxu0 0.0
    %2039 = vmatprep.subr.mxu0 0.0
    %2040 = vmatpush2.msra.mxu0 0.0
    %2041 = vmatprep.subr.mxu0 0.0
    %2042 = vmatpush2.msra.mxu0 0.0
    %2043 = vmatprep.subr.mxu0 0.0
    %2044 = vmatpush2.msra.mxu0 0.0
    %2045 = vmatprep.subr.mxu0 0.0
    %2046 = vmatpush2.msra.mxu0 0.0
    %2047 = vmatprep.subr.mxu0 0.0
    %2048 = vmatpush2.msra.mxu0 0.0
    %2049 = vmatprep.subr.mxu0 0.0
    %2050 = vmatpush2.msra.mxu0 0.0
    %2051 = vmatprep.subr.mxu0 0.0
    %2052 = vmatpush2.msra.mxu0 0.0
    %2053 = vmatprep.subr.mxu0 0.0
    %2054 = vmatpush2.msra.mxu0 0.0
    %2055 = vmatprep.subr.mxu0 0.0
    %2056 = vmatpush2.msra.mxu0 0.0
    %2057 = vmatprep.subr.mxu0 0.0
    %2058 = vmatpush2.msra.mxu0 0.0
    %2059 = vmatprep.subr.mxu0 0.0
    %2060 = vmatpush2.msra.mxu0 0.0
    %2061 = vmatprep.subr.mxu0 0.0
    %2062 = vmatpush2.msra.mxu0 0.0
    %2063 = vmatprep.mubr.f32.mxu0 0.0
    %2064 = vmatmul.mubr.f32.gmra.mxu0 %v1927
    %v2065 = vpop.f32.mrf.mxu0
    %v2066 = vadd.f32 %v545, %v2065
    %v2067 = vpop.f32.mrf.mxu0
    %2068 = vdwg.mxu0
    %2069 = vmatprep.subr.mxu0 0.0
    %2070 = vmatpush1.msra.mxu0 0.0
    %2071 = vmatprep.subr.mxu0 0.0
    %2072 = vmatpush1.msra.mxu0 0.0
    %2073 = vmatprep.subr.mxu0 0.0
    %2074 = vmatpush1.msra.mxu0 0.0
    %2075 = vmatprep.subr.mxu0 0.0
    %2076 = vmatpush1.msra.mxu0 0.0
    %2077 = vmatprep.subr.mxu0 0.0
    %2078 = vmatpush1.msra.mxu0 0.0
    %2079 = vmatprep.subr.mxu0 0.0
    %2080 = vmatpush1.msra.mxu0 0.0
    %2081 = vmatprep.subr.mxu0 0.0
    %2082 = vmatpush1.msra.mxu0 0.0
    %2083 = vmatprep.subr.mxu0 0.0
    %2084 = vmatpush1.msra.mxu0 0.0
    %2085 = vmatprep.subr.mxu0 0.0
    %2086 = vmatpush1.msra.mxu0 %v456
    %2087 = vmatprep.subr.mxu0 0.0
    %2088 = vmatpush1.msra.mxu0 %v455
    %2089 = vmatprep.subr.mxu0 0.0
    %2090 = vmatpush1.msra.mxu0 %v454
    %2091 = vmatprep.subr.mxu0 0.0
    %2092 = vmatpush1.msra.mxu0 %v453
    %2093 = vmatprep.subr.mxu0 0.0
    %2094 = vmatpush1.msra.mxu0 %v452
    %2095 = vmatprep.subr.mxu0 0.0
    %2096 = vmatpush1.msra.mxu0 %v451
    %2097 = vmatprep.subr.mxu0 0.0
    %2098 = vmatpush1.msra.mxu0 %v450
    %2099 = vmatprep.subr.mxu0 0.0
    %2100 = vmatpush1.msra.mxu0 %v449
    %2101 = vmatprep.subr.mxu0 0.0
    %2102 = vmatpush2.msra.mxu0 0.0
    %2103 = vmatprep.subr.mxu0 0.0
    %2104 = vmatpush2.msra.mxu0 0.0
    %2105 = vmatprep.subr.mxu0 0.0
    %2106 = vmatpush2.msra.mxu0 0.0
    %2107 = vmatprep.subr.mxu0 0.0
    %2108 = vmatpush2.msra.mxu0 0.0
    %2109 = vmatprep.subr.mxu0 0.0
    %2110 = vmatpush2.msra.mxu0 0.0
    %2111 = vmatprep.subr.mxu0 0.0
    %2112 = vmatpush2.msra.mxu0 0.0
    %2113 = vmatprep.subr.mxu0 0.0
    %2114 = vmatpush2.msra.mxu0 0.0
    %2115 = vmatprep.subr.mxu0 0.0
    %2116 = vmatpush2.msra.mxu0 0.0
    %2117 = vmatprep.subr.mxu0 0.0
    %2118 = vmatpush2.msra.mxu0 0.0
    %2119 = vmatprep.subr.mxu0 0.0
    %2120 = vmatpush2.msra.mxu0 0.0
    %2121 = vmatprep.subr.mxu0 0.0
    %2122 = vmatpush2.msra.mxu0 0.0
    %2123 = vmatprep.subr.mxu0 0.0
    %2124 = vmatpush2.msra.mxu0 0.0
    %2125 = vmatprep.subr.mxu0 0.0
    %2126 = vmatpush2.msra.mxu0 0.0
    %2127 = vmatprep.subr.mxu0 0.0
    %2128 = vmatpush2.msra.mxu0 0.0
    %2129 = vmatprep.subr.mxu0 0.0
    %2130 = vmatpush2.msra.mxu0 0.0
    %2131 = vmatprep.subr.mxu0 0.0
    %2132 = vmatpush2.msra.mxu0 0.0
    %2133 = vmatprep.mubr.f32.mxu0 0.0
    %2134 = vmatmul.mubr.f32.gmra.mxu0 %v1927
    %v2135 = vpop.f32.mrf.mxu0
    %v2136 = vadd.f32 %v621, %v2135
    %v2137 = vpop.f32.mrf.mxu0
    %2138 = vdwg.mxu0
    %v2139 = vsel %vm156, %v937, %v936
    %v2140 = vadd.f32 %v2139, %v1996
    %v2141 = vxor.u32 %v2140, 2147483648
    %v2142 = vmul.f32 %v2141, 1.442695
    %v2143 = vpow.pop %v2142
    %v2144 = vadd.f32 %v2143, 1.0
    %v2145 = vrcp.pop %v2144
    %v2146 = vmul.f32 1.0, %v2145
    %v2147 = vsel %vm156, %v947, %v946
    %v2148 = vadd.f32 %v2147, %v2066
    %v2149 = vxor.u32 %v2148, 2147483648
    %v2150 = vmul.f32 %v2149, 1.442695
    %v2151 = vpow.pop %v2150
    %v2152 = vadd.f32 %v2151, 1.0
    %v2153 = vrcp.pop %v2152
    %v2154 = vmul.f32 1.0, %v2153
    %v2155 = vsel %vm156, %v957, %v956
    %v2156 = vmul.f32 %v2146, %v2136
    %v2157 = vadd.f32 %v2155, %v2156
    %v2158 = vtanh.pop %v2157
    %v2159 = vsub.f32 1.0, %v2154
    %v2160 = vmul.f32 %v2159, %v2158
    %v2161 = vmul.f32 %v2154, %v1925
    %v2162 = vadd.f32 %v2160, %v2161
    %v2164 = vsel %vm250, %v2162, 0
    %2166 = vmatprep.subr.mxu0 0.0
    %2167 = vmatpush1.msra.mxu0 0.0
    %2168 = vmatprep.subr.mxu0 0.0
    %2169 = vmatpush1.msra.mxu0 0.0
    %2170 = vmatprep.subr.mxu0 0.0
    %2171 = vmatpush1.msra.mxu0 0.0
    %2172 = vmatprep.subr.mxu0 0.0
    %2173 = vmatpush1.msra.mxu0 0.0
    %2174 = vmatprep.subr.mxu0 0.0
    %2175 = vmatpush1.msra.mxu0 0.0
    %2176 = vmatprep.subr.mxu0 0.0
    %2177 = vmatpush1.msra.mxu0 0.0
    %2178 = vmatprep.subr.mxu0 0.0
    %2179 = vmatpush1.msra.mxu0 0.0
    %2180 = vmatprep.subr.mxu0 0.0
    %2181 = vmatpush1.msra.mxu0 0.0
    %2182 = vmatprep.subr.mxu0 0.0
    %2183 = vmatpush1.msra.mxu0 %v438
    %2184 = vmatprep.subr.mxu0 0.0
    %2185 = vmatpush1.msra.mxu0 %v437
    %2186 = vmatprep.subr.mxu0 0.0
    %2187 = vmatpush1.msra.mxu0 %v436
    %2188 = vmatprep.subr.mxu0 0.0
    %2189 = vmatpush1.msra.mxu0 %v435
    %2190 = vmatprep.subr.mxu0 0.0
    %2191 = vmatpush1.msra.mxu0 %v434
    %2192 = vmatprep.subr.mxu0 0.0
    %2193 = vmatpush1.msra.mxu0 %v433
    %2194 = vmatprep.subr.mxu0 0.0
    %2195 = vmatpush1.msra.mxu0 %v432
    %2196 = vmatprep.subr.mxu0 0.0
    %2197 = vmatpush1.msra.mxu0 %v431
    %2198 = vmatprep.subr.mxu0 0.0
    %2199 = vmatpush2.msra.mxu0 0.0
    %2200 = vmatprep.subr.mxu0 0.0
    %2201 = vmatpush2.msra.mxu0 0.0
    %2202 = vmatprep.subr.mxu0 0.0
    %2203 = vmatpush2.msra.mxu0 0.0
    %2204 = vmatprep.subr.mxu0 0.0
    %2205 = vmatpush2.msra.mxu0 0.0
    %2206 = vmatprep.subr.mxu0 0.0
    %2207 = vmatpush2.msra.mxu0 0.0
    %2208 = vmatprep.subr.mxu0 0.0
    %2209 = vmatpush2.msra.mxu0 0.0
    %2210 = vmatprep.subr.mxu0 0.0
    %2211 = vmatpush2.msra.mxu0 0.0
    %2212 = vmatprep.subr.mxu0 0.0
    %2213 = vmatpush2.msra.mxu0 0.0
    %2214 = vmatprep.subr.mxu0 0.0
    %2215 = vmatpush2.msra.mxu0 0.0
    %2216 = vmatprep.subr.mxu0 0.0
    %2217 = vmatpush2.msra.mxu0 0.0
    %2218 = vmatprep.subr.mxu0 0.0
    %2219 = vmatpush2.msra.mxu0 0.0
    %2220 = vmatprep.subr.mxu0 0.0
    %2221 = vmatpush2.msra.mxu0 0.0
    %2222 = vmatprep.subr.mxu0 0.0
    %2223 = vmatpush2.msra.mxu0 0.0
    %2224 = vmatprep.subr.mxu0 0.0
    %2225 = vmatpush2.msra.mxu0 0.0
    %2226 = vmatprep.subr.mxu0 0.0
    %2227 = vmatpush2.msra.mxu0 0.0
    %2228 = vmatprep.subr.mxu0 0.0
    %2229 = vmatpush2.msra.mxu0 0.0
    %2230 = vmatprep.mubr.f32.mxu0 0.0
    %2231 = vmatmul.mubr.f32.gmra.mxu0 %v2164
    %v2232 = vpop.f32.mrf.mxu0
    %v2233 = vadd.f32 %v466, %v2232
    %v2234 = vpop.f32.mrf.mxu0
    %2235 = vdwg.mxu0
    %2236 = vmatprep.subr.mxu0 0.0
    %2237 = vmatpush1.msra.mxu0 0.0
    %2238 = vmatprep.subr.mxu0 0.0
    %2239 = vmatpush1.msra.mxu0 0.0
    %2240 = vmatprep.subr.mxu0 0.0
    %2241 = vmatpush1.msra.mxu0 0.0
    %2242 = vmatprep.subr.mxu0 0.0
    %2243 = vmatpush1.msra.mxu0 0.0
    %2244 = vmatprep.subr.mxu0 0.0
    %2245 = vmatpush1.msra.mxu0 0.0
    %2246 = vmatprep.subr.mxu0 0.0
    %2247 = vmatpush1.msra.mxu0 0.0
    %2248 = vmatprep.subr.mxu0 0.0
    %2249 = vmatpush1.msra.mxu0 0.0
    %2250 = vmatprep.subr.mxu0 0.0
    %2251 = vmatpush1.msra.mxu0 0.0
    %2252 = vmatprep.subr.mxu0 0.0
    %2253 = vmatpush1.msra.mxu0 %v447
    %2254 = vmatprep.subr.mxu0 0.0
    %2255 = vmatpush1.msra.mxu0 %v446
    %2256 = vmatprep.subr.mxu0 0.0
    %2257 = vmatpush1.msra.mxu0 %v445
    %2258 = vmatprep.subr.mxu0 0.0
    %2259 = vmatpush1.msra.mxu0 %v444
    %2260 = vmatprep.subr.mxu0 0.0
    %2261 = vmatpush1.msra.mxu0 %v443
    %2262 = vmatprep.subr.mxu0 0.0
    %2263 = vmatpush1.msra.mxu0 %v442
    %2264 = vmatprep.subr.mxu0 0.0
    %2265 = vmatpush1.msra.mxu0 %v441
    %2266 = vmatprep.subr.mxu0 0.0
    %2267 = vmatpush1.msra.mxu0 %v440
    %2268 = vmatprep.subr.mxu0 0.0
    %2269 = vmatpush2.msra.mxu0 0.0
    %2270 = vmatprep.subr.mxu0 0.0
    %2271 = vmatpush2.msra.mxu0 0.0
    %2272 = vmatprep.subr.mxu0 0.0
    %2273 = vmatpush2.msra.mxu0 0.0
    %2274 = vmatprep.subr.mxu0 0.0
    %2275 = vmatpush2.msra.mxu0 0.0
    %2276 = vmatprep.subr.mxu0 0.0
    %2277 = vmatpush2.msra.mxu0 0.0
    %2278 = vmatprep.subr.mxu0 0.0
    %2279 = vmatpush2.msra.mxu0 0.0
    %2280 = vmatprep.subr.mxu0 0.0
    %2281 = vmatpush2.msra.mxu0 0.0
    %2282 = vmatprep.subr.mxu0 0.0
    %2283 = vmatpush2.msra.mxu0 0.0
    %2284 = vmatprep.subr.mxu0 0.0
    %2285 = vmatpush2.msra.mxu0 0.0
    %2286 = vmatprep.subr.mxu0 0.0
    %2287 = vmatpush2.msra.mxu0 0.0
    %2288 = vmatprep.subr.mxu0 0.0
    %2289 = vmatpush2.msra.mxu0 0.0
    %2290 = vmatprep.subr.mxu0 0.0
    %2291 = vmatpush2.msra.mxu0 0.0
    %2292 = vmatprep.subr.mxu0 0.0
    %2293 = vmatpush2.msra.mxu0 0.0
    %2294 = vmatprep.subr.mxu0 0.0
    %2295 = vmatpush2.msra.mxu0 0.0
    %2296 = vmatprep.subr.mxu0 0.0
    %2297 = vmatpush2.msra.mxu0 0.0
    %2298 = vmatprep.subr.mxu0 0.0
    %2299 = vmatpush2.msra.mxu0 0.0
    %2300 = vmatprep.mubr.f32.mxu0 0.0
    %2301 = vmatmul.mubr.f32.gmra.mxu0 %v2164
    %v2302 = vpop.f32.mrf.mxu0
    %v2303 = vadd.f32 %v545, %v2302
    %v2304 = vpop.f32.mrf.mxu0
    %2305 = vdwg.mxu0
    %2306 = vmatprep.subr.mxu0 0.0
    %2307 = vmatpush1.msra.mxu0 0.0
    %2308 = vmatprep.subr.mxu0 0.0
    %2309 = vmatpush1.msra.mxu0 0.0
    %2310 = vmatprep.subr.mxu0 0.0
    %2311 = vmatpush1.msra.mxu0 0.0
    %2312 = vmatprep.subr.mxu0 0.0
    %2313 = vmatpush1.msra.mxu0 0.0
    %2314 = vmatprep.subr.mxu0 0.0
    %2315 = vmatpush1.msra.mxu0 0.0
    %2316 = vmatprep.subr.mxu0 0.0
    %2317 = vmatpush1.msra.mxu0 0.0
    %2318 = vmatprep.subr.mxu0 0.0
    %2319 = vmatpush1.msra.mxu0 0.0
    %2320 = vmatprep.subr.mxu0 0.0
    %2321 = vmatpush1.msra.mxu0 0.0
    %2322 = vmatprep.subr.mxu0 0.0
    %2323 = vmatpush1.msra.mxu0 %v456
    %2324 = vmatprep.subr.mxu0 0.0
    %2325 = vmatpush1.msra.mxu0 %v455
    %2326 = vmatprep.subr.mxu0 0.0
    %2327 = vmatpush1.msra.mxu0 %v454
    %2328 = vmatprep.subr.mxu0 0.0
    %2329 = vmatpush1.msra.mxu0 %v453
    %2330 = vmatprep.subr.mxu0 0.0
    %2331 = vmatpush1.msra.mxu0 %v452
    %2332 = vmatprep.subr.mxu0 0.0
    %2333 = vmatpush1.msra.mxu0 %v451
    %2334 = vmatprep.subr.mxu0 0.0
    %2335 = vmatpush1.msra.mxu0 %v450
    %2336 = vmatprep.subr.mxu0 0.0
    %2337 = vmatpush1.msra.mxu0 %v449
    %2338 = vmatprep.subr.mxu0 0.0
    %2339 = vmatpush2.msra.mxu0 0.0
    %2340 = vmatprep.subr.mxu0 0.0
    %2341 = vmatpush2.msra.mxu0 0.0
    %2342 = vmatprep.subr.mxu0 0.0
    %2343 = vmatpush2.msra.mxu0 0.0
    %2344 = vmatprep.subr.mxu0 0.0
    %2345 = vmatpush2.msra.mxu0 0.0
    %2346 = vmatprep.subr.mxu0 0.0
    %2347 = vmatpush2.msra.mxu0 0.0
    %2348 = vmatprep.subr.mxu0 0.0
    %2349 = vmatpush2.msra.mxu0 0.0
    %2350 = vmatprep.subr.mxu0 0.0
    %2351 = vmatpush2.msra.mxu0 0.0
    %2352 = vmatprep.subr.mxu0 0.0
    %2353 = vmatpush2.msra.mxu0 0.0
    %2354 = vmatprep.subr.mxu0 0.0
    %2355 = vmatpush2.msra.mxu0 0.0
    %2356 = vmatprep.subr.mxu0 0.0
    %2357 = vmatpush2.msra.mxu0 0.0
    %2358 = vmatprep.subr.mxu0 0.0
    %2359 = vmatpush2.msra.mxu0 0.0
    %2360 = vmatprep.subr.mxu0 0.0
    %2361 = vmatpush2.msra.mxu0 0.0
    %2362 = vmatprep.subr.mxu0 0.0
    %2363 = vmatpush2.msra.mxu0 0.0
    %2364 = vmatprep.subr.mxu0 0.0
    %2365 = vmatpush2.msra.mxu0 0.0
    %2366 = vmatprep.subr.mxu0 0.0
    %2367 = vmatpush2.msra.mxu0 0.0
    %2368 = vmatprep.subr.mxu0 0.0
    %2369 = vmatpush2.msra.mxu0 0.0
    %2370 = vmatprep.mubr.f32.mxu0 0.0
    %2371 = vmatmul.mubr.f32.gmra.mxu0 %v2164
    %v2372 = vpop.f32.mrf.mxu0
    %v2373 = vadd.f32 %v621, %v2372
    %v2374 = vpop.f32.mrf.mxu0
    %2375 = vdwg.mxu0
    %v2376 = vsel %vm156, %v694, %v693
    %v2377 = vadd.f32 %v2376, %v2233
    %v2378 = vxor.u32 %v2377, 2147483648
    %v2379 = vmul.f32 %v2378, 1.442695
    %v2380 = vpow.pop %v2379
    %v2381 = vadd.f32 %v2380, 1.0
    %v2382 = vrcp.pop %v2381
    %v2383 = vmul.f32 1.0, %v2382
    %v2384 = vsel %vm156, %v704, %v703
    %v2385 = vadd.f32 %v2384, %v2303
    %v2386 = vxor.u32 %v2385, 2147483648
    %v2387 = vmul.f32 %v2386, 1.442695
    %v2388 = vpow.pop %v2387
    %v2389 = vadd.f32 %v2388, 1.0
    %v2390 = vrcp.pop %v2389
    %v2391 = vmul.f32 1.0, %v2390
    %v2392 = vsel %vm156, %v714, %v713
    %v2393 = vmul.f32 %v2383, %v2373
    %v2394 = vadd.f32 %v2392, %v2393
    %v2395 = vtanh.pop %v2394
    %v2396 = vsub.f32 1.0, %v2391
    %v2397 = vmul.f32 %v2396, %v2395
    %v2398 = vmul.f32 %v2391, %v2162
    %v2399 = vadd.f32 %v2397, %v2398
    %v2400 = vsel %vm156, %v722, %v2399
    %vm2401 = vcmask 517120
    %2402 = vst.msk [vmem:[#allocation3] sm:$0x3] %vm2401, %v2400
    %v2403 = vsel %vm156, %v965, %v2162
    %2404 = vst.msk [vmem:[#allocation3 + $0x2] sm:$0x3] %vm2401, %v2403
    %v2405 = vsel %vm156, %v1208, %v1925
    %2406 = vst.msk [vmem:[#allocation3 + $0x4] sm:$0x3] %vm2401, %v2405
    %v2407 = vsel %vm156, %v1451, %v1688
    %2408 = vst.msk [vmem:[#allocation3 + $0x6] sm:$0x3] %vm2401, %v2407
    %v2409 = vsel %vm156, %v1688, %v1451
    %2410 = vst.msk [vmem:[#allocation3 + $0x8] sm:$0x3] %vm2401, %v2409
    %v2411 = vsel %vm156, %v1925, %v1208
    %2412 = vst.msk [vmem:[#allocation3 + $0xa] sm:$0x3] %vm2401, %v2411
    %v2413 = vsel %vm156, %v2162, %v965
    %2414 = vst.msk [vmem:[#allocation3 + $0xc] sm:$0x3] %vm2401, %v2413
    %v2415 = vsel %vm156, %v2399, %v722
    %2416 = vst.msk [vmem:[#allocation3 + $0xe] sm:$0x3] %vm2401, %v2415
    %v2417 = vld [vmem:[#allocation3] sm:$0xff]
    %v2418 = vld [vmem:[#allocation3 + $0x8] sm:$0xff]
    %v2419 = vld [vmem:[#allocation7] sm:$0xff]
    %v2420 = vld [vmem:[#allocation7 + $0x8] sm:$0xff]
    %v2421 = vld [vmem:[#allocation7 + $0x10] sm:$0xff]
    %v2422 = vld [vmem:[#allocation7 + $0x18] sm:$0xff]
    %v2423 = vld [vmem:[#allocation7 + $0x20] sm:$0xff]
    %v2424 = vld [vmem:[#allocation7 + $0x28] sm:$0xff]
    %v2425 = vld [vmem:[#allocation7 + $0x30] sm:$0xff]
    %v2426 = vld [vmem:[#allocation7 + $0x38] sm:$0xff]
    %v2427 = vld [vmem:[#allocation9] sm:$0x1]
    %v2429 = vlaneseq
    %v2430 = vshrl.u32 %v2429, 7
    %v2431 = vsub.s32 0, %v2430
    %v2432 = vrot.slane %v2427, %v2431
    %v2435 = vsel %vm250, %v2417, 0
    %v2438 = vsel %vm250, %v2418, 0
    %2440 = vmatprep.subr.mxu0 0.0
    %2441 = vmatpush1.msra.mxu0 0.0
    %2442 = vmatprep.subr.mxu0 0.0
    %2443 = vmatpush1.msra.mxu0 0.0
    %2444 = vmatprep.subr.mxu0 0.0
    %2445 = vmatpush1.msra.mxu0 0.0
    %2446 = vmatprep.subr.mxu0 0.0
    %2447 = vmatpush1.msra.mxu0 0.0
    %2448 = vmatprep.subr.mxu0 0.0
    %2449 = vmatpush1.msra.mxu0 0.0
    %2450 = vmatprep.subr.mxu0 0.0
    %2451 = vmatpush1.msra.mxu0 0.0
    %2452 = vmatprep.subr.mxu0 0.0
    %2453 = vmatpush1.msra.mxu0 0.0
    %2454 = vmatprep.subr.mxu0 0.0
    %2455 = vmatpush1.msra.mxu0 0.0
    %2456 = vmatprep.subr.mxu0 0.0
    %2457 = vmatpush1.msra.mxu0 %v2426
    %2458 = vmatprep.subr.mxu0 0.0
    %2459 = vmatpush1.msra.mxu0 %v2425
    %2460 = vmatprep.subr.mxu0 0.0
    %2461 = vmatpush1.msra.mxu0 %v2424
    %2462 = vmatprep.subr.mxu0 0.0
    %2463 = vmatpush1.msra.mxu0 %v2423
    %2464 = vmatprep.subr.mxu0 0.0
    %2465 = vmatpush1.msra.mxu0 %v2422
    %2466 = vmatprep.subr.mxu0 0.0
    %2467 = vmatpush1.msra.mxu0 %v2421
    %2468 = vmatprep.subr.mxu0 0.0
    %2469 = vmatpush1.msra.mxu0 %v2420
    %2470 = vmatprep.subr.mxu0 0.0
    %2471 = vmatpush1.msra.mxu0 %v2419
    %2472 = vmatprep.subr.mxu0 0.0
    %2473 = vmatpush2.msra.mxu0 0.0
    %2474 = vmatprep.subr.mxu0 0.0
    %2475 = vmatpush2.msra.mxu0 0.0
    %2476 = vmatprep.subr.mxu0 0.0
    %2477 = vmatpush2.msra.mxu0 0.0
    %2478 = vmatprep.subr.mxu0 0.0
    %2479 = vmatpush2.msra.mxu0 0.0
    %2480 = vmatprep.subr.mxu0 0.0
    %2481 = vmatpush2.msra.mxu0 0.0
    %2482 = vmatprep.subr.mxu0 0.0
    %2483 = vmatpush2.msra.mxu0 0.0
    %2484 = vmatprep.subr.mxu0 0.0
    %2485 = vmatpush2.msra.mxu0 0.0
    %2486 = vmatprep.subr.mxu0 0.0
    %2487 = vmatpush2.msra.mxu0 0.0
    %2488 = vmatprep.subr.mxu0 0.0
    %2489 = vmatpush2.msra.mxu0 0.0
    %2490 = vmatprep.subr.mxu0 0.0
    %2491 = vmatpush2.msra.mxu0 0.0
    %2492 = vmatprep.subr.mxu0 0.0
    %2493 = vmatpush2.msra.mxu0 0.0
    %2494 = vmatprep.subr.mxu0 0.0
    %2495 = vmatpush2.msra.mxu0 0.0
    %2496 = vmatprep.subr.mxu0 0.0
    %2497 = vmatpush2.msra.mxu0 0.0
    %2498 = vmatprep.subr.mxu0 0.0
    %2499 = vmatpush2.msra.mxu0 0.0
    %2500 = vmatprep.subr.mxu0 0.0
    %2501 = vmatpush2.msra.mxu0 0.0
    %2502 = vmatprep.subr.mxu0 0.0
    %2503 = vmatpush2.msra.mxu0 0.0
    %2504 = vmatprep.mubr.f32.mxu0 0.0
    %2505 = vmatmul.mubr.f32.gmra.mxu0 %v2435
    %v2506 = vpop.f32.mrf.mxu0
    %v2507 = vadd.f32 %v2432, %v2506
    %v2508 = vpop.f32.mrf.mxu0
    %2509 = vmatprep.mubr.f32.mxu0 0.0
    %2510 = vmatmul.mubr.f32.gmra.mxu0 %v2438
    %v2511 = vpop.f32.mrf.mxu0
    %v2512 = vadd.f32 %v2432, %v2511
    %v2513 = vpop.f32.mrf.mxu0
    %2514 = vdwg.mxu0
    %2515 = vst.msk [vmem:[#allocation2] sm:$0xff] %vm250, %v2507
    %2516 = vst.msk [vmem:[#allocation2 + $0x8] sm:$0xff] %vm250, %v2512
    %s2517 = scalar_lea.vmem [#allocation7], 64
    %v2518 = vld [vmem:[%s2517] sm:$0xff]
    %v2519 = vld [vmem:[%s2517 + $0x8] sm:$0xff]
    %v2520 = vld [vmem:[%s2517 + $0x10] sm:$0xff]
    %v2521 = vld [vmem:[%s2517 + $0x18] sm:$0xff]
    %v2522 = vld [vmem:[%s2517 + $0x20] sm:$0xff]
    %v2523 = vld [vmem:[%s2517 + $0x28] sm:$0xff]
    %v2524 = vld [vmem:[%s2517 + $0x30] sm:$0xff]
    %v2525 = vld [vmem:[%s2517 + $0x38] sm:$0xff]
    %s2526 = scalar_lea.vmem [#allocation9], 1
    %v2527 = vld [vmem:[%s2526] sm:$0x1]
    %v2529 = vlaneseq
    %v2530 = vshrl.u32 %v2529, 7
    %v2531 = vsub.s32 0, %v2530
    %v2532 = vrot.slane %v2527, %v2531
    %2534 = vmatprep.subr.mxu0 0.0
    %2535 = vmatpush1.msra.mxu0 0.0
    %2536 = vmatprep.subr.mxu0 0.0
    %2537 = vmatpush1.msra.mxu0 0.0
    %2538 = vmatprep.subr.mxu0 0.0
    %2539 = vmatpush1.msra.mxu0 0.0
    %2540 = vmatprep.subr.mxu0 0.0
    %2541 = vmatpush1.msra.mxu0 0.0
    %2542 = vmatprep.subr.mxu0 0.0
    %2543 = vmatpush1.msra.mxu0 0.0
    %2544 = vmatprep.subr.mxu0 0.0
    %2545 = vmatpush1.msra.mxu0 0.0
    %2546 = vmatprep.subr.mxu0 0.0
    %2547 = vmatpush1.msra.mxu0 0.0
    %2548 = vmatprep.subr.mxu0 0.0
    %2549 = vmatpush1.msra.mxu0 0.0
    %2550 = vmatprep.subr.mxu0 0.0
    %2551 = vmatpush1.msra.mxu0 %v2525
    %2552 = vmatprep.subr.mxu0 0.0
    %2553 = vmatpush1.msra.mxu0 %v2524
    %2554 = vmatprep.subr.mxu0 0.0
    %2555 = vmatpush1.msra.mxu0 %v2523
    %2556 = vmatprep.subr.mxu0 0.0
    %2557 = vmatpush1.msra.mxu0 %v2522
    %2558 = vmatprep.subr.mxu0 0.0
    %2559 = vmatpush1.msra.mxu0 %v2521
    %2560 = vmatprep.subr.mxu0 0.0
    %2561 = vmatpush1.msra.mxu0 %v2520
    %2562 = vmatprep.subr.mxu0 0.0
    %2563 = vmatpush1.msra.mxu0 %v2519
    %2564 = vmatprep.subr.mxu0 0.0
    %2565 = vmatpush1.msra.mxu0 %v2518
    %2566 = vmatprep.subr.mxu0 0.0
    %2567 = vmatpush2.msra.mxu0 0.0
    %2568 = vmatprep.subr.mxu0 0.0
    %2569 = vmatpush2.msra.mxu0 0.0
    %2570 = vmatprep.subr.mxu0 0.0
    %2571 = vmatpush2.msra.mxu0 0.0
    %2572 = vmatprep.subr.mxu0 0.0
    %2573 = vmatpush2.msra.mxu0 0.0
    %2574 = vmatprep.subr.mxu0 0.0
    %2575 = vmatpush2.msra.mxu0 0.0
    %2576 = vmatprep.subr.mxu0 0.0
    %2577 = vmatpush2.msra.mxu0 0.0
    %2578 = vmatprep.subr.mxu0 0.0
    %2579 = vmatpush2.msra.mxu0 0.0
    %2580 = vmatprep.subr.mxu0 0.0
    %2581 = vmatpush2.msra.mxu0 0.0
    %2582 = vmatprep.subr.mxu0 0.0
    %2583 = vmatpush2.msra.mxu0 0.0
    %2584 = vmatprep.subr.mxu0 0.0
    %2585 = vmatpush2.msra.mxu0 0.0
    %2586 = vmatprep.subr.mxu0 0.0
    %2587 = vmatpush2.msra.mxu0 0.0
    %2588 = vmatprep.subr.mxu0 0.0
    %2589 = vmatpush2.msra.mxu0 0.0
    %2590 = vmatprep.subr.mxu0 0.0
    %2591 = vmatpush2.msra.mxu0 0.0
    %2592 = vmatprep.subr.mxu0 0.0
    %2593 = vmatpush2.msra.mxu0 0.0
    %2594 = vmatprep.subr.mxu0 0.0
    %2595 = vmatpush2.msra.mxu0 0.0
    %2596 = vmatprep.subr.mxu0 0.0
    %2597 = vmatpush2.msra.mxu0 0.0
    %2598 = vmatprep.mubr.f32.mxu0 0.0
    %2599 = vmatmul.mubr.f32.gmra.mxu0 %v2435
    %v2600 = vpop.f32.mrf.mxu0
    %v2601 = vadd.f32 %v2532, %v2600
    %v2602 = vpop.f32.mrf.mxu0
    %2603 = vmatprep.mubr.f32.mxu0 0.0
    %2604 = vmatmul.mubr.f32.gmra.mxu0 %v2438
    %v2605 = vpop.f32.mrf.mxu0
    %v2606 = vadd.f32 %v2532, %v2605
    %v2607 = vpop.f32.mrf.mxu0
    %2608 = vdwg.mxu0
    %2609 = vst.msk [vmem:[%s339] sm:$0xff] %vm250, %v2601
    %2610 = vst.msk [vmem:[%s339 + $0x8] sm:$0xff] %vm250, %v2606
    %s2611 = scalar_lea.vmem [#allocation7], 128
    %v2612 = vld [vmem:[%s2611] sm:$0xff]
    %v2613 = vld [vmem:[%s2611 + $0x8] sm:$0xff]
    %v2614 = vld [vmem:[%s2611 + $0x10] sm:$0xff]
    %v2615 = vld [vmem:[%s2611 + $0x18] sm:$0xff]
    %v2616 = vld [vmem:[%s2611 + $0x20] sm:$0xff]
    %v2617 = vld [vmem:[%s2611 + $0x28] sm:$0xff]
    %v2618 = vld [vmem:[%s2611 + $0x30] sm:$0xff]
    %v2619 = vld [vmem:[%s2611 + $0x38] sm:$0xff]
    %s2620 = scalar_lea.vmem [#allocation9], 2
    %v2621 = vld [vmem:[%s2620] sm:$0x1]
    %v2623 = vlaneseq
    %v2624 = vshrl.u32 %v2623, 7
    %v2625 = vsub.s32 0, %v2624
    %v2626 = vrot.slane %v2621, %v2625
    %2628 = vmatprep.subr.mxu0 0.0
    %2629 = vmatpush1.msra.mxu0 0.0
    %2630 = vmatprep.subr.mxu0 0.0
    %2631 = vmatpush1.msra.mxu0 0.0
    %2632 = vmatprep.subr.mxu0 0.0
    %2633 = vmatpush1.msra.mxu0 0.0
    %2634 = vmatprep.subr.mxu0 0.0
    %2635 = vmatpush1.msra.mxu0 0.0
    %2636 = vmatprep.subr.mxu0 0.0
    %2637 = vmatpush1.msra.mxu0 0.0
    %2638 = vmatprep.subr.mxu0 0.0
    %2639 = vmatpush1.msra.mxu0 0.0
    %2640 = vmatprep.subr.mxu0 0.0
    %2641 = vmatpush1.msra.mxu0 0.0
    %2642 = vmatprep.subr.mxu0 0.0
    %2643 = vmatpush1.msra.mxu0 0.0
    %2644 = vmatprep.subr.mxu0 0.0
    %2645 = vmatpush1.msra.mxu0 %v2619
    %2646 = vmatprep.subr.mxu0 0.0
    %2647 = vmatpush1.msra.mxu0 %v2618
    %2648 = vmatprep.subr.mxu0 0.0
    %2649 = vmatpush1.msra.mxu0 %v2617
    %2650 = vmatprep.subr.mxu0 0.0
    %2651 = vmatpush1.msra.mxu0 %v2616
    %2652 = vmatprep.subr.mxu0 0.0
    %2653 = vmatpush1.msra.mxu0 %v2615
    %2654 = vmatprep.subr.mxu0 0.0
    %2655 = vmatpush1.msra.mxu0 %v2614
    %2656 = vmatprep.subr.mxu0 0.0
    %2657 = vmatpush1.msra.mxu0 %v2613
    %2658 = vmatprep.subr.mxu0 0.0
    %2659 = vmatpush1.msra.mxu0 %v2612
    %2660 = vmatprep.subr.mxu0 0.0
    %2661 = vmatpush2.msra.mxu0 0.0
    %2662 = vmatprep.subr.mxu0 0.0
    %2663 = vmatpush2.msra.mxu0 0.0
    %2664 = vmatprep.subr.mxu0 0.0
    %2665 = vmatpush2.msra.mxu0 0.0
    %2666 = vmatprep.subr.mxu0 0.0
    %2667 = vmatpush2.msra.mxu0 0.0
    %2668 = vmatprep.subr.mxu0 0.0
    %2669 = vmatpush2.msra.mxu0 0.0
    %2670 = vmatprep.subr.mxu0 0.0
    %2671 = vmatpush2.msra.mxu0 0.0
    %2672 = vmatprep.subr.mxu0 0.0
    %2673 = vmatpush2.msra.mxu0 0.0
    %2674 = vmatprep.subr.mxu0 0.0
    %2675 = vmatpush2.msra.mxu0 0.0
    %2676 = vmatprep.subr.mxu0 0.0
    %2677 = vmatpush2.msra.mxu0 0.0
    %2678 = vmatprep.subr.mxu0 0.0
    %2679 = vmatpush2.msra.mxu0 0.0
    %2680 = vmatprep.subr.mxu0 0.0
    %2681 = vmatpush2.msra.mxu0 0.0
    %2682 = vmatprep.subr.mxu0 0.0
    %2683 = vmatpush2.msra.mxu0 0.0
    %2684 = vmatprep.subr.mxu0 0.0
    %2685 = vmatpush2.msra.mxu0 0.0
    %2686 = vmatprep.subr.mxu0 0.0
    %2687 = vmatpush2.msra.mxu0 0.0
    %2688 = vmatprep.subr.mxu0 0.0
    %2689 = vmatpush2.msra.mxu0 0.0
    %2690 = vmatprep.subr.mxu0 0.0
    %2691 = vmatpush2.msra.mxu0 0.0
    %2692 = vmatprep.mubr.f32.mxu0 0.0
    %2693 = vmatmul.mubr.f32.gmra.mxu0 %v2435
    %v2694 = vpop.f32.mrf.mxu0
    %v2695 = vadd.f32 %v2626, %v2694
    %v2696 = vpop.f32.mrf.mxu0
    %2697 = vmatprep.mubr.f32.mxu0 0.0
    %2698 = vmatmul.mubr.f32.gmra.mxu0 %v2438
    %v2699 = vpop.f32.mrf.mxu0
    %v2700 = vadd.f32 %v2626, %v2699
    %v2701 = vpop.f32.mrf.mxu0
    %2702 = vdwg.mxu0
    %2703 = vst.msk [vmem:[%s428] sm:$0xff] %vm250, %v2695
    %2704 = vst.msk [vmem:[%s428 + $0x8] sm:$0xff] %vm250, %v2700
    %v2705 = vld [vmem:[#allocation10] sm:$0xff]
    %v2706 = vld [vmem:[#allocation10 + $0x8] sm:$0xff]
    %v2707 = vld [vmem:[#allocation10 + $0x10] sm:$0xff]
    %v2708 = vld [vmem:[#allocation10 + $0x18] sm:$0xff]
    %v2709 = vld [vmem:[#allocation10 + $0x20] sm:$0xff]
    %v2710 = vld [vmem:[#allocation10 + $0x28] sm:$0xff]
    %v2711 = vld [vmem:[#allocation10 + $0x30] sm:$0xff]
    %v2712 = vld [vmem:[#allocation10 + $0x38] sm:$0xff]
    %s2713 = scalar_lea.vmem [#allocation10], 64
    %v2714 = vld [vmem:[%s2713] sm:$0xff]
    %v2715 = vld [vmem:[%s2713 + $0x8] sm:$0xff]
    %v2716 = vld [vmem:[%s2713 + $0x10] sm:$0xff]
    %v2717 = vld [vmem:[%s2713 + $0x18] sm:$0xff]
    %v2718 = vld [vmem:[%s2713 + $0x20] sm:$0xff]
    %v2719 = vld [vmem:[%s2713 + $0x28] sm:$0xff]
    %v2720 = vld [vmem:[%s2713 + $0x30] sm:$0xff]
    %v2721 = vld [vmem:[%s2713 + $0x38] sm:$0xff]
    %s2722 = scalar_lea.vmem [#allocation10], 128
    %v2723 = vld [vmem:[%s2722] sm:$0xff]
    %v2724 = vld [vmem:[%s2722 + $0x8] sm:$0xff]
    %v2725 = vld [vmem:[%s2722 + $0x10] sm:$0xff]
    %v2726 = vld [vmem:[%s2722 + $0x18] sm:$0xff]
    %v2727 = vld [vmem:[%s2722 + $0x20] sm:$0xff]
    %v2728 = vld [vmem:[%s2722 + $0x28] sm:$0xff]
    %v2729 = vld [vmem:[%s2722 + $0x30] sm:$0xff]
    %v2730 = vld [vmem:[%s2722 + $0x38] sm:$0xff]
    %v2731 = vld [vmem:[#allocation12] sm:$0x1]
    %s2732 = scalar_lea.vmem [#allocation12], 1
    %v2733 = vld [vmem:[%s2732] sm:$0x1]
    %s2734 = scalar_lea.vmem [#allocation12], 2
    %v2735 = vld [vmem:[%s2734] sm:$0x1]
    %v2737 = vlaneseq
    %v2738 = vshrl.u32 %v2737, 7
    %v2739 = vsub.s32 0, %v2738
    %v2740 = vrot.slane %v2731, %v2739
    %2742 = vmatprep.subr.mxu0 0.0
    %2743 = vmatpush1.msra.mxu0 0.0
    %2744 = vmatprep.subr.mxu0 0.0
    %2745 = vmatpush1.msra.mxu0 0.0
    %2746 = vmatprep.subr.mxu0 0.0
    %2747 = vmatpush1.msra.mxu0 0.0
    %2748 = vmatprep.subr.mxu0 0.0
    %2749 = vmatpush1.msra.mxu0 0.0
    %2750 = vmatprep.subr.mxu0 0.0
    %2751 = vmatpush1.msra.mxu0 0.0
    %2752 = vmatprep.subr.mxu0 0.0
    %2753 = vmatpush1.msra.mxu0 0.0
    %2754 = vmatprep.subr.mxu0 0.0
    %2755 = vmatpush1.msra.mxu0 0.0
    %2756 = vmatprep.subr.mxu0 0.0
    %2757 = vmatpush1.msra.mxu0 0.0
    %2758 = vmatprep.subr.mxu0 0.0
    %2759 = vmatpush1.msra.mxu0 %v2712
    %2760 = vmatprep.subr.mxu0 0.0
    %2761 = vmatpush1.msra.mxu0 %v2711
    %2762 = vmatprep.subr.mxu0 0.0
    %2763 = vmatpush1.msra.mxu0 %v2710
    %2764 = vmatprep.subr.mxu0 0.0
    %2765 = vmatpush1.msra.mxu0 %v2709
    %2766 = vmatprep.subr.mxu0 0.0
    %2767 = vmatpush1.msra.mxu0 %v2708
    %2768 = vmatprep.subr.mxu0 0.0
    %2769 = vmatpush1.msra.mxu0 %v2707
    %2770 = vmatprep.subr.mxu0 0.0
    %2771 = vmatpush1.msra.mxu0 %v2706
    %2772 = vmatprep.subr.mxu0 0.0
    %2773 = vmatpush1.msra.mxu0 %v2705
    %2774 = vmatprep.subr.mxu0 0.0
    %2775 = vmatpush2.msra.mxu0 0.0
    %2776 = vmatprep.subr.mxu0 0.0
    %2777 = vmatpush2.msra.mxu0 0.0
    %2778 = vmatprep.subr.mxu0 0.0
    %2779 = vmatpush2.msra.mxu0 0.0
    %2780 = vmatprep.subr.mxu0 0.0
    %2781 = vmatpush2.msra.mxu0 0.0
    %2782 = vmatprep.subr.mxu0 0.0
    %2783 = vmatpush2.msra.mxu0 0.0
    %2784 = vmatprep.subr.mxu0 0.0
    %2785 = vmatpush2.msra.mxu0 0.0
    %2786 = vmatprep.subr.mxu0 0.0
    %2787 = vmatpush2.msra.mxu0 0.0
    %2788 = vmatprep.subr.mxu0 0.0
    %2789 = vmatpush2.msra.mxu0 0.0
    %2790 = vmatprep.subr.mxu0 0.0
    %2791 = vmatpush2.msra.mxu0 0.0
    %2792 = vmatprep.subr.mxu0 0.0
    %2793 = vmatpush2.msra.mxu0 0.0
    %2794 = vmatprep.subr.mxu0 0.0
    %2795 = vmatpush2.msra.mxu0 0.0
    %2796 = vmatprep.subr.mxu0 0.0
    %2797 = vmatpush2.msra.mxu0 0.0
    %2798 = vmatprep.subr.mxu0 0.0
    %2799 = vmatpush2.msra.mxu0 0.0
    %2800 = vmatprep.subr.mxu0 0.0
    %2801 = vmatpush2.msra.mxu0 0.0
    %2802 = vmatprep.subr.mxu0 0.0
    %2803 = vmatpush2.msra.mxu0 0.0
    %2804 = vmatprep.subr.mxu0 0.0
    %2805 = vmatpush2.msra.mxu0 0.0
    %2806 = vmatprep.mubr.f32.mxu0 0.0
    %2807 = vmatmul.mubr.f32.gmra.mxu0 %v469
    %v2808 = vpop.f32.mrf.mxu0
    %v2809 = vadd.f32 %v2740, %v2808
    %v2810 = vpop.f32.mrf.mxu0
    %2811 = vdwg.mxu0
    %v2813 = vlaneseq
    %v2814 = vshrl.u32 %v2813, 7
    %v2815 = vsub.s32 0, %v2814
    %v2816 = vrot.slane %v2733, %v2815
    %2818 = vmatprep.subr.mxu0 0.0
    %2819 = vmatpush1.msra.mxu0 0.0
    %2820 = vmatprep.subr.mxu0 0.0
    %2821 = vmatpush1.msra.mxu0 0.0
    %2822 = vmatprep.subr.mxu0 0.0
    %2823 = vmatpush1.msra.mxu0 0.0
    %2824 = vmatprep.subr.mxu0 0.0
    %2825 = vmatpush1.msra.mxu0 0.0
    %2826 = vmatprep.subr.mxu0 0.0
    %2827 = vmatpush1.msra.mxu0 0.0
    %2828 = vmatprep.subr.mxu0 0.0
    %2829 = vmatpush1.msra.mxu0 0.0
    %2830 = vmatprep.subr.mxu0 0.0
    %2831 = vmatpush1.msra.mxu0 0.0
    %2832 = vmatprep.subr.mxu0 0.0
    %2833 = vmatpush1.msra.mxu0 0.0
    %2834 = vmatprep.subr.mxu0 0.0
    %2835 = vmatpush1.msra.mxu0 %v2721
    %2836 = vmatprep.subr.mxu0 0.0
    %2837 = vmatpush1.msra.mxu0 %v2720
    %2838 = vmatprep.subr.mxu0 0.0
    %2839 = vmatpush1.msra.mxu0 %v2719
    %2840 = vmatprep.subr.mxu0 0.0
    %2841 = vmatpush1.msra.mxu0 %v2718
    %2842 = vmatprep.subr.mxu0 0.0
    %2843 = vmatpush1.msra.mxu0 %v2717
    %2844 = vmatprep.subr.mxu0 0.0
    %2845 = vmatpush1.msra.mxu0 %v2716
    %2846 = vmatprep.subr.mxu0 0.0
    %2847 = vmatpush1.msra.mxu0 %v2715
    %2848 = vmatprep.subr.mxu0 0.0
    %2849 = vmatpush1.msra.mxu0 %v2714
    %2850 = vmatprep.subr.mxu0 0.0
    %2851 = vmatpush2.msra.mxu0 0.0
    %2852 = vmatprep.subr.mxu0 0.0
    %2853 = vmatpush2.msra.mxu0 0.0
    %2854 = vmatprep.subr.mxu0 0.0
    %2855 = vmatpush2.msra.mxu0 0.0
    %2856 = vmatprep.subr.mxu0 0.0
    %2857 = vmatpush2.msra.mxu0 0.0
    %2858 = vmatprep.subr.mxu0 0.0
    %2859 = vmatpush2.msra.mxu0 0.0
    %2860 = vmatprep.subr.mxu0 0.0
    %2861 = vmatpush2.msra.mxu0 0.0
    %2862 = vmatprep.subr.mxu0 0.0
    %2863 = vmatpush2.msra.mxu0 0.0
    %2864 = vmatprep.subr.mxu0 0.0
    %2865 = vmatpush2.msra.mxu0 0.0
    %2866 = vmatprep.subr.mxu0 0.0
    %2867 = vmatpush2.msra.mxu0 0.0
    %2868 = vmatprep.subr.mxu0 0.0
    %2869 = vmatpush2.msra.mxu0 0.0
    %2870 = vmatprep.subr.mxu0 0.0
    %2871 = vmatpush2.msra.mxu0 0.0
    %2872 = vmatprep.subr.mxu0 0.0
    %2873 = vmatpush2.msra.mxu0 0.0
    %2874 = vmatprep.subr.mxu0 0.0
    %2875 = vmatpush2.msra.mxu0 0.0
    %2876 = vmatprep.subr.mxu0 0.0
    %2877 = vmatpush2.msra.mxu0 0.0
    %2878 = vmatprep.subr.mxu0 0.0
    %2879 = vmatpush2.msra.mxu0 0.0
    %2880 = vmatprep.subr.mxu0 0.0
    %2881 = vmatpush2.msra.mxu0 0.0
    %2882 = vmatprep.mubr.f32.mxu0 0.0
    %2883 = vmatmul.mubr.f32.gmra.mxu0 %v469
    %v2884 = vpop.f32.mrf.mxu0
    %v2885 = vadd.f32 %v2816, %v2884
    %v2886 = vpop.f32.mrf.mxu0
    %2887 = vdwg.mxu0
    %v2889 = vlaneseq
    %v2890 = vshrl.u32 %v2889, 7
    %v2891 = vsub.s32 0, %v2890
    %v2892 = vrot.slane %v2735, %v2891
    %2894 = vmatprep.subr.mxu0 0.0
    %2895 = vmatpush1.msra.mxu0 0.0
    %2896 = vmatprep.subr.mxu0 0.0
    %2897 = vmatpush1.msra.mxu0 0.0
    %2898 = vmatprep.subr.mxu0 0.0
    %2899 = vmatpush1.msra.mxu0 0.0
    %2900 = vmatprep.subr.mxu0 0.0
    %2901 = vmatpush1.msra.mxu0 0.0
    %2902 = vmatprep.subr.mxu0 0.0
    %2903 = vmatpush1.msra.mxu0 0.0
    %2904 = vmatprep.subr.mxu0 0.0
    %2905 = vmatpush1.msra.mxu0 0.0
    %2906 = vmatprep.subr.mxu0 0.0
    %2907 = vmatpush1.msra.mxu0 0.0
    %2908 = vmatprep.subr.mxu0 0.0
    %2909 = vmatpush1.msra.mxu0 0.0
    %2910 = vmatprep.subr.mxu0 0.0
    %2911 = vmatpush1.msra.mxu0 %v2730
    %2912 = vmatprep.subr.mxu0 0.0
    %2913 = vmatpush1.msra.mxu0 %v2729
    %2914 = vmatprep.subr.mxu0 0.0
    %2915 = vmatpush1.msra.mxu0 %v2728
    %2916 = vmatprep.subr.mxu0 0.0
    %2917 = vmatpush1.msra.mxu0 %v2727
    %2918 = vmatprep.subr.mxu0 0.0
    %2919 = vmatpush1.msra.mxu0 %v2726
    %2920 = vmatprep.subr.mxu0 0.0
    %2921 = vmatpush1.msra.mxu0 %v2725
    %2922 = vmatprep.subr.mxu0 0.0
    %2923 = vmatpush1.msra.mxu0 %v2724
    %2924 = vmatprep.subr.mxu0 0.0
    %2925 = vmatpush1.msra.mxu0 %v2723
    %2926 = vmatprep.subr.mxu0 0.0
    %2927 = vmatpush2.msra.mxu0 0.0
    %2928 = vmatprep.subr.mxu0 0.0
    %2929 = vmatpush2.msra.mxu0 0.0
    %2930 = vmatprep.subr.mxu0 0.0
    %2931 = vmatpush2.msra.mxu0 0.0
    %2932 = vmatprep.subr.mxu0 0.0
    %2933 = vmatpush2.msra.mxu0 0.0
    %2934 = vmatprep.subr.mxu0 0.0
    %2935 = vmatpush2.msra.mxu0 0.0
    %2936 = vmatprep.subr.mxu0 0.0
    %2937 = vmatpush2.msra.mxu0 0.0
    %2938 = vmatprep.subr.mxu0 0.0
    %2939 = vmatpush2.msra.mxu0 0.0
    %2940 = vmatprep.subr.mxu0 0.0
    %2941 = vmatpush2.msra.mxu0 0.0
    %2942 = vmatprep.subr.mxu0 0.0
    %2943 = vmatpush2.msra.mxu0 0.0
    %2944 = vmatprep.subr.mxu0 0.0
    %2945 = vmatpush2.msra.mxu0 0.0
    %2946 = vmatprep.subr.mxu0 0.0
    %2947 = vmatpush2.msra.mxu0 0.0
    %2948 = vmatprep.subr.mxu0 0.0
    %2949 = vmatpush2.msra.mxu0 0.0
    %2950 = vmatprep.subr.mxu0 0.0
    %2951 = vmatpush2.msra.mxu0 0.0
    %2952 = vmatprep.subr.mxu0 0.0
    %2953 = vmatpush2.msra.mxu0 0.0
    %2954 = vmatprep.subr.mxu0 0.0
    %2955 = vmatpush2.msra.mxu0 0.0
    %2956 = vmatprep.subr.mxu0 0.0
    %2957 = vmatpush2.msra.mxu0 0.0
    %2958 = vmatprep.mubr.f32.mxu0 0.0
    %2959 = vmatmul.mubr.f32.gmra.mxu0 %v469
    %v2960 = vpop.f32.mrf.mxu0
    %v2961 = vadd.f32 %v2892, %v2960
    %v2962 = vpop.f32.mrf.mxu0
    %2963 = vdwg.mxu0
    %v2964 = vld [vmem:[#allocation2] sm:$0x3]
    %v2965 = vld [vmem:[#allocation2 + $0xe] sm:$0x3]
    %v2966 = vsel %vm156, %v2964, %v2965
    %v2967 = vadd.f32 %v2966, %v2809
    %v2968 = vxor.u32 %v2967, 2147483648
    %v2969 = vmul.f32 %v2968, 1.442695
    %v2970 = vpow.pop %v2969
    %v2971 = vadd.f32 %v2970, 1.0
    %v2972 = vrcp.pop %v2971
    %v2973 = vmul.f32 1.0, %v2972
    %v2974 = vld [vmem:[%s339] sm:$0x3]
    %v2975 = vld [vmem:[%s339 + $0xe] sm:$0x3]
    %v2976 = vsel %vm156, %v2974, %v2975
    %v2977 = vadd.f32 %v2976, %v2885
    %v2978 = vxor.u32 %v2977, 2147483648
    %v2979 = vmul.f32 %v2978, 1.442695
    %v2980 = vpow.pop %v2979
    %v2981 = vadd.f32 %v2980, 1.0
    %v2982 = vrcp.pop %v2981
    %v2983 = vmul.f32 1.0, %v2982
    %v2984 = vld [vmem:[%s428] sm:$0x3]
    %v2985 = vld [vmem:[%s428 + $0xe] sm:$0x3]
    %v2986 = vsel %vm156, %v2984, %v2985
    %v2987 = vmul.f32 %v2973, %v2961
    %v2988 = vadd.f32 %v2986, %v2987
    %v2989 = vtanh.pop %v2988
    %v2990 = vsub.f32 1.0, %v2983
    %v2991 = vmul.f32 %v2990, %v2989
    %v2992 = vmul.f32 %v2983, 0.0
    %v2993 = vadd.f32 %v2991, %v2992
    %v2995 = vsel %vm250, %v2993, 0
    %2997 = vmatprep.subr.mxu0 0.0
    %2998 = vmatpush1.msra.mxu0 0.0
    %2999 = vmatprep.subr.mxu0 0.0
    %3000 = vmatpush1.msra.mxu0 0.0
    %3001 = vmatprep.subr.mxu0 0.0
    %3002 = vmatpush1.msra.mxu0 0.0
    %3003 = vmatprep.subr.mxu0 0.0
    %3004 = vmatpush1.msra.mxu0 0.0
    %3005 = vmatprep.subr.mxu0 0.0
    %3006 = vmatpush1.msra.mxu0 0.0
    %3007 = vmatprep.subr.mxu0 0.0
    %3008 = vmatpush1.msra.mxu0 0.0
    %3009 = vmatprep.subr.mxu0 0.0
    %3010 = vmatpush1.msra.mxu0 0.0
    %3011 = vmatprep.subr.mxu0 0.0
    %3012 = vmatpush1.msra.mxu0 0.0
    %3013 = vmatprep.subr.mxu0 0.0
    %3014 = vmatpush1.msra.mxu0 %v2712
    %3015 = vmatprep.subr.mxu0 0.0
    %3016 = vmatpush1.msra.mxu0 %v2711
    %3017 = vmatprep.subr.mxu0 0.0
    %3018 = vmatpush1.msra.mxu0 %v2710
    %3019 = vmatprep.subr.mxu0 0.0
    %3020 = vmatpush1.msra.mxu0 %v2709
    %3021 = vmatprep.subr.mxu0 0.0
    %3022 = vmatpush1.msra.mxu0 %v2708
    %3023 = vmatprep.subr.mxu0 0.0
    %3024 = vmatpush1.msra.mxu0 %v2707
    %3025 = vmatprep.subr.mxu0 0.0
    %3026 = vmatpush1.msra.mxu0 %v2706
    %3027 = vmatprep.subr.mxu0 0.0
    %3028 = vmatpush1.msra.mxu0 %v2705
    %3029 = vmatprep.subr.mxu0 0.0
    %3030 = vmatpush2.msra.mxu0 0.0
    %3031 = vmatprep.subr.mxu0 0.0
    %3032 = vmatpush2.msra.mxu0 0.0
    %3033 = vmatprep.subr.mxu0 0.0
    %3034 = vmatpush2.msra.mxu0 0.0
    %3035 = vmatprep.subr.mxu0 0.0
    %3036 = vmatpush2.msra.mxu0 0.0
    %3037 = vmatprep.subr.mxu0 0.0
    %3038 = vmatpush2.msra.mxu0 0.0
    %3039 = vmatprep.subr.mxu0 0.0
    %3040 = vmatpush2.msra.mxu0 0.0
    %3041 = vmatprep.subr.mxu0 0.0
    %3042 = vmatpush2.msra.mxu0 0.0
    %3043 = vmatprep.subr.mxu0 0.0
    %3044 = vmatpush2.msra.mxu0 0.0
    %3045 = vmatprep.subr.mxu0 0.0
    %3046 = vmatpush2.msra.mxu0 0.0
    %3047 = vmatprep.subr.mxu0 0.0
    %3048 = vmatpush2.msra.mxu0 0.0
    %3049 = vmatprep.subr.mxu0 0.0
    %3050 = vmatpush2.msra.mxu0 0.0
    %3051 = vmatprep.subr.mxu0 0.0
    %3052 = vmatpush2.msra.mxu0 0.0
    %3053 = vmatprep.subr.mxu0 0.0
    %3054 = vmatpush2.msra.mxu0 0.0
    %3055 = vmatprep.subr.mxu0 0.0
    %3056 = vmatpush2.msra.mxu0 0.0
    %3057 = vmatprep.subr.mxu0 0.0
    %3058 = vmatpush2.msra.mxu0 0.0
    %3059 = vmatprep.subr.mxu0 0.0
    %3060 = vmatpush2.msra.mxu0 0.0
    %3061 = vmatprep.mubr.f32.mxu0 0.0
    %3062 = vmatmul.mubr.f32.gmra.mxu0 %v2995
    %v3063 = vpop.f32.mrf.mxu0
    %v3064 = vadd.f32 %v2740, %v3063
    %v3065 = vpop.f32.mrf.mxu0
    %3066 = vdwg.mxu0
    %3067 = vmatprep.subr.mxu0 0.0
    %3068 = vmatpush1.msra.mxu0 0.0
    %3069 = vmatprep.subr.mxu0 0.0
    %3070 = vmatpush1.msra.mxu0 0.0
    %3071 = vmatprep.subr.mxu0 0.0
    %3072 = vmatpush1.msra.mxu0 0.0
    %3073 = vmatprep.subr.mxu0 0.0
    %3074 = vmatpush1.msra.mxu0 0.0
    %3075 = vmatprep.subr.mxu0 0.0
    %3076 = vmatpush1.msra.mxu0 0.0
    %3077 = vmatprep.subr.mxu0 0.0
    %3078 = vmatpush1.msra.mxu0 0.0
    %3079 = vmatprep.subr.mxu0 0.0
    %3080 = vmatpush1.msra.mxu0 0.0
    %3081 = vmatprep.subr.mxu0 0.0
    %3082 = vmatpush1.msra.mxu0 0.0
    %3083 = vmatprep.subr.mxu0 0.0
    %3084 = vmatpush1.msra.mxu0 %v2721
    %3085 = vmatprep.subr.mxu0 0.0
    %3086 = vmatpush1.msra.mxu0 %v2720
    %3087 = vmatprep.subr.mxu0 0.0
    %3088 = vmatpush1.msra.mxu0 %v2719
    %3089 = vmatprep.subr.mxu0 0.0
    %3090 = vmatpush1.msra.mxu0 %v2718
    %3091 = vmatprep.subr.mxu0 0.0
    %3092 = vmatpush1.msra.mxu0 %v2717
    %3093 = vmatprep.subr.mxu0 0.0
    %3094 = vmatpush1.msra.mxu0 %v2716
    %3095 = vmatprep.subr.mxu0 0.0
    %3096 = vmatpush1.msra.mxu0 %v2715
    %3097 = vmatprep.subr.mxu0 0.0
    %3098 = vmatpush1.msra.mxu0 %v2714
    %3099 = vmatprep.subr.mxu0 0.0
    %3100 = vmatpush2.msra.mxu0 0.0
    %3101 = vmatprep.subr.mxu0 0.0
    %3102 = vmatpush2.msra.mxu0 0.0
    %3103 = vmatprep.subr.mxu0 0.0
    %3104 = vmatpush2.msra.mxu0 0.0
    %3105 = vmatprep.subr.mxu0 0.0
    %3106 = vmatpush2.msra.mxu0 0.0
    %3107 = vmatprep.subr.mxu0 0.0
    %3108 = vmatpush2.msra.mxu0 0.0
    %3109 = vmatprep.subr.mxu0 0.0
    %3110 = vmatpush2.msra.mxu0 0.0
    %3111 = vmatprep.subr.mxu0 0.0
    %3112 = vmatpush2.msra.mxu0 0.0
    %3113 = vmatprep.subr.mxu0 0.0
    %3114 = vmatpush2.msra.mxu0 0.0
    %3115 = vmatprep.subr.mxu0 0.0
    %3116 = vmatpush2.msra.mxu0 0.0
    %3117 = vmatprep.subr.mxu0 0.0
    %3118 = vmatpush2.msra.mxu0 0.0
    %3119 = vmatprep.subr.mxu0 0.0
    %3120 = vmatpush2.msra.mxu0 0.0
    %3121 = vmatprep.subr.mxu0 0.0
    %3122 = vmatpush2.msra.mxu0 0.0
    %3123 = vmatprep.subr.mxu0 0.0
    %3124 = vmatpush2.msra.mxu0 0.0
    %3125 = vmatprep.subr.mxu0 0.0
    %3126 = vmatpush2.msra.mxu0 0.0
    %3127 = vmatprep.subr.mxu0 0.0
    %3128 = vmatpush2.msra.mxu0 0.0
    %3129 = vmatprep.subr.mxu0 0.0
    %3130 = vmatpush2.msra.mxu0 0.0
    %3131 = vmatprep.mubr.f32.mxu0 0.0
    %3132 = vmatmul.mubr.f32.gmra.mxu0 %v2995
    %v3133 = vpop.f32.mrf.mxu0
    %v3134 = vadd.f32 %v2816, %v3133
    %v3135 = vpop.f32.mrf.mxu0
    %3136 = vdwg.mxu0
    %3137 = vmatprep.subr.mxu0 0.0
    %3138 = vmatpush1.msra.mxu0 0.0
    %3139 = vmatprep.subr.mxu0 0.0
    %3140 = vmatpush1.msra.mxu0 0.0
    %3141 = vmatprep.subr.mxu0 0.0
    %3142 = vmatpush1.msra.mxu0 0.0
    %3143 = vmatprep.subr.mxu0 0.0
    %3144 = vmatpush1.msra.mxu0 0.0
    %3145 = vmatprep.subr.mxu0 0.0
    %3146 = vmatpush1.msra.mxu0 0.0
    %3147 = vmatprep.subr.mxu0 0.0
    %3148 = vmatpush1.msra.mxu0 0.0
    %3149 = vmatprep.subr.mxu0 0.0
    %3150 = vmatpush1.msra.mxu0 0.0
    %3151 = vmatprep.subr.mxu0 0.0
    %3152 = vmatpush1.msra.mxu0 0.0
    %3153 = vmatprep.subr.mxu0 0.0
    %3154 = vmatpush1.msra.mxu0 %v2730
    %3155 = vmatprep.subr.mxu0 0.0
    %3156 = vmatpush1.msra.mxu0 %v2729
    %3157 = vmatprep.subr.mxu0 0.0
    %3158 = vmatpush1.msra.mxu0 %v2728
    %3159 = vmatprep.subr.mxu0 0.0
    %3160 = vmatpush1.msra.mxu0 %v2727
    %3161 = vmatprep.subr.mxu0 0.0
    %3162 = vmatpush1.msra.mxu0 %v2726
    %3163 = vmatprep.subr.mxu0 0.0
    %3164 = vmatpush1.msra.mxu0 %v2725
    %3165 = vmatprep.subr.mxu0 0.0
    %3166 = vmatpush1.msra.mxu0 %v2724
    %3167 = vmatprep.subr.mxu0 0.0
    %3168 = vmatpush1.msra.mxu0 %v2723
    %3169 = vmatprep.subr.mxu0 0.0
    %3170 = vmatpush2.msra.mxu0 0.0
    %3171 = vmatprep.subr.mxu0 0.0
    %3172 = vmatpush2.msra.mxu0 0.0
    %3173 = vmatprep.subr.mxu0 0.0
    %3174 = vmatpush2.msra.mxu0 0.0
    %3175 = vmatprep.subr.mxu0 0.0
    %3176 = vmatpush2.msra.mxu0 0.0
    %3177 = vmatprep.subr.mxu0 0.0
    %3178 = vmatpush2.msra.mxu0 0.0
    %3179 = vmatprep.subr.mxu0 0.0
    %3180 = vmatpush2.msra.mxu0 0.0
    %3181 = vmatprep.subr.mxu0 0.0
    %3182 = vmatpush2.msra.mxu0 0.0
    %3183 = vmatprep.subr.mxu0 0.0
    %3184 = vmatpush2.msra.mxu0 0.0
    %3185 = vmatprep.subr.mxu0 0.0
    %3186 = vmatpush2.msra.mxu0 0.0
    %3187 = vmatprep.subr.mxu0 0.0
    %3188 = vmatpush2.msra.mxu0 0.0
    %3189 = vmatprep.subr.mxu0 0.0
    %3190 = vmatpush2.msra.mxu0 0.0
    %3191 = vmatprep.subr.mxu0 0.0
    %3192 = vmatpush2.msra.mxu0 0.0
    %3193 = vmatprep.subr.mxu0 0.0
    %3194 = vmatpush2.msra.mxu0 0.0
    %3195 = vmatprep.subr.mxu0 0.0
    %3196 = vmatpush2.msra.mxu0 0.0
    %3197 = vmatprep.subr.mxu0 0.0
    %3198 = vmatpush2.msra.mxu0 0.0
    %3199 = vmatprep.subr.mxu0 0.0
    %3200 = vmatpush2.msra.mxu0 0.0
    %3201 = vmatprep.mubr.f32.mxu0 0.0
    %3202 = vmatmul.mubr.f32.gmra.mxu0 %v2995
    %v3203 = vpop.f32.mrf.mxu0
    %v3204 = vadd.f32 %v2892, %v3203
    %v3205 = vpop.f32.mrf.mxu0
    %3206 = vdwg.mxu0
    %v3207 = vld [vmem:[#allocation2 + $0x2] sm:$0x3]
    %v3208 = vld [vmem:[#allocation2 + $0xc] sm:$0x3]
    %v3209 = vsel %vm156, %v3207, %v3208
    %v3210 = vadd.f32 %v3209, %v3064
    %v3211 = vxor.u32 %v3210, 2147483648
    %v3212 = vmul.f32 %v3211, 1.442695
    %v3213 = vpow.pop %v3212
    %v3214 = vadd.f32 %v3213, 1.0
    %v3215 = vrcp.pop %v3214
    %v3216 = vmul.f32 1.0, %v3215
    %v3217 = vld [vmem:[%s339 + $0x2] sm:$0x3]
    %v3218 = vld [vmem:[%s339 + $0xc] sm:$0x3]
    %v3219 = vsel %vm156, %v3217, %v3218
    %v3220 = vadd.f32 %v3219, %v3134
    %v3221 = vxor.u32 %v3220, 2147483648
    %v3222 = vmul.f32 %v3221, 1.442695
    %v3223 = vpow.pop %v3222
    %v3224 = vadd.f32 %v3223, 1.0
    %v3225 = vrcp.pop %v3224
    %v3226 = vmul.f32 1.0, %v3225
    %v3227 = vld [vmem:[%s428 + $0x2] sm:$0x3]
    %v3228 = vld [vmem:[%s428 + $0xc] sm:$0x3]
    %v3229 = vsel %vm156, %v3227, %v3228
    %v3230 = vmul.f32 %v3216, %v3204
    %v3231 = vadd.f32 %v3229, %v3230
    %v3232 = vtanh.pop %v3231
    %v3233 = vsub.f32 1.0, %v3226
    %v3234 = vmul.f32 %v3233, %v3232
    %v3235 = vmul.f32 %v3226, %v2993
    %v3236 = vadd.f32 %v3234, %v3235
    %v3238 = vsel %vm250, %v3236, 0
    %3240 = vmatprep.subr.mxu0 0.0
    %3241 = vmatpush1.msra.mxu0 0.0
    %3242 = vmatprep.subr.mxu0 0.0
    %3243 = vmatpush1.msra.mxu0 0.0
    %3244 = vmatprep.subr.mxu0 0.0
    %3245 = vmatpush1.msra.mxu0 0.0
    %3246 = vmatprep.subr.mxu0 0.0
    %3247 = vmatpush1.msra.mxu0 0.0
    %3248 = vmatprep.subr.mxu0 0.0
    %3249 = vmatpush1.msra.mxu0 0.0
    %3250 = vmatprep.subr.mxu0 0.0
    %3251 = vmatpush1.msra.mxu0 0.0
    %3252 = vmatprep.subr.mxu0 0.0
    %3253 = vmatpush1.msra.mxu0 0.0
    %3254 = vmatprep.subr.mxu0 0.0
    %3255 = vmatpush1.msra.mxu0 0.0
    %3256 = vmatprep.subr.mxu0 0.0
    %3257 = vmatpush1.msra.mxu0 %v2712
    %3258 = vmatprep.subr.mxu0 0.0
    %3259 = vmatpush1.msra.mxu0 %v2711
    %3260 = vmatprep.subr.mxu0 0.0
    %3261 = vmatpush1.msra.mxu0 %v2710
    %3262 = vmatprep.subr.mxu0 0.0
    %3263 = vmatpush1.msra.mxu0 %v2709
    %3264 = vmatprep.subr.mxu0 0.0
    %3265 = vmatpush1.msra.mxu0 %v2708
    %3266 = vmatprep.subr.mxu0 0.0
    %3267 = vmatpush1.msra.mxu0 %v2707
    %3268 = vmatprep.subr.mxu0 0.0
    %3269 = vmatpush1.msra.mxu0 %v2706
    %3270 = vmatprep.subr.mxu0 0.0
    %3271 = vmatpush1.msra.mxu0 %v2705
    %3272 = vmatprep.subr.mxu0 0.0
    %3273 = vmatpush2.msra.mxu0 0.0
    %3274 = vmatprep.subr.mxu0 0.0
    %3275 = vmatpush2.msra.mxu0 0.0
    %3276 = vmatprep.subr.mxu0 0.0
    %3277 = vmatpush2.msra.mxu0 0.0
    %3278 = vmatprep.subr.mxu0 0.0
    %3279 = vmatpush2.msra.mxu0 0.0
    %3280 = vmatprep.subr.mxu0 0.0
    %3281 = vmatpush2.msra.mxu0 0.0
    %3282 = vmatprep.subr.mxu0 0.0
    %3283 = vmatpush2.msra.mxu0 0.0
    %3284 = vmatprep.subr.mxu0 0.0
    %3285 = vmatpush2.msra.mxu0 0.0
    %3286 = vmatprep.subr.mxu0 0.0
    %3287 = vmatpush2.msra.mxu0 0.0
    %3288 = vmatprep.subr.mxu0 0.0
    %3289 = vmatpush2.msra.mxu0 0.0
    %3290 = vmatprep.subr.mxu0 0.0
    %3291 = vmatpush2.msra.mxu0 0.0
    %3292 = vmatprep.subr.mxu0 0.0
    %3293 = vmatpush2.msra.mxu0 0.0
    %3294 = vmatprep.subr.mxu0 0.0
    %3295 = vmatpush2.msra.mxu0 0.0
    %3296 = vmatprep.subr.mxu0 0.0
    %3297 = vmatpush2.msra.mxu0 0.0
    %3298 = vmatprep.subr.mxu0 0.0
    %3299 = vmatpush2.msra.mxu0 0.0
    %3300 = vmatprep.subr.mxu0 0.0
    %3301 = vmatpush2.msra.mxu0 0.0
    %3302 = vmatprep.subr.mxu0 0.0
    %3303 = vmatpush2.msra.mxu0 0.0
    %3304 = vmatprep.mubr.f32.mxu0 0.0
    %3305 = vmatmul.mubr.f32.gmra.mxu0 %v3238
    %v3306 = vpop.f32.mrf.mxu0
    %v3307 = vadd.f32 %v2740, %v3306
    %v3308 = vpop.f32.mrf.mxu0
    %3309 = vdwg.mxu0
    %3310 = vmatprep.subr.mxu0 0.0
    %3311 = vmatpush1.msra.mxu0 0.0
    %3312 = vmatprep.subr.mxu0 0.0
    %3313 = vmatpush1.msra.mxu0 0.0
    %3314 = vmatprep.subr.mxu0 0.0
    %3315 = vmatpush1.msra.mxu0 0.0
    %3316 = vmatprep.subr.mxu0 0.0
    %3317 = vmatpush1.msra.mxu0 0.0
    %3318 = vmatprep.subr.mxu0 0.0
    %3319 = vmatpush1.msra.mxu0 0.0
    %3320 = vmatprep.subr.mxu0 0.0
    %3321 = vmatpush1.msra.mxu0 0.0
    %3322 = vmatprep.subr.mxu0 0.0
    %3323 = vmatpush1.msra.mxu0 0.0
    %3324 = vmatprep.subr.mxu0 0.0
    %3325 = vmatpush1.msra.mxu0 0.0
    %3326 = vmatprep.subr.mxu0 0.0
    %3327 = vmatpush1.msra.mxu0 %v2721
    %3328 = vmatprep.subr.mxu0 0.0
    %3329 = vmatpush1.msra.mxu0 %v2720
    %3330 = vmatprep.subr.mxu0 0.0
    %3331 = vmatpush1.msra.mxu0 %v2719
    %3332 = vmatprep.subr.mxu0 0.0
    %3333 = vmatpush1.msra.mxu0 %v2718
    %3334 = vmatprep.subr.mxu0 0.0
    %3335 = vmatpush1.msra.mxu0 %v2717
    %3336 = vmatprep.subr.mxu0 0.0
    %3337 = vmatpush1.msra.mxu0 %v2716
    %3338 = vmatprep.subr.mxu0 0.0
    %3339 = vmatpush1.msra.mxu0 %v2715
    %3340 = vmatprep.subr.mxu0 0.0
    %3341 = vmatpush1.msra.mxu0 %v2714
    %3342 = vmatprep.subr.mxu0 0.0
    %3343 = vmatpush2.msra.mxu0 0.0
    %3344 = vmatprep.subr.mxu0 0.0
    %3345 = vmatpush2.msra.mxu0 0.0
    %3346 = vmatprep.subr.mxu0 0.0
    %3347 = vmatpush2.msra.mxu0 0.0
    %3348 = vmatprep.subr.mxu0 0.0
    %3349 = vmatpush2.msra.mxu0 0.0
    %3350 = vmatprep.subr.mxu0 0.0
    %3351 = vmatpush2.msra.mxu0 0.0
    %3352 = vmatprep.subr.mxu0 0.0
    %3353 = vmatpush2.msra.mxu0 0.0
    %3354 = vmatprep.subr.mxu0 0.0
    %3355 = vmatpush2.msra.mxu0 0.0
    %3356 = vmatprep.subr.mxu0 0.0
    %3357 = vmatpush2.msra.mxu0 0.0
    %3358 = vmatprep.subr.mxu0 0.0
    %3359 = vmatpush2.msra.mxu0 0.0
    %3360 = vmatprep.subr.mxu0 0.0
    %3361 = vmatpush2.msra.mxu0 0.0
    %3362 = vmatprep.subr.mxu0 0.0
    %3363 = vmatpush2.msra.mxu0 0.0
    %3364 = vmatprep.subr.mxu0 0.0
    %3365 = vmatpush2.msra.mxu0 0.0
    %3366 = vmatprep.subr.mxu0 0.0
    %3367 = vmatpush2.msra.mxu0 0.0
    %3368 = vmatprep.subr.mxu0 0.0
    %3369 = vmatpush2.msra.mxu0 0.0
    %3370 = vmatprep.subr.mxu0 0.0
    %3371 = vmatpush2.msra.mxu0 0.0
    %3372 = vmatprep.subr.mxu0 0.0
    %3373 = vmatpush2.msra.mxu0 0.0
    %3374 = vmatprep.mubr.f32.mxu0 0.0
    %3375 = vmatmul.mubr.f32.gmra.mxu0 %v3238
    %v3376 = vpop.f32.mrf.mxu0
    %v3377 = vadd.f32 %v2816, %v3376
    %v3378 = vpop.f32.mrf.mxu0
    %3379 = vdwg.mxu0
    %3380 = vmatprep.subr.mxu0 0.0
    %3381 = vmatpush1.msra.mxu0 0.0
    %3382 = vmatprep.subr.mxu0 0.0
    %3383 = vmatpush1.msra.mxu0 0.0
    %3384 = vmatprep.subr.mxu0 0.0
    %3385 = vmatpush1.msra.mxu0 0.0
    %3386 = vmatprep.subr.mxu0 0.0
    %3387 = vmatpush1.msra.mxu0 0.0
    %3388 = vmatprep.subr.mxu0 0.0
    %3389 = vmatpush1.msra.mxu0 0.0
    %3390 = vmatprep.subr.mxu0 0.0
    %3391 = vmatpush1.msra.mxu0 0.0
    %3392 = vmatprep.subr.mxu0 0.0
    %3393 = vmatpush1.msra.mxu0 0.0
    %3394 = vmatprep.subr.mxu0 0.0
    %3395 = vmatpush1.msra.mxu0 0.0
    %3396 = vmatprep.subr.mxu0 0.0
    %3397 = vmatpush1.msra.mxu0 %v2730
    %3398 = vmatprep.subr.mxu0 0.0
    %3399 = vmatpush1.msra.mxu0 %v2729
    %3400 = vmatprep.subr.mxu0 0.0
    %3401 = vmatpush1.msra.mxu0 %v2728
    %3402 = vmatprep.subr.mxu0 0.0
    %3403 = vmatpush1.msra.mxu0 %v2727
    %3404 = vmatprep.subr.mxu0 0.0
    %3405 = vmatpush1.msra.mxu0 %v2726
    %3406 = vmatprep.subr.mxu0 0.0
    %3407 = vmatpush1.msra.mxu0 %v2725
    %3408 = vmatprep.subr.mxu0 0.0
    %3409 = vmatpush1.msra.mxu0 %v2724
    %3410 = vmatprep.subr.mxu0 0.0
    %3411 = vmatpush1.msra.mxu0 %v2723
    %3412 = vmatprep.subr.mxu0 0.0
    %3413 = vmatpush2.msra.mxu0 0.0
    %3414 = vmatprep.subr.mxu0 0.0
    %3415 = vmatpush2.msra.mxu0 0.0
    %3416 = vmatprep.subr.mxu0 0.0
    %3417 = vmatpush2.msra.mxu0 0.0
    %3418 = vmatprep.subr.mxu0 0.0
    %3419 = vmatpush2.msra.mxu0 0.0
    %3420 = vmatprep.subr.mxu0 0.0
    %3421 = vmatpush2.msra.mxu0 0.0
    %3422 = vmatprep.subr.mxu0 0.0
    %3423 = vmatpush2.msra.mxu0 0.0
    %3424 = vmatprep.subr.mxu0 0.0
    %3425 = vmatpush2.msra.mxu0 0.0
    %3426 = vmatprep.subr.mxu0 0.0
    %3427 = vmatpush2.msra.mxu0 0.0
    %3428 = vmatprep.subr.mxu0 0.0
    %3429 = vmatpush2.msra.mxu0 0.0
    %3430 = vmatprep.subr.mxu0 0.0
    %3431 = vmatpush2.msra.mxu0 0.0
    %3432 = vmatprep.subr.mxu0 0.0
    %3433 = vmatpush2.msra.mxu0 0.0
    %3434 = vmatprep.subr.mxu0 0.0
    %3435 = vmatpush2.msra.mxu0 0.0
    %3436 = vmatprep.subr.mxu0 0.0
    %3437 = vmatpush2.msra.mxu0 0.0
    %3438 = vmatprep.subr.mxu0 0.0
    %3439 = vmatpush2.msra.mxu0 0.0
    %3440 = vmatprep.subr.mxu0 0.0
    %3441 = vmatpush2.msra.mxu0 0.0
    %3442 = vmatprep.subr.mxu0 0.0
    %3443 = vmatpush2.msra.mxu0 0.0
    %3444 = vmatprep.mubr.f32.mxu0 0.0
    %3445 = vmatmul.mubr.f32.gmra.mxu0 %v3238
    %v3446 = vpop.f32.mrf.mxu0
    %v3447 = vadd.f32 %v2892, %v3446
    %v3448 = vpop.f32.mrf.mxu0
    %3449 = vdwg.mxu0
    %v3450 = vld [vmem:[#allocation2 + $0x4] sm:$0x3]
    %v3451 = vld [vmem:[#allocation2 + $0xa] sm:$0x3]
    %v3452 = vsel %vm156, %v3450, %v3451
    %v3453 = vadd.f32 %v3452, %v3307
    %v3454 = vxor.u32 %v3453, 2147483648
    %v3455 = vmul.f32 %v3454, 1.442695
    %v3456 = vpow.pop %v3455
    %v3457 = vadd.f32 %v3456, 1.0
    %v3458 = vrcp.pop %v3457
    %v3459 = vmul.f32 1.0, %v3458
    %v3460 = vld [vmem:[%s339 + $0x4] sm:$0x3]
    %v3461 = vld [vmem:[%s339 + $0xa] sm:$0x3]
    %v3462 = vsel %vm156, %v3460, %v3461
    %v3463 = vadd.f32 %v3462, %v3377
    %v3464 = vxor.u32 %v3463, 2147483648
    %v3465 = vmul.f32 %v3464, 1.442695
    %v3466 = vpow.pop %v3465
    %v3467 = vadd.f32 %v3466, 1.0
    %v3468 = vrcp.pop %v3467
    %v3469 = vmul.f32 1.0, %v3468
    %v3470 = vld [vmem:[%s428 + $0x4] sm:$0x3]
    %v3471 = vld [vmem:[%s428 + $0xa] sm:$0x3]
    %v3472 = vsel %vm156, %v3470, %v3471
    %v3473 = vmul.f32 %v3459, %v3447
    %v3474 = vadd.f32 %v3472, %v3473
    %v3475 = vtanh.pop %v3474
    %v3476 = vsub.f32 1.0, %v3469
    %v3477 = vmul.f32 %v3476, %v3475
    %v3478 = vmul.f32 %v3469, %v3236
    %v3479 = vadd.f32 %v3477, %v3478
    %v3481 = vsel %vm250, %v3479, 0
    %3483 = vmatprep.subr.mxu0 0.0
    %3484 = vmatpush1.msra.mxu0 0.0
    %3485 = vmatprep.subr.mxu0 0.0
    %3486 = vmatpush1.msra.mxu0 0.0
    %3487 = vmatprep.subr.mxu0 0.0
    %3488 = vmatpush1.msra.mxu0 0.0
    %3489 = vmatprep.subr.mxu0 0.0
    %3490 = vmatpush1.msra.mxu0 0.0
    %3491 = vmatprep.subr.mxu0 0.0
    %3492 = vmatpush1.msra.mxu0 0.0
    %3493 = vmatprep.subr.mxu0 0.0
    %3494 = vmatpush1.msra.mxu0 0.0
    %3495 = vmatprep.subr.mxu0 0.0
    %3496 = vmatpush1.msra.mxu0 0.0
    %3497 = vmatprep.subr.mxu0 0.0
    %3498 = vmatpush1.msra.mxu0 0.0
    %3499 = vmatprep.subr.mxu0 0.0
    %3500 = vmatpush1.msra.mxu0 %v2712
    %3501 = vmatprep.subr.mxu0 0.0
    %3502 = vmatpush1.msra.mxu0 %v2711
    %3503 = vmatprep.subr.mxu0 0.0
    %3504 = vmatpush1.msra.mxu0 %v2710
    %3505 = vmatprep.subr.mxu0 0.0
    %3506 = vmatpush1.msra.mxu0 %v2709
    %3507 = vmatprep.subr.mxu0 0.0
    %3508 = vmatpush1.msra.mxu0 %v2708
    %3509 = vmatprep.subr.mxu0 0.0
    %3510 = vmatpush1.msra.mxu0 %v2707
    %3511 = vmatprep.subr.mxu0 0.0
    %3512 = vmatpush1.msra.mxu0 %v2706
    %3513 = vmatprep.subr.mxu0 0.0
    %3514 = vmatpush1.msra.mxu0 %v2705
    %3515 = vmatprep.subr.mxu0 0.0
    %3516 = vmatpush2.msra.mxu0 0.0
    %3517 = vmatprep.subr.mxu0 0.0
    %3518 = vmatpush2.msra.mxu0 0.0
    %3519 = vmatprep.subr.mxu0 0.0
    %3520 = vmatpush2.msra.mxu0 0.0
    %3521 = vmatprep.subr.mxu0 0.0
    %3522 = vmatpush2.msra.mxu0 0.0
    %3523 = vmatprep.subr.mxu0 0.0
    %3524 = vmatpush2.msra.mxu0 0.0
    %3525 = vmatprep.subr.mxu0 0.0
    %3526 = vmatpush2.msra.mxu0 0.0
    %3527 = vmatprep.subr.mxu0 0.0
    %3528 = vmatpush2.msra.mxu0 0.0
    %3529 = vmatprep.subr.mxu0 0.0
    %3530 = vmatpush2.msra.mxu0 0.0
    %3531 = vmatprep.subr.mxu0 0.0
    %3532 = vmatpush2.msra.mxu0 0.0
    %3533 = vmatprep.subr.mxu0 0.0
    %3534 = vmatpush2.msra.mxu0 0.0
    %3535 = vmatprep.subr.mxu0 0.0
    %3536 = vmatpush2.msra.mxu0 0.0
    %3537 = vmatprep.subr.mxu0 0.0
    %3538 = vmatpush2.msra.mxu0 0.0
    %3539 = vmatprep.subr.mxu0 0.0
    %3540 = vmatpush2.msra.mxu0 0.0
    %3541 = vmatprep.subr.mxu0 0.0
    %3542 = vmatpush2.msra.mxu0 0.0
    %3543 = vmatprep.subr.mxu0 0.0
    %3544 = vmatpush2.msra.mxu0 0.0
    %3545 = vmatprep.subr.mxu0 0.0
    %3546 = vmatpush2.msra.mxu0 0.0
    %3547 = vmatprep.mubr.f32.mxu0 0.0
    %3548 = vmatmul.mubr.f32.gmra.mxu0 %v3481
    %v3549 = vpop.f32.mrf.mxu0
    %v3550 = vadd.f32 %v2740, %v3549
    %v3551 = vpop.f32.mrf.mxu0
    %3552 = vdwg.mxu0
    %3553 = vmatprep.subr.mxu0 0.0
    %3554 = vmatpush1.msra.mxu0 0.0
    %3555 = vmatprep.subr.mxu0 0.0
    %3556 = vmatpush1.msra.mxu0 0.0
    %3557 = vmatprep.subr.mxu0 0.0
    %3558 = vmatpush1.msra.mxu0 0.0
    %3559 = vmatprep.subr.mxu0 0.0
    %3560 = vmatpush1.msra.mxu0 0.0
    %3561 = vmatprep.subr.mxu0 0.0
    %3562 = vmatpush1.msra.mxu0 0.0
    %3563 = vmatprep.subr.mxu0 0.0
    %3564 = vmatpush1.msra.mxu0 0.0
    %3565 = vmatprep.subr.mxu0 0.0
    %3566 = vmatpush1.msra.mxu0 0.0
    %3567 = vmatprep.subr.mxu0 0.0
    %3568 = vmatpush1.msra.mxu0 0.0
    %3569 = vmatprep.subr.mxu0 0.0
    %3570 = vmatpush1.msra.mxu0 %v2721
    %3571 = vmatprep.subr.mxu0 0.0
    %3572 = vmatpush1.msra.mxu0 %v2720
    %3573 = vmatprep.subr.mxu0 0.0
    %3574 = vmatpush1.msra.mxu0 %v2719
    %3575 = vmatprep.subr.mxu0 0.0
    %3576 = vmatpush1.msra.mxu0 %v2718
    %3577 = vmatprep.subr.mxu0 0.0
    %3578 = vmatpush1.msra.mxu0 %v2717
    %3579 = vmatprep.subr.mxu0 0.0
    %3580 = vmatpush1.msra.mxu0 %v2716
    %3581 = vmatprep.subr.mxu0 0.0
    %3582 = vmatpush1.msra.mxu0 %v2715
    %3583 = vmatprep.subr.mxu0 0.0
    %3584 = vmatpush1.msra.mxu0 %v2714
    %3585 = vmatprep.subr.mxu0 0.0
    %3586 = vmatpush2.msra.mxu0 0.0
    %3587 = vmatprep.subr.mxu0 0.0
    %3588 = vmatpush2.msra.mxu0 0.0
    %3589 = vmatprep.subr.mxu0 0.0
    %3590 = vmatpush2.msra.mxu0 0.0
    %3591 = vmatprep.subr.mxu0 0.0
    %3592 = vmatpush2.msra.mxu0 0.0
    %3593 = vmatprep.subr.mxu0 0.0
    %3594 = vmatpush2.msra.mxu0 0.0
    %3595 = vmatprep.subr.mxu0 0.0
    %3596 = vmatpush2.msra.mxu0 0.0
    %3597 = vmatprep.subr.mxu0 0.0
    %3598 = vmatpush2.msra.mxu0 0.0
    %3599 = vmatprep.subr.mxu0 0.0
    %3600 = vmatpush2.msra.mxu0 0.0
    %3601 = vmatprep.subr.mxu0 0.0
    %3602 = vmatpush2.msra.mxu0 0.0
    %3603 = vmatprep.subr.mxu0 0.0
    %3604 = vmatpush2.msra.mxu0 0.0
    %3605 = vmatprep.subr.mxu0 0.0
    %3606 = vmatpush2.msra.mxu0 0.0
    %3607 = vmatprep.subr.mxu0 0.0
    %3608 = vmatpush2.msra.mxu0 0.0
    %3609 = vmatprep.subr.mxu0 0.0
    %3610 = vmatpush2.msra.mxu0 0.0
    %3611 = vmatprep.subr.mxu0 0.0
    %3612 = vmatpush2.msra.mxu0 0.0
    %3613 = vmatprep.subr.mxu0 0.0
    %3614 = vmatpush2.msra.mxu0 0.0
    %3615 = vmatprep.subr.mxu0 0.0
    %3616 = vmatpush2.msra.mxu0 0.0
    %3617 = vmatprep.mubr.f32.mxu0 0.0
    %3618 = vmatmul.mubr.f32.gmra.mxu0 %v3481
    %v3619 = vpop.f32.mrf.mxu0
    %v3620 = vadd.f32 %v2816, %v3619
    %v3621 = vpop.f32.mrf.mxu0
    %3622 = vdwg.mxu0
    %3623 = vmatprep.subr.mxu0 0.0
    %3624 = vmatpush1.msra.mxu0 0.0
    %3625 = vmatprep.subr.mxu0 0.0
    %3626 = vmatpush1.msra.mxu0 0.0
    %3627 = vmatprep.subr.mxu0 0.0
    %3628 = vmatpush1.msra.mxu0 0.0
    %3629 = vmatprep.subr.mxu0 0.0
    %3630 = vmatpush1.msra.mxu0 0.0
    %3631 = vmatprep.subr.mxu0 0.0
    %3632 = vmatpush1.msra.mxu0 0.0
    %3633 = vmatprep.subr.mxu0 0.0
    %3634 = vmatpush1.msra.mxu0 0.0
    %3635 = vmatprep.subr.mxu0 0.0
    %3636 = vmatpush1.msra.mxu0 0.0
    %3637 = vmatprep.subr.mxu0 0.0
    %3638 = vmatpush1.msra.mxu0 0.0
    %3639 = vmatprep.subr.mxu0 0.0
    %3640 = vmatpush1.msra.mxu0 %v2730
    %3641 = vmatprep.subr.mxu0 0.0
    %3642 = vmatpush1.msra.mxu0 %v2729
    %3643 = vmatprep.subr.mxu0 0.0
    %3644 = vmatpush1.msra.mxu0 %v2728
    %3645 = vmatprep.subr.mxu0 0.0
    %3646 = vmatpush1.msra.mxu0 %v2727
    %3647 = vmatprep.subr.mxu0 0.0
    %3648 = vmatpush1.msra.mxu0 %v2726
    %3649 = vmatprep.subr.mxu0 0.0
    %3650 = vmatpush1.msra.mxu0 %v2725
    %3651 = vmatprep.subr.mxu0 0.0
    %3652 = vmatpush1.msra.mxu0 %v2724
    %3653 = vmatprep.subr.mxu0 0.0
    %3654 = vmatpush1.msra.mxu0 %v2723
    %3655 = vmatprep.subr.mxu0 0.0
    %3656 = vmatpush2.msra.mxu0 0.0
    %3657 = vmatprep.subr.mxu0 0.0
    %3658 = vmatpush2.msra.mxu0 0.0
    %3659 = vmatprep.subr.mxu0 0.0
    %3660 = vmatpush2.msra.mxu0 0.0
    %3661 = vmatprep.subr.mxu0 0.0
    %3662 = vmatpush2.msra.mxu0 0.0
    %3663 = vmatprep.subr.mxu0 0.0
    %3664 = vmatpush2.msra.mxu0 0.0
    %3665 = vmatprep.subr.mxu0 0.0
    %3666 = vmatpush2.msra.mxu0 0.0
    %3667 = vmatprep.subr.mxu0 0.0
    %3668 = vmatpush2.msra.mxu0 0.0
    %3669 = vmatprep.subr.mxu0 0.0
    %3670 = vmatpush2.msra.mxu0 0.0
    %3671 = vmatprep.subr.mxu0 0.0
    %3672 = vmatpush2.msra.mxu0 0.0
    %3673 = vmatprep.subr.mxu0 0.0
    %3674 = vmatpush2.msra.mxu0 0.0
    %3675 = vmatprep.subr.mxu0 0.0
    %3676 = vmatpush2.msra.mxu0 0.0
    %3677 = vmatprep.subr.mxu0 0.0
    %3678 = vmatpush2.msra.mxu0 0.0
    %3679 = vmatprep.subr.mxu0 0.0
    %3680 = vmatpush2.msra.mxu0 0.0
    %3681 = vmatprep.subr.mxu0 0.0
    %3682 = vmatpush2.msra.mxu0 0.0
    %3683 = vmatprep.subr.mxu0 0.0
    %3684 = vmatpush2.msra.mxu0 0.0
    %3685 = vmatprep.subr.mxu0 0.0
    %3686 = vmatpush2.msra.mxu0 0.0
    %3687 = vmatprep.mubr.f32.mxu0 0.0
    %3688 = vmatmul.mubr.f32.gmra.mxu0 %v3481
    %v3689 = vpop.f32.mrf.mxu0
    %v3690 = vadd.f32 %v2892, %v3689
    %v3691 = vpop.f32.mrf.mxu0
    %3692 = vdwg.mxu0
    %v3693 = vld [vmem:[#allocation2 + $0x6] sm:$0x3]
    %v3694 = vld [vmem:[#allocation2 + $0x8] sm:$0x3]
    %v3695 = vsel %vm156, %v3693, %v3694
    %v3696 = vadd.f32 %v3695, %v3550
    %v3697 = vxor.u32 %v3696, 2147483648
    %v3698 = vmul.f32 %v3697, 1.442695
    %v3699 = vpow.pop %v3698
    %v3700 = vadd.f32 %v3699, 1.0
    %v3701 = vrcp.pop %v3700
    %v3702 = vmul.f32 1.0, %v3701
    %v3703 = vld [vmem:[%s339 + $0x6] sm:$0x3]
    %v3704 = vld [vmem:[%s339 + $0x8] sm:$0x3]
    %v3705 = vsel %vm156, %v3703, %v3704
    %v3706 = vadd.f32 %v3705, %v3620
    %v3707 = vxor.u32 %v3706, 2147483648
    %v3708 = vmul.f32 %v3707, 1.442695
    %v3709 = vpow.pop %v3708
    %v3710 = vadd.f32 %v3709, 1.0
    %v3711 = vrcp.pop %v3710
    %v3712 = vmul.f32 1.0, %v3711
    %v3713 = vld [vmem:[%s428 + $0x6] sm:$0x3]
    %v3714 = vld [vmem:[%s428 + $0x8] sm:$0x3]
    %v3715 = vsel %vm156, %v3713, %v3714
    %v3716 = vmul.f32 %v3702, %v3690
    %v3717 = vadd.f32 %v3715, %v3716
    %v3718 = vtanh.pop %v3717
    %v3719 = vsub.f32 1.0, %v3712
    %v3720 = vmul.f32 %v3719, %v3718
    %v3721 = vmul.f32 %v3712, %v3479
    %v3722 = vadd.f32 %v3720, %v3721
    %v3724 = vsel %vm250, %v3722, 0
    %3726 = vmatprep.subr.mxu0 0.0
    %3727 = vmatpush1.msra.mxu0 0.0
    %3728 = vmatprep.subr.mxu0 0.0
    %3729 = vmatpush1.msra.mxu0 0.0
    %3730 = vmatprep.subr.mxu0 0.0
    %3731 = vmatpush1.msra.mxu0 0.0
    %3732 = vmatprep.subr.mxu0 0.0
    %3733 = vmatpush1.msra.mxu0 0.0
    %3734 = vmatprep.subr.mxu0 0.0
    %3735 = vmatpush1.msra.mxu0 0.0
    %3736 = vmatprep.subr.mxu0 0.0
    %3737 = vmatpush1.msra.mxu0 0.0
    %3738 = vmatprep.subr.mxu0 0.0
    %3739 = vmatpush1.msra.mxu0 0.0
    %3740 = vmatprep.subr.mxu0 0.0
    %3741 = vmatpush1.msra.mxu0 0.0
    %3742 = vmatprep.subr.mxu0 0.0
    %3743 = vmatpush1.msra.mxu0 %v2712
    %3744 = vmatprep.subr.mxu0 0.0
    %3745 = vmatpush1.msra.mxu0 %v2711
    %3746 = vmatprep.subr.mxu0 0.0
    %3747 = vmatpush1.msra.mxu0 %v2710
    %3748 = vmatprep.subr.mxu0 0.0
    %3749 = vmatpush1.msra.mxu0 %v2709
    %3750 = vmatprep.subr.mxu0 0.0
    %3751 = vmatpush1.msra.mxu0 %v2708
    %3752 = vmatprep.subr.mxu0 0.0
    %3753 = vmatpush1.msra.mxu0 %v2707
    %3754 = vmatprep.subr.mxu0 0.0
    %3755 = vmatpush1.msra.mxu0 %v2706
    %3756 = vmatprep.subr.mxu0 0.0
    %3757 = vmatpush1.msra.mxu0 %v2705
    %3758 = vmatprep.subr.mxu0 0.0
    %3759 = vmatpush2.msra.mxu0 0.0
    %3760 = vmatprep.subr.mxu0 0.0
    %3761 = vmatpush2.msra.mxu0 0.0
    %3762 = vmatprep.subr.mxu0 0.0
    %3763 = vmatpush2.msra.mxu0 0.0
    %3764 = vmatprep.subr.mxu0 0.0
    %3765 = vmatpush2.msra.mxu0 0.0
    %3766 = vmatprep.subr.mxu0 0.0
    %3767 = vmatpush2.msra.mxu0 0.0
    %3768 = vmatprep.subr.mxu0 0.0
    %3769 = vmatpush2.msra.mxu0 0.0
    %3770 = vmatprep.subr.mxu0 0.0
    %3771 = vmatpush2.msra.mxu0 0.0
    %3772 = vmatprep.subr.mxu0 0.0
    %3773 = vmatpush2.msra.mxu0 0.0
    %3774 = vmatprep.subr.mxu0 0.0
    %3775 = vmatpush2.msra.mxu0 0.0
    %3776 = vmatprep.subr.mxu0 0.0
    %3777 = vmatpush2.msra.mxu0 0.0
    %3778 = vmatprep.subr.mxu0 0.0
    %3779 = vmatpush2.msra.mxu0 0.0
    %3780 = vmatprep.subr.mxu0 0.0
    %3781 = vmatpush2.msra.mxu0 0.0
    %3782 = vmatprep.subr.mxu0 0.0
    %3783 = vmatpush2.msra.mxu0 0.0
    %3784 = vmatprep.subr.mxu0 0.0
    %3785 = vmatpush2.msra.mxu0 0.0
    %3786 = vmatprep.subr.mxu0 0.0
    %3787 = vmatpush2.msra.mxu0 0.0
    %3788 = vmatprep.subr.mxu0 0.0
    %3789 = vmatpush2.msra.mxu0 0.0
    %3790 = vmatprep.mubr.f32.mxu0 0.0
    %3791 = vmatmul.mubr.f32.gmra.mxu0 %v3724
    %v3792 = vpop.f32.mrf.mxu0
    %v3793 = vadd.f32 %v2740, %v3792
    %v3794 = vpop.f32.mrf.mxu0
    %3795 = vdwg.mxu0
    %3796 = vmatprep.subr.mxu0 0.0
    %3797 = vmatpush1.msra.mxu0 0.0
    %3798 = vmatprep.subr.mxu0 0.0
    %3799 = vmatpush1.msra.mxu0 0.0
    %3800 = vmatprep.subr.mxu0 0.0
    %3801 = vmatpush1.msra.mxu0 0.0
    %3802 = vmatprep.subr.mxu0 0.0
    %3803 = vmatpush1.msra.mxu0 0.0
    %3804 = vmatprep.subr.mxu0 0.0
    %3805 = vmatpush1.msra.mxu0 0.0
    %3806 = vmatprep.subr.mxu0 0.0
    %3807 = vmatpush1.msra.mxu0 0.0
    %3808 = vmatprep.subr.mxu0 0.0
    %3809 = vmatpush1.msra.mxu0 0.0
    %3810 = vmatprep.subr.mxu0 0.0
    %3811 = vmatpush1.msra.mxu0 0.0
    %3812 = vmatprep.subr.mxu0 0.0
    %3813 = vmatpush1.msra.mxu0 %v2721
    %3814 = vmatprep.subr.mxu0 0.0
    %3815 = vmatpush1.msra.mxu0 %v2720
    %3816 = vmatprep.subr.mxu0 0.0
    %3817 = vmatpush1.msra.mxu0 %v2719
    %3818 = vmatprep.subr.mxu0 0.0
    %3819 = vmatpush1.msra.mxu0 %v2718
    %3820 = vmatprep.subr.mxu0 0.0
    %3821 = vmatpush1.msra.mxu0 %v2717
    %3822 = vmatprep.subr.mxu0 0.0
    %3823 = vmatpush1.msra.mxu0 %v2716
    %3824 = vmatprep.subr.mxu0 0.0
    %3825 = vmatpush1.msra.mxu0 %v2715
    %3826 = vmatprep.subr.mxu0 0.0
    %3827 = vmatpush1.msra.mxu0 %v2714
    %3828 = vmatprep.subr.mxu0 0.0
    %3829 = vmatpush2.msra.mxu0 0.0
    %3830 = vmatprep.subr.mxu0 0.0
    %3831 = vmatpush2.msra.mxu0 0.0
    %3832 = vmatprep.subr.mxu0 0.0
    %3833 = vmatpush2.msra.mxu0 0.0
    %3834 = vmatprep.subr.mxu0 0.0
    %3835 = vmatpush2.msra.mxu0 0.0
    %3836 = vmatprep.subr.mxu0 0.0
    %3837 = vmatpush2.msra.mxu0 0.0
    %3838 = vmatprep.subr.mxu0 0.0
    %3839 = vmatpush2.msra.mxu0 0.0
    %3840 = vmatprep.subr.mxu0 0.0
    %3841 = vmatpush2.msra.mxu0 0.0
    %3842 = vmatprep.subr.mxu0 0.0
    %3843 = vmatpush2.msra.mxu0 0.0
    %3844 = vmatprep.subr.mxu0 0.0
    %3845 = vmatpush2.msra.mxu0 0.0
    %3846 = vmatprep.subr.mxu0 0.0
    %3847 = vmatpush2.msra.mxu0 0.0
    %3848 = vmatprep.subr.mxu0 0.0
    %3849 = vmatpush2.msra.mxu0 0.0
    %3850 = vmatprep.subr.mxu0 0.0
    %3851 = vmatpush2.msra.mxu0 0.0
    %3852 = vmatprep.subr.mxu0 0.0
    %3853 = vmatpush2.msra.mxu0 0.0
    %3854 = vmatprep.subr.mxu0 0.0
    %3855 = vmatpush2.msra.mxu0 0.0
    %3856 = vmatprep.subr.mxu0 0.0
    %3857 = vmatpush2.msra.mxu0 0.0
    %3858 = vmatprep.subr.mxu0 0.0
    %3859 = vmatpush2.msra.mxu0 0.0
    %3860 = vmatprep.mubr.f32.mxu0 0.0
    %3861 = vmatmul.mubr.f32.gmra.mxu0 %v3724
    %v3862 = vpop.f32.mrf.mxu0
    %v3863 = vadd.f32 %v2816, %v3862
    %v3864 = vpop.f32.mrf.mxu0
    %3865 = vdwg.mxu0
    %3866 = vmatprep.subr.mxu0 0.0
    %3867 = vmatpush1.msra.mxu0 0.0
    %3868 = vmatprep.subr.mxu0 0.0
    %3869 = vmatpush1.msra.mxu0 0.0
    %3870 = vmatprep.subr.mxu0 0.0
    %3871 = vmatpush1.msra.mxu0 0.0
    %3872 = vmatprep.subr.mxu0 0.0
    %3873 = vmatpush1.msra.mxu0 0.0
    %3874 = vmatprep.subr.mxu0 0.0
    %3875 = vmatpush1.msra.mxu0 0.0
    %3876 = vmatprep.subr.mxu0 0.0
    %3877 = vmatpush1.msra.mxu0 0.0
    %3878 = vmatprep.subr.mxu0 0.0
    %3879 = vmatpush1.msra.mxu0 0.0
    %3880 = vmatprep.subr.mxu0 0.0
    %3881 = vmatpush1.msra.mxu0 0.0
    %3882 = vmatprep.subr.mxu0 0.0
    %3883 = vmatpush1.msra.mxu0 %v2730
    %3884 = vmatprep.subr.mxu0 0.0
    %3885 = vmatpush1.msra.mxu0 %v2729
    %3886 = vmatprep.subr.mxu0 0.0
    %3887 = vmatpush1.msra.mxu0 %v2728
    %3888 = vmatprep.subr.mxu0 0.0
    %3889 = vmatpush1.msra.mxu0 %v2727
    %3890 = vmatprep.subr.mxu0 0.0
    %3891 = vmatpush1.msra.mxu0 %v2726
    %3892 = vmatprep.subr.mxu0 0.0
    %3893 = vmatpush1.msra.mxu0 %v2725
    %3894 = vmatprep.subr.mxu0 0.0
    %3895 = vmatpush1.msra.mxu0 %v2724
    %3896 = vmatprep.subr.mxu0 0.0
    %3897 = vmatpush1.msra.mxu0 %v2723
    %3898 = vmatprep.subr.mxu0 0.0
    %3899 = vmatpush2.msra.mxu0 0.0
    %3900 = vmatprep.subr.mxu0 0.0
    %3901 = vmatpush2.msra.mxu0 0.0
    %3902 = vmatprep.subr.mxu0 0.0
    %3903 = vmatpush2.msra.mxu0 0.0
    %3904 = vmatprep.subr.mxu0 0.0
    %3905 = vmatpush2.msra.mxu0 0.0
    %3906 = vmatprep.subr.mxu0 0.0
    %3907 = vmatpush2.msra.mxu0 0.0
    %3908 = vmatprep.subr.mxu0 0.0
    %3909 = vmatpush2.msra.mxu0 0.0
    %3910 = vmatprep.subr.mxu0 0.0
    %3911 = vmatpush2.msra.mxu0 0.0
    %3912 = vmatprep.subr.mxu0 0.0
    %3913 = vmatpush2.msra.mxu0 0.0
    %3914 = vmatprep.subr.mxu0 0.0
    %3915 = vmatpush2.msra.mxu0 0.0
    %3916 = vmatprep.subr.mxu0 0.0
    %3917 = vmatpush2.msra.mxu0 0.0
    %3918 = vmatprep.subr.mxu0 0.0
    %3919 = vmatpush2.msra.mxu0 0.0
    %3920 = vmatprep.subr.mxu0 0.0
    %3921 = vmatpush2.msra.mxu0 0.0
    %3922 = vmatprep.subr.mxu0 0.0
    %3923 = vmatpush2.msra.mxu0 0.0
    %3924 = vmatprep.subr.mxu0 0.0
    %3925 = vmatpush2.msra.mxu0 0.0
    %3926 = vmatprep.subr.mxu0 0.0
    %3927 = vmatpush2.msra.mxu0 0.0
    %3928 = vmatprep.subr.mxu0 0.0
    %3929 = vmatpush2.msra.mxu0 0.0
    %3930 = vmatprep.mubr.f32.mxu0 0.0
    %3931 = vmatmul.mubr.f32.gmra.mxu0 %v3724
    %v3932 = vpop.f32.mrf.mxu0
    %v3933 = vadd.f32 %v2892, %v3932
    %v3934 = vpop.f32.mrf.mxu0
    %3935 = vdwg.mxu0
    %v3936 = vsel %vm156, %v3694, %v3693
    %v3937 = vadd.f32 %v3936, %v3793
    %v3938 = vxor.u32 %v3937, 2147483648
    %v3939 = vmul.f32 %v3938, 1.442695
    %v3940 = vpow.pop %v3939
    %v3941 = vadd.f32 %v3940, 1.0
    %v3942 = vrcp.pop %v3941
    %v3943 = vmul.f32 1.0, %v3942
    %v3944 = vsel %vm156, %v3704, %v3703
    %v3945 = vadd.f32 %v3944, %v3863
    %v3946 = vxor.u32 %v3945, 2147483648
    %v3947 = vmul.f32 %v3946, 1.442695
    %v3948 = vpow.pop %v3947
    %v3949 = vadd.f32 %v3948, 1.0
    %v3950 = vrcp.pop %v3949
    %v3951 = vmul.f32 1.0, %v3950
    %v3952 = vsel %vm156, %v3714, %v3713
    %v3953 = vmul.f32 %v3943, %v3933
    %v3954 = vadd.f32 %v3952, %v3953
    %v3955 = vtanh.pop %v3954
    %v3956 = vsub.f32 1.0, %v3951
    %v3957 = vmul.f32 %v3956, %v3955
    %v3958 = vmul.f32 %v3951, %v3722
    %v3959 = vadd.f32 %v3957, %v3958
    %v3961 = vsel %vm250, %v3959, 0
    %3963 = vmatprep.subr.mxu0 0.0
    %3964 = vmatpush1.msra.mxu0 0.0
    %3965 = vmatprep.subr.mxu0 0.0
    %3966 = vmatpush1.msra.mxu0 0.0
    %3967 = vmatprep.subr.mxu0 0.0
    %3968 = vmatpush1.msra.mxu0 0.0
    %3969 = vmatprep.subr.mxu0 0.0
    %3970 = vmatpush1.msra.mxu0 0.0
    %3971 = vmatprep.subr.mxu0 0.0
    %3972 = vmatpush1.msra.mxu0 0.0
    %3973 = vmatprep.subr.mxu0 0.0
    %3974 = vmatpush1.msra.mxu0 0.0
    %3975 = vmatprep.subr.mxu0 0.0
    %3976 = vmatpush1.msra.mxu0 0.0
    %3977 = vmatprep.subr.mxu0 0.0
    %3978 = vmatpush1.msra.mxu0 0.0
    %3979 = vmatprep.subr.mxu0 0.0
    %3980 = vmatpush1.msra.mxu0 %v2712
    %3981 = vmatprep.subr.mxu0 0.0
    %3982 = vmatpush1.msra.mxu0 %v2711
    %3983 = vmatprep.subr.mxu0 0.0
    %3984 = vmatpush1.msra.mxu0 %v2710
    %3985 = vmatprep.subr.mxu0 0.0
    %3986 = vmatpush1.msra.mxu0 %v2709
    %3987 = vmatprep.subr.mxu0 0.0
    %3988 = vmatpush1.msra.mxu0 %v2708
    %3989 = vmatprep.subr.mxu0 0.0
    %3990 = vmatpush1.msra.mxu0 %v2707
    %3991 = vmatprep.subr.mxu0 0.0
    %3992 = vmatpush1.msra.mxu0 %v2706
    %3993 = vmatprep.subr.mxu0 0.0
    %3994 = vmatpush1.msra.mxu0 %v2705
    %3995 = vmatprep.subr.mxu0 0.0
    %3996 = vmatpush2.msra.mxu0 0.0
    %3997 = vmatprep.subr.mxu0 0.0
    %3998 = vmatpush2.msra.mxu0 0.0
    %3999 = vmatprep.subr.mxu0 0.0
    %4000 = vmatpush2.msra.mxu0 0.0
    %4001 = vmatprep.subr.mxu0 0.0
    %4002 = vmatpush2.msra.mxu0 0.0
    %4003 = vmatprep.subr.mxu0 0.0
    %4004 = vmatpush2.msra.mxu0 0.0
    %4005 = vmatprep.subr.mxu0 0.0
    %4006 = vmatpush2.msra.mxu0 0.0
    %4007 = vmatprep.subr.mxu0 0.0
    %4008 = vmatpush2.msra.mxu0 0.0
    %4009 = vmatprep.subr.mxu0 0.0
    %4010 = vmatpush2.msra.mxu0 0.0
    %4011 = vmatprep.subr.mxu0 0.0
    %4012 = vmatpush2.msra.mxu0 0.0
    %4013 = vmatprep.subr.mxu0 0.0
    %4014 = vmatpush2.msra.mxu0 0.0
    %4015 = vmatprep.subr.mxu0 0.0
    %4016 = vmatpush2.msra.mxu0 0.0
    %4017 = vmatprep.subr.mxu0 0.0
    %4018 = vmatpush2.msra.mxu0 0.0
    %4019 = vmatprep.subr.mxu0 0.0
    %4020 = vmatpush2.msra.mxu0 0.0
    %4021 = vmatprep.subr.mxu0 0.0
    %4022 = vmatpush2.msra.mxu0 0.0
    %4023 = vmatprep.subr.mxu0 0.0
    %4024 = vmatpush2.msra.mxu0 0.0
    %4025 = vmatprep.subr.mxu0 0.0
    %4026 = vmatpush2.msra.mxu0 0.0
    %4027 = vmatprep.mubr.f32.mxu0 0.0
    %4028 = vmatmul.mubr.f32.gmra.mxu0 %v3961
    %v4029 = vpop.f32.mrf.mxu0
    %v4030 = vadd.f32 %v2740, %v4029
    %v4031 = vpop.f32.mrf.mxu0
    %4032 = vdwg.mxu0
    %4033 = vmatprep.subr.mxu0 0.0
    %4034 = vmatpush1.msra.mxu0 0.0
    %4035 = vmatprep.subr.mxu0 0.0
    %4036 = vmatpush1.msra.mxu0 0.0
    %4037 = vmatprep.subr.mxu0 0.0
    %4038 = vmatpush1.msra.mxu0 0.0
    %4039 = vmatprep.subr.mxu0 0.0
    %4040 = vmatpush1.msra.mxu0 0.0
    %4041 = vmatprep.subr.mxu0 0.0
    %4042 = vmatpush1.msra.mxu0 0.0
    %4043 = vmatprep.subr.mxu0 0.0
    %4044 = vmatpush1.msra.mxu0 0.0
    %4045 = vmatprep.subr.mxu0 0.0
    %4046 = vmatpush1.msra.mxu0 0.0
    %4047 = vmatprep.subr.mxu0 0.0
    %4048 = vmatpush1.msra.mxu0 0.0
    %4049 = vmatprep.subr.mxu0 0.0
    %4050 = vmatpush1.msra.mxu0 %v2721
    %4051 = vmatprep.subr.mxu0 0.0
    %4052 = vmatpush1.msra.mxu0 %v2720
    %4053 = vmatprep.subr.mxu0 0.0
    %4054 = vmatpush1.msra.mxu0 %v2719
    %4055 = vmatprep.subr.mxu0 0.0
    %4056 = vmatpush1.msra.mxu0 %v2718
    %4057 = vmatprep.subr.mxu0 0.0
    %4058 = vmatpush1.msra.mxu0 %v2717
    %4059 = vmatprep.subr.mxu0 0.0
    %4060 = vmatpush1.msra.mxu0 %v2716
    %4061 = vmatprep.subr.mxu0 0.0
    %4062 = vmatpush1.msra.mxu0 %v2715
    %4063 = vmatprep.subr.mxu0 0.0
    %4064 = vmatpush1.msra.mxu0 %v2714
    %4065 = vmatprep.subr.mxu0 0.0
    %4066 = vmatpush2.msra.mxu0 0.0
    %4067 = vmatprep.subr.mxu0 0.0
    %4068 = vmatpush2.msra.mxu0 0.0
    %4069 = vmatprep.subr.mxu0 0.0
    %4070 = vmatpush2.msra.mxu0 0.0
    %4071 = vmatprep.subr.mxu0 0.0
    %4072 = vmatpush2.msra.mxu0 0.0
    %4073 = vmatprep.subr.mxu0 0.0
    %4074 = vmatpush2.msra.mxu0 0.0
    %4075 = vmatprep.subr.mxu0 0.0
    %4076 = vmatpush2.msra.mxu0 0.0
    %4077 = vmatprep.subr.mxu0 0.0
    %4078 = vmatpush2.msra.mxu0 0.0
    %4079 = vmatprep.subr.mxu0 0.0
    %4080 = vmatpush2.msra.mxu0 0.0
    %4081 = vmatprep.subr.mxu0 0.0
    %4082 = vmatpush2.msra.mxu0 0.0
    %4083 = vmatprep.subr.mxu0 0.0
    %4084 = vmatpush2.msra.mxu0 0.0
    %4085 = vmatprep.subr.mxu0 0.0
    %4086 = vmatpush2.msra.mxu0 0.0
    %4087 = vmatprep.subr.mxu0 0.0
    %4088 = vmatpush2.msra.mxu0 0.0
    %4089 = vmatprep.subr.mxu0 0.0
    %4090 = vmatpush2.msra.mxu0 0.0
    %4091 = vmatprep.subr.mxu0 0.0
    %4092 = vmatpush2.msra.mxu0 0.0
    %4093 = vmatprep.subr.mxu0 0.0
    %4094 = vmatpush2.msra.mxu0 0.0
    %4095 = vmatprep.subr.mxu0 0.0
    %4096 = vmatpush2.msra.mxu0 0.0
    %4097 = vmatprep.mubr.f32.mxu0 0.0
    %4098 = vmatmul.mubr.f32.gmra.mxu0 %v3961
    %v4099 = vpop.f32.mrf.mxu0
    %v4100 = vadd.f32 %v2816, %v4099
    %v4101 = vpop.f32.mrf.mxu0
    %4102 = vdwg.mxu0
    %4103 = vmatprep.subr.mxu0 0.0
    %4104 = vmatpush1.msra.mxu0 0.0
    %4105 = vmatprep.subr.mxu0 0.0
    %4106 = vmatpush1.msra.mxu0 0.0
    %4107 = vmatprep.subr.mxu0 0.0
    %4108 = vmatpush1.msra.mxu0 0.0
    %4109 = vmatprep.subr.mxu0 0.0
    %4110 = vmatpush1.msra.mxu0 0.0
    %4111 = vmatprep.subr.mxu0 0.0
    %4112 = vmatpush1.msra.mxu0 0.0
    %4113 = vmatprep.subr.mxu0 0.0
    %4114 = vmatpush1.msra.mxu0 0.0
    %4115 = vmatprep.subr.mxu0 0.0
    %4116 = vmatpush1.msra.mxu0 0.0
    %4117 = vmatprep.subr.mxu0 0.0
    %4118 = vmatpush1.msra.mxu0 0.0
    %4119 = vmatprep.subr.mxu0 0.0
    %4120 = vmatpush1.msra.mxu0 %v2730
    %4121 = vmatprep.subr.mxu0 0.0
    %4122 = vmatpush1.msra.mxu0 %v2729
    %4123 = vmatprep.subr.mxu0 0.0
    %4124 = vmatpush1.msra.mxu0 %v2728
    %4125 = vmatprep.subr.mxu0 0.0
    %4126 = vmatpush1.msra.mxu0 %v2727
    %4127 = vmatprep.subr.mxu0 0.0
    %4128 = vmatpush1.msra.mxu0 %v2726
    %4129 = vmatprep.subr.mxu0 0.0
    %4130 = vmatpush1.msra.mxu0 %v2725
    %4131 = vmatprep.subr.mxu0 0.0
    %4132 = vmatpush1.msra.mxu0 %v2724
    %4133 = vmatprep.subr.mxu0 0.0
    %4134 = vmatpush1.msra.mxu0 %v2723
    %4135 = vmatprep.subr.mxu0 0.0
    %4136 = vmatpush2.msra.mxu0 0.0
    %4137 = vmatprep.subr.mxu0 0.0
    %4138 = vmatpush2.msra.mxu0 0.0
    %4139 = vmatprep.subr.mxu0 0.0
    %4140 = vmatpush2.msra.mxu0 0.0
    %4141 = vmatprep.subr.mxu0 0.0
    %4142 = vmatpush2.msra.mxu0 0.0
    %4143 = vmatprep.subr.mxu0 0.0
    %4144 = vmatpush2.msra.mxu0 0.0
    %4145 = vmatprep.subr.mxu0 0.0
    %4146 = vmatpush2.msra.mxu0 0.0
    %4147 = vmatprep.subr.mxu0 0.0
    %4148 = vmatpush2.msra.mxu0 0.0
    %4149 = vmatprep.subr.mxu0 0.0
    %4150 = vmatpush2.msra.mxu0 0.0
    %4151 = vmatprep.subr.mxu0 0.0
    %4152 = vmatpush2.msra.mxu0 0.0
    %4153 = vmatprep.subr.mxu0 0.0
    %4154 = vmatpush2.msra.mxu0 0.0
    %4155 = vmatprep.subr.mxu0 0.0
    %4156 = vmatpush2.msra.mxu0 0.0
    %4157 = vmatprep.subr.mxu0 0.0
    %4158 = vmatpush2.msra.mxu0 0.0
    %4159 = vmatprep.subr.mxu0 0.0
    %4160 = vmatpush2.msra.mxu0 0.0
    %4161 = vmatprep.subr.mxu0 0.0
    %4162 = vmatpush2.msra.mxu0 0.0
    %4163 = vmatprep.subr.mxu0 0.0
    %4164 = vmatpush2.msra.mxu0 0.0
    %4165 = vmatprep.subr.mxu0 0.0
    %4166 = vmatpush2.msra.mxu0 0.0
    %4167 = vmatprep.mubr.f32.mxu0 0.0
    %4168 = vmatmul.mubr.f32.gmra.mxu0 %v3961
    %v4169 = vpop.f32.mrf.mxu0
    %v4170 = vadd.f32 %v2892, %v4169
    %v4171 = vpop.f32.mrf.mxu0
    %4172 = vdwg.mxu0
    %v4173 = vsel %vm156, %v3451, %v3450
    %v4174 = vadd.f32 %v4173, %v4030
    %v4175 = vxor.u32 %v4174, 2147483648
    %v4176 = vmul.f32 %v4175, 1.442695
    %v4177 = vpow.pop %v4176
    %v4178 = vadd.f32 %v4177, 1.0
    %v4179 = vrcp.pop %v4178
    %v4180 = vmul.f32 1.0, %v4179
    %v4181 = vsel %vm156, %v3461, %v3460
    %v4182 = vadd.f32 %v4181, %v4100
    %v4183 = vxor.u32 %v4182, 2147483648
    %v4184 = vmul.f32 %v4183, 1.442695
    %v4185 = vpow.pop %v4184
    %v4186 = vadd.f32 %v4185, 1.0
    %v4187 = vrcp.pop %v4186
    %v4188 = vmul.f32 1.0, %v4187
    %v4189 = vsel %vm156, %v3471, %v3470
    %v4190 = vmul.f32 %v4180, %v4170
    %v4191 = vadd.f32 %v4189, %v4190
    %v4192 = vtanh.pop %v4191
    %v4193 = vsub.f32 1.0, %v4188
    %v4194 = vmul.f32 %v4193, %v4192
    %v4195 = vmul.f32 %v4188, %v3959
    %v4196 = vadd.f32 %v4194, %v4195
    %v4198 = vsel %vm250, %v4196, 0
    %4200 = vmatprep.subr.mxu0 0.0
    %4201 = vmatpush1.msra.mxu0 0.0
    %4202 = vmatprep.subr.mxu0 0.0
    %4203 = vmatpush1.msra.mxu0 0.0
    %4204 = vmatprep.subr.mxu0 0.0
    %4205 = vmatpush1.msra.mxu0 0.0
    %4206 = vmatprep.subr.mxu0 0.0
    %4207 = vmatpush1.msra.mxu0 0.0
    %4208 = vmatprep.subr.mxu0 0.0
    %4209 = vmatpush1.msra.mxu0 0.0
    %4210 = vmatprep.subr.mxu0 0.0
    %4211 = vmatpush1.msra.mxu0 0.0
    %4212 = vmatprep.subr.mxu0 0.0
    %4213 = vmatpush1.msra.mxu0 0.0
    %4214 = vmatprep.subr.mxu0 0.0
    %4215 = vmatpush1.msra.mxu0 0.0
    %4216 = vmatprep.subr.mxu0 0.0
    %4217 = vmatpush1.msra.mxu0 %v2712
    %4218 = vmatprep.subr.mxu0 0.0
    %4219 = vmatpush1.msra.mxu0 %v2711
    %4220 = vmatprep.subr.mxu0 0.0
    %4221 = vmatpush1.msra.mxu0 %v2710
    %4222 = vmatprep.subr.mxu0 0.0
    %4223 = vmatpush1.msra.mxu0 %v2709
    %4224 = vmatprep.subr.mxu0 0.0
    %4225 = vmatpush1.msra.mxu0 %v2708
    %4226 = vmatprep.subr.mxu0 0.0
    %4227 = vmatpush1.msra.mxu0 %v2707
    %4228 = vmatprep.subr.mxu0 0.0
    %4229 = vmatpush1.msra.mxu0 %v2706
    %4230 = vmatprep.subr.mxu0 0.0
    %4231 = vmatpush1.msra.mxu0 %v2705
    %4232 = vmatprep.subr.mxu0 0.0
    %4233 = vmatpush2.msra.mxu0 0.0
    %4234 = vmatprep.subr.mxu0 0.0
    %4235 = vmatpush2.msra.mxu0 0.0
    %4236 = vmatprep.subr.mxu0 0.0
    %4237 = vmatpush2.msra.mxu0 0.0
    %4238 = vmatprep.subr.mxu0 0.0
    %4239 = vmatpush2.msra.mxu0 0.0
    %4240 = vmatprep.subr.mxu0 0.0
    %4241 = vmatpush2.msra.mxu0 0.0
    %4242 = vmatprep.subr.mxu0 0.0
    %4243 = vmatpush2.msra.mxu0 0.0
    %4244 = vmatprep.subr.mxu0 0.0
    %4245 = vmatpush2.msra.mxu0 0.0
    %4246 = vmatprep.subr.mxu0 0.0
    %4247 = vmatpush2.msra.mxu0 0.0
    %4248 = vmatprep.subr.mxu0 0.0
    %4249 = vmatpush2.msra.mxu0 0.0
    %4250 = vmatprep.subr.mxu0 0.0
    %4251 = vmatpush2.msra.mxu0 0.0
    %4252 = vmatprep.subr.mxu0 0.0
    %4253 = vmatpush2.msra.mxu0 0.0
    %4254 = vmatprep.subr.mxu0 0.0
    %4255 = vmatpush2.msra.mxu0 0.0
    %4256 = vmatprep.subr.mxu0 0.0
    %4257 = vmatpush2.msra.mxu0 0.0
    %4258 = vmatprep.subr.mxu0 0.0
    %4259 = vmatpush2.msra.mxu0 0.0
    %4260 = vmatprep.subr.mxu0 0.0
    %4261 = vmatpush2.msra.mxu0 0.0
    %4262 = vmatprep.subr.mxu0 0.0
    %4263 = vmatpush2.msra.mxu0 0.0
    %4264 = vmatprep.mubr.f32.mxu0 0.0
    %4265 = vmatmul.mubr.f32.gmra.mxu0 %v4198
    %v4266 = vpop.f32.mrf.mxu0
    %v4267 = vadd.f32 %v2740, %v4266
    %v4268 = vpop.f32.mrf.mxu0
    %4269 = vdwg.mxu0
    %4270 = vmatprep.subr.mxu0 0.0
    %4271 = vmatpush1.msra.mxu0 0.0
    %4272 = vmatprep.subr.mxu0 0.0
    %4273 = vmatpush1.msra.mxu0 0.0
    %4274 = vmatprep.subr.mxu0 0.0
    %4275 = vmatpush1.msra.mxu0 0.0
    %4276 = vmatprep.subr.mxu0 0.0
    %4277 = vmatpush1.msra.mxu0 0.0
    %4278 = vmatprep.subr.mxu0 0.0
    %4279 = vmatpush1.msra.mxu0 0.0
    %4280 = vmatprep.subr.mxu0 0.0
    %4281 = vmatpush1.msra.mxu0 0.0
    %4282 = vmatprep.subr.mxu0 0.0
    %4283 = vmatpush1.msra.mxu0 0.0
    %4284 = vmatprep.subr.mxu0 0.0
    %4285 = vmatpush1.msra.mxu0 0.0
    %4286 = vmatprep.subr.mxu0 0.0
    %4287 = vmatpush1.msra.mxu0 %v2721
    %4288 = vmatprep.subr.mxu0 0.0
    %4289 = vmatpush1.msra.mxu0 %v2720
    %4290 = vmatprep.subr.mxu0 0.0
    %4291 = vmatpush1.msra.mxu0 %v2719
    %4292 = vmatprep.subr.mxu0 0.0
    %4293 = vmatpush1.msra.mxu0 %v2718
    %4294 = vmatprep.subr.mxu0 0.0
    %4295 = vmatpush1.msra.mxu0 %v2717
    %4296 = vmatprep.subr.mxu0 0.0
    %4297 = vmatpush1.msra.mxu0 %v2716
    %4298 = vmatprep.subr.mxu0 0.0
    %4299 = vmatpush1.msra.mxu0 %v2715
    %4300 = vmatprep.subr.mxu0 0.0
    %4301 = vmatpush1.msra.mxu0 %v2714
    %4302 = vmatprep.subr.mxu0 0.0
    %4303 = vmatpush2.msra.mxu0 0.0
    %4304 = vmatprep.subr.mxu0 0.0
    %4305 = vmatpush2.msra.mxu0 0.0
    %4306 = vmatprep.subr.mxu0 0.0
    %4307 = vmatpush2.msra.mxu0 0.0
    %4308 = vmatprep.subr.mxu0 0.0
    %4309 = vmatpush2.msra.mxu0 0.0
    %4310 = vmatprep.subr.mxu0 0.0
    %4311 = vmatpush2.msra.mxu0 0.0
    %4312 = vmatprep.subr.mxu0 0.0
    %4313 = vmatpush2.msra.mxu0 0.0
    %4314 = vmatprep.subr.mxu0 0.0
    %4315 = vmatpush2.msra.mxu0 0.0
    %4316 = vmatprep.subr.mxu0 0.0
    %4317 = vmatpush2.msra.mxu0 0.0
    %4318 = vmatprep.subr.mxu0 0.0
    %4319 = vmatpush2.msra.mxu0 0.0
    %4320 = vmatprep.subr.mxu0 0.0
    %4321 = vmatpush2.msra.mxu0 0.0
    %4322 = vmatprep.subr.mxu0 0.0
    %4323 = vmatpush2.msra.mxu0 0.0
    %4324 = vmatprep.subr.mxu0 0.0
    %4325 = vmatpush2.msra.mxu0 0.0
    %4326 = vmatprep.subr.mxu0 0.0
    %4327 = vmatpush2.msra.mxu0 0.0
    %4328 = vmatprep.subr.mxu0 0.0
    %4329 = vmatpush2.msra.mxu0 0.0
    %4330 = vmatprep.subr.mxu0 0.0
    %4331 = vmatpush2.msra.mxu0 0.0
    %4332 = vmatprep.subr.mxu0 0.0
    %4333 = vmatpush2.msra.mxu0 0.0
    %4334 = vmatprep.mubr.f32.mxu0 0.0
    %4335 = vmatmul.mubr.f32.gmra.mxu0 %v4198
    %v4336 = vpop.f32.mrf.mxu0
    %v4337 = vadd.f32 %v2816, %v4336
    %v4338 = vpop.f32.mrf.mxu0
    %4339 = vdwg.mxu0
    %4340 = vmatprep.subr.mxu0 0.0
    %4341 = vmatpush1.msra.mxu0 0.0
    %4342 = vmatprep.subr.mxu0 0.0
    %4343 = vmatpush1.msra.mxu0 0.0
    %4344 = vmatprep.subr.mxu0 0.0
    %4345 = vmatpush1.msra.mxu0 0.0
    %4346 = vmatprep.subr.mxu0 0.0
    %4347 = vmatpush1.msra.mxu0 0.0
    %4348 = vmatprep.subr.mxu0 0.0
    %4349 = vmatpush1.msra.mxu0 0.0
    %4350 = vmatprep.subr.mxu0 0.0
    %4351 = vmatpush1.msra.mxu0 0.0
    %4352 = vmatprep.subr.mxu0 0.0
    %4353 = vmatpush1.msra.mxu0 0.0
    %4354 = vmatprep.subr.mxu0 0.0
    %4355 = vmatpush1.msra.mxu0 0.0
    %4356 = vmatprep.subr.mxu0 0.0
    %4357 = vmatpush1.msra.mxu0 %v2730
    %4358 = vmatprep.subr.mxu0 0.0
    %4359 = vmatpush1.msra.mxu0 %v2729
    %4360 = vmatprep.subr.mxu0 0.0
    %4361 = vmatpush1.msra.mxu0 %v2728
    %4362 = vmatprep.subr.mxu0 0.0
    %4363 = vmatpush1.msra.mxu0 %v2727
    %4364 = vmatprep.subr.mxu0 0.0
    %4365 = vmatpush1.msra.mxu0 %v2726
    %4366 = vmatprep.subr.mxu0 0.0
    %4367 = vmatpush1.msra.mxu0 %v2725
    %4368 = vmatprep.subr.mxu0 0.0
    %4369 = vmatpush1.msra.mxu0 %v2724
    %4370 = vmatprep.subr.mxu0 0.0
    %4371 = vmatpush1.msra.mxu0 %v2723
    %4372 = vmatprep.subr.mxu0 0.0
    %4373 = vmatpush2.msra.mxu0 0.0
    %4374 = vmatprep.subr.mxu0 0.0
    %4375 = vmatpush2.msra.mxu0 0.0
    %4376 = vmatprep.subr.mxu0 0.0
    %4377 = vmatpush2.msra.mxu0 0.0
    %4378 = vmatprep.subr.mxu0 0.0
    %4379 = vmatpush2.msra.mxu0 0.0
    %4380 = vmatprep.subr.mxu0 0.0
    %4381 = vmatpush2.msra.mxu0 0.0
    %4382 = vmatprep.subr.mxu0 0.0
    %4383 = vmatpush2.msra.mxu0 0.0
    %4384 = vmatprep.subr.mxu0 0.0
    %4385 = vmatpush2.msra.mxu0 0.0
    %4386 = vmatprep.subr.mxu0 0.0
    %4387 = vmatpush2.msra.mxu0 0.0
    %4388 = vmatprep.subr.mxu0 0.0
    %4389 = vmatpush2.msra.mxu0 0.0
    %4390 = vmatprep.subr.mxu0 0.0
    %4391 = vmatpush2.msra.mxu0 0.0
    %4392 = vmatprep.subr.mxu0 0.0
    %4393 = vmatpush2.msra.mxu0 0.0
    %4394 = vmatprep.subr.mxu0 0.0
    %4395 = vmatpush2.msra.mxu0 0.0
    %4396 = vmatprep.subr.mxu0 0.0
    %4397 = vmatpush2.msra.mxu0 0.0
    %4398 = vmatprep.subr.mxu0 0.0
    %4399 = vmatpush2.msra.mxu0 0.0
    %4400 = vmatprep.subr.mxu0 0.0
    %4401 = vmatpush2.msra.mxu0 0.0
    %4402 = vmatprep.subr.mxu0 0.0
    %4403 = vmatpush2.msra.mxu0 0.0
    %4404 = vmatprep.mubr.f32.mxu0 0.0
    %4405 = vmatmul.mubr.f32.gmra.mxu0 %v4198
    %v4406 = vpop.f32.mrf.mxu0
    %v4407 = vadd.f32 %v2892, %v4406
    %v4408 = vpop.f32.mrf.mxu0
    %4409 = vdwg.mxu0
    %v4410 = vsel %vm156, %v3208, %v3207
    %v4411 = vadd.f32 %v4410, %v4267
    %v4412 = vxor.u32 %v4411, 2147483648
    %v4413 = vmul.f32 %v4412, 1.442695
    %v4414 = vpow.pop %v4413
    %v4415 = vadd.f32 %v4414, 1.0
    %v4416 = vrcp.pop %v4415
    %v4417 = vmul.f32 1.0, %v4416
    %v4418 = vsel %vm156, %v3218, %v3217
    %v4419 = vadd.f32 %v4418, %v4337
    %v4420 = vxor.u32 %v4419, 2147483648
    %v4421 = vmul.f32 %v4420, 1.442695
    %v4422 = vpow.pop %v4421
    %v4423 = vadd.f32 %v4422, 1.0
    %v4424 = vrcp.pop %v4423
    %v4425 = vmul.f32 1.0, %v4424
    %v4426 = vsel %vm156, %v3228, %v3227
    %v4427 = vmul.f32 %v4417, %v4407
    %v4428 = vadd.f32 %v4426, %v4427
    %v4429 = vtanh.pop %v4428
    %v4430 = vsub.f32 1.0, %v4425
    %v4431 = vmul.f32 %v4430, %v4429
    %v4432 = vmul.f32 %v4425, %v4196
    %v4433 = vadd.f32 %v4431, %v4432
    %v4435 = vsel %vm250, %v4433, 0
    %4437 = vmatprep.subr.mxu0 0.0
    %4438 = vmatpush1.msra.mxu0 0.0
    %4439 = vmatprep.subr.mxu0 0.0
    %4440 = vmatpush1.msra.mxu0 0.0
    %4441 = vmatprep.subr.mxu0 0.0
    %4442 = vmatpush1.msra.mxu0 0.0
    %4443 = vmatprep.subr.mxu0 0.0
    %4444 = vmatpush1.msra.mxu0 0.0
    %4445 = vmatprep.subr.mxu0 0.0
    %4446 = vmatpush1.msra.mxu0 0.0
    %4447 = vmatprep.subr.mxu0 0.0
    %4448 = vmatpush1.msra.mxu0 0.0
    %4449 = vmatprep.subr.mxu0 0.0
    %4450 = vmatpush1.msra.mxu0 0.0
    %4451 = vmatprep.subr.mxu0 0.0
    %4452 = vmatpush1.msra.mxu0 0.0
    %4453 = vmatprep.subr.mxu0 0.0
    %4454 = vmatpush1.msra.mxu0 %v2712
    %4455 = vmatprep.subr.mxu0 0.0
    %4456 = vmatpush1.msra.mxu0 %v2711
    %4457 = vmatprep.subr.mxu0 0.0
    %4458 = vmatpush1.msra.mxu0 %v2710
    %4459 = vmatprep.subr.mxu0 0.0
    %4460 = vmatpush1.msra.mxu0 %v2709
    %4461 = vmatprep.subr.mxu0 0.0
    %4462 = vmatpush1.msra.mxu0 %v2708
    %4463 = vmatprep.subr.mxu0 0.0
    %4464 = vmatpush1.msra.mxu0 %v2707
    %4465 = vmatprep.subr.mxu0 0.0
    %4466 = vmatpush1.msra.mxu0 %v2706
    %4467 = vmatprep.subr.mxu0 0.0
    %4468 = vmatpush1.msra.mxu0 %v2705
    %4469 = vmatprep.subr.mxu0 0.0
    %4470 = vmatpush2.msra.mxu0 0.0
    %4471 = vmatprep.subr.mxu0 0.0
    %4472 = vmatpush2.msra.mxu0 0.0
    %4473 = vmatprep.subr.mxu0 0.0
    %4474 = vmatpush2.msra.mxu0 0.0
    %4475 = vmatprep.subr.mxu0 0.0
    %4476 = vmatpush2.msra.mxu0 0.0
    %4477 = vmatprep.subr.mxu0 0.0
    %4478 = vmatpush2.msra.mxu0 0.0
    %4479 = vmatprep.subr.mxu0 0.0
    %4480 = vmatpush2.msra.mxu0 0.0
    %4481 = vmatprep.subr.mxu0 0.0
    %4482 = vmatpush2.msra.mxu0 0.0
    %4483 = vmatprep.subr.mxu0 0.0
    %4484 = vmatpush2.msra.mxu0 0.0
    %4485 = vmatprep.subr.mxu0 0.0
    %4486 = vmatpush2.msra.mxu0 0.0
    %4487 = vmatprep.subr.mxu0 0.0
    %4488 = vmatpush2.msra.mxu0 0.0
    %4489 = vmatprep.subr.mxu0 0.0
    %4490 = vmatpush2.msra.mxu0 0.0
    %4491 = vmatprep.subr.mxu0 0.0
    %4492 = vmatpush2.msra.mxu0 0.0
    %4493 = vmatprep.subr.mxu0 0.0
    %4494 = vmatpush2.msra.mxu0 0.0
    %4495 = vmatprep.subr.mxu0 0.0
    %4496 = vmatpush2.msra.mxu0 0.0
    %4497 = vmatprep.subr.mxu0 0.0
    %4498 = vmatpush2.msra.mxu0 0.0
    %4499 = vmatprep.subr.mxu0 0.0
    %4500 = vmatpush2.msra.mxu0 0.0
    %4501 = vmatprep.mubr.f32.mxu0 0.0
    %4502 = vmatmul.mubr.f32.gmra.mxu0 %v4435
    %v4503 = vpop.f32.mrf.mxu0
    %v4504 = vadd.f32 %v2740, %v4503
    %v4505 = vpop.f32.mrf.mxu0
    %4506 = vdwg.mxu0
    %4507 = vmatprep.subr.mxu0 0.0
    %4508 = vmatpush1.msra.mxu0 0.0
    %4509 = vmatprep.subr.mxu0 0.0
    %4510 = vmatpush1.msra.mxu0 0.0
    %4511 = vmatprep.subr.mxu0 0.0
    %4512 = vmatpush1.msra.mxu0 0.0
    %4513 = vmatprep.subr.mxu0 0.0
    %4514 = vmatpush1.msra.mxu0 0.0
    %4515 = vmatprep.subr.mxu0 0.0
    %4516 = vmatpush1.msra.mxu0 0.0
    %4517 = vmatprep.subr.mxu0 0.0
    %4518 = vmatpush1.msra.mxu0 0.0
    %4519 = vmatprep.subr.mxu0 0.0
    %4520 = vmatpush1.msra.mxu0 0.0
    %4521 = vmatprep.subr.mxu0 0.0
    %4522 = vmatpush1.msra.mxu0 0.0
    %4523 = vmatprep.subr.mxu0 0.0
    %4524 = vmatpush1.msra.mxu0 %v2721
    %4525 = vmatprep.subr.mxu0 0.0
    %4526 = vmatpush1.msra.mxu0 %v2720
    %4527 = vmatprep.subr.mxu0 0.0
    %4528 = vmatpush1.msra.mxu0 %v2719
    %4529 = vmatprep.subr.mxu0 0.0
    %4530 = vmatpush1.msra.mxu0 %v2718
    %4531 = vmatprep.subr.mxu0 0.0
    %4532 = vmatpush1.msra.mxu0 %v2717
    %4533 = vmatprep.subr.mxu0 0.0
    %4534 = vmatpush1.msra.mxu0 %v2716
    %4535 = vmatprep.subr.mxu0 0.0
    %4536 = vmatpush1.msra.mxu0 %v2715
    %4537 = vmatprep.subr.mxu0 0.0
    %4538 = vmatpush1.msra.mxu0 %v2714
    %4539 = vmatprep.subr.mxu0 0.0
    %4540 = vmatpush2.msra.mxu0 0.0
    %4541 = vmatprep.subr.mxu0 0.0
    %4542 = vmatpush2.msra.mxu0 0.0
    %4543 = vmatprep.subr.mxu0 0.0
    %4544 = vmatpush2.msra.mxu0 0.0
    %4545 = vmatprep.subr.mxu0 0.0
    %4546 = vmatpush2.msra.mxu0 0.0
    %4547 = vmatprep.subr.mxu0 0.0
    %4548 = vmatpush2.msra.mxu0 0.0
    %4549 = vmatprep.subr.mxu0 0.0
    %4550 = vmatpush2.msra.mxu0 0.0
    %4551 = vmatprep.subr.mxu0 0.0
    %4552 = vmatpush2.msra.mxu0 0.0
    %4553 = vmatprep.subr.mxu0 0.0
    %4554 = vmatpush2.msra.mxu0 0.0
    %4555 = vmatprep.subr.mxu0 0.0
    %4556 = vmatpush2.msra.mxu0 0.0
    %4557 = vmatprep.subr.mxu0 0.0
    %4558 = vmatpush2.msra.mxu0 0.0
    %4559 = vmatprep.subr.mxu0 0.0
    %4560 = vmatpush2.msra.mxu0 0.0
    %4561 = vmatprep.subr.mxu0 0.0
    %4562 = vmatpush2.msra.mxu0 0.0
    %4563 = vmatprep.subr.mxu0 0.0
    %4564 = vmatpush2.msra.mxu0 0.0
    %4565 = vmatprep.subr.mxu0 0.0
    %4566 = vmatpush2.msra.mxu0 0.0
    %4567 = vmatprep.subr.mxu0 0.0
    %4568 = vmatpush2.msra.mxu0 0.0
    %4569 = vmatprep.subr.mxu0 0.0
    %4570 = vmatpush2.msra.mxu0 0.0
    %4571 = vmatprep.mubr.f32.mxu0 0.0
    %4572 = vmatmul.mubr.f32.gmra.mxu0 %v4435
    %v4573 = vpop.f32.mrf.mxu0
    %v4574 = vadd.f32 %v2816, %v4573
    %v4575 = vpop.f32.mrf.mxu0
    %4576 = vdwg.mxu0
    %4577 = vmatprep.subr.mxu0 0.0
    %4578 = vmatpush1.msra.mxu0 0.0
    %4579 = vmatprep.subr.mxu0 0.0
    %4580 = vmatpush1.msra.mxu0 0.0
    %4581 = vmatprep.subr.mxu0 0.0
    %4582 = vmatpush1.msra.mxu0 0.0
    %4583 = vmatprep.subr.mxu0 0.0
    %4584 = vmatpush1.msra.mxu0 0.0
    %4585 = vmatprep.subr.mxu0 0.0
    %4586 = vmatpush1.msra.mxu0 0.0
    %4587 = vmatprep.subr.mxu0 0.0
    %4588 = vmatpush1.msra.mxu0 0.0
    %4589 = vmatprep.subr.mxu0 0.0
    %4590 = vmatpush1.msra.mxu0 0.0
    %4591 = vmatprep.subr.mxu0 0.0
    %4592 = vmatpush1.msra.mxu0 0.0
    %4593 = vmatprep.subr.mxu0 0.0
    %4594 = vmatpush1.msra.mxu0 %v2730
    %4595 = vmatprep.subr.mxu0 0.0
    %4596 = vmatpush1.msra.mxu0 %v2729
    %4597 = vmatprep.subr.mxu0 0.0
    %4598 = vmatpush1.msra.mxu0 %v2728
    %4599 = vmatprep.subr.mxu0 0.0
    %4600 = vmatpush1.msra.mxu0 %v2727
    %4601 = vmatprep.subr.mxu0 0.0
    %4602 = vmatpush1.msra.mxu0 %v2726
    %4603 = vmatprep.subr.mxu0 0.0
    %4604 = vmatpush1.msra.mxu0 %v2725
    %4605 = vmatprep.subr.mxu0 0.0
    %4606 = vmatpush1.msra.mxu0 %v2724
    %4607 = vmatprep.subr.mxu0 0.0
    %4608 = vmatpush1.msra.mxu0 %v2723
    %4609 = vmatprep.subr.mxu0 0.0
    %4610 = vmatpush2.msra.mxu0 0.0
    %4611 = vmatprep.subr.mxu0 0.0
    %4612 = vmatpush2.msra.mxu0 0.0
    %4613 = vmatprep.subr.mxu0 0.0
    %4614 = vmatpush2.msra.mxu0 0.0
    %4615 = vmatprep.subr.mxu0 0.0
    %4616 = vmatpush2.msra.mxu0 0.0
    %4617 = vmatprep.subr.mxu0 0.0
    %4618 = vmatpush2.msra.mxu0 0.0
    %4619 = vmatprep.subr.mxu0 0.0
    %4620 = vmatpush2.msra.mxu0 0.0
    %4621 = vmatprep.subr.mxu0 0.0
    %4622 = vmatpush2.msra.mxu0 0.0
    %4623 = vmatprep.subr.mxu0 0.0
    %4624 = vmatpush2.msra.mxu0 0.0
    %4625 = vmatprep.subr.mxu0 0.0
    %4626 = vmatpush2.msra.mxu0 0.0
    %4627 = vmatprep.subr.mxu0 0.0
    %4628 = vmatpush2.msra.mxu0 0.0
    %4629 = vmatprep.subr.mxu0 0.0
    %4630 = vmatpush2.msra.mxu0 0.0
    %4631 = vmatprep.subr.mxu0 0.0
    %4632 = vmatpush2.msra.mxu0 0.0
    %4633 = vmatprep.subr.mxu0 0.0
    %4634 = vmatpush2.msra.mxu0 0.0
    %4635 = vmatprep.subr.mxu0 0.0
    %4636 = vmatpush2.msra.mxu0 0.0
    %4637 = vmatprep.subr.mxu0 0.0
    %4638 = vmatpush2.msra.mxu0 0.0
    %4639 = vmatprep.subr.mxu0 0.0
    %4640 = vmatpush2.msra.mxu0 0.0
    %4641 = vmatprep.mubr.f32.mxu0 0.0
    %4642 = vmatmul.mubr.f32.gmra.mxu0 %v4435
    %v4643 = vpop.f32.mrf.mxu0
    %v4644 = vadd.f32 %v2892, %v4643
    %v4645 = vpop.f32.mrf.mxu0
    %4646 = vdwg.mxu0
    %v4647 = vsel %vm156, %v2965, %v2964
    %v4648 = vadd.f32 %v4647, %v4504
    %v4649 = vxor.u32 %v4648, 2147483648
    %v4650 = vmul.f32 %v4649, 1.442695
    %v4651 = vpow.pop %v4650
    %v4652 = vadd.f32 %v4651, 1.0
    %v4653 = vrcp.pop %v4652
    %v4654 = vmul.f32 1.0, %v4653
    %v4655 = vsel %vm156, %v2975, %v2974
    %v4656 = vadd.f32 %v4655, %v4574
    %v4657 = vxor.u32 %v4656, 2147483648
    %v4658 = vmul.f32 %v4657, 1.442695
    %v4659 = vpow.pop %v4658
    %v4660 = vadd.f32 %v4659, 1.0
    %v4661 = vrcp.pop %v4660
    %v4662 = vmul.f32 1.0, %v4661
    %v4663 = vsel %vm156, %v2985, %v2984
    %v4664 = vmul.f32 %v4654, %v4644
    %v4665 = vadd.f32 %v4663, %v4664
    %v4666 = vtanh.pop %v4665
    %v4667 = vsub.f32 1.0, %v4662
    %v4668 = vmul.f32 %v4667, %v4666
    %v4669 = vmul.f32 %v4662, %v4433
    %v4670 = vadd.f32 %v4668, %v4669
    %v4671 = vsel %vm156, %v2993, %v4670
    %4672 = vst.msk [vmem:[#allocation17] sm:$0x3] %vm2401, %v4671
    %v4673 = vsel %vm156, %v3236, %v4433
    %4674 = vst.msk [vmem:[#allocation17 + $0x2] sm:$0x3] %vm2401, %v4673
    %v4675 = vsel %vm156, %v3479, %v4196
    %4676 = vst.msk [vmem:[#allocation17 + $0x4] sm:$0x3] %vm2401, %v4675
    %v4677 = vsel %vm156, %v3722, %v3959
    %4678 = vst.msk [vmem:[#allocation17 + $0x6] sm:$0x3] %vm2401, %v4677
    %v4679 = vsel %vm156, %v3959, %v3722
    %4680 = vst.msk [vmem:[#allocation17 + $0x8] sm:$0x3] %vm2401, %v4679
    %v4681 = vsel %vm156, %v4196, %v3479
    %4682 = vst.msk [vmem:[#allocation17 + $0xa] sm:$0x3] %vm2401, %v4681
    %v4683 = vsel %vm156, %v4433, %v3236
    %4684 = vst.msk [vmem:[#allocation17 + $0xc] sm:$0x3] %vm2401, %v4683
    %v4685 = vsel %vm156, %v4670, %v2993
    %4686 = vst.msk [vmem:[#allocation17 + $0xe] sm:$0x3] %vm2401, %v4685
    %v4687 = vld [vmem:[#allocation17] sm:$0xff]
    %v4688 = vld [vmem:[#allocation17 + $0x8] sm:$0xff]
    %v4689 = vld [vmem:[%s1] sm:$0xff]
    %v4690 = vld [vmem:[%s1 + $0x8] sm:$0xff]
    %v4691 = vld [vmem:[#allocation13] sm:$0xff]
    %v4692 = vld [vmem:[#allocation13 + $0x8] sm:$0xff]
    %v4693 = vld [vmem:[#allocation13 + $0x10] sm:$0xff]
    %v4694 = vld [vmem:[#allocation13 + $0x18] sm:$0xff]
    %v4695 = vld [vmem:[#allocation13 + $0x20] sm:$0xff]
    %v4696 = vld [vmem:[#allocation13 + $0x28] sm:$0xff]
    %v4697 = vld [vmem:[#allocation13 + $0x30] sm:$0xff]
    %v4698 = vld [vmem:[#allocation13 + $0x38] sm:$0xff]
    %v4699 = vld [vmem:[%s12] sm:$0x1]
    %v4701 = vlaneseq
    %v4702 = vshrl.u32 %v4701, 7
    %v4703 = vsub.s32 0, %v4702
    %v4704 = vrot.slane %v4699, %v4703
    %v4707 = vsel %vm250, %v4687, 0
    %v4710 = vsel %vm250, %v4688, 0
    %4712 = vmatprep.subr.mxu0 0.0
    %4713 = vmatpush1.msra.mxu0 0.0
    %4714 = vmatprep.subr.mxu0 0.0
    %4715 = vmatpush1.msra.mxu0 0.0
    %4716 = vmatprep.subr.mxu0 0.0
    %4717 = vmatpush1.msra.mxu0 0.0
    %4718 = vmatprep.subr.mxu0 0.0
    %4719 = vmatpush1.msra.mxu0 0.0
    %4720 = vmatprep.subr.mxu0 0.0
    %4721 = vmatpush1.msra.mxu0 0.0
    %4722 = vmatprep.subr.mxu0 0.0
    %4723 = vmatpush1.msra.mxu0 0.0
    %4724 = vmatprep.subr.mxu0 0.0
    %4725 = vmatpush1.msra.mxu0 0.0
    %4726 = vmatprep.subr.mxu0 0.0
    %4727 = vmatpush1.msra.mxu0 0.0
    %4728 = vmatprep.subr.mxu0 0.0
    %4729 = vmatpush1.msra.mxu0 %v4698
    %4730 = vmatprep.subr.mxu0 0.0
    %4731 = vmatpush1.msra.mxu0 %v4697
    %4732 = vmatprep.subr.mxu0 0.0
    %4733 = vmatpush1.msra.mxu0 %v4696
    %4734 = vmatprep.subr.mxu0 0.0
    %4735 = vmatpush1.msra.mxu0 %v4695
    %4736 = vmatprep.subr.mxu0 0.0
    %4737 = vmatpush1.msra.mxu0 %v4694
    %4738 = vmatprep.subr.mxu0 0.0
    %4739 = vmatpush1.msra.mxu0 %v4693
    %4740 = vmatprep.subr.mxu0 0.0
    %4741 = vmatpush1.msra.mxu0 %v4692
    %4742 = vmatprep.subr.mxu0 0.0
    %4743 = vmatpush1.msra.mxu0 %v4691
    %4744 = vmatprep.subr.mxu0 0.0
    %4745 = vmatpush2.msra.mxu0 0.0
    %4746 = vmatprep.subr.mxu0 0.0
    %4747 = vmatpush2.msra.mxu0 0.0
    %4748 = vmatprep.subr.mxu0 0.0
    %4749 = vmatpush2.msra.mxu0 0.0
    %4750 = vmatprep.subr.mxu0 0.0
    %4751 = vmatpush2.msra.mxu0 0.0
    %4752 = vmatprep.subr.mxu0 0.0
    %4753 = vmatpush2.msra.mxu0 0.0
    %4754 = vmatprep.subr.mxu0 0.0
    %4755 = vmatpush2.msra.mxu0 0.0
    %4756 = vmatprep.subr.mxu0 0.0
    %4757 = vmatpush2.msra.mxu0 0.0
    %4758 = vmatprep.subr.mxu0 0.0
    %4759 = vmatpush2.msra.mxu0 0.0
    %4760 = vmatprep.subr.mxu0 0.0
    %4761 = vmatpush2.msra.mxu0 0.0
    %4762 = vmatprep.subr.mxu0 0.0
    %4763 = vmatpush2.msra.mxu0 0.0
    %4764 = vmatprep.subr.mxu0 0.0
    %4765 = vmatpush2.msra.mxu0 0.0
    %4766 = vmatprep.subr.mxu0 0.0
    %4767 = vmatpush2.msra.mxu0 0.0
    %4768 = vmatprep.subr.mxu0 0.0
    %4769 = vmatpush2.msra.mxu0 0.0
    %4770 = vmatprep.subr.mxu0 0.0
    %4771 = vmatpush2.msra.mxu0 0.0
    %4772 = vmatprep.subr.mxu0 0.0
    %4773 = vmatpush2.msra.mxu0 0.0
    %4774 = vmatprep.subr.mxu0 0.0
    %4775 = vmatpush2.msra.mxu0 0.0
    %4776 = vmatprep.mubr.f32.mxu0 0.0
    %4777 = vmatmul.mubr.f32.gmra.mxu0 %v4707
    %v4778 = vpop.f32.mrf.mxu0
    %v4779 = vadd.f32 %v4704, %v4778
    %v4780 = vpop.f32.mrf.mxu0
    %4781 = vmatprep.mubr.f32.mxu0 0.0
    %4782 = vmatmul.mubr.f32.gmra.mxu0 %v4710
    %v4783 = vpop.f32.mrf.mxu0
    %v4784 = vadd.f32 %v4704, %v4783
    %v4785 = vpop.f32.mrf.mxu0
    %4786 = vdwg.mxu0
    %v4788 = vsel %vm250, %v4779, 0
    %v4791 = vsel %vm250, %v4784, 0
    %4793 = vmatprep.subr.mxu0 0.0
    %4794 = vmatpush1.xpose.msra.mxu0 0.0
    %4795 = vmatprep.subr.mxu0 0.0
    %4796 = vmatpush1.xpose.msra.mxu0 0.0
    %4797 = vmatprep.subr.mxu0 0.0
    %4798 = vmatpush1.xpose.msra.mxu0 0.0
    %4799 = vmatprep.subr.mxu0 0.0
    %4800 = vmatpush1.xpose.msra.mxu0 0.0
    %4801 = vmatprep.subr.mxu0 0.0
    %4802 = vmatpush1.xpose.msra.mxu0 0.0
    %4803 = vmatprep.subr.mxu0 0.0
    %4804 = vmatpush1.xpose.msra.mxu0 0.0
    %4805 = vmatprep.subr.mxu0 0.0
    %4806 = vmatpush1.xpose.msra.mxu0 0.0
    %4807 = vmatprep.subr.mxu0 0.0
    %4808 = vmatpush1.xpose.msra.mxu0 0.0
    %4809 = vmatprep.subr.mxu0 0.0
    %4810 = vmatpush1.xpose.msra.mxu0 0.0
    %4811 = vmatprep.subr.mxu0 0.0
    %4812 = vmatpush1.xpose.msra.mxu0 0.0
    %4813 = vmatprep.subr.mxu0 0.0
    %4814 = vmatpush1.xpose.msra.mxu0 0.0
    %4815 = vmatprep.subr.mxu0 0.0
    %4816 = vmatpush1.xpose.msra.mxu0 0.0
    %4817 = vmatprep.subr.mxu0 0.0
    %4818 = vmatpush1.xpose.msra.mxu0 0.0
    %4819 = vmatprep.subr.mxu0 0.0
    %4820 = vmatpush1.xpose.msra.mxu0 0.0
    %4821 = vmatprep.subr.mxu0 0.0
    %4822 = vmatpush1.xpose.msra.mxu0 %v4710
    %4823 = vmatprep.subr.mxu0 0.0
    %4824 = vmatpush1.xpose.msra.mxu0 %v4707
    %4825 = vmatprep.subr.mxu0 0.0
    %4826 = vmatpush2.xpose.msra.mxu0 0.0
    %4827 = vmatprep.subr.mxu0 0.0
    %4828 = vmatpush2.xpose.msra.mxu0 0.0
    %4829 = vmatprep.subr.mxu0 0.0
    %4830 = vmatpush2.xpose.msra.mxu0 0.0
    %4831 = vmatprep.subr.mxu0 0.0
    %4832 = vmatpush2.xpose.msra.mxu0 0.0
    %4833 = vmatprep.subr.mxu0 0.0
    %4834 = vmatpush2.xpose.msra.mxu0 0.0
    %4835 = vmatprep.subr.mxu0 0.0
    %4836 = vmatpush2.xpose.msra.mxu0 0.0
    %4837 = vmatprep.subr.mxu0 0.0
    %4838 = vmatpush2.xpose.msra.mxu0 0.0
    %4839 = vmatprep.subr.mxu0 0.0
    %4840 = vmatpush2.xpose.msra.mxu0 0.0
    %4841 = vmatprep.subr.mxu0 0.0
    %4842 = vmatpush2.xpose.msra.mxu0 0.0
    %4843 = vmatprep.subr.mxu0 0.0
    %4844 = vmatpush2.xpose.msra.mxu0 0.0
    %4845 = vmatprep.subr.mxu0 0.0
    %4846 = vmatpush2.xpose.msra.mxu0 0.0
    %4847 = vmatprep.subr.mxu0 0.0
    %4848 = vmatpush2.xpose.msra.mxu0 0.0
    %4849 = vmatprep.subr.mxu0 0.0
    %4850 = vmatpush2.xpose.msra.mxu0 0.0
    %4851 = vmatprep.subr.mxu0 0.0
    %4852 = vmatpush2.xpose.msra.mxu0 0.0
    %4853 = vmatprep.subr.mxu0 0.0
    %4854 = vmatpush2.xpose.msra.mxu0 0.0
    %4855 = vmatprep.subr.mxu0 0.0
    %4856 = vmatpush2.xpose.msra.mxu0 0.0
    %4857 = vmatprep.mubr.f32.mxu0 0.0
    %4858 = vmatmul.mubr.f32.gmra.mxu0 %v4788
    %v4859 = vpop.f32.mrf.mxu0
    %v4860 = vadd.f32 0.0, %v4859
    %v4861 = vpop.f32.mrf.mxu0
    %4862 = vmatprep.mubr.f32.mxu0 0.0
    %4863 = vmatmul.mubr.f32.gmra.mxu0 %v4791
    %v4864 = vpop.f32.mrf.mxu0
    %v4865 = vadd.f32 0.0, %v4864
    %v4866 = vpop.f32.mrf.mxu0
    %4867 = vdwg.mxu0
    %v4868 = vmul.f32 %v4860, %v4689
    %v4869 = vmul.f32 %v4865, %v4690
    %v4870 = vtanh.pop %v4868
    %v4871 = vtanh.pop %v4869
    %v4872 = vsel %vm168, %v4870, -inf
    %4873 = vmax.xlane.f32.xlu0 %v4872
    %v4874 = vpop.xlane.xlu0 %4873
    %v4875 = vsel %vm168, %v4871, -inf
    %4876 = vmax.xlane.f32.xlu0 %v4875
    %v4877 = vpop.xlane.xlu0 %4876
    %v4878 = vsub.f32 %v4870, %v4874
    %v4879 = vsub.f32 %v4871, %v4877
    %v4880 = vmul.f32 %v4878, 1.442695
    %v4881 = vpow.pop %v4880
    %v4882 = vmul.f32 %v4879, 1.442695
    %v4883 = vpow.pop %v4882
    %v4884 = vmul.f32 %v4881, %v4689
    %v4885 = vmul.f32 %v4883, %v4690
    %v4886 = vsel %vm168, %v4884, 0.0
    %4887 = vadd.xlane.f32.xlu0 %v4886
    %v4888 = vpop.xlane.xlu0 %4887
    %v4889 = vsel %vm168, %v4885, 0.0
    %4890 = vadd.xlane.f32.xlu0 %v4889
    %v4891 = vpop.xlane.xlu0 %4890
    %v4892 = vrcp.pop %v4888
    %v4893 = vmul.f32 %v4884, %v4892
    %v4894 = vrcp.pop %v4891
    %v4895 = vmul.f32 %v4885, %v4894
    %v4897 = vsel %vm168, %v4893, 0
    %v4900 = vsel %vm168, %v4895, 0
    %4902 = vmatprep.subr.mxu0 0.0
    %4903 = vmatpush1.msra.mxu0 0.0
    %4904 = vmatprep.subr.mxu0 0.0
    %4905 = vmatpush1.msra.mxu0 0.0
    %4906 = vmatprep.subr.mxu0 0.0
    %4907 = vmatpush1.msra.mxu0 0.0
    %4908 = vmatprep.subr.mxu0 0.0
    %4909 = vmatpush1.msra.mxu0 0.0
    %4910 = vmatprep.subr.mxu0 0.0
    %4911 = vmatpush1.msra.mxu0 0.0
    %4912 = vmatprep.subr.mxu0 0.0
    %4913 = vmatpush1.msra.mxu0 0.0
    %4914 = vmatprep.subr.mxu0 0.0
    %4915 = vmatpush1.msra.mxu0 0.0
    %4916 = vmatprep.subr.mxu0 0.0
    %4917 = vmatpush1.msra.mxu0 0.0
    %4918 = vmatprep.subr.mxu0 0.0
    %4919 = vmatpush1.msra.mxu0 0.0
    %4920 = vmatprep.subr.mxu0 0.0
    %4921 = vmatpush1.msra.mxu0 0.0
    %4922 = vmatprep.subr.mxu0 0.0
    %4923 = vmatpush1.msra.mxu0 0.0
    %4924 = vmatprep.subr.mxu0 0.0
    %4925 = vmatpush1.msra.mxu0 0.0
    %4926 = vmatprep.subr.mxu0 0.0
    %4927 = vmatpush1.msra.mxu0 0.0
    %4928 = vmatprep.subr.mxu0 0.0
    %4929 = vmatpush1.msra.mxu0 0.0
    %4930 = vmatprep.subr.mxu0 0.0
    %4931 = vmatpush1.msra.mxu0 %v4688
    %4932 = vmatprep.subr.mxu0 0.0
    %4933 = vmatpush1.msra.mxu0 %v4687
    %4934 = vmatprep.subr.mxu0 0.0
    %4935 = vmatpush2.msra.mxu0 0.0
    %4936 = vmatprep.subr.mxu0 0.0
    %4937 = vmatpush2.msra.mxu0 0.0
    %4938 = vmatprep.subr.mxu0 0.0
    %4939 = vmatpush2.msra.mxu0 0.0
    %4940 = vmatprep.subr.mxu0 0.0
    %4941 = vmatpush2.msra.mxu0 0.0
    %4942 = vmatprep.subr.mxu0 0.0
    %4943 = vmatpush2.msra.mxu0 0.0
    %4944 = vmatprep.subr.mxu0 0.0
    %4945 = vmatpush2.msra.mxu0 0.0
    %4946 = vmatprep.subr.mxu0 0.0
    %4947 = vmatpush2.msra.mxu0 0.0
    %4948 = vmatprep.subr.mxu0 0.0
    %4949 = vmatpush2.msra.mxu0 0.0
    %4950 = vmatprep.subr.mxu0 0.0
    %4951 = vmatpush2.msra.mxu0 0.0
    %4952 = vmatprep.subr.mxu0 0.0
    %4953 = vmatpush2.msra.mxu0 0.0
    %4954 = vmatprep.subr.mxu0 0.0
    %4955 = vmatpush2.msra.mxu0 0.0
    %4956 = vmatprep.subr.mxu0 0.0
    %4957 = vmatpush2.msra.mxu0 0.0
    %4958 = vmatprep.subr.mxu0 0.0
    %4959 = vmatpush2.msra.mxu0 0.0
    %4960 = vmatprep.subr.mxu0 0.0
    %4961 = vmatpush2.msra.mxu0 0.0
    %4962 = vmatprep.subr.mxu0 0.0
    %4963 = vmatpush2.msra.mxu0 0.0
    %4964 = vmatprep.subr.mxu0 0.0
    %4965 = vmatpush2.msra.mxu0 0.0
    %4966 = vmatprep.mubr.f32.mxu0 0.0
    %4967 = vmatmul.mubr.f32.gmra.mxu0 %v4897
    %v4968 = vpop.f32.mrf.mxu0
    %v4969 = vadd.f32 0.0, %v4968
    %v4970 = vpop.f32.mrf.mxu0
    %4971 = vmatprep.mubr.f32.mxu0 0.0
    %4972 = vmatmul.mubr.f32.gmra.mxu0 %v4900
    %v4973 = vpop.f32.mrf.mxu0
    %v4974 = vadd.f32 0.0, %v4973
    %v4975 = vpop.f32.mrf.mxu0
    %4976 = vdwg.mxu0
    %v4977 = vld [vmem:[%s13] sm:$0xff]
    %v4978 = vld [vmem:[%s13 + $0x8] sm:$0xff]
    %v4979 = vld [vmem:[%s13 + $0x10] sm:$0xff]
    %v4980 = vld [vmem:[%s13 + $0x18] sm:$0xff]
    %v4981 = vld [vmem:[%s13 + $0x20] sm:$0xff]
    %v4982 = vld [vmem:[%s13 + $0x28] sm:$0xff]
    %v4983 = vld [vmem:[%s13 + $0x30] sm:$0xff]
    %v4984 = vld [vmem:[%s13 + $0x38] sm:$0xff]
    %v4985 = vld [vmem:[%s14] sm:$0x1]
    %v4987 = vlaneseq
    %v4988 = vshrl.u32 %v4987, 7
    %v4989 = vsub.s32 0, %v4988
    %v4990 = vrot.slane %v4985, %v4989
    %v4993 = vsel %vm250, %v4969, 0
    %v4996 = vsel %vm250, %v4974, 0
    %4998 = vmatprep.subr.mxu0 0.0
    %4999 = vmatpush1.msra.mxu0 0.0
    %5000 = vmatprep.subr.mxu0 0.0
    %5001 = vmatpush1.msra.mxu0 0.0
    %5002 = vmatprep.subr.mxu0 0.0
    %5003 = vmatpush1.msra.mxu0 0.0
    %5004 = vmatprep.subr.mxu0 0.0
    %5005 = vmatpush1.msra.mxu0 0.0
    %5006 = vmatprep.subr.mxu0 0.0
    %5007 = vmatpush1.msra.mxu0 0.0
    %5008 = vmatprep.subr.mxu0 0.0
    %5009 = vmatpush1.msra.mxu0 0.0
    %5010 = vmatprep.subr.mxu0 0.0
    %5011 = vmatpush1.msra.mxu0 0.0
    %5012 = vmatprep.subr.mxu0 0.0
    %5013 = vmatpush1.msra.mxu0 0.0
    %5014 = vmatprep.subr.mxu0 0.0
    %5015 = vmatpush1.msra.mxu0 %v4984
    %5016 = vmatprep.subr.mxu0 0.0
    %5017 = vmatpush1.msra.mxu0 %v4983
    %5018 = vmatprep.subr.mxu0 0.0
    %5019 = vmatpush1.msra.mxu0 %v4982
    %5020 = vmatprep.subr.mxu0 0.0
    %5021 = vmatpush1.msra.mxu0 %v4981
    %5022 = vmatprep.subr.mxu0 0.0
    %5023 = vmatpush1.msra.mxu0 %v4980
    %5024 = vmatprep.subr.mxu0 0.0
    %5025 = vmatpush1.msra.mxu0 %v4979
    %5026 = vmatprep.subr.mxu0 0.0
    %5027 = vmatpush1.msra.mxu0 %v4978
    %5028 = vmatprep.subr.mxu0 0.0
    %5029 = vmatpush1.msra.mxu0 %v4977
    %5030 = vmatprep.subr.mxu0 0.0
    %5031 = vmatpush2.msra.mxu0 0.0
    %5032 = vmatprep.subr.mxu0 0.0
    %5033 = vmatpush2.msra.mxu0 0.0
    %5034 = vmatprep.subr.mxu0 0.0
    %5035 = vmatpush2.msra.mxu0 0.0
    %5036 = vmatprep.subr.mxu0 0.0
    %5037 = vmatpush2.msra.mxu0 0.0
    %5038 = vmatprep.subr.mxu0 0.0
    %5039 = vmatpush2.msra.mxu0 0.0
    %5040 = vmatprep.subr.mxu0 0.0
    %5041 = vmatpush2.msra.mxu0 0.0
    %5042 = vmatprep.subr.mxu0 0.0
    %5043 = vmatpush2.msra.mxu0 0.0
    %5044 = vmatprep.subr.mxu0 0.0
    %5045 = vmatpush2.msra.mxu0 0.0
    %5046 = vmatprep.subr.mxu0 0.0
    %5047 = vmatpush2.msra.mxu0 0.0
    %5048 = vmatprep.subr.mxu0 0.0
    %5049 = vmatpush2.msra.mxu0 0.0
    %5050 = vmatprep.subr.mxu0 0.0
    %5051 = vmatpush2.msra.mxu0 0.0
    %5052 = vmatprep.subr.mxu0 0.0
    %5053 = vmatpush2.msra.mxu0 0.0
    %5054 = vmatprep.subr.mxu0 0.0
    %5055 = vmatpush2.msra.mxu0 0.0
    %5056 = vmatprep.subr.mxu0 0.0
    %5057 = vmatpush2.msra.mxu0 0.0
    %5058 = vmatprep.subr.mxu0 0.0
    %5059 = vmatpush2.msra.mxu0 0.0
    %5060 = vmatprep.subr.mxu0 0.0
    %5061 = vmatpush2.msra.mxu0 0.0
    %5062 = vmatprep.mubr.f32.mxu0 0.0
    %5063 = vmatmul.mubr.f32.gmra.mxu0 %v4993
    %v5064 = vpop.f32.mrf.mxu0
    %v5065 = vadd.f32 %v4990, %v5064
    %v5066 = vpop.f32.mrf.mxu0
    %5067 = vmatprep.mubr.f32.mxu0 0.0
    %5068 = vmatmul.mubr.f32.gmra.mxu0 %v4996
    %v5069 = vpop.f32.mrf.mxu0
    %v5070 = vadd.f32 %v4990, %v5069
    %v5071 = vpop.f32.mrf.mxu0
    %5072 = vdwg.mxu0
    %v5073 = vmax.f32 %v5065, 0.0
    %v5074 = vmax.f32 %v5070, 0.0
    %v5075 = vld [vmem:[%s15] sm:$0xff]
    %v5076 = vld [vmem:[%s15 + $0x8] sm:$0xff]
    %v5077 = vld [vmem:[%s15 + $0x10] sm:$0xff]
    %v5078 = vld [vmem:[%s15 + $0x18] sm:$0xff]
    %v5079 = vld [vmem:[#allocation15] sm:$0x1]
    %v5081 = vlaneseq
    %v5082 = vshrl.u32 %v5081, 7
    %v5083 = vsub.s32 0, %v5082
    %v5084 = vrot.slane %v5079, %v5083
    %vm5086 = vcmask 261120
    %v5088 = vsel %vm5086, %v5073, 0
    %v5091 = vsel %vm5086, %v5074, 0
    %5093 = vmatprep.subr.mxu0 0.0
    %5094 = vmatpush1.msra.mxu0 0.0
    %5095 = vmatprep.subr.mxu0 0.0
    %5096 = vmatpush1.msra.mxu0 0.0
    %5097 = vmatprep.subr.mxu0 0.0
    %5098 = vmatpush1.msra.mxu0 0.0
    %5099 = vmatprep.subr.mxu0 0.0
    %5100 = vmatpush1.msra.mxu0 0.0
    %5101 = vmatprep.subr.mxu0 0.0
    %5102 = vmatpush1.msra.mxu0 0.0
    %5103 = vmatprep.subr.mxu0 0.0
    %5104 = vmatpush1.msra.mxu0 0.0
    %5105 = vmatprep.subr.mxu0 0.0
    %5106 = vmatpush1.msra.mxu0 0.0
    %5107 = vmatprep.subr.mxu0 0.0
    %5108 = vmatpush1.msra.mxu0 0.0
    %5109 = vmatprep.subr.mxu0 0.0
    %5110 = vmatpush1.msra.mxu0 0.0
    %5111 = vmatprep.subr.mxu0 0.0
    %5112 = vmatpush1.msra.mxu0 0.0
    %5113 = vmatprep.subr.mxu0 0.0
    %5114 = vmatpush1.msra.mxu0 0.0
    %5115 = vmatprep.subr.mxu0 0.0
    %5116 = vmatpush1.msra.mxu0 0.0
    %5117 = vmatprep.subr.mxu0 0.0
    %5118 = vmatpush1.msra.mxu0 %v5078
    %5119 = vmatprep.subr.mxu0 0.0
    %5120 = vmatpush1.msra.mxu0 %v5077
    %5121 = vmatprep.subr.mxu0 0.0
    %5122 = vmatpush1.msra.mxu0 %v5076
    %5123 = vmatprep.subr.mxu0 0.0
    %5124 = vmatpush1.msra.mxu0 %v5075
    %5125 = vmatprep.subr.mxu0 0.0
    %5126 = vmatpush2.msra.mxu0 0.0
    %5127 = vmatprep.subr.mxu0 0.0
    %5128 = vmatpush2.msra.mxu0 0.0
    %5129 = vmatprep.subr.mxu0 0.0
    %5130 = vmatpush2.msra.mxu0 0.0
    %5131 = vmatprep.subr.mxu0 0.0
    %5132 = vmatpush2.msra.mxu0 0.0
    %5133 = vmatprep.subr.mxu0 0.0
    %5134 = vmatpush2.msra.mxu0 0.0
    %5135 = vmatprep.subr.mxu0 0.0
    %5136 = vmatpush2.msra.mxu0 0.0
    %5137 = vmatprep.subr.mxu0 0.0
    %5138 = vmatpush2.msra.mxu0 0.0
    %5139 = vmatprep.subr.mxu0 0.0
    %5140 = vmatpush2.msra.mxu0 0.0
    %5141 = vmatprep.subr.mxu0 0.0
    %5142 = vmatpush2.msra.mxu0 0.0
    %5143 = vmatprep.subr.mxu0 0.0
    %5144 = vmatpush2.msra.mxu0 0.0
    %5145 = vmatprep.subr.mxu0 0.0
    %5146 = vmatpush2.msra.mxu0 0.0
    %5147 = vmatprep.subr.mxu0 0.0
    %5148 = vmatpush2.msra.mxu0 0.0
    %5149 = vmatprep.subr.mxu0 0.0
    %5150 = vmatpush2.msra.mxu0 0.0
    %5151 = vmatprep.subr.mxu0 0.0
    %5152 = vmatpush2.msra.mxu0 0.0
    %5153 = vmatprep.subr.mxu0 0.0
    %5154 = vmatpush2.msra.mxu0 0.0
    %5155 = vmatprep.subr.mxu0 0.0
    %5156 = vmatpush2.msra.mxu0 0.0
    %5157 = vmatprep.mubr.f32.mxu0 0.0
    %5158 = vmatmul.mubr.f32.gmra.mxu0 %v5088
    %v5159 = vpop.f32.mrf.mxu0
    %v5160 = vadd.f32 %v5084, %v5159
    %v5161 = vpop.f32.mrf.mxu0
    %5162 = vmatprep.mubr.f32.mxu0 0.0
    %5163 = vmatmul.mubr.f32.gmra.mxu0 %v5091
    %v5164 = vpop.f32.mrf.mxu0
    %v5165 = vadd.f32 %v5084, %v5164
    %v5166 = vpop.f32.mrf.mxu0
    %5167 = vdwg.mxu0
    %vm5168 = vcmask 56320
    %v5169 = vsel %vm5168, %v5160, -inf
    %5170 = vmax.xlane.f32.xlu0 %v5169
    %v5171 = vpop.xlane.xlu0 %5170
    %v5172 = vsel %vm5168, %v5165, -inf
    %5173 = vmax.xlane.f32.xlu0 %v5172
    %v5174 = vpop.xlane.xlu0 %5173
    %v5175 = vsub.f32 %v5160, %v5171
    %v5176 = vsub.f32 %v5165, %v5174
    %v5177 = vmul.f32 %v5175, 1.442695
    %v5178 = vpow.pop %v5177
    %v5179 = vmul.f32 %v5176, 1.442695
    %v5180 = vpow.pop %v5179
    %v5181 = vsel %vm5168, %v5178, 0.0
    %5182 = vadd.xlane.f32.xlu0 %v5181
    %v5183 = vpop.xlane.xlu0 %5182
    %v5184 = vsel %vm5168, %v5180, 0.0
    %5185 = vadd.xlane.f32.xlu0 %v5184
    %v5186 = vpop.xlane.xlu0 %5185
    %v5187 = vlog2.pop %v5183
    %v5188 = vmul.f32 %v5187, 0.6931472
    %v5189 = vlog2.pop %v5186
    %v5190 = vmul.f32 %v5189, 0.6931472
    %v5191 = vadd.f32 %v5171, %v5188
    %v5192 = vadd.f32 %v5174, %v5190
    %v5193 = vsub.f32 %v5160, %v5191
    %v5194 = vsub.f32 %v5165, %v5192
    %5195 = vst.msk [vmem:[%s17] sm:$0xff] %vm5168, %v5193
    %5196 = vst.msk [vmem:[%s17 + $0x8] sm:$0xff] %vm5168, %v5194
    %v5197 = vld [vmem:[%s2] sm:$0xff]
    %v5198 = vld [vmem:[%s2 + $0x8] sm:$0xff]
    %5199 = vmatprep.subr.mxu0 0.0
    %5200 = vmatpush1.msra.mxu0 0.0
    %5201 = vmatprep.subr.mxu0 0.0
    %5202 = vmatpush1.msra.mxu0 0.0
    %5203 = vmatprep.subr.mxu0 0.0
    %5204 = vmatpush1.msra.mxu0 0.0
    %5205 = vmatprep.subr.mxu0 0.0
    %5206 = vmatpush1.msra.mxu0 0.0
    %5207 = vmatprep.subr.mxu0 0.0
    %5208 = vmatpush1.msra.mxu0 0.0
    %5209 = vmatprep.subr.mxu0 0.0
    %5210 = vmatpush1.msra.mxu0 0.0
    %5211 = vmatprep.subr.mxu0 0.0
    %5212 = vmatpush1.msra.mxu0 0.0
    %5213 = vmatprep.subr.mxu0 0.0
    %5214 = vmatpush1.msra.mxu0 0.0
    %5215 = vmatprep.subr.mxu0 0.0
    %5216 = vmatpush1.msra.mxu0 0.0
    %5217 = vmatprep.subr.mxu0 0.0
    %5218 = vmatpush1.msra.mxu0 0.0
    %5219 = vmatprep.subr.mxu0 0.0
    %5220 = vmatpush1.msra.mxu0 0.0
    %5221 = vmatprep.subr.mxu0 0.0
    %5222 = vmatpush1.msra.mxu0 0.0
    %5223 = vmatprep.subr.mxu0 0.0
    %5224 = vmatpush1.msra.mxu0 0.0
    %5225 = vmatprep.subr.mxu0 0.0
    %5226 = vmatpush1.msra.mxu0 0.0
    %5227 = vmatprep.subr.mxu0 0.0
    %5228 = vmatpush1.msra.mxu0 %v5198
    %5229 = vmatprep.subr.mxu0 0.0
    %5230 = vmatpush1.msra.mxu0 %v5197
    %5231 = vmatprep.subr.mxu0 0.0
    %5232 = vmatpush2.msra.mxu0 0.0
    %5233 = vmatprep.subr.mxu0 0.0
    %5234 = vmatpush2.msra.mxu0 0.0
    %5235 = vmatprep.subr.mxu0 0.0
    %5236 = vmatpush2.msra.mxu0 0.0
    %5237 = vmatprep.subr.mxu0 0.0
    %5238 = vmatpush2.msra.mxu0 0.0
    %5239 = vmatprep.subr.mxu0 0.0
    %5240 = vmatpush2.msra.mxu0 0.0
    %5241 = vmatprep.subr.mxu0 0.0
    %5242 = vmatpush2.msra.mxu0 0.0
    %5243 = vmatprep.subr.mxu0 0.0
    %5244 = vmatpush2.msra.mxu0 0.0
    %5245 = vmatprep.subr.mxu0 0.0
    %5246 = vmatpush2.msra.mxu0 0.0
    %5247 = vmatprep.subr.mxu0 0.0
    %5248 = vmatpush2.msra.mxu0 0.0
    %5249 = vmatprep.subr.mxu0 0.0
    %5250 = vmatpush2.msra.mxu0 0.0
    %5251 = vmatprep.subr.mxu0 0.0
    %5252 = vmatpush2.msra.mxu0 0.0
    %5253 = vmatprep.subr.mxu0 0.0
    %5254 = vmatpush2.msra.mxu0 0.0
    %5255 = vmatprep.subr.mxu0 0.0
    %5256 = vmatpush2.msra.mxu0 0.0
    %5257 = vmatprep.subr.mxu0 0.0
    %5258 = vmatpush2.msra.mxu0 0.0
    %5259 = vmatprep.subr.mxu0 0.0
    %5260 = vmatpush2.msra.mxu0 0.0
    %5261 = vmatprep.subr.mxu0 0.0
    %5262 = vmatpush2.msra.mxu0 0.0
    %5263 = vmatprep.mubr.f32.mxu0 0.0
    %5264 = vmatmul.mubr.f32.gmra.mxu0 %v4897
    %v5265 = vpop.f32.mrf.mxu0
    %v5266 = vadd.f32 0.0, %v5265
    %v5267 = vpop.f32.mrf.mxu0
    %5268 = vmatprep.mubr.f32.mxu0 0.0
    %5269 = vmatmul.mubr.f32.gmra.mxu0 %v4900
    %v5270 = vpop.f32.mrf.mxu0
    %v5271 = vadd.f32 0.0, %v5270
    %v5272 = vpop.f32.mrf.mxu0
    %5273 = vdwg.mxu0
    %vm5274 = vcmask 64512
    %5275 = vst.msk [vmem:[#allocation16] sm:$0xff] %vm5274, %v5266
    %5276 = vst.msk [vmem:[#allocation16 + $0x8] sm:$0xff] %vm5274, %v5271
    // Predicated region
    $region98: #{gru_model_forward.1} parent=1 // pred_check
      _
    $region99: #{gru_model_forward.1} parent=1 // pred_check_branch
      %5278 = sbr.rel (0) target = $region101
    $region100: #{gru_model_forward.1} parent=1 // pred_region
      _
    $region101: #{gru_model_forward.1} parent=1 // pred_fallthru
      _
    // Predicated region
    $region102: #{gru_model_forward.1} parent=1 // pred_check
      _
    $region103: #{gru_model_forward.1} parent=1 // pred_check_branch
      %5280 = sbr.rel (0) target = $region105
    $region104: #{gru_model_forward.1} parent=1 // pred_region
      %s5282 = ssub.s32 256, 256
      %5283 = vsyncadd [#allocation6], %s5282
      %s5284 = sshll.u32 [#allocation16], 4
      %s5285 = int_to_ptr.vmem [resolvable:$true] %s5284
      %5290 = dma.vmem_to_hbm [thread:$0]  %s5285, 256, %s18, [#allocation6], 128, 128, 8
    $region105: #{gru_model_forward.1} parent=1 // pred_fallthru
      _
    // Predicated region
    $region106: #{gru_model_forward.1} parent=1 // pred_check
      _
    $region107: #{gru_model_forward.1} parent=1 // pred_check_branch
      %5292 = sbr.rel (0) target = $region109
    $region108: #{gru_model_forward.1} parent=1 // pred_region
      %s5294 = ssub.s32 256, 256
      %5295 = vsyncadd [#allocation18], %s5294
      %s5296 = sshll.u32 [#allocation17], 4
      %s5297 = int_to_ptr.vmem [resolvable:$true] %s5296
      %5302 = dma.vmem_to_hbm [thread:$0]  %s5297, 256, %s19, [#allocation18], 128, 128, 8
    $region109: #{gru_model_forward.1} parent=1 // pred_fallthru
      _
    // Predicated region
    $region110: #{gru_model_forward.1} parent=1 // pred_check
      _
    $region111: #{gru_model_forward.1} parent=1 // pred_check_branch
      %5304 = sbr.rel (0) target = $region113
    $region112: #{gru_model_forward.1} parent=1 // pred_region
      _
    $region113: #{gru_model_forward.1} parent=1 // pred_fallthru
      _
    // Predicated region
    $region114: #{gru_model_forward.1} parent=1 // pred_check
      _
    $region115: #{gru_model_forward.1} parent=1 // pred_check_branch
      %5306 = sbr.rel (0) target = $region117
    $region116: #{gru_model_forward.1} parent=1 // pred_region
      %5307 = dma.done [#allocation6], 256
    $region117: #{gru_model_forward.1} parent=1 // pred_fallthru
      _
    // Predicated region
    $region118: #{gru_model_forward.1} parent=1 // pred_check
      _
    $region119: #{gru_model_forward.1} parent=1 // pred_check_branch
      %5309 = sbr.rel (0) target = $region121
    $region120: #{gru_model_forward.1} parent=1 // pred_region
      %5310 = dma.done [#allocation18], 256
    $region121: #{gru_model_forward.1} parent=1 // pred_fallthru
      _
    %5311 = vsyncpa [#allocation5], 1
    %5312 = vsyncpa [#allocation8], 1
    %5313 = vsyncpa [#allocation11], 1
    %5314 = vsyncpa [#allocation14], 1
    %5315 = vsyncpa [#allocation6], 1
    %5316 = vsyncpa [#allocation18], 1

</llo_original>
